<compile_context>
chip_gen: v6e
topology: v6e:2x2x1
jax: 0.10.0
libtpu: 0.0.40
codegen_flags: <defaults>
</compile_context>

<pallas_src>
import math

import jax
import jax.numpy as jnp
from jax import lax
from jax.experimental import pallas as pl
from jax.experimental.pallas import tpu as pltpu

# ---------------- configuration (small synthetic sizes) ----------------
BERT_FEATURE_DIM = 128          # args.bert_feature_dim
NUM_HEADS = 4                   # bert_config.num_attention_heads
HEAD_DIM = BERT_FEATURE_DIM // NUM_HEADS
INTERMEDIATE_SIZE = 256         # bert_config.intermediate_size
LSTM_HIDDEN = 128               # fixed by the module
NUM_CLASSES = 4                 # len(sentiment2id)  (synthetic choice)
CLS_PAD = 128                   # lane-dense padded classifier width
BLOCK_NUM = 2                   # args.block_num -> max(1, 2 - 1) = 1 Pointer_Block
LN_EPS = 1e-12

_VMEM = pl.BlockSpec(memory_space=pltpu.MemorySpace.VMEM)

_BLOCK_PARAM_KEYS = (
    "wih0", "whh0", "b0", "wih1", "whh1", "b1",
    "dense_w", "dense_b", "q_w", "q_b", "kv_w", "kv_b",
    "ao_w", "ao_b", "ao_ln_g", "ao_ln_b",
    "i_w", "i_b", "o_w", "o_b", "o_ln_g", "o_ln_b",
)


# ---------------- shared Pointer_Block math (traced inside kernels) ----------
def _pointer_block_math(
        hidden_ref, enc_ref,
        wih0_ref, whh0_ref, b0_ref,
        wih1_ref, whh1_ref, b1_ref,
        dw_ref, db_ref,
        qw_ref, qb_ref,
        kvw_ref, kvb_ref,
        aow_ref, aob_ref, aog_ref, aobeta_ref,
        iw_ref, ib_ref,
        ow_ref, ob_ref, og_ref, obeta_ref):
    B, S, D = hidden_ref.shape
    Senc = enc_ref.shape[1]
    H = LSTM_HIDDEN

    def mm(x_f32, w_ref, b_ref=None):
        # bf16 MXU inputs, f32 accumulation.
        acc = jnp.dot(x_f32.astype(jnp.bfloat16), w_ref[...],
                      preferred_element_type=jnp.float32)
        if b_ref is not None:
            acc = acc + b_ref[...]
        return acc

    def layer_norm(x, g_ref, beta_ref):
        mean = jnp.mean(x, axis=-1, keepdims=True)
        var = jnp.mean(jnp.square(x - mean), axis=-1, keepdims=True)
        return (x - mean) * lax.rsqrt(var + LN_EPS) * g_ref[...] + beta_ref[...]

    hid2d = hidden_ref[...].reshape(B * S, D)                    # (B*S, D) f32

    # ---- 2-layer LSTM; time loop statically unrolled (S is tiny & static) ----
    def lstm_layer(x2d, wih_ref, whh_ref, b_ref):
        # hoisted input-to-hidden matmul for all timesteps at once
        gx = mm(x2d, wih_ref, b_ref).reshape(B, S, 4 * H)        # (B, S, 4H) f32
        h = jnp.zeros((B, H), jnp.float32)
        c = jnp.zeros((B, H), jnp.float32)
        hs = []
        for t in range(S):                                       # static unroll
            gates = gx[:, t, :] + mm(h, whh_ref)                 # (B, 4H)
            i = jax.nn.sigmoid(gates[:, 0 * H:1 * H])
            f = jax.nn.sigmoid(gates[:, 1 * H:2 * H])
            g = jnp.tanh(gates[:, 2 * H:3 * H])
            o = jax.nn.sigmoid(gates[:, 3 * H:4 * H])
            c = f * c + i * g
            h = o * jnp.tanh(c)
            hs.append(h)
        return jnp.stack(hs, axis=1).reshape(B * S, H)           # batch-major

    h_all = lstm_layer(hid2d, wih0_ref, whh0_ref, b0_ref)
    h_all = lstm_layer(h_all, wih1_ref, whh1_ref, b1_ref)

    # ---- dense after LSTM, Q projection, fused K/V projection ----
    lstm_dense = mm(h_all, dw_ref, db_ref)                       # (B*S, D)
    scale = 1.0 / math.sqrt(HEAD_DIM)
    q = mm(lstm_dense, qw_ref, qb_ref) * scale                   # scale folded in
    enc2d = enc_ref[...].reshape(B * Senc, D)
    kv = mm(enc2d, kvw_ref, kvb_ref)                             # (B*Senc, 2D)

    # cast attention operands to bf16 exactly once
    q_bf = q.astype(jnp.bfloat16)
    k_bf = kv[:, :D].astype(jnp.bfloat16)
    v_bf = kv[:, D:].astype(jnp.bfloat16)

    # ---- multi-head cross attention (heads = static 32-lane slices) ----
    # NOTE: the reference adds a (B,1,Sq,1) additive mask to the scores; it is
    # a per-query-row constant, which cancels in the row softmax, so it is
    # dropped here (identical forward semantics in exact arithmetic).
    ctx_rows = []
    for b in range(B):                                           # static unroll
        qb = q_bf[b * S:(b + 1) * S, :]                          # (S, D)
        kb = k_bf[b * Senc:(b + 1) * Senc, :]                    # (Senc, D)
        vb = v_bf[b * Senc:(b + 1) * Senc, :]
        heads = []
        for hh in range(NUM_HEADS):
            lo, hi = hh * HEAD_DIM, (hh + 1) * HEAD_DIM
            s = jnp.einsum("qd,kd->qk", qb[:, lo:hi], kb[:, lo:hi],
                           preferred_element_type=jnp.float32)
            s = s - jnp.max(s, axis=-1, keepdims=True)
            p = jnp.exp(s)
            p = p * pl.reciprocal(jnp.sum(p, axis=-1, keepdims=True), approx=True)
            heads.append(jnp.dot(p.astype(jnp.bfloat16), vb[:, lo:hi],
                                 preferred_element_type=jnp.float32))
        ctx_rows.append(jnp.concatenate(heads, axis=-1))         # (S, D)
    ctx = jnp.concatenate(ctx_rows, axis=0)                      # (B*S, D)

    # ---- attention output: dense + residual + LayerNorm (fused) ----
    attn_out = layer_norm(mm(ctx, aow_ref, aob_ref) + hid2d,
                          aog_ref, aobeta_ref)

    # ---- Intermediate (gelu) + Output dense + residual + LayerNorm (fused) ---
    inter = jax.nn.gelu(mm(attn_out, iw_ref, ib_ref), approximate=True)
    layer_out = layer_norm(mm(inter, ow_ref, ob_ref) + attn_out,
                           og_ref, obeta_ref)
    return layer_out, (B, S, D)                                  # (B*S, D) f32


# ---------------- kernels ----------------
def _pointer_block_kernel(*refs):
    *ins, out_ref = refs
    layer_out, (B, S, D) = _pointer_block_math(*ins)
    out_ref[...] = layer_out.reshape(B, S, D).astype(out_ref.dtype)


def _pointer_block_cls_kernel(*refs):
    # last two inputs are the (lane-padded) classifier weight / bias
    *ins, cls_w_ref, cls_b_ref, out_ref = refs
    layer_out, _ = _pointer_block_math(*ins)
    out_ref[...] = (jnp.dot(layer_out.astype(jnp.bfloat16), cls_w_ref[...],
                            preferred_element_type=jnp.float32)
                    + cls_b_ref[...]).astype(out_ref.dtype)


def pointer_block_forward(p, hidden_embedding, encoder_embedding):
    B, S, D = hidden_embedding.shape
    args = (hidden_embedding, encoder_embedding) + tuple(
        p[k] for k in _BLOCK_PARAM_KEYS)
    return pl.pallas_call(
        _pointer_block_kernel,
        out_shape=jax.ShapeDtypeStruct((B, S, D), jnp.float32),
        in_specs=[_VMEM] * len(args),
        out_specs=_VMEM,
    )(*args)


def pointer_block_cls_forward(p, hidden_embedding, encoder_embedding,
                              cls_w, cls_b):
    B, S, _ = hidden_embedding.shape
    args = (hidden_embedding, encoder_embedding) + tuple(
        p[k] for k in _BLOCK_PARAM_KEYS) + (cls_w, cls_b)
    return pl.pallas_call(
        _pointer_block_cls_kernel,
        out_shape=jax.ShapeDtypeStruct((B * S, CLS_PAD), jnp.float32),
        in_specs=[_VMEM] * len(args),
        out_specs=_VMEM,
    )(*args)


# ---------------- module forward ----------------
def step_2_reverse0_forward(params, reverse_spans_embedding, reverse_span_mask,
                            all_reverse_opinion_tensor, forward_embedding):
    # forward_embedding is unused by the reference forward pass.
    # reverse_span_mask (2-D, mask_for_encoder=False) only adds a per-query-row
    # constant to the attention scores, which the row softmax cancels -> no-op.
    del forward_embedding, reverse_span_mask
    x = reverse_spans_embedding
    blocks = params["blocks"]
    for blk in blocks[:-1]:
        x = pointer_block_forward(blk, x, all_reverse_opinion_tensor)
    B, S, _ = x.shape
    logits_pad = pointer_block_cls_forward(
        blocks[-1], x, all_reverse_opinion_tensor,
        params["cls_w"], params["cls_b"])                        # (B*S, 128)
    return logits_pad[:, :NUM_CLASSES].reshape(B, S, NUM_CLASSES)


# ---------------- deterministic parameter init ----------------
def init_params(seed=0):
    keys = iter(jax.random.split(jax.random.PRNGKey(seed), 128))

    def w_init(shape, scale=0.02):
        # matmul operands stored in bf16 (MXU-native, half the DMA bytes)
        return (scale * jax.random.normal(next(keys), shape, jnp.float32)
                ).astype(jnp.bfloat16)

    def b_init(n):
        return jnp.zeros((1, n), jnp.float32)

    D, H, I = BERT_FEATURE_DIM, LSTM_HIDDEN, INTERMEDIATE_SIZE
    num_blocks = max(1, BLOCK_NUM - 1)
    blocks = []
    for _ in range(num_blocks):
        p = {}
        p["wih0"] = w_init((D, 4 * H), 0.05)
        p["whh0"] = w_init((H, 4 * H), 0.05)
        p["b0"] = b_init(4 * H)
        p["wih1"] = w_init((H, 4 * H), 0.05)
        p["whh1"] = w_init((H, 4 * H), 0.05)
        p["b1"] = b_init(4 * H)
        p["dense_w"] = w_init((H, D)); p["dense_b"] = b_init(D)
        p["q_w"] = w_init((D, D));     p["q_b"] = b_init(D)
        p["kv_w"] = w_init((D, 2 * D)); p["kv_b"] = b_init(2 * D)   # fused K|V
        p["ao_w"] = w_init((D, D));    p["ao_b"] = b_init(D)
        p["ao_ln_g"] = jnp.ones((1, D), jnp.float32)
        p["ao_ln_b"] = jnp.zeros((1, D), jnp.float32)
        p["i_w"] = w_init((D, I));     p["i_b"] = b_init(I)
        p["o_w"] = w_init((I, D));     p["o_b"] = b_init(D)
        p["o_ln_g"] = jnp.ones((1, D), jnp.float32)
        p["o_ln_b"] = jnp.zeros((1, D), jnp.float32)
        blocks.append(p)

    # classifier padded to 128 lanes; only the first NUM_CLASSES columns are real
    cls_w = jnp.zeros((D, CLS_PAD), jnp.float32)
    cls_w = cls_w.at[:, :NUM_CLASSES].set(
        0.02 * jax.random.normal(next(keys), (D, NUM_CLASSES), jnp.float32))
    return {"blocks": blocks,
            "cls_w": cls_w.astype(jnp.bfloat16),
            "cls_b": jnp.zeros((1, CLS_PAD), jnp.float32)}


# ---------------- main ----------------
if __name__ == "__main__":
    B, S, Senc, D = 2, 8, 8, BERT_FEATURE_DIM
    k1, k2, k3 = jax.random.split(jax.random.PRNGKey(0), 3)
    reverse_spans_embedding = jax.random.normal(k1, (B, S, D), jnp.float32)
    all_reverse_opinion_tensor = jax.random.normal(k2, (B, Senc, D), jnp.float32)
    forward_embedding = jax.random.normal(k3, (B, S, D), jnp.float32)  # unused
    reverse_span_mask = jnp.concatenate(
        [jnp.ones((B, S - 2), jnp.float32), jnp.zeros((B, 2), jnp.float32)], axis=1)

    params = init_params(0)
    fwd = jax.jit(step_2_reverse0_forward)
    out = fwd(params, reverse_spans_embedding, reverse_span_mask,
              all_reverse_opinion_tensor, forward_embedding)
    jax.block_until_ready(out)
    assert out.shape == (B, S, NUM_CLASSES) and out.dtype == jnp.float32
    # TODO(synk): dropout layers (Attention/Output) are identity (eval mode);
    # attention probabilities ("attention_result") are discarded by the
    # reference module and therefore not returned.
    print("KERNEL_OK")
</pallas_src>

<mosaic_0001>
module attributes {stable_mosaic.version = 11 : i64} {
  func.func @_pointer_block_cls_kernel(%arg0: memref<2x8x128xf32, #tpu.memory_space<vmem>>, %arg1: memref<2x8x128xf32, #tpu.memory_space<vmem>>, %arg2: memref<128x512xbf16, #tpu.memory_space<vmem>>, %arg3: memref<128x512xbf16, #tpu.memory_space<vmem>>, %arg4: memref<1x512xf32, #tpu.memory_space<vmem>>, %arg5: memref<128x512xbf16, #tpu.memory_space<vmem>>, %arg6: memref<128x512xbf16, #tpu.memory_space<vmem>>, %arg7: memref<1x512xf32, #tpu.memory_space<vmem>>, %arg8: memref<128x128xbf16, #tpu.memory_space<vmem>>, %arg9: memref<1x128xf32, #tpu.memory_space<vmem>>, %arg10: memref<128x128xbf16, #tpu.memory_space<vmem>>, %arg11: memref<1x128xf32, #tpu.memory_space<vmem>>, %arg12: memref<128x256xbf16, #tpu.memory_space<vmem>>, %arg13: memref<1x256xf32, #tpu.memory_space<vmem>>, %arg14: memref<128x128xbf16, #tpu.memory_space<vmem>>, %arg15: memref<1x128xf32, #tpu.memory_space<vmem>>, %arg16: memref<1x128xf32, #tpu.memory_space<vmem>>, %arg17: memref<1x128xf32, #tpu.memory_space<vmem>>, %arg18: memref<128x256xbf16, #tpu.memory_space<vmem>>, %arg19: memref<1x256xf32, #tpu.memory_space<vmem>>, %arg20: memref<256x128xbf16, #tpu.memory_space<vmem>>, %arg21: memref<1x128xf32, #tpu.memory_space<vmem>>, %arg22: memref<1x128xf32, #tpu.memory_space<vmem>>, %arg23: memref<1x128xf32, #tpu.memory_space<vmem>>, %arg24: memref<128x128xbf16, #tpu.memory_space<vmem>>, %arg25: memref<1x128xf32, #tpu.memory_space<vmem>>, %arg26: memref<16x128xf32, #tpu.memory_space<vmem>>) attributes {dimension_semantics = [], scalar_prefetch = 0 : i64, scratch_operands = 0 : i64, tpu.core_type = #tpu.core_type<tc>} {
    %c0 = arith.constant 0 : index
    %c0_0 = arith.constant 0 : index
    %c0_1 = arith.constant 0 : index
    %0 = vector.load %arg0[%c0, %c0_0, %c0_1] : memref<2x8x128xf32, #tpu.memory_space<vmem>>, vector<2x8x128xf32>
    %1 = vector.shape_cast %0 : vector<2x8x128xf32> to vector<16x128xf32>
    %2 = arith.truncf %1 : vector<16x128xf32> to vector<16x128xbf16>
    %c0_2 = arith.constant 0 : index
    %c0_3 = arith.constant 0 : index
    %3 = vector.load %arg2[%c0_2, %c0_3] : memref<128x512xbf16, #tpu.memory_space<vmem>>, vector<128x512xbf16>
    %cst = arith.constant dense<0.000000e+00> : vector<16x512xf32>
    %4 = tpu.matmul %2, %3, %cst {dimension_numbers = #tpu.dot_dimension_numbers<[1], [0], [0], [1], [0, 0, 1, 1], [], []>} : vector<16x128xbf16>, vector<128x512xbf16>, vector<16x512xf32> -> vector<16x512xf32>
    %c0_4 = arith.constant 0 : index
    %c0_5 = arith.constant 0 : index
    %5 = vector.load %arg4[%c0_4, %c0_5] : memref<1x512xf32, #tpu.memory_space<vmem>>, vector<1x512xf32>
    %6 = vector.broadcast %5 : vector<1x512xf32> to vector<16x512xf32>
    %7 = arith.addf %4, %6 : vector<16x512xf32>
    %8 = vector.shape_cast %7 : vector<16x512xf32> to vector<2x8x512xf32>
    %cst_6 = arith.constant 0.000000e+00 : f32
    %9 = vector.broadcast %cst_6 : f32 to vector<2x128xf32>
    %cst_7 = arith.constant 0.000000e+00 : f32
    %10 = vector.broadcast %cst_7 : f32 to vector<2x128xf32>
    %11 = vector.extract_strided_slice %8 {offsets = [0, 0, 0], sizes = [2, 1, 512], strides = [1, 1, 1]} : vector<2x8x512xf32> to vector<2x1x512xf32>
    %12 = vector.shape_cast %11 : vector<2x1x512xf32> to vector<2x512xf32>
    %13 = arith.truncf %9 : vector<2x128xf32> to vector<2x128xbf16>
    %c0_8 = arith.constant 0 : index
    %c0_9 = arith.constant 0 : index
    %14 = vector.load %arg3[%c0_8, %c0_9] : memref<128x512xbf16, #tpu.memory_space<vmem>>, vector<128x512xbf16>
    %cst_10 = arith.constant dense<0.000000e+00> : vector<2x512xf32>
    %15 = tpu.matmul %13, %14, %cst_10 {dimension_numbers = #tpu.dot_dimension_numbers<[1], [0], [0], [1], [0, 0, 1, 1], [], []>} : vector<2x128xbf16>, vector<128x512xbf16>, vector<2x512xf32> -> vector<2x512xf32>
    %16 = arith.addf %12, %15 : vector<2x512xf32>
    %17 = vector.extract_strided_slice %16 {offsets = [0, 0], sizes = [2, 128], strides = [1, 1]} : vector<2x512xf32> to vector<2x128xf32>
    %18 = arith.negf %17 : vector<2x128xf32>
    %19 = math.exp %18 : vector<2x128xf32>
    %cst_11 = arith.constant 1.000000e+00 : f32
    %20 = vector.broadcast %cst_11 : f32 to vector<2x128xf32>
    %21 = arith.addf %20, %19 : vector<2x128xf32>
    %22 = arith.divf %20, %21 : vector<2x128xf32>
    %23 = vector.extract_strided_slice %16 {offsets = [0, 128], sizes = [2, 128], strides = [1, 1]} : vector<2x512xf32> to vector<2x128xf32>
    %24 = arith.negf %23 : vector<2x128xf32>
    %25 = math.exp %24 : vector<2x128xf32>
    %cst_12 = arith.constant 1.000000e+00 : f32
    %26 = vector.broadcast %cst_12 : f32 to vector<2x128xf32>
    %27 = arith.addf %26, %25 : vector<2x128xf32>
    %28 = arith.divf %26, %27 : vector<2x128xf32>
    %29 = vector.extract_strided_slice %16 {offsets = [0, 256], sizes = [2, 128], strides = [1, 1]} : vector<2x512xf32> to vector<2x128xf32>
    %30 = math.tanh %29 : vector<2x128xf32>
    %31 = vector.extract_strided_slice %16 {offsets = [0, 384], sizes = [2, 128], strides = [1, 1]} : vector<2x512xf32> to vector<2x128xf32>
    %32 = arith.negf %31 : vector<2x128xf32>
    %33 = math.exp %32 : vector<2x128xf32>
    %cst_13 = arith.constant 1.000000e+00 : f32
    %34 = vector.broadcast %cst_13 : f32 to vector<2x128xf32>
    %35 = arith.addf %34, %33 : vector<2x128xf32>
    %36 = arith.divf %34, %35 : vector<2x128xf32>
    %37 = arith.mulf %28, %10 : vector<2x128xf32>
    %38 = arith.mulf %22, %30 : vector<2x128xf32>
    %39 = arith.addf %37, %38 : vector<2x128xf32>
    %40 = math.tanh %39 : vector<2x128xf32>
    %41 = arith.mulf %36, %40 : vector<2x128xf32>
    %42 = vector.extract_strided_slice %8 {offsets = [0, 1, 0], sizes = [2, 1, 512], strides = [1, 1, 1]} : vector<2x8x512xf32> to vector<2x1x512xf32>
    %43 = vector.shape_cast %42 : vector<2x1x512xf32> to vector<2x512xf32>
    %44 = arith.truncf %41 : vector<2x128xf32> to vector<2x128xbf16>
    %c0_14 = arith.constant 0 : index
    %c0_15 = arith.constant 0 : index
    %45 = vector.load %arg3[%c0_14, %c0_15] : memref<128x512xbf16, #tpu.memory_space<vmem>>, vector<128x512xbf16>
    %cst_16 = arith.constant dense<0.000000e+00> : vector<2x512xf32>
    %46 = tpu.matmul %44, %45, %cst_16 {dimension_numbers = #tpu.dot_dimension_numbers<[1], [0], [0], [1], [0, 0, 1, 1], [], []>} : vector<2x128xbf16>, vector<128x512xbf16>, vector<2x512xf32> -> vector<2x512xf32>
    %47 = arith.addf %43, %46 : vector<2x512xf32>
    %48 = vector.extract_strided_slice %47 {offsets = [0, 0], sizes = [2, 128], strides = [1, 1]} : vector<2x512xf32> to vector<2x128xf32>
    %49 = arith.negf %48 : vector<2x128xf32>
    %50 = math.exp %49 : vector<2x128xf32>
    %cst_17 = arith.constant 1.000000e+00 : f32
    %51 = vector.broadcast %cst_17 : f32 to vector<2x128xf32>
    %52 = arith.addf %51, %50 : vector<2x128xf32>
    %53 = arith.divf %51, %52 : vector<2x128xf32>
    %54 = vector.extract_strided_slice %47 {offsets = [0, 128], sizes = [2, 128], strides = [1, 1]} : vector<2x512xf32> to vector<2x128xf32>
    %55 = arith.negf %54 : vector<2x128xf32>
    %56 = math.exp %55 : vector<2x128xf32>
    %cst_18 = arith.constant 1.000000e+00 : f32
    %57 = vector.broadcast %cst_18 : f32 to vector<2x128xf32>
    %58 = arith.addf %57, %56 : vector<2x128xf32>
    %59 = arith.divf %57, %58 : vector<2x128xf32>
    %60 = vector.extract_strided_slice %47 {offsets = [0, 256], sizes = [2, 128], strides = [1, 1]} : vector<2x512xf32> to vector<2x128xf32>
    %61 = math.tanh %60 : vector<2x128xf32>
    %62 = vector.extract_strided_slice %47 {offsets = [0, 384], sizes = [2, 128], strides = [1, 1]} : vector<2x512xf32> to vector<2x128xf32>
    %63 = arith.negf %62 : vector<2x128xf32>
    %64 = math.exp %63 : vector<2x128xf32>
    %cst_19 = arith.constant 1.000000e+00 : f32
    %65 = vector.broadcast %cst_19 : f32 to vector<2x128xf32>
    %66 = arith.addf %65, %64 : vector<2x128xf32>
    %67 = arith.divf %65, %66 : vector<2x128xf32>
    %68 = arith.mulf %59, %39 : vector<2x128xf32>
    %69 = arith.mulf %53, %61 : vector<2x128xf32>
    %70 = arith.addf %68, %69 : vector<2x128xf32>
    %71 = math.tanh %70 : vector<2x128xf32>
    %72 = arith.mulf %67, %71 : vector<2x128xf32>
    %73 = vector.extract_strided_slice %8 {offsets = [0, 2, 0], sizes = [2, 1, 512], strides = [1, 1, 1]} : vector<2x8x512xf32> to vector<2x1x512xf32>
    %74 = vector.shape_cast %73 : vector<2x1x512xf32> to vector<2x512xf32>
    %75 = arith.truncf %72 : vector<2x128xf32> to vector<2x128xbf16>
    %c0_20 = arith.constant 0 : index
    %c0_21 = arith.constant 0 : index
    %76 = vector.load %arg3[%c0_20, %c0_21] : memref<128x512xbf16, #tpu.memory_space<vmem>>, vector<128x512xbf16>
    %cst_22 = arith.constant dense<0.000000e+00> : vector<2x512xf32>
    %77 = tpu.matmul %75, %76, %cst_22 {dimension_numbers = #tpu.dot_dimension_numbers<[1], [0], [0], [1], [0, 0, 1, 1], [], []>} : vector<2x128xbf16>, vector<128x512xbf16>, vector<2x512xf32> -> vector<2x512xf32>
    %78 = arith.addf %74, %77 : vector<2x512xf32>
    %79 = vector.extract_strided_slice %78 {offsets = [0, 0], sizes = [2, 128], strides = [1, 1]} : vector<2x512xf32> to vector<2x128xf32>
    %80 = arith.negf %79 : vector<2x128xf32>
    %81 = math.exp %80 : vector<2x128xf32>
    %cst_23 = arith.constant 1.000000e+00 : f32
    %82 = vector.broadcast %cst_23 : f32 to vector<2x128xf32>
    %83 = arith.addf %82, %81 : vector<2x128xf32>
    %84 = arith.divf %82, %83 : vector<2x128xf32>
    %85 = vector.extract_strided_slice %78 {offsets = [0, 128], sizes = [2, 128], strides = [1, 1]} : vector<2x512xf32> to vector<2x128xf32>
    %86 = arith.negf %85 : vector<2x128xf32>
    %87 = math.exp %86 : vector<2x128xf32>
    %cst_24 = arith.constant 1.000000e+00 : f32
    %88 = vector.broadcast %cst_24 : f32 to vector<2x128xf32>
    %89 = arith.addf %88, %87 : vector<2x128xf32>
    %90 = arith.divf %88, %89 : vector<2x128xf32>
    %91 = vector.extract_strided_slice %78 {offsets = [0, 256], sizes = [2, 128], strides = [1, 1]} : vector<2x512xf32> to vector<2x128xf32>
    %92 = math.tanh %91 : vector<2x128xf32>
    %93 = vector.extract_strided_slice %78 {offsets = [0, 384], sizes = [2, 128], strides = [1, 1]} : vector<2x512xf32> to vector<2x128xf32>
    %94 = arith.negf %93 : vector<2x128xf32>
    %95 = math.exp %94 : vector<2x128xf32>
    %cst_25 = arith.constant 1.000000e+00 : f32
    %96 = vector.broadcast %cst_25 : f32 to vector<2x128xf32>
    %97 = arith.addf %96, %95 : vector<2x128xf32>
    %98 = arith.divf %96, %97 : vector<2x128xf32>
    %99 = arith.mulf %90, %70 : vector<2x128xf32>
    %100 = arith.mulf %84, %92 : vector<2x128xf32>
    %101 = arith.addf %99, %100 : vector<2x128xf32>
    %102 = math.tanh %101 : vector<2x128xf32>
    %103 = arith.mulf %98, %102 : vector<2x128xf32>
    %104 = vector.extract_strided_slice %8 {offsets = [0, 3, 0], sizes = [2, 1, 512], strides = [1, 1, 1]} : vector<2x8x512xf32> to vector<2x1x512xf32>
    %105 = vector.shape_cast %104 : vector<2x1x512xf32> to vector<2x512xf32>
    %106 = arith.truncf %103 : vector<2x128xf32> to vector<2x128xbf16>
    %c0_26 = arith.constant 0 : index
    %c0_27 = arith.constant 0 : index
    %107 = vector.load %arg3[%c0_26, %c0_27] : memref<128x512xbf16, #tpu.memory_space<vmem>>, vector<128x512xbf16>
    %cst_28 = arith.constant dense<0.000000e+00> : vector<2x512xf32>
    %108 = tpu.matmul %106, %107, %cst_28 {dimension_numbers = #tpu.dot_dimension_numbers<[1], [0], [0], [1], [0, 0, 1, 1], [], []>} : vector<2x128xbf16>, vector<128x512xbf16>, vector<2x512xf32> -> vector<2x512xf32>
    %109 = arith.addf %105, %108 : vector<2x512xf32>
    %110 = vector.extract_strided_slice %109 {offsets = [0, 0], sizes = [2, 128], strides = [1, 1]} : vector<2x512xf32> to vector<2x128xf32>
    %111 = arith.negf %110 : vector<2x128xf32>
    %112 = math.exp %111 : vector<2x128xf32>
    %cst_29 = arith.constant 1.000000e+00 : f32
    %113 = vector.broadcast %cst_29 : f32 to vector<2x128xf32>
    %114 = arith.addf %113, %112 : vector<2x128xf32>
    %115 = arith.divf %113, %114 : vector<2x128xf32>
    %116 = vector.extract_strided_slice %109 {offsets = [0, 128], sizes = [2, 128], strides = [1, 1]} : vector<2x512xf32> to vector<2x128xf32>
    %117 = arith.negf %116 : vector<2x128xf32>
    %118 = math.exp %117 : vector<2x128xf32>
    %cst_30 = arith.constant 1.000000e+00 : f32
    %119 = vector.broadcast %cst_30 : f32 to vector<2x128xf32>
    %120 = arith.addf %119, %118 : vector<2x128xf32>
    %121 = arith.divf %119, %120 : vector<2x128xf32>
    %122 = vector.extract_strided_slice %109 {offsets = [0, 256], sizes = [2, 128], strides = [1, 1]} : vector<2x512xf32> to vector<2x128xf32>
    %123 = math.tanh %122 : vector<2x128xf32>
    %124 = vector.extract_strided_slice %109 {offsets = [0, 384], sizes = [2, 128], strides = [1, 1]} : vector<2x512xf32> to vector<2x128xf32>
    %125 = arith.negf %124 : vector<2x128xf32>
    %126 = math.exp %125 : vector<2x128xf32>
    %cst_31 = arith.constant 1.000000e+00 : f32
    %127 = vector.broadcast %cst_31 : f32 to vector<2x128xf32>
    %128 = arith.addf %127, %126 : vector<2x128xf32>
    %129 = arith.divf %127, %128 : vector<2x128xf32>
    %130 = arith.mulf %121, %101 : vector<2x128xf32>
    %131 = arith.mulf %115, %123 : vector<2x128xf32>
    %132 = arith.addf %130, %131 : vector<2x128xf32>
    %133 = math.tanh %132 : vector<2x128xf32>
    %134 = arith.mulf %129, %133 : vector<2x128xf32>
    %135 = vector.extract_strided_slice %8 {offsets = [0, 4, 0], sizes = [2, 1, 512], strides = [1, 1, 1]} : vector<2x8x512xf32> to vector<2x1x512xf32>
    %136 = vector.shape_cast %135 : vector<2x1x512xf32> to vector<2x512xf32>
    %137 = arith.truncf %134 : vector<2x128xf32> to vector<2x128xbf16>
    %c0_32 = arith.constant 0 : index
    %c0_33 = arith.constant 0 : index
    %138 = vector.load %arg3[%c0_32, %c0_33] : memref<128x512xbf16, #tpu.memory_space<vmem>>, vector<128x512xbf16>
    %cst_34 = arith.constant dense<0.000000e+00> : vector<2x512xf32>
    %139 = tpu.matmul %137, %138, %cst_34 {dimension_numbers = #tpu.dot_dimension_numbers<[1], [0], [0], [1], [0, 0, 1, 1], [], []>} : vector<2x128xbf16>, vector<128x512xbf16>, vector<2x512xf32> -> vector<2x512xf32>
    %140 = arith.addf %136, %139 : vector<2x512xf32>
    %141 = vector.extract_strided_slice %140 {offsets = [0, 0], sizes = [2, 128], strides = [1, 1]} : vector<2x512xf32> to vector<2x128xf32>
    %142 = arith.negf %141 : vector<2x128xf32>
    %143 = math.exp %142 : vector<2x128xf32>
    %cst_35 = arith.constant 1.000000e+00 : f32
    %144 = vector.broadcast %cst_35 : f32 to vector<2x128xf32>
    %145 = arith.addf %144, %143 : vector<2x128xf32>
    %146 = arith.divf %144, %145 : vector<2x128xf32>
    %147 = vector.extract_strided_slice %140 {offsets = [0, 128], sizes = [2, 128], strides = [1, 1]} : vector<2x512xf32> to vector<2x128xf32>
    %148 = arith.negf %147 : vector<2x128xf32>
    %149 = math.exp %148 : vector<2x128xf32>
    %cst_36 = arith.constant 1.000000e+00 : f32
    %150 = vector.broadcast %cst_36 : f32 to vector<2x128xf32>
    %151 = arith.addf %150, %149 : vector<2x128xf32>
    %152 = arith.divf %150, %151 : vector<2x128xf32>
    %153 = vector.extract_strided_slice %140 {offsets = [0, 256], sizes = [2, 128], strides = [1, 1]} : vector<2x512xf32> to vector<2x128xf32>
    %154 = math.tanh %153 : vector<2x128xf32>
    %155 = vector.extract_strided_slice %140 {offsets = [0, 384], sizes = [2, 128], strides = [1, 1]} : vector<2x512xf32> to vector<2x128xf32>
    %156 = arith.negf %155 : vector<2x128xf32>
    %157 = math.exp %156 : vector<2x128xf32>
    %cst_37 = arith.constant 1.000000e+00 : f32
    %158 = vector.broadcast %cst_37 : f32 to vector<2x128xf32>
    %159 = arith.addf %158, %157 : vector<2x128xf32>
    %160 = arith.divf %158, %159 : vector<2x128xf32>
    %161 = arith.mulf %152, %132 : vector<2x128xf32>
    %162 = arith.mulf %146, %154 : vector<2x128xf32>
    %163 = arith.addf %161, %162 : vector<2x128xf32>
    %164 = math.tanh %163 : vector<2x128xf32>
    %165 = arith.mulf %160, %164 : vector<2x128xf32>
    %166 = vector.extract_strided_slice %8 {offsets = [0, 5, 0], sizes = [2, 1, 512], strides = [1, 1, 1]} : vector<2x8x512xf32> to vector<2x1x512xf32>
    %167 = vector.shape_cast %166 : vector<2x1x512xf32> to vector<2x512xf32>
    %168 = arith.truncf %165 : vector<2x128xf32> to vector<2x128xbf16>
    %c0_38 = arith.constant 0 : index
    %c0_39 = arith.constant 0 : index
    %169 = vector.load %arg3[%c0_38, %c0_39] : memref<128x512xbf16, #tpu.memory_space<vmem>>, vector<128x512xbf16>
    %cst_40 = arith.constant dense<0.000000e+00> : vector<2x512xf32>
    %170 = tpu.matmul %168, %169, %cst_40 {dimension_numbers = #tpu.dot_dimension_numbers<[1], [0], [0], [1], [0, 0, 1, 1], [], []>} : vector<2x128xbf16>, vector<128x512xbf16>, vector<2x512xf32> -> vector<2x512xf32>
    %171 = arith.addf %167, %170 : vector<2x512xf32>
    %172 = vector.extract_strided_slice %171 {offsets = [0, 0], sizes = [2, 128], strides = [1, 1]} : vector<2x512xf32> to vector<2x128xf32>
    %173 = arith.negf %172 : vector<2x128xf32>
    %174 = math.exp %173 : vector<2x128xf32>
    %cst_41 = arith.constant 1.000000e+00 : f32
    %175 = vector.broadcast %cst_41 : f32 to vector<2x128xf32>
    %176 = arith.addf %175, %174 : vector<2x128xf32>
    %177 = arith.divf %175, %176 : vector<2x128xf32>
    %178 = vector.extract_strided_slice %171 {offsets = [0, 128], sizes = [2, 128], strides = [1, 1]} : vector<2x512xf32> to vector<2x128xf32>
    %179 = arith.negf %178 : vector<2x128xf32>
    %180 = math.exp %179 : vector<2x128xf32>
    %cst_42 = arith.constant 1.000000e+00 : f32
    %181 = vector.broadcast %cst_42 : f32 to vector<2x128xf32>
    %182 = arith.addf %181, %180 : vector<2x128xf32>
    %183 = arith.divf %181, %182 : vector<2x128xf32>
    %184 = vector.extract_strided_slice %171 {offsets = [0, 256], sizes = [2, 128], strides = [1, 1]} : vector<2x512xf32> to vector<2x128xf32>
    %185 = math.tanh %184 : vector<2x128xf32>
    %186 = vector.extract_strided_slice %171 {offsets = [0, 384], sizes = [2, 128], strides = [1, 1]} : vector<2x512xf32> to vector<2x128xf32>
    %187 = arith.negf %186 : vector<2x128xf32>
    %188 = math.exp %187 : vector<2x128xf32>
    %cst_43 = arith.constant 1.000000e+00 : f32
    %189 = vector.broadcast %cst_43 : f32 to vector<2x128xf32>
    %190 = arith.addf %189, %188 : vector<2x128xf32>
    %191 = arith.divf %189, %190 : vector<2x128xf32>
    %192 = arith.mulf %183, %163 : vector<2x128xf32>
    %193 = arith.mulf %177, %185 : vector<2x128xf32>
    %194 = arith.addf %192, %193 : vector<2x128xf32>
    %195 = math.tanh %194 : vector<2x128xf32>
    %196 = arith.mulf %191, %195 : vector<2x128xf32>
    %197 = vector.extract_strided_slice %8 {offsets = [0, 6, 0], sizes = [2, 1, 512], strides = [1, 1, 1]} : vector<2x8x512xf32> to vector<2x1x512xf32>
    %198 = vector.shape_cast %197 : vector<2x1x512xf32> to vector<2x512xf32>
    %199 = arith.truncf %196 : vector<2x128xf32> to vector<2x128xbf16>
    %c0_44 = arith.constant 0 : index
    %c0_45 = arith.constant 0 : index
    %200 = vector.load %arg3[%c0_44, %c0_45] : memref<128x512xbf16, #tpu.memory_space<vmem>>, vector<128x512xbf16>
    %cst_46 = arith.constant dense<0.000000e+00> : vector<2x512xf32>
    %201 = tpu.matmul %199, %200, %cst_46 {dimension_numbers = #tpu.dot_dimension_numbers<[1], [0], [0], [1], [0, 0, 1, 1], [], []>} : vector<2x128xbf16>, vector<128x512xbf16>, vector<2x512xf32> -> vector<2x512xf32>
    %202 = arith.addf %198, %201 : vector<2x512xf32>
    %203 = vector.extract_strided_slice %202 {offsets = [0, 0], sizes = [2, 128], strides = [1, 1]} : vector<2x512xf32> to vector<2x128xf32>
    %204 = arith.negf %203 : vector<2x128xf32>
    %205 = math.exp %204 : vector<2x128xf32>
    %cst_47 = arith.constant 1.000000e+00 : f32
    %206 = vector.broadcast %cst_47 : f32 to vector<2x128xf32>
    %207 = arith.addf %206, %205 : vector<2x128xf32>
    %208 = arith.divf %206, %207 : vector<2x128xf32>
    %209 = vector.extract_strided_slice %202 {offsets = [0, 128], sizes = [2, 128], strides = [1, 1]} : vector<2x512xf32> to vector<2x128xf32>
    %210 = arith.negf %209 : vector<2x128xf32>
    %211 = math.exp %210 : vector<2x128xf32>
    %cst_48 = arith.constant 1.000000e+00 : f32
    %212 = vector.broadcast %cst_48 : f32 to vector<2x128xf32>
    %213 = arith.addf %212, %211 : vector<2x128xf32>
    %214 = arith.divf %212, %213 : vector<2x128xf32>
    %215 = vector.extract_strided_slice %202 {offsets = [0, 256], sizes = [2, 128], strides = [1, 1]} : vector<2x512xf32> to vector<2x128xf32>
    %216 = math.tanh %215 : vector<2x128xf32>
    %217 = vector.extract_strided_slice %202 {offsets = [0, 384], sizes = [2, 128], strides = [1, 1]} : vector<2x512xf32> to vector<2x128xf32>
    %218 = arith.negf %217 : vector<2x128xf32>
    %219 = math.exp %218 : vector<2x128xf32>
    %cst_49 = arith.constant 1.000000e+00 : f32
    %220 = vector.broadcast %cst_49 : f32 to vector<2x128xf32>
    %221 = arith.addf %220, %219 : vector<2x128xf32>
    %222 = arith.divf %220, %221 : vector<2x128xf32>
    %223 = arith.mulf %214, %194 : vector<2x128xf32>
    %224 = arith.mulf %208, %216 : vector<2x128xf32>
    %225 = arith.addf %223, %224 : vector<2x128xf32>
    %226 = math.tanh %225 : vector<2x128xf32>
    %227 = arith.mulf %222, %226 : vector<2x128xf32>
    %228 = vector.extract_strided_slice %8 {offsets = [0, 7, 0], sizes = [2, 1, 512], strides = [1, 1, 1]} : vector<2x8x512xf32> to vector<2x1x512xf32>
    %229 = vector.shape_cast %228 : vector<2x1x512xf32> to vector<2x512xf32>
    %230 = arith.truncf %227 : vector<2x128xf32> to vector<2x128xbf16>
    %c0_50 = arith.constant 0 : index
    %c0_51 = arith.constant 0 : index
    %231 = vector.load %arg3[%c0_50, %c0_51] : memref<128x512xbf16, #tpu.memory_space<vmem>>, vector<128x512xbf16>
    %cst_52 = arith.constant dense<0.000000e+00> : vector<2x512xf32>
    %232 = tpu.matmul %230, %231, %cst_52 {dimension_numbers = #tpu.dot_dimension_numbers<[1], [0], [0], [1], [0, 0, 1, 1], [], []>} : vector<2x128xbf16>, vector<128x512xbf16>, vector<2x512xf32> -> vector<2x512xf32>
    %233 = arith.addf %229, %232 : vector<2x512xf32>
    %234 = vector.extract_strided_slice %233 {offsets = [0, 0], sizes = [2, 128], strides = [1, 1]} : vector<2x512xf32> to vector<2x128xf32>
    %235 = arith.negf %234 : vector<2x128xf32>
    %236 = math.exp %235 : vector<2x128xf32>
    %cst_53 = arith.constant 1.000000e+00 : f32
    %237 = vector.broadcast %cst_53 : f32 to vector<2x128xf32>
    %238 = arith.addf %237, %236 : vector<2x128xf32>
    %239 = arith.divf %237, %238 : vector<2x128xf32>
    %240 = vector.extract_strided_slice %233 {offsets = [0, 128], sizes = [2, 128], strides = [1, 1]} : vector<2x512xf32> to vector<2x128xf32>
    %241 = arith.negf %240 : vector<2x128xf32>
    %242 = math.exp %241 : vector<2x128xf32>
    %cst_54 = arith.constant 1.000000e+00 : f32
    %243 = vector.broadcast %cst_54 : f32 to vector<2x128xf32>
    %244 = arith.addf %243, %242 : vector<2x128xf32>
    %245 = arith.divf %243, %244 : vector<2x128xf32>
    %246 = vector.extract_strided_slice %233 {offsets = [0, 256], sizes = [2, 128], strides = [1, 1]} : vector<2x512xf32> to vector<2x128xf32>
    %247 = math.tanh %246 : vector<2x128xf32>
    %248 = vector.extract_strided_slice %233 {offsets = [0, 384], sizes = [2, 128], strides = [1, 1]} : vector<2x512xf32> to vector<2x128xf32>
    %249 = arith.negf %248 : vector<2x128xf32>
    %250 = math.exp %249 : vector<2x128xf32>
    %cst_55 = arith.constant 1.000000e+00 : f32
    %251 = vector.broadcast %cst_55 : f32 to vector<2x128xf32>
    %252 = arith.addf %251, %250 : vector<2x128xf32>
    %253 = arith.divf %251, %252 : vector<2x128xf32>
    %254 = arith.mulf %245, %225 : vector<2x128xf32>
    %255 = arith.mulf %239, %247 : vector<2x128xf32>
    %256 = arith.addf %254, %255 : vector<2x128xf32>
    %257 = math.tanh %256 : vector<2x128xf32>
    %258 = arith.mulf %253, %257 : vector<2x128xf32>
    %259 = vector.shape_cast %41 : vector<2x128xf32> to vector<2x1x128xf32>
    %260 = vector.shape_cast %72 : vector<2x128xf32> to vector<2x1x128xf32>
    %261 = vector.shape_cast %103 : vector<2x128xf32> to vector<2x1x128xf32>
    %262 = vector.shape_cast %134 : vector<2x128xf32> to vector<2x1x128xf32>
    %263 = vector.shape_cast %165 : vector<2x128xf32> to vector<2x1x128xf32>
    %264 = vector.shape_cast %196 : vector<2x128xf32> to vector<2x1x128xf32>
    %265 = vector.shape_cast %227 : vector<2x128xf32> to vector<2x1x128xf32>
    %266 = vector.shape_cast %258 : vector<2x128xf32> to vector<2x1x128xf32>
    %267 = tpu.concatenate %259, %260, %261, %262, %263, %264, %265, %266 in 1 : vector<2x1x128xf32>, vector<2x1x128xf32>, vector<2x1x128xf32>, vector<2x1x128xf32>, vector<2x1x128xf32>, vector<2x1x128xf32>, vector<2x1x128xf32>, vector<2x1x128xf32> -> vector<2x8x128xf32>
    %268 = vector.shape_cast %267 : vector<2x8x128xf32> to vector<16x128xf32>
    %269 = arith.truncf %268 : vector<16x128xf32> to vector<16x128xbf16>
    %c0_56 = arith.constant 0 : index
    %c0_57 = arith.constant 0 : index
    %270 = vector.load %arg5[%c0_56, %c0_57] : memref<128x512xbf16, #tpu.memory_space<vmem>>, vector<128x512xbf16>
    %cst_58 = arith.constant dense<0.000000e+00> : vector<16x512xf32>
    %271 = tpu.matmul %269, %270, %cst_58 {dimension_numbers = #tpu.dot_dimension_numbers<[1], [0], [0], [1], [0, 0, 1, 1], [], []>} : vector<16x128xbf16>, vector<128x512xbf16>, vector<16x512xf32> -> vector<16x512xf32>
    %c0_59 = arith.constant 0 : index
    %c0_60 = arith.constant 0 : index
    %272 = vector.load %arg7[%c0_59, %c0_60] : memref<1x512xf32, #tpu.memory_space<vmem>>, vector<1x512xf32>
    %273 = vector.broadcast %272 : vector<1x512xf32> to vector<16x512xf32>
    %274 = arith.addf %271, %273 : vector<16x512xf32>
    %275 = vector.shape_cast %274 : vector<16x512xf32> to vector<2x8x512xf32>
    %cst_61 = arith.constant 0.000000e+00 : f32
    %276 = vector.broadcast %cst_61 : f32 to vector<2x128xf32>
    %cst_62 = arith.constant 0.000000e+00 : f32
    %277 = vector.broadcast %cst_62 : f32 to vector<2x128xf32>
    %278 = vector.extract_strided_slice %275 {offsets = [0, 0, 0], sizes = [2, 1, 512], strides = [1, 1, 1]} : vector<2x8x512xf32> to vector<2x1x512xf32>
    %279 = vector.shape_cast %278 : vector<2x1x512xf32> to vector<2x512xf32>
    %280 = arith.truncf %276 : vector<2x128xf32> to vector<2x128xbf16>
    %c0_63 = arith.constant 0 : index
    %c0_64 = arith.constant 0 : index
    %281 = vector.load %arg6[%c0_63, %c0_64] : memref<128x512xbf16, #tpu.memory_space<vmem>>, vector<128x512xbf16>
    %cst_65 = arith.constant dense<0.000000e+00> : vector<2x512xf32>
    %282 = tpu.matmul %280, %281, %cst_65 {dimension_numbers = #tpu.dot_dimension_numbers<[1], [0], [0], [1], [0, 0, 1, 1], [], []>} : vector<2x128xbf16>, vector<128x512xbf16>, vector<2x512xf32> -> vector<2x512xf32>
    %283 = arith.addf %279, %282 : vector<2x512xf32>
    %284 = vector.extract_strided_slice %283 {offsets = [0, 0], sizes = [2, 128], strides = [1, 1]} : vector<2x512xf32> to vector<2x128xf32>
    %285 = arith.negf %284 : vector<2x128xf32>
    %286 = math.exp %285 : vector<2x128xf32>
    %cst_66 = arith.constant 1.000000e+00 : f32
    %287 = vector.broadcast %cst_66 : f32 to vector<2x128xf32>
    %288 = arith.addf %287, %286 : vector<2x128xf32>
    %289 = arith.divf %287, %288 : vector<2x128xf32>
    %290 = vector.extract_strided_slice %283 {offsets = [0, 128], sizes = [2, 128], strides = [1, 1]} : vector<2x512xf32> to vector<2x128xf32>
    %291 = arith.negf %290 : vector<2x128xf32>
    %292 = math.exp %291 : vector<2x128xf32>
    %cst_67 = arith.constant 1.000000e+00 : f32
    %293 = vector.broadcast %cst_67 : f32 to vector<2x128xf32>
    %294 = arith.addf %293, %292 : vector<2x128xf32>
    %295 = arith.divf %293, %294 : vector<2x128xf32>
    %296 = vector.extract_strided_slice %283 {offsets = [0, 256], sizes = [2, 128], strides = [1, 1]} : vector<2x512xf32> to vector<2x128xf32>
    %297 = math.tanh %296 : vector<2x128xf32>
    %298 = vector.extract_strided_slice %283 {offsets = [0, 384], sizes = [2, 128], strides = [1, 1]} : vector<2x512xf32> to vector<2x128xf32>
    %299 = arith.negf %298 : vector<2x128xf32>
    %300 = math.exp %299 : vector<2x128xf32>
    %cst_68 = arith.constant 1.000000e+00 : f32
    %301 = vector.broadcast %cst_68 : f32 to vector<2x128xf32>
    %302 = arith.addf %301, %300 : vector<2x128xf32>
    %303 = arith.divf %301, %302 : vector<2x128xf32>
    %304 = arith.mulf %295, %277 : vector<2x128xf32>
    %305 = arith.mulf %289, %297 : vector<2x128xf32>
    %306 = arith.addf %304, %305 : vector<2x128xf32>
    %307 = math.tanh %306 : vector<2x128xf32>
    %308 = arith.mulf %303, %307 : vector<2x128xf32>
    %309 = vector.extract_strided_slice %275 {offsets = [0, 1, 0], sizes = [2, 1, 512], strides = [1, 1, 1]} : vector<2x8x512xf32> to vector<2x1x512xf32>
    %310 = vector.shape_cast %309 : vector<2x1x512xf32> to vector<2x512xf32>
    %311 = arith.truncf %308 : vector<2x128xf32> to vector<2x128xbf16>
    %c0_69 = arith.constant 0 : index
    %c0_70 = arith.constant 0 : index
    %312 = vector.load %arg6[%c0_69, %c0_70] : memref<128x512xbf16, #tpu.memory_space<vmem>>, vector<128x512xbf16>
    %cst_71 = arith.constant dense<0.000000e+00> : vector<2x512xf32>
    %313 = tpu.matmul %311, %312, %cst_71 {dimension_numbers = #tpu.dot_dimension_numbers<[1], [0], [0], [1], [0, 0, 1, 1], [], []>} : vector<2x128xbf16>, vector<128x512xbf16>, vector<2x512xf32> -> vector<2x512xf32>
    %314 = arith.addf %310, %313 : vector<2x512xf32>
    %315 = vector.extract_strided_slice %314 {offsets = [0, 0], sizes = [2, 128], strides = [1, 1]} : vector<2x512xf32> to vector<2x128xf32>
    %316 = arith.negf %315 : vector<2x128xf32>
    %317 = math.exp %316 : vector<2x128xf32>
    %cst_72 = arith.constant 1.000000e+00 : f32
    %318 = vector.broadcast %cst_72 : f32 to vector<2x128xf32>
    %319 = arith.addf %318, %317 : vector<2x128xf32>
    %320 = arith.divf %318, %319 : vector<2x128xf32>
    %321 = vector.extract_strided_slice %314 {offsets = [0, 128], sizes = [2, 128], strides = [1, 1]} : vector<2x512xf32> to vector<2x128xf32>
    %322 = arith.negf %321 : vector<2x128xf32>
    %323 = math.exp %322 : vector<2x128xf32>
    %cst_73 = arith.constant 1.000000e+00 : f32
    %324 = vector.broadcast %cst_73 : f32 to vector<2x128xf32>
    %325 = arith.addf %324, %323 : vector<2x128xf32>
    %326 = arith.divf %324, %325 : vector<2x128xf32>
    %327 = vector.extract_strided_slice %314 {offsets = [0, 256], sizes = [2, 128], strides = [1, 1]} : vector<2x512xf32> to vector<2x128xf32>
    %328 = math.tanh %327 : vector<2x128xf32>
    %329 = vector.extract_strided_slice %314 {offsets = [0, 384], sizes = [2, 128], strides = [1, 1]} : vector<2x512xf32> to vector<2x128xf32>
    %330 = arith.negf %329 : vector<2x128xf32>
    %331 = math.exp %330 : vector<2x128xf32>
    %cst_74 = arith.constant 1.000000e+00 : f32
    %332 = vector.broadcast %cst_74 : f32 to vector<2x128xf32>
    %333 = arith.addf %332, %331 : vector<2x128xf32>
    %334 = arith.divf %332, %333 : vector<2x128xf32>
    %335 = arith.mulf %326, %306 : vector<2x128xf32>
    %336 = arith.mulf %320, %328 : vector<2x128xf32>
    %337 = arith.addf %335, %336 : vector<2x128xf32>
    %338 = math.tanh %337 : vector<2x128xf32>
    %339 = arith.mulf %334, %338 : vector<2x128xf32>
    %340 = vector.extract_strided_slice %275 {offsets = [0, 2, 0], sizes = [2, 1, 512], strides = [1, 1, 1]} : vector<2x8x512xf32> to vector<2x1x512xf32>
    %341 = vector.shape_cast %340 : vector<2x1x512xf32> to vector<2x512xf32>
    %342 = arith.truncf %339 : vector<2x128xf32> to vector<2x128xbf16>
    %c0_75 = arith.constant 0 : index
    %c0_76 = arith.constant 0 : index
    %343 = vector.load %arg6[%c0_75, %c0_76] : memref<128x512xbf16, #tpu.memory_space<vmem>>, vector<128x512xbf16>
    %cst_77 = arith.constant dense<0.000000e+00> : vector<2x512xf32>
    %344 = tpu.matmul %342, %343, %cst_77 {dimension_numbers = #tpu.dot_dimension_numbers<[1], [0], [0], [1], [0, 0, 1, 1], [], []>} : vector<2x128xbf16>, vector<128x512xbf16>, vector<2x512xf32> -> vector<2x512xf32>
    %345 = arith.addf %341, %344 : vector<2x512xf32>
    %346 = vector.extract_strided_slice %345 {offsets = [0, 0], sizes = [2, 128], strides = [1, 1]} : vector<2x512xf32> to vector<2x128xf32>
    %347 = arith.negf %346 : vector<2x128xf32>
    %348 = math.exp %347 : vector<2x128xf32>
    %cst_78 = arith.constant 1.000000e+00 : f32
    %349 = vector.broadcast %cst_78 : f32 to vector<2x128xf32>
    %350 = arith.addf %349, %348 : vector<2x128xf32>
    %351 = arith.divf %349, %350 : vector<2x128xf32>
    %352 = vector.extract_strided_slice %345 {offsets = [0, 128], sizes = [2, 128], strides = [1, 1]} : vector<2x512xf32> to vector<2x128xf32>
    %353 = arith.negf %352 : vector<2x128xf32>
    %354 = math.exp %353 : vector<2x128xf32>
    %cst_79 = arith.constant 1.000000e+00 : f32
    %355 = vector.broadcast %cst_79 : f32 to vector<2x128xf32>
    %356 = arith.addf %355, %354 : vector<2x128xf32>
    %357 = arith.divf %355, %356 : vector<2x128xf32>
    %358 = vector.extract_strided_slice %345 {offsets = [0, 256], sizes = [2, 128], strides = [1, 1]} : vector<2x512xf32> to vector<2x128xf32>
    %359 = math.tanh %358 : vector<2x128xf32>
    %360 = vector.extract_strided_slice %345 {offsets = [0, 384], sizes = [2, 128], strides = [1, 1]} : vector<2x512xf32> to vector<2x128xf32>
    %361 = arith.negf %360 : vector<2x128xf32>
    %362 = math.exp %361 : vector<2x128xf32>
    %cst_80 = arith.constant 1.000000e+00 : f32
    %363 = vector.broadcast %cst_80 : f32 to vector<2x128xf32>
    %364 = arith.addf %363, %362 : vector<2x128xf32>
    %365 = arith.divf %363, %364 : vector<2x128xf32>
    %366 = arith.mulf %357, %337 : vector<2x128xf32>
    %367 = arith.mulf %351, %359 : vector<2x128xf32>
    %368 = arith.addf %366, %367 : vector<2x128xf32>
    %369 = math.tanh %368 : vector<2x128xf32>
    %370 = arith.mulf %365, %369 : vector<2x128xf32>
    %371 = vector.extract_strided_slice %275 {offsets = [0, 3, 0], sizes = [2, 1, 512], strides = [1, 1, 1]} : vector<2x8x512xf32> to vector<2x1x512xf32>
    %372 = vector.shape_cast %371 : vector<2x1x512xf32> to vector<2x512xf32>
    %373 = arith.truncf %370 : vector<2x128xf32> to vector<2x128xbf16>
    %c0_81 = arith.constant 0 : index
    %c0_82 = arith.constant 0 : index
    %374 = vector.load %arg6[%c0_81, %c0_82] : memref<128x512xbf16, #tpu.memory_space<vmem>>, vector<128x512xbf16>
    %cst_83 = arith.constant dense<0.000000e+00> : vector<2x512xf32>
    %375 = tpu.matmul %373, %374, %cst_83 {dimension_numbers = #tpu.dot_dimension_numbers<[1], [0], [0], [1], [0, 0, 1, 1], [], []>} : vector<2x128xbf16>, vector<128x512xbf16>, vector<2x512xf32> -> vector<2x512xf32>
    %376 = arith.addf %372, %375 : vector<2x512xf32>
    %377 = vector.extract_strided_slice %376 {offsets = [0, 0], sizes = [2, 128], strides = [1, 1]} : vector<2x512xf32> to vector<2x128xf32>
    %378 = arith.negf %377 : vector<2x128xf32>
    %379 = math.exp %378 : vector<2x128xf32>
    %cst_84 = arith.constant 1.000000e+00 : f32
    %380 = vector.broadcast %cst_84 : f32 to vector<2x128xf32>
    %381 = arith.addf %380, %379 : vector<2x128xf32>
    %382 = arith.divf %380, %381 : vector<2x128xf32>
    %383 = vector.extract_strided_slice %376 {offsets = [0, 128], sizes = [2, 128], strides = [1, 1]} : vector<2x512xf32> to vector<2x128xf32>
    %384 = arith.negf %383 : vector<2x128xf32>
    %385 = math.exp %384 : vector<2x128xf32>
    %cst_85 = arith.constant 1.000000e+00 : f32
    %386 = vector.broadcast %cst_85 : f32 to vector<2x128xf32>
    %387 = arith.addf %386, %385 : vector<2x128xf32>
    %388 = arith.divf %386, %387 : vector<2x128xf32>
    %389 = vector.extract_strided_slice %376 {offsets = [0, 256], sizes = [2, 128], strides = [1, 1]} : vector<2x512xf32> to vector<2x128xf32>
    %390 = math.tanh %389 : vector<2x128xf32>
    %391 = vector.extract_strided_slice %376 {offsets = [0, 384], sizes = [2, 128], strides = [1, 1]} : vector<2x512xf32> to vector<2x128xf32>
    %392 = arith.negf %391 : vector<2x128xf32>
    %393 = math.exp %392 : vector<2x128xf32>
    %cst_86 = arith.constant 1.000000e+00 : f32
    %394 = vector.broadcast %cst_86 : f32 to vector<2x128xf32>
    %395 = arith.addf %394, %393 : vector<2x128xf32>
    %396 = arith.divf %394, %395 : vector<2x128xf32>
    %397 = arith.mulf %388, %368 : vector<2x128xf32>
    %398 = arith.mulf %382, %390 : vector<2x128xf32>
    %399 = arith.addf %397, %398 : vector<2x128xf32>
    %400 = math.tanh %399 : vector<2x128xf32>
    %401 = arith.mulf %396, %400 : vector<2x128xf32>
    %402 = vector.extract_strided_slice %275 {offsets = [0, 4, 0], sizes = [2, 1, 512], strides = [1, 1, 1]} : vector<2x8x512xf32> to vector<2x1x512xf32>
    %403 = vector.shape_cast %402 : vector<2x1x512xf32> to vector<2x512xf32>
    %404 = arith.truncf %401 : vector<2x128xf32> to vector<2x128xbf16>
    %c0_87 = arith.constant 0 : index
    %c0_88 = arith.constant 0 : index
    %405 = vector.load %arg6[%c0_87, %c0_88] : memref<128x512xbf16, #tpu.memory_space<vmem>>, vector<128x512xbf16>
    %cst_89 = arith.constant dense<0.000000e+00> : vector<2x512xf32>
    %406 = tpu.matmul %404, %405, %cst_89 {dimension_numbers = #tpu.dot_dimension_numbers<[1], [0], [0], [1], [0, 0, 1, 1], [], []>} : vector<2x128xbf16>, vector<128x512xbf16>, vector<2x512xf32> -> vector<2x512xf32>
    %407 = arith.addf %403, %406 : vector<2x512xf32>
    %408 = vector.extract_strided_slice %407 {offsets = [0, 0], sizes = [2, 128], strides = [1, 1]} : vector<2x512xf32> to vector<2x128xf32>
    %409 = arith.negf %408 : vector<2x128xf32>
    %410 = math.exp %409 : vector<2x128xf32>
    %cst_90 = arith.constant 1.000000e+00 : f32
    %411 = vector.broadcast %cst_90 : f32 to vector<2x128xf32>
    %412 = arith.addf %411, %410 : vector<2x128xf32>
    %413 = arith.divf %411, %412 : vector<2x128xf32>
    %414 = vector.extract_strided_slice %407 {offsets = [0, 128], sizes = [2, 128], strides = [1, 1]} : vector<2x512xf32> to vector<2x128xf32>
    %415 = arith.negf %414 : vector<2x128xf32>
    %416 = math.exp %415 : vector<2x128xf32>
    %cst_91 = arith.constant 1.000000e+00 : f32
    %417 = vector.broadcast %cst_91 : f32 to vector<2x128xf32>
    %418 = arith.addf %417, %416 : vector<2x128xf32>
    %419 = arith.divf %417, %418 : vector<2x128xf32>
    %420 = vector.extract_strided_slice %407 {offsets = [0, 256], sizes = [2, 128], strides = [1, 1]} : vector<2x512xf32> to vector<2x128xf32>
    %421 = math.tanh %420 : vector<2x128xf32>
    %422 = vector.extract_strided_slice %407 {offsets = [0, 384], sizes = [2, 128], strides = [1, 1]} : vector<2x512xf32> to vector<2x128xf32>
    %423 = arith.negf %422 : vector<2x128xf32>
    %424 = math.exp %423 : vector<2x128xf32>
    %cst_92 = arith.constant 1.000000e+00 : f32
    %425 = vector.broadcast %cst_92 : f32 to vector<2x128xf32>
    %426 = arith.addf %425, %424 : vector<2x128xf32>
    %427 = arith.divf %425, %426 : vector<2x128xf32>
    %428 = arith.mulf %419, %399 : vector<2x128xf32>
    %429 = arith.mulf %413, %421 : vector<2x128xf32>
    %430 = arith.addf %428, %429 : vector<2x128xf32>
    %431 = math.tanh %430 : vector<2x128xf32>
    %432 = arith.mulf %427, %431 : vector<2x128xf32>
    %433 = vector.extract_strided_slice %275 {offsets = [0, 5, 0], sizes = [2, 1, 512], strides = [1, 1, 1]} : vector<2x8x512xf32> to vector<2x1x512xf32>
    %434 = vector.shape_cast %433 : vector<2x1x512xf32> to vector<2x512xf32>
    %435 = arith.truncf %432 : vector<2x128xf32> to vector<2x128xbf16>
    %c0_93 = arith.constant 0 : index
    %c0_94 = arith.constant 0 : index
    %436 = vector.load %arg6[%c0_93, %c0_94] : memref<128x512xbf16, #tpu.memory_space<vmem>>, vector<128x512xbf16>
    %cst_95 = arith.constant dense<0.000000e+00> : vector<2x512xf32>
    %437 = tpu.matmul %435, %436, %cst_95 {dimension_numbers = #tpu.dot_dimension_numbers<[1], [0], [0], [1], [0, 0, 1, 1], [], []>} : vector<2x128xbf16>, vector<128x512xbf16>, vector<2x512xf32> -> vector<2x512xf32>
    %438 = arith.addf %434, %437 : vector<2x512xf32>
    %439 = vector.extract_strided_slice %438 {offsets = [0, 0], sizes = [2, 128], strides = [1, 1]} : vector<2x512xf32> to vector<2x128xf32>
    %440 = arith.negf %439 : vector<2x128xf32>
    %441 = math.exp %440 : vector<2x128xf32>
    %cst_96 = arith.constant 1.000000e+00 : f32
    %442 = vector.broadcast %cst_96 : f32 to vector<2x128xf32>
    %443 = arith.addf %442, %441 : vector<2x128xf32>
    %444 = arith.divf %442, %443 : vector<2x128xf32>
    %445 = vector.extract_strided_slice %438 {offsets = [0, 128], sizes = [2, 128], strides = [1, 1]} : vector<2x512xf32> to vector<2x128xf32>
    %446 = arith.negf %445 : vector<2x128xf32>
    %447 = math.exp %446 : vector<2x128xf32>
    %cst_97 = arith.constant 1.000000e+00 : f32
    %448 = vector.broadcast %cst_97 : f32 to vector<2x128xf32>
    %449 = arith.addf %448, %447 : vector<2x128xf32>
    %450 = arith.divf %448, %449 : vector<2x128xf32>
    %451 = vector.extract_strided_slice %438 {offsets = [0, 256], sizes = [2, 128], strides = [1, 1]} : vector<2x512xf32> to vector<2x128xf32>
    %452 = math.tanh %451 : vector<2x128xf32>
    %453 = vector.extract_strided_slice %438 {offsets = [0, 384], sizes = [2, 128], strides = [1, 1]} : vector<2x512xf32> to vector<2x128xf32>
    %454 = arith.negf %453 : vector<2x128xf32>
    %455 = math.exp %454 : vector<2x128xf32>
    %cst_98 = arith.constant 1.000000e+00 : f32
    %456 = vector.broadcast %cst_98 : f32 to vector<2x128xf32>
    %457 = arith.addf %456, %455 : vector<2x128xf32>
    %458 = arith.divf %456, %457 : vector<2x128xf32>
    %459 = arith.mulf %450, %430 : vector<2x128xf32>
    %460 = arith.mulf %444, %452 : vector<2x128xf32>
    %461 = arith.addf %459, %460 : vector<2x128xf32>
    %462 = math.tanh %461 : vector<2x128xf32>
    %463 = arith.mulf %458, %462 : vector<2x128xf32>
    %464 = vector.extract_strided_slice %275 {offsets = [0, 6, 0], sizes = [2, 1, 512], strides = [1, 1, 1]} : vector<2x8x512xf32> to vector<2x1x512xf32>
    %465 = vector.shape_cast %464 : vector<2x1x512xf32> to vector<2x512xf32>
    %466 = arith.truncf %463 : vector<2x128xf32> to vector<2x128xbf16>
    %c0_99 = arith.constant 0 : index
    %c0_100 = arith.constant 0 : index
    %467 = vector.load %arg6[%c0_99, %c0_100] : memref<128x512xbf16, #tpu.memory_space<vmem>>, vector<128x512xbf16>
    %cst_101 = arith.constant dense<0.000000e+00> : vector<2x512xf32>
    %468 = tpu.matmul %466, %467, %cst_101 {dimension_numbers = #tpu.dot_dimension_numbers<[1], [0], [0], [1], [0, 0, 1, 1], [], []>} : vector<2x128xbf16>, vector<128x512xbf16>, vector<2x512xf32> -> vector<2x512xf32>
    %469 = arith.addf %465, %468 : vector<2x512xf32>
    %470 = vector.extract_strided_slice %469 {offsets = [0, 0], sizes = [2, 128], strides = [1, 1]} : vector<2x512xf32> to vector<2x128xf32>
    %471 = arith.negf %470 : vector<2x128xf32>
    %472 = math.exp %471 : vector<2x128xf32>
    %cst_102 = arith.constant 1.000000e+00 : f32
    %473 = vector.broadcast %cst_102 : f32 to vector<2x128xf32>
    %474 = arith.addf %473, %472 : vector<2x128xf32>
    %475 = arith.divf %473, %474 : vector<2x128xf32>
    %476 = vector.extract_strided_slice %469 {offsets = [0, 128], sizes = [2, 128], strides = [1, 1]} : vector<2x512xf32> to vector<2x128xf32>
    %477 = arith.negf %476 : vector<2x128xf32>
    %478 = math.exp %477 : vector<2x128xf32>
    %cst_103 = arith.constant 1.000000e+00 : f32
    %479 = vector.broadcast %cst_103 : f32 to vector<2x128xf32>
    %480 = arith.addf %479, %478 : vector<2x128xf32>
    %481 = arith.divf %479, %480 : vector<2x128xf32>
    %482 = vector.extract_strided_slice %469 {offsets = [0, 256], sizes = [2, 128], strides = [1, 1]} : vector<2x512xf32> to vector<2x128xf32>
    %483 = math.tanh %482 : vector<2x128xf32>
    %484 = vector.extract_strided_slice %469 {offsets = [0, 384], sizes = [2, 128], strides = [1, 1]} : vector<2x512xf32> to vector<2x128xf32>
    %485 = arith.negf %484 : vector<2x128xf32>
    %486 = math.exp %485 : vector<2x128xf32>
    %cst_104 = arith.constant 1.000000e+00 : f32
    %487 = vector.broadcast %cst_104 : f32 to vector<2x128xf32>
    %488 = arith.addf %487, %486 : vector<2x128xf32>
    %489 = arith.divf %487, %488 : vector<2x128xf32>
    %490 = arith.mulf %481, %461 : vector<2x128xf32>
    %491 = arith.mulf %475, %483 : vector<2x128xf32>
    %492 = arith.addf %490, %491 : vector<2x128xf32>
    %493 = math.tanh %492 : vector<2x128xf32>
    %494 = arith.mulf %489, %493 : vector<2x128xf32>
    %495 = vector.extract_strided_slice %275 {offsets = [0, 7, 0], sizes = [2, 1, 512], strides = [1, 1, 1]} : vector<2x8x512xf32> to vector<2x1x512xf32>
    %496 = vector.shape_cast %495 : vector<2x1x512xf32> to vector<2x512xf32>
    %497 = arith.truncf %494 : vector<2x128xf32> to vector<2x128xbf16>
    %c0_105 = arith.constant 0 : index
    %c0_106 = arith.constant 0 : index
    %498 = vector.load %arg6[%c0_105, %c0_106] : memref<128x512xbf16, #tpu.memory_space<vmem>>, vector<128x512xbf16>
    %cst_107 = arith.constant dense<0.000000e+00> : vector<2x512xf32>
    %499 = tpu.matmul %497, %498, %cst_107 {dimension_numbers = #tpu.dot_dimension_numbers<[1], [0], [0], [1], [0, 0, 1, 1], [], []>} : vector<2x128xbf16>, vector<128x512xbf16>, vector<2x512xf32> -> vector<2x512xf32>
    %500 = arith.addf %496, %499 : vector<2x512xf32>
    %501 = vector.extract_strided_slice %500 {offsets = [0, 0], sizes = [2, 128], strides = [1, 1]} : vector<2x512xf32> to vector<2x128xf32>
    %502 = arith.negf %501 : vector<2x128xf32>
    %503 = math.exp %502 : vector<2x128xf32>
    %cst_108 = arith.constant 1.000000e+00 : f32
    %504 = vector.broadcast %cst_108 : f32 to vector<2x128xf32>
    %505 = arith.addf %504, %503 : vector<2x128xf32>
    %506 = arith.divf %504, %505 : vector<2x128xf32>
    %507 = vector.extract_strided_slice %500 {offsets = [0, 128], sizes = [2, 128], strides = [1, 1]} : vector<2x512xf32> to vector<2x128xf32>
    %508 = arith.negf %507 : vector<2x128xf32>
    %509 = math.exp %508 : vector<2x128xf32>
    %cst_109 = arith.constant 1.000000e+00 : f32
    %510 = vector.broadcast %cst_109 : f32 to vector<2x128xf32>
    %511 = arith.addf %510, %509 : vector<2x128xf32>
    %512 = arith.divf %510, %511 : vector<2x128xf32>
    %513 = vector.extract_strided_slice %500 {offsets = [0, 256], sizes = [2, 128], strides = [1, 1]} : vector<2x512xf32> to vector<2x128xf32>
    %514 = math.tanh %513 : vector<2x128xf32>
    %515 = vector.extract_strided_slice %500 {offsets = [0, 384], sizes = [2, 128], strides = [1, 1]} : vector<2x512xf32> to vector<2x128xf32>
    %516 = arith.negf %515 : vector<2x128xf32>
    %517 = math.exp %516 : vector<2x128xf32>
    %cst_110 = arith.constant 1.000000e+00 : f32
    %518 = vector.broadcast %cst_110 : f32 to vector<2x128xf32>
    %519 = arith.addf %518, %517 : vector<2x128xf32>
    %520 = arith.divf %518, %519 : vector<2x128xf32>
    %521 = arith.mulf %512, %492 : vector<2x128xf32>
    %522 = arith.mulf %506, %514 : vector<2x128xf32>
    %523 = arith.addf %521, %522 : vector<2x128xf32>
    %524 = math.tanh %523 : vector<2x128xf32>
    %525 = arith.mulf %520, %524 : vector<2x128xf32>
    %526 = vector.shape_cast %308 : vector<2x128xf32> to vector<2x1x128xf32>
    %527 = vector.shape_cast %339 : vector<2x128xf32> to vector<2x1x128xf32>
    %528 = vector.shape_cast %370 : vector<2x128xf32> to vector<2x1x128xf32>
    %529 = vector.shape_cast %401 : vector<2x128xf32> to vector<2x1x128xf32>
    %530 = vector.shape_cast %432 : vector<2x128xf32> to vector<2x1x128xf32>
    %531 = vector.shape_cast %463 : vector<2x128xf32> to vector<2x1x128xf32>
    %532 = vector.shape_cast %494 : vector<2x128xf32> to vector<2x1x128xf32>
    %533 = vector.shape_cast %525 : vector<2x128xf32> to vector<2x1x128xf32>
    %534 = tpu.concatenate %526, %527, %528, %529, %530, %531, %532, %533 in 1 : vector<2x1x128xf32>, vector<2x1x128xf32>, vector<2x1x128xf32>, vector<2x1x128xf32>, vector<2x1x128xf32>, vector<2x1x128xf32>, vector<2x1x128xf32>, vector<2x1x128xf32> -> vector<2x8x128xf32>
    %535 = vector.shape_cast %534 : vector<2x8x128xf32> to vector<16x128xf32>
    %536 = arith.truncf %535 : vector<16x128xf32> to vector<16x128xbf16>
    %c0_111 = arith.constant 0 : index
    %c0_112 = arith.constant 0 : index
    %537 = vector.load %arg8[%c0_111, %c0_112] : memref<128x128xbf16, #tpu.memory_space<vmem>>, vector<128x128xbf16>
    %cst_113 = arith.constant dense<0.000000e+00> : vector<16x128xf32>
    %538 = tpu.matmul %536, %537, %cst_113 {dimension_numbers = #tpu.dot_dimension_numbers<[1], [0], [0], [1], [0, 0, 1, 1], [], []>} : vector<16x128xbf16>, vector<128x128xbf16>, vector<16x128xf32> -> vector<16x128xf32>
    %c0_114 = arith.constant 0 : index
    %c0_115 = arith.constant 0 : index
    %539 = vector.load %arg9[%c0_114, %c0_115] : memref<1x128xf32, #tpu.memory_space<vmem>>, vector<1x128xf32>
    %540 = vector.broadcast %539 : vector<1x128xf32> to vector<16x128xf32>
    %541 = arith.addf %538, %540 : vector<16x128xf32>
    %542 = arith.truncf %541 : vector<16x128xf32> to vector<16x128xbf16>
    %c0_116 = arith.constant 0 : index
    %c0_117 = arith.constant 0 : index
    %543 = vector.load %arg10[%c0_116, %c0_117] : memref<128x128xbf16, #tpu.memory_space<vmem>>, vector<128x128xbf16>
    %cst_118 = arith.constant dense<0.000000e+00> : vector<16x128xf32>
    %544 = tpu.matmul %542, %543, %cst_118 {dimension_numbers = #tpu.dot_dimension_numbers<[1], [0], [0], [1], [0, 0, 1, 1], [], []>} : vector<16x128xbf16>, vector<128x128xbf16>, vector<16x128xf32> -> vector<16x128xf32>
    %c0_119 = arith.constant 0 : index
    %c0_120 = arith.constant 0 : index
    %545 = vector.load %arg11[%c0_119, %c0_120] : memref<1x128xf32, #tpu.memory_space<vmem>>, vector<1x128xf32>
    %546 = vector.broadcast %545 : vector<1x128xf32> to vector<16x128xf32>
    %547 = arith.addf %544, %546 : vector<16x128xf32>
    %cst_121 = arith.constant 0.176776692 : f32
    %548 = vector.broadcast %cst_121 : f32 to vector<16x128xf32>
    %549 = arith.mulf %547, %548 : vector<16x128xf32>
    %c0_122 = arith.constant 0 : index
    %c0_123 = arith.constant 0 : index
    %c0_124 = arith.constant 0 : index
    %550 = vector.load %arg1[%c0_122, %c0_123, %c0_124] : memref<2x8x128xf32, #tpu.memory_space<vmem>>, vector<2x8x128xf32>
    %551 = vector.shape_cast %550 : vector<2x8x128xf32> to vector<16x128xf32>
    %552 = arith.truncf %551 : vector<16x128xf32> to vector<16x128xbf16>
    %c0_125 = arith.constant 0 : index
    %c0_126 = arith.constant 0 : index
    %553 = vector.load %arg12[%c0_125, %c0_126] : memref<128x256xbf16, #tpu.memory_space<vmem>>, vector<128x256xbf16>
    %cst_127 = arith.constant dense<0.000000e+00> : vector<16x256xf32>
    %554 = tpu.matmul %552, %553, %cst_127 {dimension_numbers = #tpu.dot_dimension_numbers<[1], [0], [0], [1], [0, 0, 1, 1], [], []>} : vector<16x128xbf16>, vector<128x256xbf16>, vector<16x256xf32> -> vector<16x256xf32>
    %c0_128 = arith.constant 0 : index
    %c0_129 = arith.constant 0 : index
    %555 = vector.load %arg13[%c0_128, %c0_129] : memref<1x256xf32, #tpu.memory_space<vmem>>, vector<1x256xf32>
    %556 = vector.broadcast %555 : vector<1x256xf32> to vector<16x256xf32>
    %557 = arith.addf %554, %556 : vector<16x256xf32>
    %558 = arith.truncf %549 : vector<16x128xf32> to vector<16x128xbf16>
    %559 = vector.extract_strided_slice %557 {offsets = [0, 0], sizes = [16, 128], strides = [1, 1]} : vector<16x256xf32> to vector<16x128xf32>
    %560 = arith.truncf %559 : vector<16x128xf32> to vector<16x128xbf16>
    %561 = vector.extract_strided_slice %557 {offsets = [0, 128], sizes = [16, 128], strides = [1, 1]} : vector<16x256xf32> to vector<16x128xf32>
    %562 = arith.truncf %561 : vector<16x128xf32> to vector<16x128xbf16>
    %563 = vector.extract_strided_slice %558 {offsets = [0, 0], sizes = [8, 128], strides = [1, 1]} : vector<16x128xbf16> to vector<8x128xbf16>
    %564 = vector.extract_strided_slice %560 {offsets = [0, 0], sizes = [8, 128], strides = [1, 1]} : vector<16x128xbf16> to vector<8x128xbf16>
    %565 = vector.extract_strided_slice %562 {offsets = [0, 0], sizes = [8, 128], strides = [1, 1]} : vector<16x128xbf16> to vector<8x128xbf16>
    %566 = vector.extract_strided_slice %563 {offsets = [0, 0], sizes = [8, 32], strides = [1, 1]} : vector<8x128xbf16> to vector<8x32xbf16>
    %567 = vector.extract_strided_slice %564 {offsets = [0, 0], sizes = [8, 32], strides = [1, 1]} : vector<8x128xbf16> to vector<8x32xbf16>
    "tpu.trace_start"() <{level = 10 : i32, message = "qd,kd->qk"}> : () -> ()
    %cst_130 = arith.constant dense<0.000000e+00> : vector<8x8xf32>
    %568 = tpu.matmul %566, %567, %cst_130 {dimension_numbers = #tpu.dot_dimension_numbers<[1], [1], [0], [0], [0, 0, 1, 0], [], []>} : vector<8x32xbf16>, vector<8x32xbf16>, vector<8x8xf32> -> vector<8x8xf32>
    "tpu.trace_stop"() : () -> ()
    %cst_131 = arith.constant dense<0xFF800000> : vector<8xf32>
    %569 = vector.multi_reduction <maximumf>, %568, %cst_131 [1] : vector<8x8xf32> to vector<8xf32>
    %570 = vector.shape_cast %569 : vector<8xf32> to vector<8x1xf32>
    %571 = vector.broadcast %570 : vector<8x1xf32> to vector<8x8xf32>
    %572 = arith.subf %568, %571 : vector<8x8xf32>
    %573 = math.exp %572 : vector<8x8xf32>
    %cst_132 = arith.constant dense<0.000000e+00> : vector<8xf32>
    %574 = vector.multi_reduction <add>, %573, %cst_132 [1] : vector<8x8xf32> to vector<8xf32>
    %575 = vector.shape_cast %574 : vector<8xf32> to vector<8x1xf32>
    %576 = tpu.reciprocal %575 {approx = true} : vector<8x1xf32> -> vector<8x1xf32>
    %577 = vector.broadcast %576 : vector<8x1xf32> to vector<8x8xf32>
    %578 = arith.mulf %573, %577 : vector<8x8xf32>
    %579 = arith.truncf %578 : vector<8x8xf32> to vector<8x8xbf16>
    %580 = vector.extract_strided_slice %565 {offsets = [0, 0], sizes = [8, 32], strides = [1, 1]} : vector<8x128xbf16> to vector<8x32xbf16>
    %cst_133 = arith.constant dense<0.000000e+00> : vector<8x32xf32>
    %581 = tpu.matmul %579, %580, %cst_133 {dimension_numbers = #tpu.dot_dimension_numbers<[1], [0], [0], [1], [0, 0, 1, 1], [], []>} : vector<8x8xbf16>, vector<8x32xbf16>, vector<8x32xf32> -> vector<8x32xf32>
    %582 = vector.extract_strided_slice %563 {offsets = [0, 32], sizes = [8, 32], strides = [1, 1]} : vector<8x128xbf16> to vector<8x32xbf16>
    %583 = vector.extract_strided_slice %564 {offsets = [0, 32], sizes = [8, 32], strides = [1, 1]} : vector<8x128xbf16> to vector<8x32xbf16>
    "tpu.trace_start"() <{level = 10 : i32, message = "qd,kd->qk"}> : () -> ()
    %cst_134 = arith.constant dense<0.000000e+00> : vector<8x8xf32>
    %584 = tpu.matmul %582, %583, %cst_134 {dimension_numbers = #tpu.dot_dimension_numbers<[1], [1], [0], [0], [0, 0, 1, 0], [], []>} : vector<8x32xbf16>, vector<8x32xbf16>, vector<8x8xf32> -> vector<8x8xf32>
    "tpu.trace_stop"() : () -> ()
    %cst_135 = arith.constant dense<0xFF800000> : vector<8xf32>
    %585 = vector.multi_reduction <maximumf>, %584, %cst_135 [1] : vector<8x8xf32> to vector<8xf32>
    %586 = vector.shape_cast %585 : vector<8xf32> to vector<8x1xf32>
    %587 = vector.broadcast %586 : vector<8x1xf32> to vector<8x8xf32>
    %588 = arith.subf %584, %587 : vector<8x8xf32>
    %589 = math.exp %588 : vector<8x8xf32>
    %cst_136 = arith.constant dense<0.000000e+00> : vector<8xf32>
    %590 = vector.multi_reduction <add>, %589, %cst_136 [1] : vector<8x8xf32> to vector<8xf32>
    %591 = vector.shape_cast %590 : vector<8xf32> to vector<8x1xf32>
    %592 = tpu.reciprocal %591 {approx = true} : vector<8x1xf32> -> vector<8x1xf32>
    %593 = vector.broadcast %592 : vector<8x1xf32> to vector<8x8xf32>
    %594 = arith.mulf %589, %593 : vector<8x8xf32>
    %595 = arith.truncf %594 : vector<8x8xf32> to vector<8x8xbf16>
    %596 = vector.extract_strided_slice %565 {offsets = [0, 32], sizes = [8, 32], strides = [1, 1]} : vector<8x128xbf16> to vector<8x32xbf16>
    %cst_137 = arith.constant dense<0.000000e+00> : vector<8x32xf32>
    %597 = tpu.matmul %595, %596, %cst_137 {dimension_numbers = #tpu.dot_dimension_numbers<[1], [0], [0], [1], [0, 0, 1, 1], [], []>} : vector<8x8xbf16>, vector<8x32xbf16>, vector<8x32xf32> -> vector<8x32xf32>
    %598 = vector.extract_strided_slice %563 {offsets = [0, 64], sizes = [8, 32], strides = [1, 1]} : vector<8x128xbf16> to vector<8x32xbf16>
    %599 = vector.extract_strided_slice %564 {offsets = [0, 64], sizes = [8, 32], strides = [1, 1]} : vector<8x128xbf16> to vector<8x32xbf16>
    "tpu.trace_start"() <{level = 10 : i32, message = "qd,kd->qk"}> : () -> ()
    %cst_138 = arith.constant dense<0.000000e+00> : vector<8x8xf32>
    %600 = tpu.matmul %598, %599, %cst_138 {dimension_numbers = #tpu.dot_dimension_numbers<[1], [1], [0], [0], [0, 0, 1, 0], [], []>} : vector<8x32xbf16>, vector<8x32xbf16>, vector<8x8xf32> -> vector<8x8xf32>
    "tpu.trace_stop"() : () -> ()
    %cst_139 = arith.constant dense<0xFF800000> : vector<8xf32>
    %601 = vector.multi_reduction <maximumf>, %600, %cst_139 [1] : vector<8x8xf32> to vector<8xf32>
    %602 = vector.shape_cast %601 : vector<8xf32> to vector<8x1xf32>
    %603 = vector.broadcast %602 : vector<8x1xf32> to vector<8x8xf32>
    %604 = arith.subf %600, %603 : vector<8x8xf32>
    %605 = math.exp %604 : vector<8x8xf32>
    %cst_140 = arith.constant dense<0.000000e+00> : vector<8xf32>
    %606 = vector.multi_reduction <add>, %605, %cst_140 [1] : vector<8x8xf32> to vector<8xf32>
    %607 = vector.shape_cast %606 : vector<8xf32> to vector<8x1xf32>
    %608 = tpu.reciprocal %607 {approx = true} : vector<8x1xf32> -> vector<8x1xf32>
    %609 = vector.broadcast %608 : vector<8x1xf32> to vector<8x8xf32>
    %610 = arith.mulf %605, %609 : vector<8x8xf32>
    %611 = arith.truncf %610 : vector<8x8xf32> to vector<8x8xbf16>
    %612 = vector.extract_strided_slice %565 {offsets = [0, 64], sizes = [8, 32], strides = [1, 1]} : vector<8x128xbf16> to vector<8x32xbf16>
    %cst_141 = arith.constant dense<0.000000e+00> : vector<8x32xf32>
    %613 = tpu.matmul %611, %612, %cst_141 {dimension_numbers = #tpu.dot_dimension_numbers<[1], [0], [0], [1], [0, 0, 1, 1], [], []>} : vector<8x8xbf16>, vector<8x32xbf16>, vector<8x32xf32> -> vector<8x32xf32>
    %614 = vector.extract_strided_slice %563 {offsets = [0, 96], sizes = [8, 32], strides = [1, 1]} : vector<8x128xbf16> to vector<8x32xbf16>
    %615 = vector.extract_strided_slice %564 {offsets = [0, 96], sizes = [8, 32], strides = [1, 1]} : vector<8x128xbf16> to vector<8x32xbf16>
    "tpu.trace_start"() <{level = 10 : i32, message = "qd,kd->qk"}> : () -> ()
    %cst_142 = arith.constant dense<0.000000e+00> : vector<8x8xf32>
    %616 = tpu.matmul %614, %615, %cst_142 {dimension_numbers = #tpu.dot_dimension_numbers<[1], [1], [0], [0], [0, 0, 1, 0], [], []>} : vector<8x32xbf16>, vector<8x32xbf16>, vector<8x8xf32> -> vector<8x8xf32>
    "tpu.trace_stop"() : () -> ()
    %cst_143 = arith.constant dense<0xFF800000> : vector<8xf32>
    %617 = vector.multi_reduction <maximumf>, %616, %cst_143 [1] : vector<8x8xf32> to vector<8xf32>
    %618 = vector.shape_cast %617 : vector<8xf32> to vector<8x1xf32>
    %619 = vector.broadcast %618 : vector<8x1xf32> to vector<8x8xf32>
    %620 = arith.subf %616, %619 : vector<8x8xf32>
    %621 = math.exp %620 : vector<8x8xf32>
    %cst_144 = arith.constant dense<0.000000e+00> : vector<8xf32>
    %622 = vector.multi_reduction <add>, %621, %cst_144 [1] : vector<8x8xf32> to vector<8xf32>
    %623 = vector.shape_cast %622 : vector<8xf32> to vector<8x1xf32>
    %624 = tpu.reciprocal %623 {approx = true} : vector<8x1xf32> -> vector<8x1xf32>
    %625 = vector.broadcast %624 : vector<8x1xf32> to vector<8x8xf32>
    %626 = arith.mulf %621, %625 : vector<8x8xf32>
    %627 = arith.truncf %626 : vector<8x8xf32> to vector<8x8xbf16>
    %628 = vector.extract_strided_slice %565 {offsets = [0, 96], sizes = [8, 32], strides = [1, 1]} : vector<8x128xbf16> to vector<8x32xbf16>
    %cst_145 = arith.constant dense<0.000000e+00> : vector<8x32xf32>
    %629 = tpu.matmul %627, %628, %cst_145 {dimension_numbers = #tpu.dot_dimension_numbers<[1], [0], [0], [1], [0, 0, 1, 1], [], []>} : vector<8x8xbf16>, vector<8x32xbf16>, vector<8x32xf32> -> vector<8x32xf32>
    %630 = tpu.concatenate %581, %597, %613, %629 in 1 : vector<8x32xf32>, vector<8x32xf32>, vector<8x32xf32>, vector<8x32xf32> -> vector<8x128xf32>
    %631 = vector.extract_strided_slice %558 {offsets = [8, 0], sizes = [8, 128], strides = [1, 1]} : vector<16x128xbf16> to vector<8x128xbf16>
    %632 = vector.extract_strided_slice %560 {offsets = [8, 0], sizes = [8, 128], strides = [1, 1]} : vector<16x128xbf16> to vector<8x128xbf16>
    %633 = vector.extract_strided_slice %562 {offsets = [8, 0], sizes = [8, 128], strides = [1, 1]} : vector<16x128xbf16> to vector<8x128xbf16>
    %634 = vector.extract_strided_slice %631 {offsets = [0, 0], sizes = [8, 32], strides = [1, 1]} : vector<8x128xbf16> to vector<8x32xbf16>
    %635 = vector.extract_strided_slice %632 {offsets = [0, 0], sizes = [8, 32], strides = [1, 1]} : vector<8x128xbf16> to vector<8x32xbf16>
    "tpu.trace_start"() <{level = 10 : i32, message = "qd,kd->qk"}> : () -> ()
    %cst_146 = arith.constant dense<0.000000e+00> : vector<8x8xf32>
    %636 = tpu.matmul %634, %635, %cst_146 {dimension_numbers = #tpu.dot_dimension_numbers<[1], [1], [0], [0], [0, 0, 1, 0], [], []>} : vector<8x32xbf16>, vector<8x32xbf16>, vector<8x8xf32> -> vector<8x8xf32>
    "tpu.trace_stop"() : () -> ()
    %cst_147 = arith.constant dense<0xFF800000> : vector<8xf32>
    %637 = vector.multi_reduction <maximumf>, %636, %cst_147 [1] : vector<8x8xf32> to vector<8xf32>
    %638 = vector.shape_cast %637 : vector<8xf32> to vector<8x1xf32>
    %639 = vector.broadcast %638 : vector<8x1xf32> to vector<8x8xf32>
    %640 = arith.subf %636, %639 : vector<8x8xf32>
    %641 = math.exp %640 : vector<8x8xf32>
    %cst_148 = arith.constant dense<0.000000e+00> : vector<8xf32>
    %642 = vector.multi_reduction <add>, %641, %cst_148 [1] : vector<8x8xf32> to vector<8xf32>
    %643 = vector.shape_cast %642 : vector<8xf32> to vector<8x1xf32>
    %644 = tpu.reciprocal %643 {approx = true} : vector<8x1xf32> -> vector<8x1xf32>
    %645 = vector.broadcast %644 : vector<8x1xf32> to vector<8x8xf32>
    %646 = arith.mulf %641, %645 : vector<8x8xf32>
    %647 = arith.truncf %646 : vector<8x8xf32> to vector<8x8xbf16>
    %648 = vector.extract_strided_slice %633 {offsets = [0, 0], sizes = [8, 32], strides = [1, 1]} : vector<8x128xbf16> to vector<8x32xbf16>
    %cst_149 = arith.constant dense<0.000000e+00> : vector<8x32xf32>
    %649 = tpu.matmul %647, %648, %cst_149 {dimension_numbers = #tpu.dot_dimension_numbers<[1], [0], [0], [1], [0, 0, 1, 1], [], []>} : vector<8x8xbf16>, vector<8x32xbf16>, vector<8x32xf32> -> vector<8x32xf32>
    %650 = vector.extract_strided_slice %631 {offsets = [0, 32], sizes = [8, 32], strides = [1, 1]} : vector<8x128xbf16> to vector<8x32xbf16>
    %651 = vector.extract_strided_slice %632 {offsets = [0, 32], sizes = [8, 32], strides = [1, 1]} : vector<8x128xbf16> to vector<8x32xbf16>
    "tpu.trace_start"() <{level = 10 : i32, message = "qd,kd->qk"}> : () -> ()
    %cst_150 = arith.constant dense<0.000000e+00> : vector<8x8xf32>
    %652 = tpu.matmul %650, %651, %cst_150 {dimension_numbers = #tpu.dot_dimension_numbers<[1], [1], [0], [0], [0, 0, 1, 0], [], []>} : vector<8x32xbf16>, vector<8x32xbf16>, vector<8x8xf32> -> vector<8x8xf32>
    "tpu.trace_stop"() : () -> ()
    %cst_151 = arith.constant dense<0xFF800000> : vector<8xf32>
    %653 = vector.multi_reduction <maximumf>, %652, %cst_151 [1] : vector<8x8xf32> to vector<8xf32>
    %654 = vector.shape_cast %653 : vector<8xf32> to vector<8x1xf32>
    %655 = vector.broadcast %654 : vector<8x1xf32> to vector<8x8xf32>
    %656 = arith.subf %652, %655 : vector<8x8xf32>
    %657 = math.exp %656 : vector<8x8xf32>
    %cst_152 = arith.constant dense<0.000000e+00> : vector<8xf32>
    %658 = vector.multi_reduction <add>, %657, %cst_152 [1] : vector<8x8xf32> to vector<8xf32>
    %659 = vector.shape_cast %658 : vector<8xf32> to vector<8x1xf32>
    %660 = tpu.reciprocal %659 {approx = true} : vector<8x1xf32> -> vector<8x1xf32>
    %661 = vector.broadcast %660 : vector<8x1xf32> to vector<8x8xf32>
    %662 = arith.mulf %657, %661 : vector<8x8xf32>
    %663 = arith.truncf %662 : vector<8x8xf32> to vector<8x8xbf16>
    %664 = vector.extract_strided_slice %633 {offsets = [0, 32], sizes = [8, 32], strides = [1, 1]} : vector<8x128xbf16> to vector<8x32xbf16>
    %cst_153 = arith.constant dense<0.000000e+00> : vector<8x32xf32>
    %665 = tpu.matmul %663, %664, %cst_153 {dimension_numbers = #tpu.dot_dimension_numbers<[1], [0], [0], [1], [0, 0, 1, 1], [], []>} : vector<8x8xbf16>, vector<8x32xbf16>, vector<8x32xf32> -> vector<8x32xf32>
    %666 = vector.extract_strided_slice %631 {offsets = [0, 64], sizes = [8, 32], strides = [1, 1]} : vector<8x128xbf16> to vector<8x32xbf16>
    %667 = vector.extract_strided_slice %632 {offsets = [0, 64], sizes = [8, 32], strides = [1, 1]} : vector<8x128xbf16> to vector<8x32xbf16>
    "tpu.trace_start"() <{level = 10 : i32, message = "qd,kd->qk"}> : () -> ()
    %cst_154 = arith.constant dense<0.000000e+00> : vector<8x8xf32>
    %668 = tpu.matmul %666, %667, %cst_154 {dimension_numbers = #tpu.dot_dimension_numbers<[1], [1], [0], [0], [0, 0, 1, 0], [], []>} : vector<8x32xbf16>, vector<8x32xbf16>, vector<8x8xf32> -> vector<8x8xf32>
    "tpu.trace_stop"() : () -> ()
    %cst_155 = arith.constant dense<0xFF800000> : vector<8xf32>
    %669 = vector.multi_reduction <maximumf>, %668, %cst_155 [1] : vector<8x8xf32> to vector<8xf32>
    %670 = vector.shape_cast %669 : vector<8xf32> to vector<8x1xf32>
    %671 = vector.broadcast %670 : vector<8x1xf32> to vector<8x8xf32>
    %672 = arith.subf %668, %671 : vector<8x8xf32>
    %673 = math.exp %672 : vector<8x8xf32>
    %cst_156 = arith.constant dense<0.000000e+00> : vector<8xf32>
    %674 = vector.multi_reduction <add>, %673, %cst_156 [1] : vector<8x8xf32> to vector<8xf32>
    %675 = vector.shape_cast %674 : vector<8xf32> to vector<8x1xf32>
    %676 = tpu.reciprocal %675 {approx = true} : vector<8x1xf32> -> vector<8x1xf32>
    %677 = vector.broadcast %676 : vector<8x1xf32> to vector<8x8xf32>
    %678 = arith.mulf %673, %677 : vector<8x8xf32>
    %679 = arith.truncf %678 : vector<8x8xf32> to vector<8x8xbf16>
    %680 = vector.extract_strided_slice %633 {offsets = [0, 64], sizes = [8, 32], strides = [1, 1]} : vector<8x128xbf16> to vector<8x32xbf16>
    %cst_157 = arith.constant dense<0.000000e+00> : vector<8x32xf32>
    %681 = tpu.matmul %679, %680, %cst_157 {dimension_numbers = #tpu.dot_dimension_numbers<[1], [0], [0], [1], [0, 0, 1, 1], [], []>} : vector<8x8xbf16>, vector<8x32xbf16>, vector<8x32xf32> -> vector<8x32xf32>
    %682 = vector.extract_strided_slice %631 {offsets = [0, 96], sizes = [8, 32], strides = [1, 1]} : vector<8x128xbf16> to vector<8x32xbf16>
    %683 = vector.extract_strided_slice %632 {offsets = [0, 96], sizes = [8, 32], strides = [1, 1]} : vector<8x128xbf16> to vector<8x32xbf16>
    "tpu.trace_start"() <{level = 10 : i32, message = "qd,kd->qk"}> : () -> ()
    %cst_158 = arith.constant dense<0.000000e+00> : vector<8x8xf32>
    %684 = tpu.matmul %682, %683, %cst_158 {dimension_numbers = #tpu.dot_dimension_numbers<[1], [1], [0], [0], [0, 0, 1, 0], [], []>} : vector<8x32xbf16>, vector<8x32xbf16>, vector<8x8xf32> -> vector<8x8xf32>
    "tpu.trace_stop"() : () -> ()
    %cst_159 = arith.constant dense<0xFF800000> : vector<8xf32>
    %685 = vector.multi_reduction <maximumf>, %684, %cst_159 [1] : vector<8x8xf32> to vector<8xf32>
    %686 = vector.shape_cast %685 : vector<8xf32> to vector<8x1xf32>
    %687 = vector.broadcast %686 : vector<8x1xf32> to vector<8x8xf32>
    %688 = arith.subf %684, %687 : vector<8x8xf32>
    %689 = math.exp %688 : vector<8x8xf32>
    %cst_160 = arith.constant dense<0.000000e+00> : vector<8xf32>
    %690 = vector.multi_reduction <add>, %689, %cst_160 [1] : vector<8x8xf32> to vector<8xf32>
    %691 = vector.shape_cast %690 : vector<8xf32> to vector<8x1xf32>
    %692 = tpu.reciprocal %691 {approx = true} : vector<8x1xf32> -> vector<8x1xf32>
    %693 = vector.broadcast %692 : vector<8x1xf32> to vector<8x8xf32>
    %694 = arith.mulf %689, %693 : vector<8x8xf32>
    %695 = arith.truncf %694 : vector<8x8xf32> to vector<8x8xbf16>
    %696 = vector.extract_strided_slice %633 {offsets = [0, 96], sizes = [8, 32], strides = [1, 1]} : vector<8x128xbf16> to vector<8x32xbf16>
    %cst_161 = arith.constant dense<0.000000e+00> : vector<8x32xf32>
    %697 = tpu.matmul %695, %696, %cst_161 {dimension_numbers = #tpu.dot_dimension_numbers<[1], [0], [0], [1], [0, 0, 1, 1], [], []>} : vector<8x8xbf16>, vector<8x32xbf16>, vector<8x32xf32> -> vector<8x32xf32>
    %698 = tpu.concatenate %649, %665, %681, %697 in 1 : vector<8x32xf32>, vector<8x32xf32>, vector<8x32xf32>, vector<8x32xf32> -> vector<8x128xf32>
    %699 = tpu.concatenate %630, %698 in 0 : vector<8x128xf32>, vector<8x128xf32> -> vector<16x128xf32>
    %700 = arith.truncf %699 : vector<16x128xf32> to vector<16x128xbf16>
    %c0_162 = arith.constant 0 : index
    %c0_163 = arith.constant 0 : index
    %701 = vector.load %arg14[%c0_162, %c0_163] : memref<128x128xbf16, #tpu.memory_space<vmem>>, vector<128x128xbf16>
    %cst_164 = arith.constant dense<0.000000e+00> : vector<16x128xf32>
    %702 = tpu.matmul %700, %701, %cst_164 {dimension_numbers = #tpu.dot_dimension_numbers<[1], [0], [0], [1], [0, 0, 1, 1], [], []>} : vector<16x128xbf16>, vector<128x128xbf16>, vector<16x128xf32> -> vector<16x128xf32>
    %c0_165 = arith.constant 0 : index
    %c0_166 = arith.constant 0 : index
    %703 = vector.load %arg15[%c0_165, %c0_166] : memref<1x128xf32, #tpu.memory_space<vmem>>, vector<1x128xf32>
    %704 = vector.broadcast %703 : vector<1x128xf32> to vector<16x128xf32>
    %705 = arith.addf %702, %704 : vector<16x128xf32>
    %706 = arith.addf %705, %1 : vector<16x128xf32>
    %cst_167 = arith.constant dense<0.000000e+00> : vector<16xf32>
    %707 = vector.multi_reduction <add>, %706, %cst_167 [1] : vector<16x128xf32> to vector<16xf32>
    %708 = vector.shape_cast %707 : vector<16xf32> to vector<16x1xf32>
    %cst_168 = arith.constant 1.280000e+02 : f32
    %709 = vector.broadcast %cst_168 : f32 to vector<16x1xf32>
    %710 = arith.divf %708, %709 : vector<16x1xf32>
    %711 = vector.broadcast %710 : vector<16x1xf32> to vector<16x128xf32>
    %712 = arith.subf %706, %711 : vector<16x128xf32>
    %713 = arith.mulf %712, %712 : vector<16x128xf32>
    %cst_169 = arith.constant dense<0.000000e+00> : vector<16xf32>
    %714 = vector.multi_reduction <add>, %713, %cst_169 [1] : vector<16x128xf32> to vector<16xf32>
    %715 = vector.shape_cast %714 : vector<16xf32> to vector<16x1xf32>
    %cst_170 = arith.constant 1.280000e+02 : f32
    %716 = vector.broadcast %cst_170 : f32 to vector<16x1xf32>
    %717 = arith.divf %715, %716 : vector<16x1xf32>
    %718 = vector.broadcast %710 : vector<16x1xf32> to vector<16x128xf32>
    %719 = arith.subf %706, %718 : vector<16x128xf32>
    %cst_171 = arith.constant 9.99999996E-13 : f32
    %720 = vector.broadcast %cst_171 : f32 to vector<16x1xf32>
    %721 = arith.addf %717, %720 : vector<16x1xf32>
    %722 = math.rsqrt %721 : vector<16x1xf32>
    %723 = vector.broadcast %722 : vector<16x1xf32> to vector<16x128xf32>
    %724 = arith.mulf %719, %723 : vector<16x128xf32>
    %c0_172 = arith.constant 0 : index
    %c0_173 = arith.constant 0 : index
    %725 = vector.load %arg16[%c0_172, %c0_173] : memref<1x128xf32, #tpu.memory_space<vmem>>, vector<1x128xf32>
    %726 = vector.broadcast %725 : vector<1x128xf32> to vector<16x128xf32>
    %727 = arith.mulf %724, %726 : vector<16x128xf32>
    %c0_174 = arith.constant 0 : index
    %c0_175 = arith.constant 0 : index
    %728 = vector.load %arg17[%c0_174, %c0_175] : memref<1x128xf32, #tpu.memory_space<vmem>>, vector<1x128xf32>
    %729 = vector.broadcast %728 : vector<1x128xf32> to vector<16x128xf32>
    %730 = arith.addf %727, %729 : vector<16x128xf32>
    %731 = arith.truncf %730 : vector<16x128xf32> to vector<16x128xbf16>
    %c0_176 = arith.constant 0 : index
    %c0_177 = arith.constant 0 : index
    %732 = vector.load %arg18[%c0_176, %c0_177] : memref<128x256xbf16, #tpu.memory_space<vmem>>, vector<128x256xbf16>
    %cst_178 = arith.constant dense<0.000000e+00> : vector<16x256xf32>
    %733 = tpu.matmul %731, %732, %cst_178 {dimension_numbers = #tpu.dot_dimension_numbers<[1], [0], [0], [1], [0, 0, 1, 1], [], []>} : vector<16x128xbf16>, vector<128x256xbf16>, vector<16x256xf32> -> vector<16x256xf32>
    %c0_179 = arith.constant 0 : index
    %c0_180 = arith.constant 0 : index
    %734 = vector.load %arg19[%c0_179, %c0_180] : memref<1x256xf32, #tpu.memory_space<vmem>>, vector<1x256xf32>
    %735 = vector.broadcast %734 : vector<1x256xf32> to vector<16x256xf32>
    %736 = arith.addf %733, %735 : vector<16x256xf32>
    %737 = arith.mulf %736, %736 : vector<16x256xf32>
    %738 = arith.mulf %736, %737 : vector<16x256xf32>
    %cst_181 = arith.constant 4.471500e-02 : f32
    %739 = vector.broadcast %cst_181 : f32 to vector<16x256xf32>
    %740 = arith.mulf %739, %738 : vector<16x256xf32>
    %741 = arith.addf %736, %740 : vector<16x256xf32>
    %cst_182 = arith.constant 0.797884583 : f32
    %742 = vector.broadcast %cst_182 : f32 to vector<16x256xf32>
    %743 = arith.mulf %742, %741 : vector<16x256xf32>
    %744 = math.tanh %743 : vector<16x256xf32>
    %cst_183 = arith.constant 1.000000e+00 : f32
    %745 = vector.broadcast %cst_183 : f32 to vector<16x256xf32>
    %746 = arith.addf %745, %744 : vector<16x256xf32>
    %cst_184 = arith.constant 5.000000e-01 : f32
    %747 = vector.broadcast %cst_184 : f32 to vector<16x256xf32>
    %748 = arith.mulf %747, %746 : vector<16x256xf32>
    %749 = arith.mulf %736, %748 : vector<16x256xf32>
    %750 = arith.truncf %749 : vector<16x256xf32> to vector<16x256xbf16>
    %c0_185 = arith.constant 0 : index
    %c0_186 = arith.constant 0 : index
    %751 = vector.load %arg20[%c0_185, %c0_186] : memref<256x128xbf16, #tpu.memory_space<vmem>>, vector<256x128xbf16>
    %cst_187 = arith.constant dense<0.000000e+00> : vector<16x128xf32>
    %752 = tpu.matmul %750, %751, %cst_187 {dimension_numbers = #tpu.dot_dimension_numbers<[1], [0], [0], [1], [0, 0, 1, 1], [], []>} : vector<16x256xbf16>, vector<256x128xbf16>, vector<16x128xf32> -> vector<16x128xf32>
    %c0_188 = arith.constant 0 : index
    %c0_189 = arith.constant 0 : index
    %753 = vector.load %arg21[%c0_188, %c0_189] : memref<1x128xf32, #tpu.memory_space<vmem>>, vector<1x128xf32>
    %754 = vector.broadcast %753 : vector<1x128xf32> to vector<16x128xf32>
    %755 = arith.addf %752, %754 : vector<16x128xf32>
    %756 = arith.addf %755, %730 : vector<16x128xf32>
    %cst_190 = arith.constant dense<0.000000e+00> : vector<16xf32>
    %757 = vector.multi_reduction <add>, %756, %cst_190 [1] : vector<16x128xf32> to vector<16xf32>
    %758 = vector.shape_cast %757 : vector<16xf32> to vector<16x1xf32>
    %cst_191 = arith.constant 1.280000e+02 : f32
    %759 = vector.broadcast %cst_191 : f32 to vector<16x1xf32>
    %760 = arith.divf %758, %759 : vector<16x1xf32>
    %761 = vector.broadcast %760 : vector<16x1xf32> to vector<16x128xf32>
    %762 = arith.subf %756, %761 : vector<16x128xf32>
    %763 = arith.mulf %762, %762 : vector<16x128xf32>
    %cst_192 = arith.constant dense<0.000000e+00> : vector<16xf32>
    %764 = vector.multi_reduction <add>, %763, %cst_192 [1] : vector<16x128xf32> to vector<16xf32>
    %765 = vector.shape_cast %764 : vector<16xf32> to vector<16x1xf32>
    %cst_193 = arith.constant 1.280000e+02 : f32
    %766 = vector.broadcast %cst_193 : f32 to vector<16x1xf32>
    %767 = arith.divf %765, %766 : vector<16x1xf32>
    %768 = vector.broadcast %760 : vector<16x1xf32> to vector<16x128xf32>
    %769 = arith.subf %756, %768 : vector<16x128xf32>
    %cst_194 = arith.constant 9.99999996E-13 : f32
    %770 = vector.broadcast %cst_194 : f32 to vector<16x1xf32>
    %771 = arith.addf %767, %770 : vector<16x1xf32>
    %772 = math.rsqrt %771 : vector<16x1xf32>
    %773 = vector.broadcast %772 : vector<16x1xf32> to vector<16x128xf32>
    %774 = arith.mulf %769, %773 : vector<16x128xf32>
    %c0_195 = arith.constant 0 : index
    %c0_196 = arith.constant 0 : index
    %775 = vector.load %arg22[%c0_195, %c0_196] : memref<1x128xf32, #tpu.memory_space<vmem>>, vector<1x128xf32>
    %776 = vector.broadcast %775 : vector<1x128xf32> to vector<16x128xf32>
    %777 = arith.mulf %774, %776 : vector<16x128xf32>
    %c0_197 = arith.constant 0 : index
    %c0_198 = arith.constant 0 : index
    %778 = vector.load %arg23[%c0_197, %c0_198] : memref<1x128xf32, #tpu.memory_space<vmem>>, vector<1x128xf32>
    %779 = vector.broadcast %778 : vector<1x128xf32> to vector<16x128xf32>
    %780 = arith.addf %777, %779 : vector<16x128xf32>
    %781 = arith.truncf %780 : vector<16x128xf32> to vector<16x128xbf16>
    %c0_199 = arith.constant 0 : index
    %c0_200 = arith.constant 0 : index
    %782 = vector.load %arg24[%c0_199, %c0_200] : memref<128x128xbf16, #tpu.memory_space<vmem>>, vector<128x128xbf16>
    %cst_201 = arith.constant dense<0.000000e+00> : vector<16x128xf32>
    %783 = tpu.matmul %781, %782, %cst_201 {dimension_numbers = #tpu.dot_dimension_numbers<[1], [0], [0], [1], [0, 0, 1, 1], [], []>} : vector<16x128xbf16>, vector<128x128xbf16>, vector<16x128xf32> -> vector<16x128xf32>
    %c0_202 = arith.constant 0 : index
    %c0_203 = arith.constant 0 : index
    %784 = vector.load %arg25[%c0_202, %c0_203] : memref<1x128xf32, #tpu.memory_space<vmem>>, vector<1x128xf32>
    %785 = vector.broadcast %784 : vector<1x128xf32> to vector<16x128xf32>
    %786 = arith.addf %783, %785 : vector<16x128xf32>
    %c0_204 = arith.constant 0 : index
    %c0_205 = arith.constant 0 : index
    %787 = vector.load %arg26[%c0_204, %c0_205] : memref<16x128xf32, #tpu.memory_space<vmem>>, vector<16x128xf32>
    tpu.vector_store %arg26[%c0_204, %c0_205], %786 {strides = array<i32>} : memref<16x128xf32, #tpu.memory_space<vmem>>, vector<16x128xf32>,
    return
  }
}

</mosaic_0001>

<llo_original>
// kernel: step_2_reverse0_forward.1
$region0: #{step_2_reverse0_forward.1}
  #allocation0 [shape = 'u32[]', space=smem, size = 0x4, offset = 0x4, fixed_abs, tag = 'smem constant byte address 0x4 - core index']
  #allocation1 [shape = 'u32[144,128]{1,0:T(1,128)}', space=vmem, size = 0x12000, scoped, tag = 'internal scratch']
  %s0 = inlined_call_operand.vmem [shape: f32[2,8,128], index: 0, kind: input, shape index: {}]
  %s1 = inlined_call_operand.vmem [shape: f32[2,8,128], index: 1, kind: input, shape index: {}]
  %s2 = inlined_call_operand.hbm [shape: bf16[128,512], index: 2, kind: input, shape index: {}]
  %s3 = inlined_call_operand.hbm [shape: bf16[128,512], index: 3, kind: input, shape index: {}]
  %s4 = inlined_call_operand.hbm [shape: f32[1,512], index: 4, kind: input, shape index: {}]
  %s5 = inlined_call_operand.hbm [shape: bf16[128,512], index: 5, kind: input, shape index: {}]
  %s6 = inlined_call_operand.hbm [shape: bf16[128,512], index: 6, kind: input, shape index: {}]
  %s7 = inlined_call_operand.hbm [shape: f32[1,512], index: 7, kind: input, shape index: {}]
  %s8 = inlined_call_operand.hbm [shape: bf16[128,128], index: 8, kind: input, shape index: {}]
  %s9 = inlined_call_operand.hbm [shape: f32[1,128], index: 9, kind: input, shape index: {}]
  %s10 = inlined_call_operand.hbm [shape: bf16[128,128], index: 10, kind: input, shape index: {}]
  %s11 = inlined_call_operand.hbm [shape: f32[1,128], index: 11, kind: input, shape index: {}]
  %s12 = inlined_call_operand.hbm [shape: bf16[128,256], index: 12, kind: input, shape index: {}]
  %s13 = inlined_call_operand.hbm [shape: f32[1,256], index: 13, kind: input, shape index: {}]
  %s14 = inlined_call_operand.hbm [shape: bf16[128,128], index: 14, kind: input, shape index: {}]
  %s15 = inlined_call_operand.hbm [shape: f32[1,128], index: 15, kind: input, shape index: {}]
  %s16 = inlined_call_operand.hbm [shape: f32[1,128], index: 16, kind: input, shape index: {}]
  %s17 = inlined_call_operand.hbm [shape: f32[1,128], index: 17, kind: input, shape index: {}]
  %s18 = inlined_call_operand.hbm [shape: bf16[128,256], index: 18, kind: input, shape index: {}]
  %s19 = inlined_call_operand.hbm [shape: f32[1,256], index: 19, kind: input, shape index: {}]
  %s20 = inlined_call_operand.hbm [shape: bf16[256,128], index: 20, kind: input, shape index: {}]
  %s21 = inlined_call_operand.hbm [shape: f32[1,128], index: 21, kind: input, shape index: {}]
  %s22 = inlined_call_operand.hbm [shape: f32[1,128], index: 22, kind: input, shape index: {}]
  %s23 = inlined_call_operand.hbm [shape: f32[1,128], index: 23, kind: input, shape index: {}]
  %s24 = inlined_call_operand.hbm [shape: bf16[128,128], index: 24, kind: input, shape index: {}]
  %s25 = inlined_call_operand.vmem [shape: f32[1,128], index: 25, kind: input, shape index: {}]
  %s26 = inlined_call_operand.vmem [shape: f32[16,128], index: 26, kind: output, shape index: {}]
  %s27 = sld [smem:[#allocation0]]
  $region206: #{step_2_reverse0_forward.1} parent=0
    _
  %s29 = ssub.s32 1, %s27
  %s30 = scalar_select 0, %s29, %s27
  $region1: #{step_2_reverse0_forward.1} parent=0
    #allocation2 [shape = 'u8[131072]{0}', space=vmem, size = 0x20000, scoped, tag = 'input window, operand 2, single buffered']
    #allocation3 [shape = 's32[1]{0}', space=sflag, size = 0x4, scoped, tag = 'scoped memory for step_2_reverse0_forward.1']
    #allocation4 [shape = 'u8[131072]{0}', space=vmem, size = 0x20000, scoped, tag = 'input window, operand 3, single buffered']
    #allocation5 [shape = 's32[1]{0}', space=sflag, size = 0x4, scoped, tag = 'scoped memory for step_2_reverse0_forward.1']
    #allocation6 [shape = 'u8[2048]{0}', space=vmem, size = 0x800, scoped, tag = 'input window, operand 4, single buffered']
    #allocation7 [shape = 'u8[131072]{0}', space=vmem, size = 0x20000, scoped, tag = 'input window, operand 5, single buffered']
    #allocation8 [shape = 's32[1]{0}', space=sflag, size = 0x4, scoped, tag = 'scoped memory for step_2_reverse0_forward.1']
    #allocation9 [shape = 'u8[131072]{0}', space=vmem, size = 0x20000, scoped, tag = 'input window, operand 6, single buffered']
    #allocation10 [shape = 'u8[2048]{0}', space=vmem, size = 0x800, scoped, tag = 'input window, operand 7, single buffered']
    #allocation11 [shape = 's32[1]{0}', space=sflag, size = 0x4, scoped, tag = 'scoped memory for step_2_reverse0_forward.1']
    #allocation12 [shape = 'u8[32768]{0}', space=vmem, size = 0x8000, scoped, tag = 'input window, operand 8, single buffered']
    #allocation13 [shape = 'u8[512]{0}', space=vmem, size = 0x400, scoped, tag = 'input window, operand 9, single buffered']
    #allocation14 [shape = 's32[1]{0}', space=sflag, size = 0x4, scoped, tag = 'scoped memory for step_2_reverse0_forward.1']
    #allocation15 [shape = 'u8[32768]{0}', space=vmem, size = 0x8000, scoped, tag = 'input window, operand 10, single buffered']
    #allocation16 [shape = 'u8[512]{0}', space=vmem, size = 0x400, scoped, tag = 'input window, operand 11, single buffered']
    #allocation17 [shape = 's32[1]{0}', space=sflag, size = 0x4, scoped, tag = 'scoped memory for step_2_reverse0_forward.1']
    #allocation18 [shape = 'u8[65536]{0}', space=vmem, size = 0x10000, scoped, tag = 'input window, operand 12, single buffered']
    #allocation19 [shape = 'u8[1024]{0}', space=vmem, size = 0x400, scoped, tag = 'input window, operand 13, single buffered']
    #allocation20 [shape = 's32[1]{0}', space=sflag, size = 0x4, scoped, tag = 'scoped memory for step_2_reverse0_forward.1']
    #allocation21 [shape = 'u8[32768]{0}', space=vmem, size = 0x8000, scoped, tag = 'input window, operand 14, single buffered']
    #allocation22 [shape = 'u8[512]{0}', space=vmem, size = 0x400, scoped, tag = 'input window, operand 15, single buffered']
    #allocation23 [shape = 's32[1]{0}', space=sflag, size = 0x4, scoped, tag = 'scoped memory for step_2_reverse0_forward.1']
    #allocation24 [shape = 'u8[512]{0}', space=vmem, size = 0x400, scoped, tag = 'input window, operand 16, single buffered']
    #allocation25 [shape = 'u8[512]{0}', space=vmem, size = 0x400, scoped, tag = 'input window, operand 17, single buffered']
    #allocation26 [shape = 's32[1]{0}', space=sflag, size = 0x4, scoped, tag = 'scoped memory for step_2_reverse0_forward.1']
    #allocation27 [shape = 'u8[65536]{0}', space=vmem, size = 0x10000, scoped, tag = 'input window, operand 18, single buffered']
    #allocation28 [shape = 'u8[1024]{0}', space=vmem, size = 0x400, scoped, tag = 'input window, operand 19, single buffered']
    #allocation29 [shape = 's32[1]{0}', space=sflag, size = 0x4, scoped, tag = 'scoped memory for step_2_reverse0_forward.1']
    #allocation30 [shape = 'u8[65536]{0}', space=vmem, size = 0x10000, scoped, tag = 'input window, operand 20, single buffered']
    #allocation31 [shape = 'u8[512]{0}', space=vmem, size = 0x400, scoped, tag = 'input window, operand 21, single buffered']
    #allocation32 [shape = 's32[1]{0}', space=sflag, size = 0x4, scoped, tag = 'scoped memory for step_2_reverse0_forward.1']
    #allocation33 [shape = 'u8[512]{0}', space=vmem, size = 0x400, scoped, tag = 'input window, operand 22, single buffered']
    #allocation34 [shape = 'u8[512]{0}', space=vmem, size = 0x400, scoped, tag = 'input window, operand 23, single buffered']
    #allocation35 [shape = 's32[1]{0}', space=sflag, size = 0x4, scoped, tag = 'scoped memory for step_2_reverse0_forward.1']
    #allocation36 [shape = 'u8[32768]{0}', space=vmem, size = 0x8000, scoped, tag = 'input window, operand 24, single buffered']
    %31 = vsyncpa [#allocation3], 0
    %32 = vsyncpa [#allocation5], 0
    %33 = vsyncpa [#allocation8], 0
    %34 = vsyncpa [#allocation11], 0
    %35 = vsyncpa [#allocation14], 0
    %36 = vsyncpa [#allocation17], 0
    %37 = vsyncpa [#allocation20], 0
    %38 = vsyncpa [#allocation23], 0
    %39 = vsyncpa [#allocation26], 0
    %40 = vsyncpa [#allocation29], 0
    %41 = vsyncpa [#allocation32], 0
    %42 = vsyncpa [#allocation35], 0
    // Predicated region
    $region2: #{step_2_reverse0_forward.1} parent=1 // pred_check
      _
    $region3: #{step_2_reverse0_forward.1} parent=1 // pred_check_branch
      %44 = sbr.rel (0) target = $region5
    $region4: #{step_2_reverse0_forward.1} parent=1 // pred_region
      _
    $region5: #{step_2_reverse0_forward.1} parent=1 // pred_fallthru
      _
    // Predicated region
    $region6: #{step_2_reverse0_forward.1} parent=1 // pred_check
      _
    $region7: #{step_2_reverse0_forward.1} parent=1 // pred_check_branch
      %46 = sbr.rel (0) target = $region9
    $region8: #{step_2_reverse0_forward.1} parent=1 // pred_region
      _
    $region9: #{step_2_reverse0_forward.1} parent=1 // pred_fallthru
      _
    // Predicated region
    $region10: #{step_2_reverse0_forward.1} parent=1 // pred_check
      _
    $region11: #{step_2_reverse0_forward.1} parent=1 // pred_check_branch
      %48 = sbr.rel (0) target = $region13
    $region12: #{step_2_reverse0_forward.1} parent=1 // pred_region
      %s50 = ssub.s32 4096, 4096
      %51 = vsyncadd [#allocation3], %s50
      %s52 = sshll.u32 [#allocation2], 4
      %s53 = int_to_ptr.vmem [resolvable:$true] %s52
      %58 = dma.hbm_to_vmem [thread:$0]  %s2, 4096, %s53, [#allocation3], 256, 256, 16
    $region13: #{step_2_reverse0_forward.1} parent=1 // pred_fallthru
      _
    // Predicated region
    $region14: #{step_2_reverse0_forward.1} parent=1 // pred_check
      _
    $region15: #{step_2_reverse0_forward.1} parent=1 // pred_check_branch
      %60 = sbr.rel (0) target = $region17
    $region16: #{step_2_reverse0_forward.1} parent=1 // pred_region
      %s62 = ssub.s32 4096, 4096
      %63 = vsyncadd [#allocation5], %s62
      %s64 = sshll.u32 [#allocation4], 4
      %s65 = int_to_ptr.vmem [resolvable:$true] %s64
      %70 = dma.hbm_to_vmem [thread:$0]  %s3, 4096, %s65, [#allocation5], 256, 256, 16
    $region17: #{step_2_reverse0_forward.1} parent=1 // pred_fallthru
      _
    // Predicated region
    $region18: #{step_2_reverse0_forward.1} parent=1 // pred_check
      _
    $region19: #{step_2_reverse0_forward.1} parent=1 // pred_check_branch
      %72 = sbr.rel (0) target = $region21
    $region20: #{step_2_reverse0_forward.1} parent=1 // pred_region
      %s74 = ssub.s32 64, 64
      %75 = vsyncadd [#allocation5], %s74
      %s77 = sshll.u32 [#allocation6], 4
      %s78 = int_to_ptr.vmem [resolvable:$true] %s77
      %80 = dma.hbm_to_vmem [thread:$0]  %s4, 64, %s78, [#allocation5]
    $region21: #{step_2_reverse0_forward.1} parent=1 // pred_fallthru
      _
    // Predicated region
    $region22: #{step_2_reverse0_forward.1} parent=1 // pred_check
      _
    $region23: #{step_2_reverse0_forward.1} parent=1 // pred_check_branch
      %82 = sbr.rel (0) target = $region25
    $region24: #{step_2_reverse0_forward.1} parent=1 // pred_region
      %s84 = ssub.s32 4096, 4096
      %85 = vsyncadd [#allocation8], %s84
      %s86 = sshll.u32 [#allocation7], 4
      %s87 = int_to_ptr.vmem [resolvable:$true] %s86
      %92 = dma.hbm_to_vmem [thread:$0]  %s5, 4096, %s87, [#allocation8], 256, 256, 16
    $region25: #{step_2_reverse0_forward.1} parent=1 // pred_fallthru
      _
    // Predicated region
    $region26: #{step_2_reverse0_forward.1} parent=1 // pred_check
      _
    $region27: #{step_2_reverse0_forward.1} parent=1 // pred_check_branch
      %94 = sbr.rel (0) target = $region29
    $region28: #{step_2_reverse0_forward.1} parent=1 // pred_region
      %s96 = ssub.s32 4096, 4096
      %97 = vsyncadd [#allocation8], %s96
      %s98 = sshll.u32 [#allocation9], 4
      %s99 = int_to_ptr.vmem [resolvable:$true] %s98
      %104 = dma.hbm_to_vmem [thread:$0]  %s6, 4096, %s99, [#allocation8], 256, 256, 16
    $region29: #{step_2_reverse0_forward.1} parent=1 // pred_fallthru
      _
    // Predicated region
    $region30: #{step_2_reverse0_forward.1} parent=1 // pred_check
      _
    $region31: #{step_2_reverse0_forward.1} parent=1 // pred_check_branch
      %106 = sbr.rel (0) target = $region33
    $region32: #{step_2_reverse0_forward.1} parent=1 // pred_region
      %s108 = ssub.s32 64, 64
      %109 = vsyncadd [#allocation11], %s108
      %s111 = sshll.u32 [#allocation10], 4
      %s112 = int_to_ptr.vmem [resolvable:$true] %s111
      %114 = dma.hbm_to_vmem [thread:$0]  %s7, 64, %s112, [#allocation11]
    $region33: #{step_2_reverse0_forward.1} parent=1 // pred_fallthru
      _
    // Predicated region
    $region34: #{step_2_reverse0_forward.1} parent=1 // pred_check
      _
    $region35: #{step_2_reverse0_forward.1} parent=1 // pred_check_branch
      %116 = sbr.rel (0) target = $region37
    $region36: #{step_2_reverse0_forward.1} parent=1 // pred_region
      %s118 = ssub.s32 1024, 1024
      %119 = vsyncadd [#allocation11], %s118
      %s120 = sshll.u32 [#allocation12], 4
      %s121 = int_to_ptr.vmem [resolvable:$true] %s120
      %126 = dma.hbm_to_vmem [thread:$0]  %s8, 1024, %s121, [#allocation11], 64, 64, 4
    $region37: #{step_2_reverse0_forward.1} parent=1 // pred_fallthru
      _
    // Predicated region
    $region38: #{step_2_reverse0_forward.1} parent=1 // pred_check
      _
    $region39: #{step_2_reverse0_forward.1} parent=1 // pred_check_branch
      %128 = sbr.rel (0) target = $region41
    $region40: #{step_2_reverse0_forward.1} parent=1 // pred_region
      %s130 = ssub.s32 16, 16
      %131 = vsyncadd [#allocation14], %s130
      %s133 = sshll.u32 [#allocation13], 4
      %s134 = int_to_ptr.vmem [resolvable:$true] %s133
      %136 = dma.hbm_to_vmem [thread:$0]  %s9, 16, %s134, [#allocation14]
    $region41: #{step_2_reverse0_forward.1} parent=1 // pred_fallthru
      _
    // Predicated region
    $region42: #{step_2_reverse0_forward.1} parent=1 // pred_check
      _
    $region43: #{step_2_reverse0_forward.1} parent=1 // pred_check_branch
      %138 = sbr.rel (0) target = $region45
    $region44: #{step_2_reverse0_forward.1} parent=1 // pred_region
      %s140 = ssub.s32 1024, 1024
      %141 = vsyncadd [#allocation14], %s140
      %s142 = sshll.u32 [#allocation15], 4
      %s143 = int_to_ptr.vmem [resolvable:$true] %s142
      %148 = dma.hbm_to_vmem [thread:$0]  %s10, 1024, %s143, [#allocation14], 64, 64, 4
    $region45: #{step_2_reverse0_forward.1} parent=1 // pred_fallthru
      _
    // Predicated region
    $region46: #{step_2_reverse0_forward.1} parent=1 // pred_check
      _
    $region47: #{step_2_reverse0_forward.1} parent=1 // pred_check_branch
      %150 = sbr.rel (0) target = $region49
    $region48: #{step_2_reverse0_forward.1} parent=1 // pred_region
      %s152 = ssub.s32 16, 16
      %153 = vsyncadd [#allocation17], %s152
      %s155 = sshll.u32 [#allocation16], 4
      %s156 = int_to_ptr.vmem [resolvable:$true] %s155
      %158 = dma.hbm_to_vmem [thread:$0]  %s11, 16, %s156, [#allocation17]
    $region49: #{step_2_reverse0_forward.1} parent=1 // pred_fallthru
      _
    // Predicated region
    $region50: #{step_2_reverse0_forward.1} parent=1 // pred_check
      _
    $region51: #{step_2_reverse0_forward.1} parent=1 // pred_check_branch
      %160 = sbr.rel (0) target = $region53
    $region52: #{step_2_reverse0_forward.1} parent=1 // pred_region
      %s162 = ssub.s32 2048, 2048
      %163 = vsyncadd [#allocation17], %s162
      %s164 = sshll.u32 [#allocation18], 4
      %s165 = int_to_ptr.vmem [resolvable:$true] %s164
      %170 = dma.hbm_to_vmem [thread:$0]  %s12, 2048, %s165, [#allocation17], 128, 128, 8
    $region53: #{step_2_reverse0_forward.1} parent=1 // pred_fallthru
      _
    // Predicated region
    $region54: #{step_2_reverse0_forward.1} parent=1 // pred_check
      _
    $region55: #{step_2_reverse0_forward.1} parent=1 // pred_check_branch
      %172 = sbr.rel (0) target = $region57
    $region56: #{step_2_reverse0_forward.1} parent=1 // pred_region
      %s174 = ssub.s32 32, 32
      %175 = vsyncadd [#allocation20], %s174
      %s177 = sshll.u32 [#allocation19], 4
      %s178 = int_to_ptr.vmem [resolvable:$true] %s177
      %180 = dma.hbm_to_vmem [thread:$0]  %s13, 32, %s178, [#allocation20]
    $region57: #{step_2_reverse0_forward.1} parent=1 // pred_fallthru
      _
    // Predicated region
    $region58: #{step_2_reverse0_forward.1} parent=1 // pred_check
      _
    $region59: #{step_2_reverse0_forward.1} parent=1 // pred_check_branch
      %182 = sbr.rel (0) target = $region61
    $region60: #{step_2_reverse0_forward.1} parent=1 // pred_region
      %s184 = ssub.s32 1024, 1024
      %185 = vsyncadd [#allocation20], %s184
      %s186 = sshll.u32 [#allocation21], 4
      %s187 = int_to_ptr.vmem [resolvable:$true] %s186
      %192 = dma.hbm_to_vmem [thread:$0]  %s14, 1024, %s187, [#allocation20], 64, 64, 4
    $region61: #{step_2_reverse0_forward.1} parent=1 // pred_fallthru
      _
    // Predicated region
    $region62: #{step_2_reverse0_forward.1} parent=1 // pred_check
      _
    $region63: #{step_2_reverse0_forward.1} parent=1 // pred_check_branch
      %194 = sbr.rel (0) target = $region65
    $region64: #{step_2_reverse0_forward.1} parent=1 // pred_region
      %s196 = ssub.s32 16, 16
      %197 = vsyncadd [#allocation23], %s196
      %s199 = sshll.u32 [#allocation22], 4
      %s200 = int_to_ptr.vmem [resolvable:$true] %s199
      %202 = dma.hbm_to_vmem [thread:$0]  %s15, 16, %s200, [#allocation23]
    $region65: #{step_2_reverse0_forward.1} parent=1 // pred_fallthru
      _
    // Predicated region
    $region66: #{step_2_reverse0_forward.1} parent=1 // pred_check
      _
    $region67: #{step_2_reverse0_forward.1} parent=1 // pred_check_branch
      %204 = sbr.rel (0) target = $region69
    $region68: #{step_2_reverse0_forward.1} parent=1 // pred_region
      %s206 = ssub.s32 16, 16
      %207 = vsyncadd [#allocation23], %s206
      %s209 = sshll.u32 [#allocation24], 4
      %s210 = int_to_ptr.vmem [resolvable:$true] %s209
      %212 = dma.hbm_to_vmem [thread:$0]  %s16, 16, %s210, [#allocation23]
    $region69: #{step_2_reverse0_forward.1} parent=1 // pred_fallthru
      _
    // Predicated region
    $region70: #{step_2_reverse0_forward.1} parent=1 // pred_check
      _
    $region71: #{step_2_reverse0_forward.1} parent=1 // pred_check_branch
      %214 = sbr.rel (0) target = $region73
    $region72: #{step_2_reverse0_forward.1} parent=1 // pred_region
      %s216 = ssub.s32 16, 16
      %217 = vsyncadd [#allocation26], %s216
      %s219 = sshll.u32 [#allocation25], 4
      %s220 = int_to_ptr.vmem [resolvable:$true] %s219
      %222 = dma.hbm_to_vmem [thread:$0]  %s17, 16, %s220, [#allocation26]
    $region73: #{step_2_reverse0_forward.1} parent=1 // pred_fallthru
      _
    // Predicated region
    $region74: #{step_2_reverse0_forward.1} parent=1 // pred_check
      _
    $region75: #{step_2_reverse0_forward.1} parent=1 // pred_check_branch
      %224 = sbr.rel (0) target = $region77
    $region76: #{step_2_reverse0_forward.1} parent=1 // pred_region
      %s226 = ssub.s32 2048, 2048
      %227 = vsyncadd [#allocation26], %s226
      %s228 = sshll.u32 [#allocation27], 4
      %s229 = int_to_ptr.vmem [resolvable:$true] %s228
      %234 = dma.hbm_to_vmem [thread:$0]  %s18, 2048, %s229, [#allocation26], 128, 128, 8
    $region77: #{step_2_reverse0_forward.1} parent=1 // pred_fallthru
      _
    // Predicated region
    $region78: #{step_2_reverse0_forward.1} parent=1 // pred_check
      _
    $region79: #{step_2_reverse0_forward.1} parent=1 // pred_check_branch
      %236 = sbr.rel (0) target = $region81
    $region80: #{step_2_reverse0_forward.1} parent=1 // pred_region
      %s238 = ssub.s32 32, 32
      %239 = vsyncadd [#allocation29], %s238
      %s241 = sshll.u32 [#allocation28], 4
      %s242 = int_to_ptr.vmem [resolvable:$true] %s241
      %244 = dma.hbm_to_vmem [thread:$0]  %s19, 32, %s242, [#allocation29]
    $region81: #{step_2_reverse0_forward.1} parent=1 // pred_fallthru
      _
    // Predicated region
    $region82: #{step_2_reverse0_forward.1} parent=1 // pred_check
      _
    $region83: #{step_2_reverse0_forward.1} parent=1 // pred_check_branch
      %246 = sbr.rel (0) target = $region85
    $region84: #{step_2_reverse0_forward.1} parent=1 // pred_region
      %s248 = ssub.s32 2048, 2048
      %249 = vsyncadd [#allocation29], %s248
      %s250 = sshll.u32 [#allocation30], 4
      %s251 = int_to_ptr.vmem [resolvable:$true] %s250
      %256 = dma.hbm_to_vmem [thread:$0]  %s20, 2048, %s251, [#allocation29], 64, 64, 4
    $region85: #{step_2_reverse0_forward.1} parent=1 // pred_fallthru
      _
    // Predicated region
    $region86: #{step_2_reverse0_forward.1} parent=1 // pred_check
      _
    $region87: #{step_2_reverse0_forward.1} parent=1 // pred_check_branch
      %258 = sbr.rel (0) target = $region89
    $region88: #{step_2_reverse0_forward.1} parent=1 // pred_region
      %s260 = ssub.s32 16, 16
      %261 = vsyncadd [#allocation32], %s260
      %s263 = sshll.u32 [#allocation31], 4
      %s264 = int_to_ptr.vmem [resolvable:$true] %s263
      %266 = dma.hbm_to_vmem [thread:$0]  %s21, 16, %s264, [#allocation32]
    $region89: #{step_2_reverse0_forward.1} parent=1 // pred_fallthru
      _
    // Predicated region
    $region90: #{step_2_reverse0_forward.1} parent=1 // pred_check
      _
    $region91: #{step_2_reverse0_forward.1} parent=1 // pred_check_branch
      %268 = sbr.rel (0) target = $region93
    $region92: #{step_2_reverse0_forward.1} parent=1 // pred_region
      %s270 = ssub.s32 16, 16
      %271 = vsyncadd [#allocation32], %s270
      %s273 = sshll.u32 [#allocation33], 4
      %s274 = int_to_ptr.vmem [resolvable:$true] %s273
      %276 = dma.hbm_to_vmem [thread:$0]  %s22, 16, %s274, [#allocation32]
    $region93: #{step_2_reverse0_forward.1} parent=1 // pred_fallthru
      _
    // Predicated region
    $region94: #{step_2_reverse0_forward.1} parent=1 // pred_check
      _
    $region95: #{step_2_reverse0_forward.1} parent=1 // pred_check_branch
      %278 = sbr.rel (0) target = $region97
    $region96: #{step_2_reverse0_forward.1} parent=1 // pred_region
      %s280 = ssub.s32 16, 16
      %281 = vsyncadd [#allocation35], %s280
      %s283 = sshll.u32 [#allocation34], 4
      %s284 = int_to_ptr.vmem [resolvable:$true] %s283
      %286 = dma.hbm_to_vmem [thread:$0]  %s23, 16, %s284, [#allocation35]
    $region97: #{step_2_reverse0_forward.1} parent=1 // pred_fallthru
      _
    // Predicated region
    $region98: #{step_2_reverse0_forward.1} parent=1 // pred_check
      _
    $region99: #{step_2_reverse0_forward.1} parent=1 // pred_check_branch
      %288 = sbr.rel (0) target = $region101
    $region100: #{step_2_reverse0_forward.1} parent=1 // pred_region
      %s290 = ssub.s32 1024, 1024
      %291 = vsyncadd [#allocation35], %s290
      %s292 = sshll.u32 [#allocation36], 4
      %s293 = int_to_ptr.vmem [resolvable:$true] %s292
      %298 = dma.hbm_to_vmem [thread:$0]  %s24, 1024, %s293, [#allocation35], 64, 64, 4
    $region101: #{step_2_reverse0_forward.1} parent=1 // pred_fallthru
      _
    // Predicated region
    $region102: #{step_2_reverse0_forward.1} parent=1 // pred_check
      _
    $region103: #{step_2_reverse0_forward.1} parent=1 // pred_check_branch
      %300 = sbr.rel (0) target = $region105
    $region104: #{step_2_reverse0_forward.1} parent=1 // pred_region
      _
    $region105: #{step_2_reverse0_forward.1} parent=1 // pred_fallthru
      _
    // Predicated region
    $region106: #{step_2_reverse0_forward.1} parent=1 // pred_check
      _
    $region107: #{step_2_reverse0_forward.1} parent=1 // pred_check_branch
      %302 = sbr.rel (0) target = $region109
    $region108: #{step_2_reverse0_forward.1} parent=1 // pred_region
      %303 = dma.done [#allocation3], 4096
    $region109: #{step_2_reverse0_forward.1} parent=1 // pred_fallthru
      _
    // Predicated region
    $region110: #{step_2_reverse0_forward.1} parent=1 // pred_check
      _
    $region111: #{step_2_reverse0_forward.1} parent=1 // pred_check_branch
      %305 = sbr.rel (0) target = $region113
    $region112: #{step_2_reverse0_forward.1} parent=1 // pred_region
      %306 = dma.done [#allocation5], 4096
    $region113: #{step_2_reverse0_forward.1} parent=1 // pred_fallthru
      _
    // Predicated region
    $region114: #{step_2_reverse0_forward.1} parent=1 // pred_check
      _
    $region115: #{step_2_reverse0_forward.1} parent=1 // pred_check_branch
      %308 = sbr.rel (0) target = $region117
    $region116: #{step_2_reverse0_forward.1} parent=1 // pred_region
      %309 = dma.done [#allocation5], 64
    $region117: #{step_2_reverse0_forward.1} parent=1 // pred_fallthru
      _
    // Predicated region
    $region118: #{step_2_reverse0_forward.1} parent=1 // pred_check
      _
    $region119: #{step_2_reverse0_forward.1} parent=1 // pred_check_branch
      %311 = sbr.rel (0) target = $region121
    $region120: #{step_2_reverse0_forward.1} parent=1 // pred_region
      %312 = dma.done [#allocation8], 4096
    $region121: #{step_2_reverse0_forward.1} parent=1 // pred_fallthru
      _
    // Predicated region
    $region122: #{step_2_reverse0_forward.1} parent=1 // pred_check
      _
    $region123: #{step_2_reverse0_forward.1} parent=1 // pred_check_branch
      %314 = sbr.rel (0) target = $region125
    $region124: #{step_2_reverse0_forward.1} parent=1 // pred_region
      %315 = dma.done [#allocation8], 4096
    $region125: #{step_2_reverse0_forward.1} parent=1 // pred_fallthru
      _
    // Predicated region
    $region126: #{step_2_reverse0_forward.1} parent=1 // pred_check
      _
    $region127: #{step_2_reverse0_forward.1} parent=1 // pred_check_branch
      %317 = sbr.rel (0) target = $region129
    $region128: #{step_2_reverse0_forward.1} parent=1 // pred_region
      %318 = dma.done [#allocation11], 64
    $region129: #{step_2_reverse0_forward.1} parent=1 // pred_fallthru
      _
    // Predicated region
    $region130: #{step_2_reverse0_forward.1} parent=1 // pred_check
      _
    $region131: #{step_2_reverse0_forward.1} parent=1 // pred_check_branch
      %320 = sbr.rel (0) target = $region133
    $region132: #{step_2_reverse0_forward.1} parent=1 // pred_region
      %321 = dma.done [#allocation11], 1024
    $region133: #{step_2_reverse0_forward.1} parent=1 // pred_fallthru
      _
    // Predicated region
    $region134: #{step_2_reverse0_forward.1} parent=1 // pred_check
      _
    $region135: #{step_2_reverse0_forward.1} parent=1 // pred_check_branch
      %323 = sbr.rel (0) target = $region137
    $region136: #{step_2_reverse0_forward.1} parent=1 // pred_region
      %324 = dma.done [#allocation14], 16
    $region137: #{step_2_reverse0_forward.1} parent=1 // pred_fallthru
      _
    // Predicated region
    $region138: #{step_2_reverse0_forward.1} parent=1 // pred_check
      _
    $region139: #{step_2_reverse0_forward.1} parent=1 // pred_check_branch
      %326 = sbr.rel (0) target = $region141
    $region140: #{step_2_reverse0_forward.1} parent=1 // pred_region
      %327 = dma.done [#allocation14], 1024
    $region141: #{step_2_reverse0_forward.1} parent=1 // pred_fallthru
      _
    // Predicated region
    $region142: #{step_2_reverse0_forward.1} parent=1 // pred_check
      _
    $region143: #{step_2_reverse0_forward.1} parent=1 // pred_check_branch
      %329 = sbr.rel (0) target = $region145
    $region144: #{step_2_reverse0_forward.1} parent=1 // pred_region
      %330 = dma.done [#allocation17], 16
    $region145: #{step_2_reverse0_forward.1} parent=1 // pred_fallthru
      _
    // Predicated region
    $region146: #{step_2_reverse0_forward.1} parent=1 // pred_check
      _
    $region147: #{step_2_reverse0_forward.1} parent=1 // pred_check_branch
      %332 = sbr.rel (0) target = $region149
    $region148: #{step_2_reverse0_forward.1} parent=1 // pred_region
      %333 = dma.done [#allocation17], 2048
    $region149: #{step_2_reverse0_forward.1} parent=1 // pred_fallthru
      _
    // Predicated region
    $region150: #{step_2_reverse0_forward.1} parent=1 // pred_check
      _
    $region151: #{step_2_reverse0_forward.1} parent=1 // pred_check_branch
      %335 = sbr.rel (0) target = $region153
    $region152: #{step_2_reverse0_forward.1} parent=1 // pred_region
      %336 = dma.done [#allocation20], 32
    $region153: #{step_2_reverse0_forward.1} parent=1 // pred_fallthru
      _
    // Predicated region
    $region154: #{step_2_reverse0_forward.1} parent=1 // pred_check
      _
    $region155: #{step_2_reverse0_forward.1} parent=1 // pred_check_branch
      %338 = sbr.rel (0) target = $region157
    $region156: #{step_2_reverse0_forward.1} parent=1 // pred_region
      %339 = dma.done [#allocation20], 1024
    $region157: #{step_2_reverse0_forward.1} parent=1 // pred_fallthru
      _
    // Predicated region
    $region158: #{step_2_reverse0_forward.1} parent=1 // pred_check
      _
    $region159: #{step_2_reverse0_forward.1} parent=1 // pred_check_branch
      %341 = sbr.rel (0) target = $region161
    $region160: #{step_2_reverse0_forward.1} parent=1 // pred_region
      %342 = dma.done [#allocation23], 16
    $region161: #{step_2_reverse0_forward.1} parent=1 // pred_fallthru
      _
    // Predicated region
    $region162: #{step_2_reverse0_forward.1} parent=1 // pred_check
      _
    $region163: #{step_2_reverse0_forward.1} parent=1 // pred_check_branch
      %344 = sbr.rel (0) target = $region165
    $region164: #{step_2_reverse0_forward.1} parent=1 // pred_region
      %345 = dma.done [#allocation23], 16
    $region165: #{step_2_reverse0_forward.1} parent=1 // pred_fallthru
      _
    // Predicated region
    $region166: #{step_2_reverse0_forward.1} parent=1 // pred_check
      _
    $region167: #{step_2_reverse0_forward.1} parent=1 // pred_check_branch
      %347 = sbr.rel (0) target = $region169
    $region168: #{step_2_reverse0_forward.1} parent=1 // pred_region
      %348 = dma.done [#allocation26], 16
    $region169: #{step_2_reverse0_forward.1} parent=1 // pred_fallthru
      _
    // Predicated region
    $region170: #{step_2_reverse0_forward.1} parent=1 // pred_check
      _
    $region171: #{step_2_reverse0_forward.1} parent=1 // pred_check_branch
      %350 = sbr.rel (0) target = $region173
    $region172: #{step_2_reverse0_forward.1} parent=1 // pred_region
      %351 = dma.done [#allocation26], 2048
    $region173: #{step_2_reverse0_forward.1} parent=1 // pred_fallthru
      _
    // Predicated region
    $region174: #{step_2_reverse0_forward.1} parent=1 // pred_check
      _
    $region175: #{step_2_reverse0_forward.1} parent=1 // pred_check_branch
      %353 = sbr.rel (0) target = $region177
    $region176: #{step_2_reverse0_forward.1} parent=1 // pred_region
      %354 = dma.done [#allocation29], 32
    $region177: #{step_2_reverse0_forward.1} parent=1 // pred_fallthru
      _
    // Predicated region
    $region178: #{step_2_reverse0_forward.1} parent=1 // pred_check
      _
    $region179: #{step_2_reverse0_forward.1} parent=1 // pred_check_branch
      %356 = sbr.rel (0) target = $region181
    $region180: #{step_2_reverse0_forward.1} parent=1 // pred_region
      %357 = dma.done [#allocation29], 2048
    $region181: #{step_2_reverse0_forward.1} parent=1 // pred_fallthru
      _
    // Predicated region
    $region182: #{step_2_reverse0_forward.1} parent=1 // pred_check
      _
    $region183: #{step_2_reverse0_forward.1} parent=1 // pred_check_branch
      %359 = sbr.rel (0) target = $region185
    $region184: #{step_2_reverse0_forward.1} parent=1 // pred_region
      %360 = dma.done [#allocation32], 16
    $region185: #{step_2_reverse0_forward.1} parent=1 // pred_fallthru
      _
    // Predicated region
    $region186: #{step_2_reverse0_forward.1} parent=1 // pred_check
      _
    $region187: #{step_2_reverse0_forward.1} parent=1 // pred_check_branch
      %362 = sbr.rel (0) target = $region189
    $region188: #{step_2_reverse0_forward.1} parent=1 // pred_region
      %363 = dma.done [#allocation32], 16
    $region189: #{step_2_reverse0_forward.1} parent=1 // pred_fallthru
      _
    // Predicated region
    $region190: #{step_2_reverse0_forward.1} parent=1 // pred_check
      _
    $region191: #{step_2_reverse0_forward.1} parent=1 // pred_check_branch
      %365 = sbr.rel (0) target = $region193
    $region192: #{step_2_reverse0_forward.1} parent=1 // pred_region
      %366 = dma.done [#allocation35], 16
    $region193: #{step_2_reverse0_forward.1} parent=1 // pred_fallthru
      _
    // Predicated region
    $region194: #{step_2_reverse0_forward.1} parent=1 // pred_check
      _
    $region195: #{step_2_reverse0_forward.1} parent=1 // pred_check_branch
      %368 = sbr.rel (0) target = $region197
    $region196: #{step_2_reverse0_forward.1} parent=1 // pred_region
      %369 = dma.done [#allocation35], 1024
    $region197: #{step_2_reverse0_forward.1} parent=1 // pred_fallthru
      _
    %v371 = vld [vmem:[%s0] sm:$0xff]
    %v372 = vld [vmem:[%s0 + $0x8] sm:$0xff]
    %v373 = vpack.c.bf16 %v372, %v371
    %v374 = vld [vmem:[#allocation2] sm:$0xff]
    %v375 = vld [vmem:[#allocation2 + $0x8] sm:$0xff]
    %v376 = vld [vmem:[#allocation2 + $0x10] sm:$0xff]
    %v377 = vld [vmem:[#allocation2 + $0x18] sm:$0xff]
    %v378 = vld [vmem:[#allocation2 + $0x20] sm:$0xff]
    %v379 = vld [vmem:[#allocation2 + $0x28] sm:$0xff]
    %v380 = vld [vmem:[#allocation2 + $0x30] sm:$0xff]
    %v381 = vld [vmem:[#allocation2 + $0x38] sm:$0xff]
    %v382 = vld [vmem:[#allocation2 + $0x40] sm:$0xff]
    %v383 = vld [vmem:[#allocation2 + $0x48] sm:$0xff]
    %v384 = vld [vmem:[#allocation2 + $0x50] sm:$0xff]
    %v385 = vld [vmem:[#allocation2 + $0x58] sm:$0xff]
    %v386 = vld [vmem:[#allocation2 + $0x60] sm:$0xff]
    %v387 = vld [vmem:[#allocation2 + $0x68] sm:$0xff]
    %v388 = vld [vmem:[#allocation2 + $0x70] sm:$0xff]
    %v389 = vld [vmem:[#allocation2 + $0x78] sm:$0xff]
    %v390 = vld [vmem:[#allocation2 + $0x80] sm:$0xff]
    %v391 = vld [vmem:[#allocation2 + $0x88] sm:$0xff]
    %v392 = vld [vmem:[#allocation2 + $0x90] sm:$0xff]
    %v393 = vld [vmem:[#allocation2 + $0x98] sm:$0xff]
    %v394 = vld [vmem:[#allocation2 + $0xa0] sm:$0xff]
    %v395 = vld [vmem:[#allocation2 + $0xa8] sm:$0xff]
    %v396 = vld [vmem:[#allocation2 + $0xb0] sm:$0xff]
    %v397 = vld [vmem:[#allocation2 + $0xb8] sm:$0xff]
    %v398 = vld [vmem:[#allocation2 + $0xc0] sm:$0xff]
    %v399 = vld [vmem:[#allocation2 + $0xc8] sm:$0xff]
    %v400 = vld [vmem:[#allocation2 + $0xd0] sm:$0xff]
    %v401 = vld [vmem:[#allocation2 + $0xd8] sm:$0xff]
    %v402 = vld [vmem:[#allocation2 + $0xe0] sm:$0xff]
    %v403 = vld [vmem:[#allocation2 + $0xe8] sm:$0xff]
    %v404 = vld [vmem:[#allocation2 + $0xf0] sm:$0xff]
    %v405 = vld [vmem:[#allocation2 + $0xf8] sm:$0xff]
    %v406 = vld [vmem:[#allocation6] sm:$0xf]
    %v408 = vlaneseq
    %v409 = vshrl.u32 %v408, 7
    %v410 = vsub.s32 0, %v409
    %v411 = vrot.slane %v406, %v410
    %v412 = vlaneseq
    %v413 = vshrl.u32 %v412, 7
    %v414 = vsub.s32 1, %v413
    %v415 = vrot.slane %v406, %v414
    %v416 = vlaneseq
    %v417 = vshrl.u32 %v416, 7
    %v418 = vsub.s32 2, %v417
    %v419 = vrot.slane %v406, %v418
    %v420 = vlaneseq
    %v421 = vshrl.u32 %v420, 7
    %v422 = vsub.s32 3, %v421
    %v423 = vrot.slane %v406, %v422
    %v460 = vunpack.c.l.b16 %v374
    %v461 = vunpack.c.h.b16 %v374
    %v462 = vunpack.c.l.b16 %v375
    %v463 = vunpack.c.h.b16 %v375
    %v464 = vunpack.c.l.b16 %v376
    %v465 = vunpack.c.h.b16 %v376
    %v466 = vunpack.c.l.b16 %v377
    %v467 = vunpack.c.h.b16 %v377
    %v468 = vunpack.c.l.b16 %v378
    %v469 = vunpack.c.h.b16 %v378
    %v470 = vunpack.c.l.b16 %v379
    %v471 = vunpack.c.h.b16 %v379
    %v472 = vunpack.c.l.b16 %v380
    %v473 = vunpack.c.h.b16 %v380
    %v474 = vunpack.c.l.b16 %v381
    %v475 = vunpack.c.h.b16 %v381
    %v476 = vunpack.c.l.b16 %v382
    %v477 = vunpack.c.h.b16 %v382
    %v478 = vunpack.c.l.b16 %v383
    %v479 = vunpack.c.h.b16 %v383
    %v480 = vunpack.c.l.b16 %v384
    %v481 = vunpack.c.h.b16 %v384
    %v482 = vunpack.c.l.b16 %v385
    %v483 = vunpack.c.h.b16 %v385
    %v484 = vunpack.c.l.b16 %v386
    %v485 = vunpack.c.h.b16 %v386
    %v486 = vunpack.c.l.b16 %v387
    %v487 = vunpack.c.h.b16 %v387
    %v488 = vunpack.c.l.b16 %v388
    %v489 = vunpack.c.h.b16 %v388
    %v490 = vunpack.c.l.b16 %v389
    %v491 = vunpack.c.h.b16 %v389
    %v492 = vunpack.c.l.b16 %v390
    %v493 = vunpack.c.h.b16 %v390
    %v494 = vunpack.c.l.b16 %v391
    %v495 = vunpack.c.h.b16 %v391
    %v496 = vunpack.c.l.b16 %v392
    %v497 = vunpack.c.h.b16 %v392
    %v498 = vunpack.c.l.b16 %v393
    %v499 = vunpack.c.h.b16 %v393
    %v500 = vunpack.c.l.b16 %v394
    %v501 = vunpack.c.h.b16 %v394
    %v502 = vunpack.c.l.b16 %v395
    %v503 = vunpack.c.h.b16 %v395
    %v504 = vunpack.c.l.b16 %v396
    %v505 = vunpack.c.h.b16 %v396
    %v506 = vunpack.c.l.b16 %v397
    %v507 = vunpack.c.h.b16 %v397
    %v508 = vunpack.c.l.b16 %v398
    %v509 = vunpack.c.h.b16 %v398
    %v510 = vunpack.c.l.b16 %v399
    %v511 = vunpack.c.h.b16 %v399
    %v512 = vunpack.c.l.b16 %v400
    %v513 = vunpack.c.h.b16 %v400
    %v514 = vunpack.c.l.b16 %v401
    %v515 = vunpack.c.h.b16 %v401
    %v516 = vunpack.c.l.b16 %v402
    %v517 = vunpack.c.h.b16 %v402
    %v518 = vunpack.c.l.b16 %v403
    %v519 = vunpack.c.h.b16 %v403
    %v520 = vunpack.c.l.b16 %v404
    %v521 = vunpack.c.h.b16 %v404
    %v522 = vunpack.c.l.b16 %v405
    %v523 = vunpack.c.h.b16 %v405
    %v524 = vpack.c.b16 %v464, %v460
    %v525 = vpack.c.b16 %v465, %v461
    %v526 = vpack.c.b16 %v466, %v462
    %v527 = vpack.c.b16 %v467, %v463
    %v528 = vpack.c.b16 %v472, %v468
    %v529 = vpack.c.b16 %v473, %v469
    %v530 = vpack.c.b16 %v474, %v470
    %v531 = vpack.c.b16 %v475, %v471
    %v532 = vpack.c.b16 %v480, %v476
    %v533 = vpack.c.b16 %v481, %v477
    %v534 = vpack.c.b16 %v482, %v478
    %v535 = vpack.c.b16 %v483, %v479
    %v536 = vpack.c.b16 %v488, %v484
    %v537 = vpack.c.b16 %v489, %v485
    %v538 = vpack.c.b16 %v490, %v486
    %v539 = vpack.c.b16 %v491, %v487
    %v540 = vpack.c.b16 %v496, %v492
    %v541 = vpack.c.b16 %v497, %v493
    %v542 = vpack.c.b16 %v498, %v494
    %v543 = vpack.c.b16 %v499, %v495
    %v544 = vpack.c.b16 %v504, %v500
    %v545 = vpack.c.b16 %v505, %v501
    %v546 = vpack.c.b16 %v506, %v502
    %v547 = vpack.c.b16 %v507, %v503
    %v548 = vpack.c.b16 %v512, %v508
    %v549 = vpack.c.b16 %v513, %v509
    %v550 = vpack.c.b16 %v514, %v510
    %v551 = vpack.c.b16 %v515, %v511
    %v552 = vpack.c.b16 %v520, %v516
    %v553 = vpack.c.b16 %v521, %v517
    %v554 = vpack.c.b16 %v522, %v518
    %v555 = vpack.c.b16 %v523, %v519
    %588 = vmatprep.subr.bf16.mxu0 %v553
    %589 = vmatpush1.bf16.msra.mxu0 %v552
    %590 = vmatprep.subr.bf16.mxu0 %v549
    %591 = vmatpush1.bf16.msra.mxu0 %v548
    %592 = vmatprep.subr.bf16.mxu0 %v545
    %593 = vmatpush1.bf16.msra.mxu0 %v544
    %594 = vmatprep.subr.bf16.mxu0 %v541
    %595 = vmatpush1.bf16.msra.mxu0 %v540
    %596 = vmatprep.subr.bf16.mxu0 %v537
    %597 = vmatpush1.bf16.msra.mxu0 %v536
    %598 = vmatprep.subr.bf16.mxu0 %v533
    %599 = vmatpush1.bf16.msra.mxu0 %v532
    %600 = vmatprep.subr.bf16.mxu0 %v529
    %601 = vmatpush1.bf16.msra.mxu0 %v528
    %602 = vmatprep.subr.bf16.mxu0 %v525
    %603 = vmatpush1.bf16.msra.mxu0 %v524
    %604 = vmatprep.subr.bf16.mxu0 0
    %605 = vmatpush2.bf16.msra.mxu0 0
    %606 = vmatprep.subr.bf16.mxu0 0
    %607 = vmatpush2.bf16.msra.mxu0 0
    %608 = vmatprep.subr.bf16.mxu0 0
    %609 = vmatpush2.bf16.msra.mxu0 0
    %610 = vmatprep.subr.bf16.mxu0 0
    %611 = vmatpush2.bf16.msra.mxu0 0
    %612 = vmatprep.subr.bf16.mxu0 0
    %613 = vmatpush2.bf16.msra.mxu0 0
    %614 = vmatprep.subr.bf16.mxu0 0
    %615 = vmatpush2.bf16.msra.mxu0 0
    %616 = vmatprep.subr.bf16.mxu0 0
    %617 = vmatpush2.bf16.msra.mxu0 0
    %618 = vmatprep.subr.bf16.mxu0 0
    %619 = vmatpush2.bf16.msra.mxu0 0
    %620 = vmatprep.mubr.bf16.mxu0 0
    %621 = vmatmul.mubr.bf16.gmra.mxu0 %v373
    %v622 = vpop.f32.mrf.mxu0
    %v623 = vadd.f32 %v411, %v622
    %v624 = vpop.f32.mrf.mxu0
    %v625 = vadd.f32 %v415, %v624
    %v626 = vpop.f32.mrf.mxu0
    %v627 = vadd.f32 %v411, %v626
    %v628 = vpop.f32.mrf.mxu0
    %v629 = vadd.f32 %v415, %v628
    %630 = vdwg.mxu0
    %631 = vmatprep.subr.bf16.mxu0 %v555
    %632 = vmatpush1.bf16.msra.mxu0 %v554
    %633 = vmatprep.subr.bf16.mxu0 %v551
    %634 = vmatpush1.bf16.msra.mxu0 %v550
    %635 = vmatprep.subr.bf16.mxu0 %v547
    %636 = vmatpush1.bf16.msra.mxu0 %v546
    %637 = vmatprep.subr.bf16.mxu0 %v543
    %638 = vmatpush1.bf16.msra.mxu0 %v542
    %639 = vmatprep.subr.bf16.mxu0 %v539
    %640 = vmatpush1.bf16.msra.mxu0 %v538
    %641 = vmatprep.subr.bf16.mxu0 %v535
    %642 = vmatpush1.bf16.msra.mxu0 %v534
    %643 = vmatprep.subr.bf16.mxu0 %v531
    %644 = vmatpush1.bf16.msra.mxu0 %v530
    %645 = vmatprep.subr.bf16.mxu0 %v527
    %646 = vmatpush1.bf16.msra.mxu0 %v526
    %647 = vmatprep.subr.bf16.mxu0 0
    %648 = vmatpush2.bf16.msra.mxu0 0
    %649 = vmatprep.subr.bf16.mxu0 0
    %650 = vmatpush2.bf16.msra.mxu0 0
    %651 = vmatprep.subr.bf16.mxu0 0
    %652 = vmatpush2.bf16.msra.mxu0 0
    %653 = vmatprep.subr.bf16.mxu0 0
    %654 = vmatpush2.bf16.msra.mxu0 0
    %655 = vmatprep.subr.bf16.mxu0 0
    %656 = vmatpush2.bf16.msra.mxu0 0
    %657 = vmatprep.subr.bf16.mxu0 0
    %658 = vmatpush2.bf16.msra.mxu0 0
    %659 = vmatprep.subr.bf16.mxu0 0
    %660 = vmatpush2.bf16.msra.mxu0 0
    %661 = vmatprep.subr.bf16.mxu0 0
    %662 = vmatpush2.bf16.msra.mxu0 0
    %663 = vmatprep.mubr.bf16.mxu0 0
    %664 = vmatmul.mubr.bf16.gmra.mxu0 %v373
    %v665 = vpop.f32.mrf.mxu0
    %v666 = vadd.f32 %v419, %v665
    %v667 = vpop.f32.mrf.mxu0
    %v668 = vadd.f32 %v423, %v667
    %v669 = vpop.f32.mrf.mxu0
    %v670 = vadd.f32 %v419, %v669
    %v671 = vpop.f32.mrf.mxu0
    %v672 = vadd.f32 %v423, %v671
    %673 = vdwg.mxu0
    %v674 = vld [vmem:[#allocation4] sm:$0xff]
    %v675 = vld [vmem:[#allocation4 + $0x8] sm:$0xff]
    %v676 = vld [vmem:[#allocation4 + $0x10] sm:$0xff]
    %v677 = vld [vmem:[#allocation4 + $0x18] sm:$0xff]
    %v678 = vld [vmem:[#allocation4 + $0x20] sm:$0xff]
    %v679 = vld [vmem:[#allocation4 + $0x28] sm:$0xff]
    %v680 = vld [vmem:[#allocation4 + $0x30] sm:$0xff]
    %v681 = vld [vmem:[#allocation4 + $0x38] sm:$0xff]
    %v682 = vld [vmem:[#allocation4 + $0x40] sm:$0xff]
    %v683 = vld [vmem:[#allocation4 + $0x48] sm:$0xff]
    %v684 = vld [vmem:[#allocation4 + $0x50] sm:$0xff]
    %v685 = vld [vmem:[#allocation4 + $0x58] sm:$0xff]
    %v686 = vld [vmem:[#allocation4 + $0x60] sm:$0xff]
    %v687 = vld [vmem:[#allocation4 + $0x68] sm:$0xff]
    %v688 = vld [vmem:[#allocation4 + $0x70] sm:$0xff]
    %v689 = vld [vmem:[#allocation4 + $0x78] sm:$0xff]
    %v690 = vld [vmem:[#allocation4 + $0x80] sm:$0xff]
    %v691 = vld [vmem:[#allocation4 + $0x88] sm:$0xff]
    %v692 = vld [vmem:[#allocation4 + $0x90] sm:$0xff]
    %v693 = vld [vmem:[#allocation4 + $0x98] sm:$0xff]
    %v694 = vld [vmem:[#allocation4 + $0xa0] sm:$0xff]
    %v695 = vld [vmem:[#allocation4 + $0xa8] sm:$0xff]
    %v696 = vld [vmem:[#allocation4 + $0xb0] sm:$0xff]
    %v697 = vld [vmem:[#allocation4 + $0xb8] sm:$0xff]
    %v698 = vld [vmem:[#allocation4 + $0xc0] sm:$0xff]
    %v699 = vld [vmem:[#allocation4 + $0xc8] sm:$0xff]
    %v700 = vld [vmem:[#allocation4 + $0xd0] sm:$0xff]
    %v701 = vld [vmem:[#allocation4 + $0xd8] sm:$0xff]
    %v702 = vld [vmem:[#allocation4 + $0xe0] sm:$0xff]
    %v703 = vld [vmem:[#allocation4 + $0xe8] sm:$0xff]
    %v704 = vld [vmem:[#allocation4 + $0xf0] sm:$0xff]
    %v705 = vld [vmem:[#allocation4 + $0xf8] sm:$0xff]
    %v738 = vunpack.c.l.b16 %v674
    %v739 = vunpack.c.h.b16 %v674
    %v740 = vunpack.c.l.b16 %v675
    %v741 = vunpack.c.h.b16 %v675
    %v742 = vunpack.c.l.b16 %v676
    %v743 = vunpack.c.h.b16 %v676
    %v744 = vunpack.c.l.b16 %v677
    %v745 = vunpack.c.h.b16 %v677
    %v746 = vunpack.c.l.b16 %v678
    %v747 = vunpack.c.h.b16 %v678
    %v748 = vunpack.c.l.b16 %v679
    %v749 = vunpack.c.h.b16 %v679
    %v750 = vunpack.c.l.b16 %v680
    %v751 = vunpack.c.h.b16 %v680
    %v752 = vunpack.c.l.b16 %v681
    %v753 = vunpack.c.h.b16 %v681
    %v754 = vunpack.c.l.b16 %v682
    %v755 = vunpack.c.h.b16 %v682
    %v756 = vunpack.c.l.b16 %v683
    %v757 = vunpack.c.h.b16 %v683
    %v758 = vunpack.c.l.b16 %v684
    %v759 = vunpack.c.h.b16 %v684
    %v760 = vunpack.c.l.b16 %v685
    %v761 = vunpack.c.h.b16 %v685
    %v762 = vunpack.c.l.b16 %v686
    %v763 = vunpack.c.h.b16 %v686
    %v764 = vunpack.c.l.b16 %v687
    %v765 = vunpack.c.h.b16 %v687
    %v766 = vunpack.c.l.b16 %v688
    %v767 = vunpack.c.h.b16 %v688
    %v768 = vunpack.c.l.b16 %v689
    %v769 = vunpack.c.h.b16 %v689
    %v770 = vunpack.c.l.b16 %v690
    %v771 = vunpack.c.h.b16 %v690
    %v772 = vunpack.c.l.b16 %v691
    %v773 = vunpack.c.h.b16 %v691
    %v774 = vunpack.c.l.b16 %v692
    %v775 = vunpack.c.h.b16 %v692
    %v776 = vunpack.c.l.b16 %v693
    %v777 = vunpack.c.h.b16 %v693
    %v778 = vunpack.c.l.b16 %v694
    %v779 = vunpack.c.h.b16 %v694
    %v780 = vunpack.c.l.b16 %v695
    %v781 = vunpack.c.h.b16 %v695
    %v782 = vunpack.c.l.b16 %v696
    %v783 = vunpack.c.h.b16 %v696
    %v784 = vunpack.c.l.b16 %v697
    %v785 = vunpack.c.h.b16 %v697
    %v786 = vunpack.c.l.b16 %v698
    %v787 = vunpack.c.h.b16 %v698
    %v788 = vunpack.c.l.b16 %v699
    %v789 = vunpack.c.h.b16 %v699
    %v790 = vunpack.c.l.b16 %v700
    %v791 = vunpack.c.h.b16 %v700
    %v792 = vunpack.c.l.b16 %v701
    %v793 = vunpack.c.h.b16 %v701
    %v794 = vunpack.c.l.b16 %v702
    %v795 = vunpack.c.h.b16 %v702
    %v796 = vunpack.c.l.b16 %v703
    %v797 = vunpack.c.h.b16 %v703
    %v798 = vunpack.c.l.b16 %v704
    %v799 = vunpack.c.h.b16 %v704
    %v800 = vunpack.c.l.b16 %v705
    %v801 = vunpack.c.h.b16 %v705
    %v802 = vpack.c.b16 %v742, %v738
    %v803 = vpack.c.b16 %v743, %v739
    %v804 = vpack.c.b16 %v744, %v740
    %v805 = vpack.c.b16 %v745, %v741
    %v806 = vpack.c.b16 %v750, %v746
    %v807 = vpack.c.b16 %v751, %v747
    %v808 = vpack.c.b16 %v752, %v748
    %v809 = vpack.c.b16 %v753, %v749
    %v810 = vpack.c.b16 %v758, %v754
    %v811 = vpack.c.b16 %v759, %v755
    %v812 = vpack.c.b16 %v760, %v756
    %v813 = vpack.c.b16 %v761, %v757
    %v814 = vpack.c.b16 %v766, %v762
    %v815 = vpack.c.b16 %v767, %v763
    %v816 = vpack.c.b16 %v768, %v764
    %v817 = vpack.c.b16 %v769, %v765
    %v818 = vpack.c.b16 %v774, %v770
    %v819 = vpack.c.b16 %v775, %v771
    %v820 = vpack.c.b16 %v776, %v772
    %v821 = vpack.c.b16 %v777, %v773
    %v822 = vpack.c.b16 %v782, %v778
    %v823 = vpack.c.b16 %v783, %v779
    %v824 = vpack.c.b16 %v784, %v780
    %v825 = vpack.c.b16 %v785, %v781
    %v826 = vpack.c.b16 %v790, %v786
    %v827 = vpack.c.b16 %v791, %v787
    %v828 = vpack.c.b16 %v792, %v788
    %v829 = vpack.c.b16 %v793, %v789
    %v830 = vpack.c.b16 %v798, %v794
    %v831 = vpack.c.b16 %v799, %v795
    %v832 = vpack.c.b16 %v800, %v796
    %v833 = vpack.c.b16 %v801, %v797
    %866 = vmatprep.subr.bf16.mxu0 %v831
    %867 = vmatpush1.bf16.msra.mxu0 %v830
    %868 = vmatprep.subr.bf16.mxu0 %v827
    %869 = vmatpush1.bf16.msra.mxu0 %v826
    %870 = vmatprep.subr.bf16.mxu0 %v823
    %871 = vmatpush1.bf16.msra.mxu0 %v822
    %872 = vmatprep.subr.bf16.mxu0 %v819
    %873 = vmatpush1.bf16.msra.mxu0 %v818
    %874 = vmatprep.subr.bf16.mxu0 %v815
    %875 = vmatpush1.bf16.msra.mxu0 %v814
    %876 = vmatprep.subr.bf16.mxu0 %v811
    %877 = vmatpush1.bf16.msra.mxu0 %v810
    %878 = vmatprep.subr.bf16.mxu0 %v807
    %879 = vmatpush1.bf16.msra.mxu0 %v806
    %880 = vmatprep.subr.bf16.mxu0 %v803
    %881 = vmatpush1.bf16.msra.mxu0 %v802
    %882 = vmatprep.subr.bf16.mxu0 0
    %883 = vmatpush2.bf16.msra.mxu0 0
    %884 = vmatprep.subr.bf16.mxu0 0
    %885 = vmatpush2.bf16.msra.mxu0 0
    %886 = vmatprep.subr.bf16.mxu0 0
    %887 = vmatpush2.bf16.msra.mxu0 0
    %888 = vmatprep.subr.bf16.mxu0 0
    %889 = vmatpush2.bf16.msra.mxu0 0
    %890 = vmatprep.subr.bf16.mxu0 0
    %891 = vmatpush2.bf16.msra.mxu0 0
    %892 = vmatprep.subr.bf16.mxu0 0
    %893 = vmatpush2.bf16.msra.mxu0 0
    %894 = vmatprep.subr.bf16.mxu0 0
    %895 = vmatpush2.bf16.msra.mxu0 0
    %896 = vmatprep.subr.bf16.mxu0 0
    %897 = vmatpush2.bf16.msra.mxu0 0
    %898 = vmatprep.mubr.bf16.mxu0 0
    %899 = vmatmul.mubr.bf16.gmra.mxu0 0
    %v900 = vpop.f32.mrf.mxu0
    %v901 = vadd.f32 0.0, %v900
    %v902 = vpop.f32.mrf.mxu0
    %v903 = vadd.f32 0.0, %v902
    %v904 = vpop.f32.mrf.mxu0
    %v905 = vpop.f32.mrf.mxu0
    %906 = vdwg.mxu0
    %907 = vmatprep.subr.bf16.mxu0 %v833
    %908 = vmatpush1.bf16.msra.mxu0 %v832
    %909 = vmatprep.subr.bf16.mxu0 %v829
    %910 = vmatpush1.bf16.msra.mxu0 %v828
    %911 = vmatprep.subr.bf16.mxu0 %v825
    %912 = vmatpush1.bf16.msra.mxu0 %v824
    %913 = vmatprep.subr.bf16.mxu0 %v821
    %914 = vmatpush1.bf16.msra.mxu0 %v820
    %915 = vmatprep.subr.bf16.mxu0 %v817
    %916 = vmatpush1.bf16.msra.mxu0 %v816
    %917 = vmatprep.subr.bf16.mxu0 %v813
    %918 = vmatpush1.bf16.msra.mxu0 %v812
    %919 = vmatprep.subr.bf16.mxu0 %v809
    %920 = vmatpush1.bf16.msra.mxu0 %v808
    %921 = vmatprep.subr.bf16.mxu0 %v805
    %922 = vmatpush1.bf16.msra.mxu0 %v804
    %923 = vmatprep.subr.bf16.mxu0 0
    %924 = vmatpush2.bf16.msra.mxu0 0
    %925 = vmatprep.subr.bf16.mxu0 0
    %926 = vmatpush2.bf16.msra.mxu0 0
    %927 = vmatprep.subr.bf16.mxu0 0
    %928 = vmatpush2.bf16.msra.mxu0 0
    %929 = vmatprep.subr.bf16.mxu0 0
    %930 = vmatpush2.bf16.msra.mxu0 0
    %931 = vmatprep.subr.bf16.mxu0 0
    %932 = vmatpush2.bf16.msra.mxu0 0
    %933 = vmatprep.subr.bf16.mxu0 0
    %934 = vmatpush2.bf16.msra.mxu0 0
    %935 = vmatprep.subr.bf16.mxu0 0
    %936 = vmatpush2.bf16.msra.mxu0 0
    %937 = vmatprep.subr.bf16.mxu0 0
    %938 = vmatpush2.bf16.msra.mxu0 0
    %939 = vmatprep.mubr.bf16.mxu0 0
    %940 = vmatmul.mubr.bf16.gmra.mxu0 0
    %v941 = vpop.f32.mrf.mxu0
    %v942 = vadd.f32 0.0, %v941
    %v943 = vpop.f32.mrf.mxu0
    %v944 = vadd.f32 0.0, %v943
    %v945 = vpop.f32.mrf.mxu0
    %v946 = vpop.f32.mrf.mxu0
    %947 = vdwg.mxu0
    %v952 = vrot.slane %v901, 1
    %v953 = vrot.slane %v903, 1
    %v954 = vrot.slane %v942, 1
    %v955 = vrot.slane %v944, 1
    %v964 = vadd.f32 %v623, %v901
    %v965 = vadd.f32 %v625, %v903
    %v966 = vadd.f32 %v666, %v942
    %v967 = vadd.f32 %v668, %v944
    %v968 = vadd.f32 %v627, %v952
    %v969 = vadd.f32 %v629, %v953
    %v970 = vadd.f32 %v670, %v954
    %v971 = vadd.f32 %v672, %v955
    %v972 = vxor.u32 %v964, 2147483648
    %v973 = vxor.u32 %v968, 2147483648
    %v974 = vmul.f32 %v972, 1.442695
    %v975 = vpow.pop %v974
    %v976 = vmul.f32 %v973, 1.442695
    %v977 = vpow.pop %v976
    %v978 = vadd.f32 %v975, 1.0
    %v979 = vadd.f32 %v977, 1.0
    %v980 = vrcp.pop %v978
    %v981 = vmul.f32 1.0, %v980
    %v982 = vrcp.pop %v979
    %v983 = vmul.f32 1.0, %v982
    %v984 = vxor.u32 %v965, 2147483648
    %v985 = vxor.u32 %v969, 2147483648
    %v986 = vmul.f32 %v984, 1.442695
    %v987 = vpow.pop %v986
    %v988 = vmul.f32 %v985, 1.442695
    %v989 = vpow.pop %v988
    %v990 = vadd.f32 %v987, 1.0
    %v991 = vadd.f32 %v989, 1.0
    %v992 = vrcp.pop %v990
    %v993 = vmul.f32 1.0, %v992
    %v994 = vrcp.pop %v991
    %v995 = vmul.f32 1.0, %v994
    %v996 = vtanh.pop %v966
    %v997 = vtanh.pop %v970
    %v998 = vxor.u32 %v967, 2147483648
    %v999 = vxor.u32 %v971, 2147483648
    %v1000 = vmul.f32 %v998, 1.442695
    %v1001 = vpow.pop %v1000
    %v1002 = vmul.f32 %v999, 1.442695
    %v1003 = vpow.pop %v1002
    %v1004 = vadd.f32 %v1001, 1.0
    %v1005 = vadd.f32 %v1003, 1.0
    %v1006 = vrcp.pop %v1004
    %v1007 = vmul.f32 1.0, %v1006
    %v1008 = vrcp.pop %v1005
    %v1009 = vmul.f32 1.0, %v1008
    %v1010 = vmul.f32 %v993, 0.0
    %v1011 = vmul.f32 %v995, 0.0
    %v1012 = vmul.f32 %v981, %v996
    %v1013 = vmul.f32 %v983, %v997
    %v1014 = vadd.f32 %v1010, %v1012
    %v1015 = vadd.f32 %v1011, %v1013
    %v1016 = vtanh.pop %v1014
    %v1017 = vtanh.pop %v1015
    %v1018 = vmul.f32 %v1007, %v1016
    %v1019 = vmul.f32 %v1009, %v1017
    %v1020 = vpack.c.bf16 %v1018, %v1018
    %v1021 = vpack.c.bf16 %v1019, %v1019
    %v1024 = vunpack.c.l.b16 %v1020
    %v1025 = vunpack.c.l.b16 %v1021
    %v1026 = vrot.slane %v1025, 7
    %vm1027 = vcmask 1041409
    %v1028 = vsel %vm1027, %v1026, %v1024
    %v1029 = vpack.c.b16 %v1028, %v1028
    %1031 = vmatprep.subr.bf16.mxu0 %v831
    %1032 = vmatpush1.bf16.msra.mxu0 %v830
    %1033 = vmatprep.subr.bf16.mxu0 %v827
    %1034 = vmatpush1.bf16.msra.mxu0 %v826
    %1035 = vmatprep.subr.bf16.mxu0 %v823
    %1036 = vmatpush1.bf16.msra.mxu0 %v822
    %1037 = vmatprep.subr.bf16.mxu0 %v819
    %1038 = vmatpush1.bf16.msra.mxu0 %v818
    %1039 = vmatprep.subr.bf16.mxu0 %v815
    %1040 = vmatpush1.bf16.msra.mxu0 %v814
    %1041 = vmatprep.subr.bf16.mxu0 %v811
    %1042 = vmatpush1.bf16.msra.mxu0 %v810
    %1043 = vmatprep.subr.bf16.mxu0 %v807
    %1044 = vmatpush1.bf16.msra.mxu0 %v806
    %1045 = vmatprep.subr.bf16.mxu0 %v803
    %1046 = vmatpush1.bf16.msra.mxu0 %v802
    %1047 = vmatprep.subr.bf16.mxu0 0
    %1048 = vmatpush2.bf16.msra.mxu0 0
    %1049 = vmatprep.subr.bf16.mxu0 0
    %1050 = vmatpush2.bf16.msra.mxu0 0
    %1051 = vmatprep.subr.bf16.mxu0 0
    %1052 = vmatpush2.bf16.msra.mxu0 0
    %1053 = vmatprep.subr.bf16.mxu0 0
    %1054 = vmatpush2.bf16.msra.mxu0 0
    %1055 = vmatprep.subr.bf16.mxu0 0
    %1056 = vmatpush2.bf16.msra.mxu0 0
    %1057 = vmatprep.subr.bf16.mxu0 0
    %1058 = vmatpush2.bf16.msra.mxu0 0
    %1059 = vmatprep.subr.bf16.mxu0 0
    %1060 = vmatpush2.bf16.msra.mxu0 0
    %1061 = vmatprep.subr.bf16.mxu0 0
    %1062 = vmatpush2.bf16.msra.mxu0 0
    %1063 = vmatprep.mubr.bf16.mxu0 0
    %1064 = vmatmul.mubr.bf16.gmra.mxu0 %v1029
    %v1065 = vpop.f32.mrf.mxu0
    %v1066 = vadd.f32 0.0, %v1065
    %v1067 = vpop.f32.mrf.mxu0
    %v1068 = vadd.f32 0.0, %v1067
    %v1069 = vpop.f32.mrf.mxu0
    %v1070 = vpop.f32.mrf.mxu0
    %1071 = vdwg.mxu0
    %1072 = vmatprep.subr.bf16.mxu0 %v833
    %1073 = vmatpush1.bf16.msra.mxu0 %v832
    %1074 = vmatprep.subr.bf16.mxu0 %v829
    %1075 = vmatpush1.bf16.msra.mxu0 %v828
    %1076 = vmatprep.subr.bf16.mxu0 %v825
    %1077 = vmatpush1.bf16.msra.mxu0 %v824
    %1078 = vmatprep.subr.bf16.mxu0 %v821
    %1079 = vmatpush1.bf16.msra.mxu0 %v820
    %1080 = vmatprep.subr.bf16.mxu0 %v817
    %1081 = vmatpush1.bf16.msra.mxu0 %v816
    %1082 = vmatprep.subr.bf16.mxu0 %v813
    %1083 = vmatpush1.bf16.msra.mxu0 %v812
    %1084 = vmatprep.subr.bf16.mxu0 %v809
    %1085 = vmatpush1.bf16.msra.mxu0 %v808
    %1086 = vmatprep.subr.bf16.mxu0 %v805
    %1087 = vmatpush1.bf16.msra.mxu0 %v804
    %1088 = vmatprep.subr.bf16.mxu0 0
    %1089 = vmatpush2.bf16.msra.mxu0 0
    %1090 = vmatprep.subr.bf16.mxu0 0
    %1091 = vmatpush2.bf16.msra.mxu0 0
    %1092 = vmatprep.subr.bf16.mxu0 0
    %1093 = vmatpush2.bf16.msra.mxu0 0
    %1094 = vmatprep.subr.bf16.mxu0 0
    %1095 = vmatpush2.bf16.msra.mxu0 0
    %1096 = vmatprep.subr.bf16.mxu0 0
    %1097 = vmatpush2.bf16.msra.mxu0 0
    %1098 = vmatprep.subr.bf16.mxu0 0
    %1099 = vmatpush2.bf16.msra.mxu0 0
    %1100 = vmatprep.subr.bf16.mxu0 0
    %1101 = vmatpush2.bf16.msra.mxu0 0
    %1102 = vmatprep.subr.bf16.mxu0 0
    %1103 = vmatpush2.bf16.msra.mxu0 0
    %1104 = vmatprep.mubr.bf16.mxu0 0
    %1105 = vmatmul.mubr.bf16.gmra.mxu0 %v1029
    %v1106 = vpop.f32.mrf.mxu0
    %v1107 = vadd.f32 0.0, %v1106
    %v1108 = vpop.f32.mrf.mxu0
    %v1109 = vadd.f32 0.0, %v1108
    %v1110 = vpop.f32.mrf.mxu0
    %v1111 = vpop.f32.mrf.mxu0
    %1112 = vdwg.mxu0
    %v1117 = vrot.slane %v1066, 7
    %v1118 = vrot.slane %v1068, 7
    %v1119 = vrot.slane %v1107, 7
    %v1120 = vrot.slane %v1109, 7
    %v1129 = vadd.f32 %v623, %v1117
    %v1130 = vadd.f32 %v625, %v1118
    %v1131 = vadd.f32 %v666, %v1119
    %v1132 = vadd.f32 %v668, %v1120
    %v1133 = vadd.f32 %v627, %v1066
    %v1134 = vadd.f32 %v629, %v1068
    %v1135 = vadd.f32 %v670, %v1107
    %v1136 = vadd.f32 %v672, %v1109
    %v1137 = vxor.u32 %v1129, 2147483648
    %v1138 = vxor.u32 %v1133, 2147483648
    %v1139 = vmul.f32 %v1137, 1.442695
    %v1140 = vpow.pop %v1139
    %v1141 = vmul.f32 %v1138, 1.442695
    %v1142 = vpow.pop %v1141
    %v1143 = vadd.f32 %v1140, 1.0
    %v1144 = vadd.f32 %v1142, 1.0
    %v1145 = vrcp.pop %v1143
    %v1146 = vmul.f32 1.0, %v1145
    %v1147 = vrcp.pop %v1144
    %v1148 = vmul.f32 1.0, %v1147
    %v1149 = vxor.u32 %v1130, 2147483648
    %v1150 = vxor.u32 %v1134, 2147483648
    %v1151 = vmul.f32 %v1149, 1.442695
    %v1152 = vpow.pop %v1151
    %v1153 = vmul.f32 %v1150, 1.442695
    %v1154 = vpow.pop %v1153
    %v1155 = vadd.f32 %v1152, 1.0
    %v1156 = vadd.f32 %v1154, 1.0
    %v1157 = vrcp.pop %v1155
    %v1158 = vmul.f32 1.0, %v1157
    %v1159 = vrcp.pop %v1156
    %v1160 = vmul.f32 1.0, %v1159
    %v1161 = vtanh.pop %v1131
    %v1162 = vtanh.pop %v1135
    %v1163 = vxor.u32 %v1132, 2147483648
    %v1164 = vxor.u32 %v1136, 2147483648
    %v1165 = vmul.f32 %v1163, 1.442695
    %v1166 = vpow.pop %v1165
    %v1167 = vmul.f32 %v1164, 1.442695
    %v1168 = vpow.pop %v1167
    %v1169 = vadd.f32 %v1166, 1.0
    %v1170 = vadd.f32 %v1168, 1.0
    %v1171 = vrcp.pop %v1169
    %v1172 = vmul.f32 1.0, %v1171
    %v1173 = vrcp.pop %v1170
    %v1174 = vmul.f32 1.0, %v1173
    %v1177 = vrot.slane %v1014, 7
    %v1178 = vrot.slane %v1015, 7
    %v1181 = vmul.f32 %v1158, %v1177
    %v1182 = vmul.f32 %v1160, %v1178
    %v1183 = vmul.f32 %v1146, %v1161
    %v1184 = vmul.f32 %v1148, %v1162
    %v1185 = vadd.f32 %v1181, %v1183
    %v1186 = vadd.f32 %v1182, %v1184
    %v1187 = vtanh.pop %v1185
    %v1188 = vtanh.pop %v1186
    %v1189 = vmul.f32 %v1172, %v1187
    %v1190 = vmul.f32 %v1174, %v1188
    %v1191 = vpack.c.bf16 %v1189, %v1189
    %v1192 = vpack.c.bf16 %v1190, %v1190
    %v1195 = vunpack.c.l.b16 %v1191
    %v1196 = vunpack.c.l.b16 %v1192
    %v1197 = vrot.slane %v1195, 1
    %v1198 = vsel %vm1027, %v1196, %v1197
    %v1199 = vpack.c.b16 %v1198, %v1198
    %1201 = vmatprep.subr.bf16.mxu0 %v831
    %1202 = vmatpush1.bf16.msra.mxu0 %v830
    %1203 = vmatprep.subr.bf16.mxu0 %v827
    %1204 = vmatpush1.bf16.msra.mxu0 %v826
    %1205 = vmatprep.subr.bf16.mxu0 %v823
    %1206 = vmatpush1.bf16.msra.mxu0 %v822
    %1207 = vmatprep.subr.bf16.mxu0 %v819
    %1208 = vmatpush1.bf16.msra.mxu0 %v818
    %1209 = vmatprep.subr.bf16.mxu0 %v815
    %1210 = vmatpush1.bf16.msra.mxu0 %v814
    %1211 = vmatprep.subr.bf16.mxu0 %v811
    %1212 = vmatpush1.bf16.msra.mxu0 %v810
    %1213 = vmatprep.subr.bf16.mxu0 %v807
    %1214 = vmatpush1.bf16.msra.mxu0 %v806
    %1215 = vmatprep.subr.bf16.mxu0 %v803
    %1216 = vmatpush1.bf16.msra.mxu0 %v802
    %1217 = vmatprep.subr.bf16.mxu0 0
    %1218 = vmatpush2.bf16.msra.mxu0 0
    %1219 = vmatprep.subr.bf16.mxu0 0
    %1220 = vmatpush2.bf16.msra.mxu0 0
    %1221 = vmatprep.subr.bf16.mxu0 0
    %1222 = vmatpush2.bf16.msra.mxu0 0
    %1223 = vmatprep.subr.bf16.mxu0 0
    %1224 = vmatpush2.bf16.msra.mxu0 0
    %1225 = vmatprep.subr.bf16.mxu0 0
    %1226 = vmatpush2.bf16.msra.mxu0 0
    %1227 = vmatprep.subr.bf16.mxu0 0
    %1228 = vmatpush2.bf16.msra.mxu0 0
    %1229 = vmatprep.subr.bf16.mxu0 0
    %1230 = vmatpush2.bf16.msra.mxu0 0
    %1231 = vmatprep.subr.bf16.mxu0 0
    %1232 = vmatpush2.bf16.msra.mxu0 0
    %1233 = vmatprep.mubr.bf16.mxu0 0
    %1234 = vmatmul.mubr.bf16.gmra.mxu0 %v1199
    %v1235 = vpop.f32.mrf.mxu0
    %v1236 = vadd.f32 0.0, %v1235
    %v1237 = vpop.f32.mrf.mxu0
    %v1238 = vadd.f32 0.0, %v1237
    %v1239 = vpop.f32.mrf.mxu0
    %v1240 = vpop.f32.mrf.mxu0
    %1241 = vdwg.mxu0
    %1242 = vmatprep.subr.bf16.mxu0 %v833
    %1243 = vmatpush1.bf16.msra.mxu0 %v832
    %1244 = vmatprep.subr.bf16.mxu0 %v829
    %1245 = vmatpush1.bf16.msra.mxu0 %v828
    %1246 = vmatprep.subr.bf16.mxu0 %v825
    %1247 = vmatpush1.bf16.msra.mxu0 %v824
    %1248 = vmatprep.subr.bf16.mxu0 %v821
    %1249 = vmatpush1.bf16.msra.mxu0 %v820
    %1250 = vmatprep.subr.bf16.mxu0 %v817
    %1251 = vmatpush1.bf16.msra.mxu0 %v816
    %1252 = vmatprep.subr.bf16.mxu0 %v813
    %1253 = vmatpush1.bf16.msra.mxu0 %v812
    %1254 = vmatprep.subr.bf16.mxu0 %v809
    %1255 = vmatpush1.bf16.msra.mxu0 %v808
    %1256 = vmatprep.subr.bf16.mxu0 %v805
    %1257 = vmatpush1.bf16.msra.mxu0 %v804
    %1258 = vmatprep.subr.bf16.mxu0 0
    %1259 = vmatpush2.bf16.msra.mxu0 0
    %1260 = vmatprep.subr.bf16.mxu0 0
    %1261 = vmatpush2.bf16.msra.mxu0 0
    %1262 = vmatprep.subr.bf16.mxu0 0
    %1263 = vmatpush2.bf16.msra.mxu0 0
    %1264 = vmatprep.subr.bf16.mxu0 0
    %1265 = vmatpush2.bf16.msra.mxu0 0
    %1266 = vmatprep.subr.bf16.mxu0 0
    %1267 = vmatpush2.bf16.msra.mxu0 0
    %1268 = vmatprep.subr.bf16.mxu0 0
    %1269 = vmatpush2.bf16.msra.mxu0 0
    %1270 = vmatprep.subr.bf16.mxu0 0
    %1271 = vmatpush2.bf16.msra.mxu0 0
    %1272 = vmatprep.subr.bf16.mxu0 0
    %1273 = vmatpush2.bf16.msra.mxu0 0
    %1274 = vmatprep.mubr.bf16.mxu0 0
    %1275 = vmatmul.mubr.bf16.gmra.mxu0 %v1199
    %v1276 = vpop.f32.mrf.mxu0
    %v1277 = vadd.f32 0.0, %v1276
    %v1278 = vpop.f32.mrf.mxu0
    %v1279 = vadd.f32 0.0, %v1278
    %v1280 = vpop.f32.mrf.mxu0
    %v1281 = vpop.f32.mrf.mxu0
    %1282 = vdwg.mxu0
    %v1287 = vrot.slane %v1236, 6
    %v1288 = vrot.slane %v1238, 6
    %v1289 = vrot.slane %v1277, 6
    %v1290 = vrot.slane %v1279, 6
    %v1291 = vrot.slane %v1236, 7
    %v1292 = vrot.slane %v1238, 7
    %v1293 = vrot.slane %v1277, 7
    %v1294 = vrot.slane %v1279, 7
    %v1303 = vadd.f32 %v623, %v1287
    %v1304 = vadd.f32 %v625, %v1288
    %v1305 = vadd.f32 %v666, %v1289
    %v1306 = vadd.f32 %v668, %v1290
    %v1307 = vadd.f32 %v627, %v1291
    %v1308 = vadd.f32 %v629, %v1292
    %v1309 = vadd.f32 %v670, %v1293
    %v1310 = vadd.f32 %v672, %v1294
    %v1311 = vxor.u32 %v1303, 2147483648
    %v1312 = vxor.u32 %v1307, 2147483648
    %v1313 = vmul.f32 %v1311, 1.442695
    %v1314 = vpow.pop %v1313
    %v1315 = vmul.f32 %v1312, 1.442695
    %v1316 = vpow.pop %v1315
    %v1317 = vadd.f32 %v1314, 1.0
    %v1318 = vadd.f32 %v1316, 1.0
    %v1319 = vrcp.pop %v1317
    %v1320 = vmul.f32 1.0, %v1319
    %v1321 = vrcp.pop %v1318
    %v1322 = vmul.f32 1.0, %v1321
    %v1323 = vxor.u32 %v1304, 2147483648
    %v1324 = vxor.u32 %v1308, 2147483648
    %v1325 = vmul.f32 %v1323, 1.442695
    %v1326 = vpow.pop %v1325
    %v1327 = vmul.f32 %v1324, 1.442695
    %v1328 = vpow.pop %v1327
    %v1329 = vadd.f32 %v1326, 1.0
    %v1330 = vadd.f32 %v1328, 1.0
    %v1331 = vrcp.pop %v1329
    %v1332 = vmul.f32 1.0, %v1331
    %v1333 = vrcp.pop %v1330
    %v1334 = vmul.f32 1.0, %v1333
    %v1335 = vtanh.pop %v1305
    %v1336 = vtanh.pop %v1309
    %v1337 = vxor.u32 %v1306, 2147483648
    %v1338 = vxor.u32 %v1310, 2147483648
    %v1339 = vmul.f32 %v1337, 1.442695
    %v1340 = vpow.pop %v1339
    %v1341 = vmul.f32 %v1338, 1.442695
    %v1342 = vpow.pop %v1341
    %v1343 = vadd.f32 %v1340, 1.0
    %v1344 = vadd.f32 %v1342, 1.0
    %v1345 = vrcp.pop %v1343
    %v1346 = vmul.f32 1.0, %v1345
    %v1347 = vrcp.pop %v1344
    %v1348 = vmul.f32 1.0, %v1347
    %v1351 = vrot.slane %v1185, 7
    %v1352 = vrot.slane %v1186, 7
    %v1355 = vmul.f32 %v1332, %v1351
    %v1356 = vmul.f32 %v1334, %v1352
    %v1357 = vmul.f32 %v1320, %v1335
    %v1358 = vmul.f32 %v1322, %v1336
    %v1359 = vadd.f32 %v1355, %v1357
    %v1360 = vadd.f32 %v1356, %v1358
    %v1361 = vtanh.pop %v1359
    %v1362 = vtanh.pop %v1360
    %v1363 = vmul.f32 %v1346, %v1361
    %v1364 = vmul.f32 %v1348, %v1362
    %v1365 = vpack.c.bf16 %v1363, %v1363
    %v1366 = vpack.c.bf16 %v1364, %v1364
    %v1369 = vunpack.c.l.b16 %v1365
    %v1370 = vunpack.c.l.b16 %v1366
    %v1371 = vrot.slane %v1369, 2
    %v1372 = vrot.slane %v1370, 1
    %v1373 = vsel %vm1027, %v1372, %v1371
    %v1374 = vpack.c.b16 %v1373, %v1373
    %1376 = vmatprep.subr.bf16.mxu0 %v831
    %1377 = vmatpush1.bf16.msra.mxu0 %v830
    %1378 = vmatprep.subr.bf16.mxu0 %v827
    %1379 = vmatpush1.bf16.msra.mxu0 %v826
    %1380 = vmatprep.subr.bf16.mxu0 %v823
    %1381 = vmatpush1.bf16.msra.mxu0 %v822
    %1382 = vmatprep.subr.bf16.mxu0 %v819
    %1383 = vmatpush1.bf16.msra.mxu0 %v818
    %1384 = vmatprep.subr.bf16.mxu0 %v815
    %1385 = vmatpush1.bf16.msra.mxu0 %v814
    %1386 = vmatprep.subr.bf16.mxu0 %v811
    %1387 = vmatpush1.bf16.msra.mxu0 %v810
    %1388 = vmatprep.subr.bf16.mxu0 %v807
    %1389 = vmatpush1.bf16.msra.mxu0 %v806
    %1390 = vmatprep.subr.bf16.mxu0 %v803
    %1391 = vmatpush1.bf16.msra.mxu0 %v802
    %1392 = vmatprep.subr.bf16.mxu0 0
    %1393 = vmatpush2.bf16.msra.mxu0 0
    %1394 = vmatprep.subr.bf16.mxu0 0
    %1395 = vmatpush2.bf16.msra.mxu0 0
    %1396 = vmatprep.subr.bf16.mxu0 0
    %1397 = vmatpush2.bf16.msra.mxu0 0
    %1398 = vmatprep.subr.bf16.mxu0 0
    %1399 = vmatpush2.bf16.msra.mxu0 0
    %1400 = vmatprep.subr.bf16.mxu0 0
    %1401 = vmatpush2.bf16.msra.mxu0 0
    %1402 = vmatprep.subr.bf16.mxu0 0
    %1403 = vmatpush2.bf16.msra.mxu0 0
    %1404 = vmatprep.subr.bf16.mxu0 0
    %1405 = vmatpush2.bf16.msra.mxu0 0
    %1406 = vmatprep.subr.bf16.mxu0 0
    %1407 = vmatpush2.bf16.msra.mxu0 0
    %1408 = vmatprep.mubr.bf16.mxu0 0
    %1409 = vmatmul.mubr.bf16.gmra.mxu0 %v1374
    %v1410 = vpop.f32.mrf.mxu0
    %v1411 = vadd.f32 0.0, %v1410
    %v1412 = vpop.f32.mrf.mxu0
    %v1413 = vadd.f32 0.0, %v1412
    %v1414 = vpop.f32.mrf.mxu0
    %v1415 = vpop.f32.mrf.mxu0
    %1416 = vdwg.mxu0
    %1417 = vmatprep.subr.bf16.mxu0 %v833
    %1418 = vmatpush1.bf16.msra.mxu0 %v832
    %1419 = vmatprep.subr.bf16.mxu0 %v829
    %1420 = vmatpush1.bf16.msra.mxu0 %v828
    %1421 = vmatprep.subr.bf16.mxu0 %v825
    %1422 = vmatpush1.bf16.msra.mxu0 %v824
    %1423 = vmatprep.subr.bf16.mxu0 %v821
    %1424 = vmatpush1.bf16.msra.mxu0 %v820
    %1425 = vmatprep.subr.bf16.mxu0 %v817
    %1426 = vmatpush1.bf16.msra.mxu0 %v816
    %1427 = vmatprep.subr.bf16.mxu0 %v813
    %1428 = vmatpush1.bf16.msra.mxu0 %v812
    %1429 = vmatprep.subr.bf16.mxu0 %v809
    %1430 = vmatpush1.bf16.msra.mxu0 %v808
    %1431 = vmatprep.subr.bf16.mxu0 %v805
    %1432 = vmatpush1.bf16.msra.mxu0 %v804
    %1433 = vmatprep.subr.bf16.mxu0 0
    %1434 = vmatpush2.bf16.msra.mxu0 0
    %1435 = vmatprep.subr.bf16.mxu0 0
    %1436 = vmatpush2.bf16.msra.mxu0 0
    %1437 = vmatprep.subr.bf16.mxu0 0
    %1438 = vmatpush2.bf16.msra.mxu0 0
    %1439 = vmatprep.subr.bf16.mxu0 0
    %1440 = vmatpush2.bf16.msra.mxu0 0
    %1441 = vmatprep.subr.bf16.mxu0 0
    %1442 = vmatpush2.bf16.msra.mxu0 0
    %1443 = vmatprep.subr.bf16.mxu0 0
    %1444 = vmatpush2.bf16.msra.mxu0 0
    %1445 = vmatprep.subr.bf16.mxu0 0
    %1446 = vmatpush2.bf16.msra.mxu0 0
    %1447 = vmatprep.subr.bf16.mxu0 0
    %1448 = vmatpush2.bf16.msra.mxu0 0
    %1449 = vmatprep.mubr.bf16.mxu0 0
    %1450 = vmatmul.mubr.bf16.gmra.mxu0 %v1374
    %v1451 = vpop.f32.mrf.mxu0
    %v1452 = vadd.f32 0.0, %v1451
    %v1453 = vpop.f32.mrf.mxu0
    %v1454 = vadd.f32 0.0, %v1453
    %v1455 = vpop.f32.mrf.mxu0
    %v1456 = vpop.f32.mrf.mxu0
    %1457 = vdwg.mxu0
    %v1462 = vrot.slane %v1411, 5
    %v1463 = vrot.slane %v1413, 5
    %v1464 = vrot.slane %v1452, 5
    %v1465 = vrot.slane %v1454, 5
    %v1466 = vrot.slane %v1411, 6
    %v1467 = vrot.slane %v1413, 6
    %v1468 = vrot.slane %v1452, 6
    %v1469 = vrot.slane %v1454, 6
    %v1478 = vadd.f32 %v623, %v1462
    %v1479 = vadd.f32 %v625, %v1463
    %v1480 = vadd.f32 %v666, %v1464
    %v1481 = vadd.f32 %v668, %v1465
    %v1482 = vadd.f32 %v627, %v1466
    %v1483 = vadd.f32 %v629, %v1467
    %v1484 = vadd.f32 %v670, %v1468
    %v1485 = vadd.f32 %v672, %v1469
    %v1486 = vxor.u32 %v1478, 2147483648
    %v1487 = vxor.u32 %v1482, 2147483648
    %v1488 = vmul.f32 %v1486, 1.442695
    %v1489 = vpow.pop %v1488
    %v1490 = vmul.f32 %v1487, 1.442695
    %v1491 = vpow.pop %v1490
    %v1492 = vadd.f32 %v1489, 1.0
    %v1493 = vadd.f32 %v1491, 1.0
    %v1494 = vrcp.pop %v1492
    %v1495 = vmul.f32 1.0, %v1494
    %v1496 = vrcp.pop %v1493
    %v1497 = vmul.f32 1.0, %v1496
    %v1498 = vxor.u32 %v1479, 2147483648
    %v1499 = vxor.u32 %v1483, 2147483648
    %v1500 = vmul.f32 %v1498, 1.442695
    %v1501 = vpow.pop %v1500
    %v1502 = vmul.f32 %v1499, 1.442695
    %v1503 = vpow.pop %v1502
    %v1504 = vadd.f32 %v1501, 1.0
    %v1505 = vadd.f32 %v1503, 1.0
    %v1506 = vrcp.pop %v1504
    %v1507 = vmul.f32 1.0, %v1506
    %v1508 = vrcp.pop %v1505
    %v1509 = vmul.f32 1.0, %v1508
    %v1510 = vtanh.pop %v1480
    %v1511 = vtanh.pop %v1484
    %v1512 = vxor.u32 %v1481, 2147483648
    %v1513 = vxor.u32 %v1485, 2147483648
    %v1514 = vmul.f32 %v1512, 1.442695
    %v1515 = vpow.pop %v1514
    %v1516 = vmul.f32 %v1513, 1.442695
    %v1517 = vpow.pop %v1516
    %v1518 = vadd.f32 %v1515, 1.0
    %v1519 = vadd.f32 %v1517, 1.0
    %v1520 = vrcp.pop %v1518
    %v1521 = vmul.f32 1.0, %v1520
    %v1522 = vrcp.pop %v1519
    %v1523 = vmul.f32 1.0, %v1522
    %v1526 = vrot.slane %v1359, 7
    %v1527 = vrot.slane %v1360, 7
    %v1530 = vmul.f32 %v1507, %v1526
    %v1531 = vmul.f32 %v1509, %v1527
    %v1532 = vmul.f32 %v1495, %v1510
    %v1533 = vmul.f32 %v1497, %v1511
    %v1534 = vadd.f32 %v1530, %v1532
    %v1535 = vadd.f32 %v1531, %v1533
    %v1536 = vtanh.pop %v1534
    %v1537 = vtanh.pop %v1535
    %v1538 = vmul.f32 %v1521, %v1536
    %v1539 = vmul.f32 %v1523, %v1537
    %v1540 = vpack.c.bf16 %v1538, %v1538
    %v1541 = vpack.c.bf16 %v1539, %v1539
    %v1544 = vunpack.c.l.b16 %v1540
    %v1545 = vunpack.c.l.b16 %v1541
    %v1546 = vrot.slane %v1544, 3
    %v1547 = vrot.slane %v1545, 2
    %v1548 = vsel %vm1027, %v1547, %v1546
    %v1549 = vpack.c.b16 %v1548, %v1548
    %1551 = vmatprep.subr.bf16.mxu0 %v831
    %1552 = vmatpush1.bf16.msra.mxu0 %v830
    %1553 = vmatprep.subr.bf16.mxu0 %v827
    %1554 = vmatpush1.bf16.msra.mxu0 %v826
    %1555 = vmatprep.subr.bf16.mxu0 %v823
    %1556 = vmatpush1.bf16.msra.mxu0 %v822
    %1557 = vmatprep.subr.bf16.mxu0 %v819
    %1558 = vmatpush1.bf16.msra.mxu0 %v818
    %1559 = vmatprep.subr.bf16.mxu0 %v815
    %1560 = vmatpush1.bf16.msra.mxu0 %v814
    %1561 = vmatprep.subr.bf16.mxu0 %v811
    %1562 = vmatpush1.bf16.msra.mxu0 %v810
    %1563 = vmatprep.subr.bf16.mxu0 %v807
    %1564 = vmatpush1.bf16.msra.mxu0 %v806
    %1565 = vmatprep.subr.bf16.mxu0 %v803
    %1566 = vmatpush1.bf16.msra.mxu0 %v802
    %1567 = vmatprep.subr.bf16.mxu0 0
    %1568 = vmatpush2.bf16.msra.mxu0 0
    %1569 = vmatprep.subr.bf16.mxu0 0
    %1570 = vmatpush2.bf16.msra.mxu0 0
    %1571 = vmatprep.subr.bf16.mxu0 0
    %1572 = vmatpush2.bf16.msra.mxu0 0
    %1573 = vmatprep.subr.bf16.mxu0 0
    %1574 = vmatpush2.bf16.msra.mxu0 0
    %1575 = vmatprep.subr.bf16.mxu0 0
    %1576 = vmatpush2.bf16.msra.mxu0 0
    %1577 = vmatprep.subr.bf16.mxu0 0
    %1578 = vmatpush2.bf16.msra.mxu0 0
    %1579 = vmatprep.subr.bf16.mxu0 0
    %1580 = vmatpush2.bf16.msra.mxu0 0
    %1581 = vmatprep.subr.bf16.mxu0 0
    %1582 = vmatpush2.bf16.msra.mxu0 0
    %1583 = vmatprep.mubr.bf16.mxu0 0
    %1584 = vmatmul.mubr.bf16.gmra.mxu0 %v1549
    %v1585 = vpop.f32.mrf.mxu0
    %v1586 = vadd.f32 0.0, %v1585
    %v1587 = vpop.f32.mrf.mxu0
    %v1588 = vadd.f32 0.0, %v1587
    %v1589 = vpop.f32.mrf.mxu0
    %v1590 = vpop.f32.mrf.mxu0
    %1591 = vdwg.mxu0
    %1592 = vmatprep.subr.bf16.mxu0 %v833
    %1593 = vmatpush1.bf16.msra.mxu0 %v832
    %1594 = vmatprep.subr.bf16.mxu0 %v829
    %1595 = vmatpush1.bf16.msra.mxu0 %v828
    %1596 = vmatprep.subr.bf16.mxu0 %v825
    %1597 = vmatpush1.bf16.msra.mxu0 %v824
    %1598 = vmatprep.subr.bf16.mxu0 %v821
    %1599 = vmatpush1.bf16.msra.mxu0 %v820
    %1600 = vmatprep.subr.bf16.mxu0 %v817
    %1601 = vmatpush1.bf16.msra.mxu0 %v816
    %1602 = vmatprep.subr.bf16.mxu0 %v813
    %1603 = vmatpush1.bf16.msra.mxu0 %v812
    %1604 = vmatprep.subr.bf16.mxu0 %v809
    %1605 = vmatpush1.bf16.msra.mxu0 %v808
    %1606 = vmatprep.subr.bf16.mxu0 %v805
    %1607 = vmatpush1.bf16.msra.mxu0 %v804
    %1608 = vmatprep.subr.bf16.mxu0 0
    %1609 = vmatpush2.bf16.msra.mxu0 0
    %1610 = vmatprep.subr.bf16.mxu0 0
    %1611 = vmatpush2.bf16.msra.mxu0 0
    %1612 = vmatprep.subr.bf16.mxu0 0
    %1613 = vmatpush2.bf16.msra.mxu0 0
    %1614 = vmatprep.subr.bf16.mxu0 0
    %1615 = vmatpush2.bf16.msra.mxu0 0
    %1616 = vmatprep.subr.bf16.mxu0 0
    %1617 = vmatpush2.bf16.msra.mxu0 0
    %1618 = vmatprep.subr.bf16.mxu0 0
    %1619 = vmatpush2.bf16.msra.mxu0 0
    %1620 = vmatprep.subr.bf16.mxu0 0
    %1621 = vmatpush2.bf16.msra.mxu0 0
    %1622 = vmatprep.subr.bf16.mxu0 0
    %1623 = vmatpush2.bf16.msra.mxu0 0
    %1624 = vmatprep.mubr.bf16.mxu0 0
    %1625 = vmatmul.mubr.bf16.gmra.mxu0 %v1549
    %v1626 = vpop.f32.mrf.mxu0
    %v1627 = vadd.f32 0.0, %v1626
    %v1628 = vpop.f32.mrf.mxu0
    %v1629 = vadd.f32 0.0, %v1628
    %v1630 = vpop.f32.mrf.mxu0
    %v1631 = vpop.f32.mrf.mxu0
    %1632 = vdwg.mxu0
    %v1637 = vrot.slane %v1586, 4
    %v1638 = vrot.slane %v1588, 4
    %v1639 = vrot.slane %v1627, 4
    %v1640 = vrot.slane %v1629, 4
    %v1641 = vrot.slane %v1586, 5
    %v1642 = vrot.slane %v1588, 5
    %v1643 = vrot.slane %v1627, 5
    %v1644 = vrot.slane %v1629, 5
    %v1653 = vadd.f32 %v623, %v1637
    %v1654 = vadd.f32 %v625, %v1638
    %v1655 = vadd.f32 %v666, %v1639
    %v1656 = vadd.f32 %v668, %v1640
    %v1657 = vadd.f32 %v627, %v1641
    %v1658 = vadd.f32 %v629, %v1642
    %v1659 = vadd.f32 %v670, %v1643
    %v1660 = vadd.f32 %v672, %v1644
    %v1661 = vxor.u32 %v1653, 2147483648
    %v1662 = vxor.u32 %v1657, 2147483648
    %v1663 = vmul.f32 %v1661, 1.442695
    %v1664 = vpow.pop %v1663
    %v1665 = vmul.f32 %v1662, 1.442695
    %v1666 = vpow.pop %v1665
    %v1667 = vadd.f32 %v1664, 1.0
    %v1668 = vadd.f32 %v1666, 1.0
    %v1669 = vrcp.pop %v1667
    %v1670 = vmul.f32 1.0, %v1669
    %v1671 = vrcp.pop %v1668
    %v1672 = vmul.f32 1.0, %v1671
    %v1673 = vxor.u32 %v1654, 2147483648
    %v1674 = vxor.u32 %v1658, 2147483648
    %v1675 = vmul.f32 %v1673, 1.442695
    %v1676 = vpow.pop %v1675
    %v1677 = vmul.f32 %v1674, 1.442695
    %v1678 = vpow.pop %v1677
    %v1679 = vadd.f32 %v1676, 1.0
    %v1680 = vadd.f32 %v1678, 1.0
    %v1681 = vrcp.pop %v1679
    %v1682 = vmul.f32 1.0, %v1681
    %v1683 = vrcp.pop %v1680
    %v1684 = vmul.f32 1.0, %v1683
    %v1685 = vtanh.pop %v1655
    %v1686 = vtanh.pop %v1659
    %v1687 = vxor.u32 %v1656, 2147483648
    %v1688 = vxor.u32 %v1660, 2147483648
    %v1689 = vmul.f32 %v1687, 1.442695
    %v1690 = vpow.pop %v1689
    %v1691 = vmul.f32 %v1688, 1.442695
    %v1692 = vpow.pop %v1691
    %v1693 = vadd.f32 %v1690, 1.0
    %v1694 = vadd.f32 %v1692, 1.0
    %v1695 = vrcp.pop %v1693
    %v1696 = vmul.f32 1.0, %v1695
    %v1697 = vrcp.pop %v1694
    %v1698 = vmul.f32 1.0, %v1697
    %v1701 = vrot.slane %v1534, 7
    %v1702 = vrot.slane %v1535, 7
    %v1705 = vmul.f32 %v1682, %v1701
    %v1706 = vmul.f32 %v1684, %v1702
    %v1707 = vmul.f32 %v1670, %v1685
    %v1708 = vmul.f32 %v1672, %v1686
    %v1709 = vadd.f32 %v1705, %v1707
    %v1710 = vadd.f32 %v1706, %v1708
    %v1711 = vtanh.pop %v1709
    %v1712 = vtanh.pop %v1710
    %v1713 = vmul.f32 %v1696, %v1711
    %v1714 = vmul.f32 %v1698, %v1712
    %v1715 = vpack.c.bf16 %v1713, %v1713
    %v1716 = vpack.c.bf16 %v1714, %v1714
    %v1719 = vunpack.c.l.b16 %v1715
    %v1720 = vunpack.c.l.b16 %v1716
    %v1721 = vrot.slane %v1719, 4
    %v1722 = vrot.slane %v1720, 3
    %v1723 = vsel %vm1027, %v1722, %v1721
    %v1724 = vpack.c.b16 %v1723, %v1723
    %1726 = vmatprep.subr.bf16.mxu0 %v831
    %1727 = vmatpush1.bf16.msra.mxu0 %v830
    %1728 = vmatprep.subr.bf16.mxu0 %v827
    %1729 = vmatpush1.bf16.msra.mxu0 %v826
    %1730 = vmatprep.subr.bf16.mxu0 %v823
    %1731 = vmatpush1.bf16.msra.mxu0 %v822
    %1732 = vmatprep.subr.bf16.mxu0 %v819
    %1733 = vmatpush1.bf16.msra.mxu0 %v818
    %1734 = vmatprep.subr.bf16.mxu0 %v815
    %1735 = vmatpush1.bf16.msra.mxu0 %v814
    %1736 = vmatprep.subr.bf16.mxu0 %v811
    %1737 = vmatpush1.bf16.msra.mxu0 %v810
    %1738 = vmatprep.subr.bf16.mxu0 %v807
    %1739 = vmatpush1.bf16.msra.mxu0 %v806
    %1740 = vmatprep.subr.bf16.mxu0 %v803
    %1741 = vmatpush1.bf16.msra.mxu0 %v802
    %1742 = vmatprep.subr.bf16.mxu0 0
    %1743 = vmatpush2.bf16.msra.mxu0 0
    %1744 = vmatprep.subr.bf16.mxu0 0
    %1745 = vmatpush2.bf16.msra.mxu0 0
    %1746 = vmatprep.subr.bf16.mxu0 0
    %1747 = vmatpush2.bf16.msra.mxu0 0
    %1748 = vmatprep.subr.bf16.mxu0 0
    %1749 = vmatpush2.bf16.msra.mxu0 0
    %1750 = vmatprep.subr.bf16.mxu0 0
    %1751 = vmatpush2.bf16.msra.mxu0 0
    %1752 = vmatprep.subr.bf16.mxu0 0
    %1753 = vmatpush2.bf16.msra.mxu0 0
    %1754 = vmatprep.subr.bf16.mxu0 0
    %1755 = vmatpush2.bf16.msra.mxu0 0
    %1756 = vmatprep.subr.bf16.mxu0 0
    %1757 = vmatpush2.bf16.msra.mxu0 0
    %1758 = vmatprep.mubr.bf16.mxu0 0
    %1759 = vmatmul.mubr.bf16.gmra.mxu0 %v1724
    %v1760 = vpop.f32.mrf.mxu0
    %v1761 = vadd.f32 0.0, %v1760
    %v1762 = vpop.f32.mrf.mxu0
    %v1763 = vadd.f32 0.0, %v1762
    %v1764 = vpop.f32.mrf.mxu0
    %v1765 = vpop.f32.mrf.mxu0
    %1766 = vdwg.mxu0
    %1767 = vmatprep.subr.bf16.mxu0 %v833
    %1768 = vmatpush1.bf16.msra.mxu0 %v832
    %1769 = vmatprep.subr.bf16.mxu0 %v829
    %1770 = vmatpush1.bf16.msra.mxu0 %v828
    %1771 = vmatprep.subr.bf16.mxu0 %v825
    %1772 = vmatpush1.bf16.msra.mxu0 %v824
    %1773 = vmatprep.subr.bf16.mxu0 %v821
    %1774 = vmatpush1.bf16.msra.mxu0 %v820
    %1775 = vmatprep.subr.bf16.mxu0 %v817
    %1776 = vmatpush1.bf16.msra.mxu0 %v816
    %1777 = vmatprep.subr.bf16.mxu0 %v813
    %1778 = vmatpush1.bf16.msra.mxu0 %v812
    %1779 = vmatprep.subr.bf16.mxu0 %v809
    %1780 = vmatpush1.bf16.msra.mxu0 %v808
    %1781 = vmatprep.subr.bf16.mxu0 %v805
    %1782 = vmatpush1.bf16.msra.mxu0 %v804
    %1783 = vmatprep.subr.bf16.mxu0 0
    %1784 = vmatpush2.bf16.msra.mxu0 0
    %1785 = vmatprep.subr.bf16.mxu0 0
    %1786 = vmatpush2.bf16.msra.mxu0 0
    %1787 = vmatprep.subr.bf16.mxu0 0
    %1788 = vmatpush2.bf16.msra.mxu0 0
    %1789 = vmatprep.subr.bf16.mxu0 0
    %1790 = vmatpush2.bf16.msra.mxu0 0
    %1791 = vmatprep.subr.bf16.mxu0 0
    %1792 = vmatpush2.bf16.msra.mxu0 0
    %1793 = vmatprep.subr.bf16.mxu0 0
    %1794 = vmatpush2.bf16.msra.mxu0 0
    %1795 = vmatprep.subr.bf16.mxu0 0
    %1796 = vmatpush2.bf16.msra.mxu0 0
    %1797 = vmatprep.subr.bf16.mxu0 0
    %1798 = vmatpush2.bf16.msra.mxu0 0
    %1799 = vmatprep.mubr.bf16.mxu0 0
    %1800 = vmatmul.mubr.bf16.gmra.mxu0 %v1724
    %v1801 = vpop.f32.mrf.mxu0
    %v1802 = vadd.f32 0.0, %v1801
    %v1803 = vpop.f32.mrf.mxu0
    %v1804 = vadd.f32 0.0, %v1803
    %v1805 = vpop.f32.mrf.mxu0
    %v1806 = vpop.f32.mrf.mxu0
    %1807 = vdwg.mxu0
    %v1812 = vrot.slane %v1761, 3
    %v1813 = vrot.slane %v1763, 3
    %v1814 = vrot.slane %v1802, 3
    %v1815 = vrot.slane %v1804, 3
    %v1816 = vrot.slane %v1761, 4
    %v1817 = vrot.slane %v1763, 4
    %v1818 = vrot.slane %v1802, 4
    %v1819 = vrot.slane %v1804, 4
    %v1828 = vadd.f32 %v623, %v1812
    %v1829 = vadd.f32 %v625, %v1813
    %v1830 = vadd.f32 %v666, %v1814
    %v1831 = vadd.f32 %v668, %v1815
    %v1832 = vadd.f32 %v627, %v1816
    %v1833 = vadd.f32 %v629, %v1817
    %v1834 = vadd.f32 %v670, %v1818
    %v1835 = vadd.f32 %v672, %v1819
    %v1836 = vxor.u32 %v1828, 2147483648
    %v1837 = vxor.u32 %v1832, 2147483648
    %v1838 = vmul.f32 %v1836, 1.442695
    %v1839 = vpow.pop %v1838
    %v1840 = vmul.f32 %v1837, 1.442695
    %v1841 = vpow.pop %v1840
    %v1842 = vadd.f32 %v1839, 1.0
    %v1843 = vadd.f32 %v1841, 1.0
    %v1844 = vrcp.pop %v1842
    %v1845 = vmul.f32 1.0, %v1844
    %v1846 = vrcp.pop %v1843
    %v1847 = vmul.f32 1.0, %v1846
    %v1848 = vxor.u32 %v1829, 2147483648
    %v1849 = vxor.u32 %v1833, 2147483648
    %v1850 = vmul.f32 %v1848, 1.442695
    %v1851 = vpow.pop %v1850
    %v1852 = vmul.f32 %v1849, 1.442695
    %v1853 = vpow.pop %v1852
    %v1854 = vadd.f32 %v1851, 1.0
    %v1855 = vadd.f32 %v1853, 1.0
    %v1856 = vrcp.pop %v1854
    %v1857 = vmul.f32 1.0, %v1856
    %v1858 = vrcp.pop %v1855
    %v1859 = vmul.f32 1.0, %v1858
    %v1860 = vtanh.pop %v1830
    %v1861 = vtanh.pop %v1834
    %v1862 = vxor.u32 %v1831, 2147483648
    %v1863 = vxor.u32 %v1835, 2147483648
    %v1864 = vmul.f32 %v1862, 1.442695
    %v1865 = vpow.pop %v1864
    %v1866 = vmul.f32 %v1863, 1.442695
    %v1867 = vpow.pop %v1866
    %v1868 = vadd.f32 %v1865, 1.0
    %v1869 = vadd.f32 %v1867, 1.0
    %v1870 = vrcp.pop %v1868
    %v1871 = vmul.f32 1.0, %v1870
    %v1872 = vrcp.pop %v1869
    %v1873 = vmul.f32 1.0, %v1872
    %v1876 = vrot.slane %v1709, 7
    %v1877 = vrot.slane %v1710, 7
    %v1880 = vmul.f32 %v1857, %v1876
    %v1881 = vmul.f32 %v1859, %v1877
    %v1882 = vmul.f32 %v1845, %v1860
    %v1883 = vmul.f32 %v1847, %v1861
    %v1884 = vadd.f32 %v1880, %v1882
    %v1885 = vadd.f32 %v1881, %v1883
    %v1886 = vtanh.pop %v1884
    %v1887 = vtanh.pop %v1885
    %v1888 = vmul.f32 %v1871, %v1886
    %v1889 = vmul.f32 %v1873, %v1887
    %v1890 = vpack.c.bf16 %v1888, %v1888
    %v1891 = vpack.c.bf16 %v1889, %v1889
    %v1894 = vunpack.c.l.b16 %v1890
    %v1895 = vunpack.c.l.b16 %v1891
    %v1896 = vrot.slane %v1894, 5
    %v1897 = vrot.slane %v1895, 4
    %v1898 = vsel %vm1027, %v1897, %v1896
    %v1899 = vpack.c.b16 %v1898, %v1898
    %1901 = vmatprep.subr.bf16.mxu0 %v831
    %1902 = vmatpush1.bf16.msra.mxu0 %v830
    %1903 = vmatprep.subr.bf16.mxu0 %v827
    %1904 = vmatpush1.bf16.msra.mxu0 %v826
    %1905 = vmatprep.subr.bf16.mxu0 %v823
    %1906 = vmatpush1.bf16.msra.mxu0 %v822
    %1907 = vmatprep.subr.bf16.mxu0 %v819
    %1908 = vmatpush1.bf16.msra.mxu0 %v818
    %1909 = vmatprep.subr.bf16.mxu0 %v815
    %1910 = vmatpush1.bf16.msra.mxu0 %v814
    %1911 = vmatprep.subr.bf16.mxu0 %v811
    %1912 = vmatpush1.bf16.msra.mxu0 %v810
    %1913 = vmatprep.subr.bf16.mxu0 %v807
    %1914 = vmatpush1.bf16.msra.mxu0 %v806
    %1915 = vmatprep.subr.bf16.mxu0 %v803
    %1916 = vmatpush1.bf16.msra.mxu0 %v802
    %1917 = vmatprep.subr.bf16.mxu0 0
    %1918 = vmatpush2.bf16.msra.mxu0 0
    %1919 = vmatprep.subr.bf16.mxu0 0
    %1920 = vmatpush2.bf16.msra.mxu0 0
    %1921 = vmatprep.subr.bf16.mxu0 0
    %1922 = vmatpush2.bf16.msra.mxu0 0
    %1923 = vmatprep.subr.bf16.mxu0 0
    %1924 = vmatpush2.bf16.msra.mxu0 0
    %1925 = vmatprep.subr.bf16.mxu0 0
    %1926 = vmatpush2.bf16.msra.mxu0 0
    %1927 = vmatprep.subr.bf16.mxu0 0
    %1928 = vmatpush2.bf16.msra.mxu0 0
    %1929 = vmatprep.subr.bf16.mxu0 0
    %1930 = vmatpush2.bf16.msra.mxu0 0
    %1931 = vmatprep.subr.bf16.mxu0 0
    %1932 = vmatpush2.bf16.msra.mxu0 0
    %1933 = vmatprep.mubr.bf16.mxu0 0
    %1934 = vmatmul.mubr.bf16.gmra.mxu0 %v1899
    %v1935 = vpop.f32.mrf.mxu0
    %v1936 = vadd.f32 0.0, %v1935
    %v1937 = vpop.f32.mrf.mxu0
    %v1938 = vadd.f32 0.0, %v1937
    %v1939 = vpop.f32.mrf.mxu0
    %v1940 = vpop.f32.mrf.mxu0
    %1941 = vdwg.mxu0
    %1942 = vmatprep.subr.bf16.mxu0 %v833
    %1943 = vmatpush1.bf16.msra.mxu0 %v832
    %1944 = vmatprep.subr.bf16.mxu0 %v829
    %1945 = vmatpush1.bf16.msra.mxu0 %v828
    %1946 = vmatprep.subr.bf16.mxu0 %v825
    %1947 = vmatpush1.bf16.msra.mxu0 %v824
    %1948 = vmatprep.subr.bf16.mxu0 %v821
    %1949 = vmatpush1.bf16.msra.mxu0 %v820
    %1950 = vmatprep.subr.bf16.mxu0 %v817
    %1951 = vmatpush1.bf16.msra.mxu0 %v816
    %1952 = vmatprep.subr.bf16.mxu0 %v813
    %1953 = vmatpush1.bf16.msra.mxu0 %v812
    %1954 = vmatprep.subr.bf16.mxu0 %v809
    %1955 = vmatpush1.bf16.msra.mxu0 %v808
    %1956 = vmatprep.subr.bf16.mxu0 %v805
    %1957 = vmatpush1.bf16.msra.mxu0 %v804
    %1958 = vmatprep.subr.bf16.mxu0 0
    %1959 = vmatpush2.bf16.msra.mxu0 0
    %1960 = vmatprep.subr.bf16.mxu0 0
    %1961 = vmatpush2.bf16.msra.mxu0 0
    %1962 = vmatprep.subr.bf16.mxu0 0
    %1963 = vmatpush2.bf16.msra.mxu0 0
    %1964 = vmatprep.subr.bf16.mxu0 0
    %1965 = vmatpush2.bf16.msra.mxu0 0
    %1966 = vmatprep.subr.bf16.mxu0 0
    %1967 = vmatpush2.bf16.msra.mxu0 0
    %1968 = vmatprep.subr.bf16.mxu0 0
    %1969 = vmatpush2.bf16.msra.mxu0 0
    %1970 = vmatprep.subr.bf16.mxu0 0
    %1971 = vmatpush2.bf16.msra.mxu0 0
    %1972 = vmatprep.subr.bf16.mxu0 0
    %1973 = vmatpush2.bf16.msra.mxu0 0
    %1974 = vmatprep.mubr.bf16.mxu0 0
    %1975 = vmatmul.mubr.bf16.gmra.mxu0 %v1899
    %v1976 = vpop.f32.mrf.mxu0
    %v1977 = vadd.f32 0.0, %v1976
    %v1978 = vpop.f32.mrf.mxu0
    %v1979 = vadd.f32 0.0, %v1978
    %v1980 = vpop.f32.mrf.mxu0
    %v1981 = vpop.f32.mrf.mxu0
    %1982 = vdwg.mxu0
    %v1987 = vrot.slane %v1936, 2
    %v1988 = vrot.slane %v1938, 2
    %v1989 = vrot.slane %v1977, 2
    %v1990 = vrot.slane %v1979, 2
    %v1991 = vrot.slane %v1936, 3
    %v1992 = vrot.slane %v1938, 3
    %v1993 = vrot.slane %v1977, 3
    %v1994 = vrot.slane %v1979, 3
    %v2003 = vadd.f32 %v623, %v1987
    %v2004 = vadd.f32 %v625, %v1988
    %v2005 = vadd.f32 %v666, %v1989
    %v2006 = vadd.f32 %v668, %v1990
    %v2007 = vadd.f32 %v627, %v1991
    %v2008 = vadd.f32 %v629, %v1992
    %v2009 = vadd.f32 %v670, %v1993
    %v2010 = vadd.f32 %v672, %v1994
    %v2011 = vxor.u32 %v2003, 2147483648
    %v2012 = vxor.u32 %v2007, 2147483648
    %v2013 = vmul.f32 %v2011, 1.442695
    %v2014 = vpow.pop %v2013
    %v2015 = vmul.f32 %v2012, 1.442695
    %v2016 = vpow.pop %v2015
    %v2017 = vadd.f32 %v2014, 1.0
    %v2018 = vadd.f32 %v2016, 1.0
    %v2019 = vrcp.pop %v2017
    %v2020 = vmul.f32 1.0, %v2019
    %v2021 = vrcp.pop %v2018
    %v2022 = vmul.f32 1.0, %v2021
    %v2023 = vxor.u32 %v2004, 2147483648
    %v2024 = vxor.u32 %v2008, 2147483648
    %v2025 = vmul.f32 %v2023, 1.442695
    %v2026 = vpow.pop %v2025
    %v2027 = vmul.f32 %v2024, 1.442695
    %v2028 = vpow.pop %v2027
    %v2029 = vadd.f32 %v2026, 1.0
    %v2030 = vadd.f32 %v2028, 1.0
    %v2031 = vrcp.pop %v2029
    %v2032 = vmul.f32 1.0, %v2031
    %v2033 = vrcp.pop %v2030
    %v2034 = vmul.f32 1.0, %v2033
    %v2035 = vtanh.pop %v2005
    %v2036 = vtanh.pop %v2009
    %v2037 = vxor.u32 %v2006, 2147483648
    %v2038 = vxor.u32 %v2010, 2147483648
    %v2039 = vmul.f32 %v2037, 1.442695
    %v2040 = vpow.pop %v2039
    %v2041 = vmul.f32 %v2038, 1.442695
    %v2042 = vpow.pop %v2041
    %v2043 = vadd.f32 %v2040, 1.0
    %v2044 = vadd.f32 %v2042, 1.0
    %v2045 = vrcp.pop %v2043
    %v2046 = vmul.f32 1.0, %v2045
    %v2047 = vrcp.pop %v2044
    %v2048 = vmul.f32 1.0, %v2047
    %v2051 = vrot.slane %v1884, 7
    %v2052 = vrot.slane %v1885, 7
    %v2055 = vmul.f32 %v2032, %v2051
    %v2056 = vmul.f32 %v2034, %v2052
    %v2057 = vmul.f32 %v2020, %v2035
    %v2058 = vmul.f32 %v2022, %v2036
    %v2059 = vadd.f32 %v2055, %v2057
    %v2060 = vadd.f32 %v2056, %v2058
    %v2061 = vtanh.pop %v2059
    %v2062 = vtanh.pop %v2060
    %v2063 = vmul.f32 %v2046, %v2061
    %v2064 = vmul.f32 %v2048, %v2062
    %v2065 = vpack.c.bf16 %v2063, %v2063
    %v2066 = vpack.c.bf16 %v2064, %v2064
    %v2069 = vunpack.c.l.b16 %v2065
    %v2070 = vunpack.c.l.b16 %v2066
    %v2071 = vrot.slane %v2069, 6
    %v2072 = vrot.slane %v2070, 5
    %v2073 = vsel %vm1027, %v2072, %v2071
    %v2074 = vpack.c.b16 %v2073, %v2073
    %2076 = vmatprep.subr.bf16.mxu0 %v831
    %2077 = vmatpush1.bf16.msra.mxu0 %v830
    %2078 = vmatprep.subr.bf16.mxu0 %v827
    %2079 = vmatpush1.bf16.msra.mxu0 %v826
    %2080 = vmatprep.subr.bf16.mxu0 %v823
    %2081 = vmatpush1.bf16.msra.mxu0 %v822
    %2082 = vmatprep.subr.bf16.mxu0 %v819
    %2083 = vmatpush1.bf16.msra.mxu0 %v818
    %2084 = vmatprep.subr.bf16.mxu0 %v815
    %2085 = vmatpush1.bf16.msra.mxu0 %v814
    %2086 = vmatprep.subr.bf16.mxu0 %v811
    %2087 = vmatpush1.bf16.msra.mxu0 %v810
    %2088 = vmatprep.subr.bf16.mxu0 %v807
    %2089 = vmatpush1.bf16.msra.mxu0 %v806
    %2090 = vmatprep.subr.bf16.mxu0 %v803
    %2091 = vmatpush1.bf16.msra.mxu0 %v802
    %2092 = vmatprep.subr.bf16.mxu0 0
    %2093 = vmatpush2.bf16.msra.mxu0 0
    %2094 = vmatprep.subr.bf16.mxu0 0
    %2095 = vmatpush2.bf16.msra.mxu0 0
    %2096 = vmatprep.subr.bf16.mxu0 0
    %2097 = vmatpush2.bf16.msra.mxu0 0
    %2098 = vmatprep.subr.bf16.mxu0 0
    %2099 = vmatpush2.bf16.msra.mxu0 0
    %2100 = vmatprep.subr.bf16.mxu0 0
    %2101 = vmatpush2.bf16.msra.mxu0 0
    %2102 = vmatprep.subr.bf16.mxu0 0
    %2103 = vmatpush2.bf16.msra.mxu0 0
    %2104 = vmatprep.subr.bf16.mxu0 0
    %2105 = vmatpush2.bf16.msra.mxu0 0
    %2106 = vmatprep.subr.bf16.mxu0 0
    %2107 = vmatpush2.bf16.msra.mxu0 0
    %2108 = vmatprep.mubr.bf16.mxu0 0
    %2109 = vmatmul.mubr.bf16.gmra.mxu0 %v2074
    %v2110 = vpop.f32.mrf.mxu0
    %v2111 = vadd.f32 0.0, %v2110
    %v2112 = vpop.f32.mrf.mxu0
    %v2113 = vadd.f32 0.0, %v2112
    %v2114 = vpop.f32.mrf.mxu0
    %v2115 = vpop.f32.mrf.mxu0
    %2116 = vdwg.mxu0
    %2117 = vmatprep.subr.bf16.mxu0 %v833
    %2118 = vmatpush1.bf16.msra.mxu0 %v832
    %2119 = vmatprep.subr.bf16.mxu0 %v829
    %2120 = vmatpush1.bf16.msra.mxu0 %v828
    %2121 = vmatprep.subr.bf16.mxu0 %v825
    %2122 = vmatpush1.bf16.msra.mxu0 %v824
    %2123 = vmatprep.subr.bf16.mxu0 %v821
    %2124 = vmatpush1.bf16.msra.mxu0 %v820
    %2125 = vmatprep.subr.bf16.mxu0 %v817
    %2126 = vmatpush1.bf16.msra.mxu0 %v816
    %2127 = vmatprep.subr.bf16.mxu0 %v813
    %2128 = vmatpush1.bf16.msra.mxu0 %v812
    %2129 = vmatprep.subr.bf16.mxu0 %v809
    %2130 = vmatpush1.bf16.msra.mxu0 %v808
    %2131 = vmatprep.subr.bf16.mxu0 %v805
    %2132 = vmatpush1.bf16.msra.mxu0 %v804
    %2133 = vmatprep.subr.bf16.mxu0 0
    %2134 = vmatpush2.bf16.msra.mxu0 0
    %2135 = vmatprep.subr.bf16.mxu0 0
    %2136 = vmatpush2.bf16.msra.mxu0 0
    %2137 = vmatprep.subr.bf16.mxu0 0
    %2138 = vmatpush2.bf16.msra.mxu0 0
    %2139 = vmatprep.subr.bf16.mxu0 0
    %2140 = vmatpush2.bf16.msra.mxu0 0
    %2141 = vmatprep.subr.bf16.mxu0 0
    %2142 = vmatpush2.bf16.msra.mxu0 0
    %2143 = vmatprep.subr.bf16.mxu0 0
    %2144 = vmatpush2.bf16.msra.mxu0 0
    %2145 = vmatprep.subr.bf16.mxu0 0
    %2146 = vmatpush2.bf16.msra.mxu0 0
    %2147 = vmatprep.subr.bf16.mxu0 0
    %2148 = vmatpush2.bf16.msra.mxu0 0
    %2149 = vmatprep.mubr.bf16.mxu0 0
    %2150 = vmatmul.mubr.bf16.gmra.mxu0 %v2074
    %v2151 = vpop.f32.mrf.mxu0
    %v2152 = vadd.f32 0.0, %v2151
    %v2153 = vpop.f32.mrf.mxu0
    %v2154 = vadd.f32 0.0, %v2153
    %v2155 = vpop.f32.mrf.mxu0
    %v2156 = vpop.f32.mrf.mxu0
    %2157 = vdwg.mxu0
    %v2162 = vrot.slane %v2111, 1
    %v2163 = vrot.slane %v2113, 1
    %v2164 = vrot.slane %v2152, 1
    %v2165 = vrot.slane %v2154, 1
    %v2166 = vrot.slane %v2111, 2
    %v2167 = vrot.slane %v2113, 2
    %v2168 = vrot.slane %v2152, 2
    %v2169 = vrot.slane %v2154, 2
    %v2178 = vadd.f32 %v623, %v2162
    %v2179 = vadd.f32 %v625, %v2163
    %v2180 = vadd.f32 %v666, %v2164
    %v2181 = vadd.f32 %v668, %v2165
    %v2182 = vadd.f32 %v627, %v2166
    %v2183 = vadd.f32 %v629, %v2167
    %v2184 = vadd.f32 %v670, %v2168
    %v2185 = vadd.f32 %v672, %v2169
    %v2186 = vxor.u32 %v2178, 2147483648
    %v2187 = vxor.u32 %v2182, 2147483648
    %v2188 = vmul.f32 %v2186, 1.442695
    %v2189 = vpow.pop %v2188
    %v2190 = vmul.f32 %v2187, 1.442695
    %v2191 = vpow.pop %v2190
    %v2192 = vadd.f32 %v2189, 1.0
    %v2193 = vadd.f32 %v2191, 1.0
    %v2194 = vrcp.pop %v2192
    %v2195 = vmul.f32 1.0, %v2194
    %v2196 = vrcp.pop %v2193
    %v2197 = vmul.f32 1.0, %v2196
    %v2198 = vxor.u32 %v2179, 2147483648
    %v2199 = vxor.u32 %v2183, 2147483648
    %v2200 = vmul.f32 %v2198, 1.442695
    %v2201 = vpow.pop %v2200
    %v2202 = vmul.f32 %v2199, 1.442695
    %v2203 = vpow.pop %v2202
    %v2204 = vadd.f32 %v2201, 1.0
    %v2205 = vadd.f32 %v2203, 1.0
    %v2206 = vrcp.pop %v2204
    %v2207 = vmul.f32 1.0, %v2206
    %v2208 = vrcp.pop %v2205
    %v2209 = vmul.f32 1.0, %v2208
    %v2210 = vtanh.pop %v2180
    %v2211 = vtanh.pop %v2184
    %v2212 = vxor.u32 %v2181, 2147483648
    %v2213 = vxor.u32 %v2185, 2147483648
    %v2214 = vmul.f32 %v2212, 1.442695
    %v2215 = vpow.pop %v2214
    %v2216 = vmul.f32 %v2213, 1.442695
    %v2217 = vpow.pop %v2216
    %v2218 = vadd.f32 %v2215, 1.0
    %v2219 = vadd.f32 %v2217, 1.0
    %v2220 = vrcp.pop %v2218
    %v2221 = vmul.f32 1.0, %v2220
    %v2222 = vrcp.pop %v2219
    %v2223 = vmul.f32 1.0, %v2222
    %v2226 = vrot.slane %v2059, 7
    %v2227 = vrot.slane %v2060, 7
    %v2230 = vmul.f32 %v2207, %v2226
    %v2231 = vmul.f32 %v2209, %v2227
    %v2232 = vmul.f32 %v2195, %v2210
    %v2233 = vmul.f32 %v2197, %v2211
    %v2234 = vadd.f32 %v2230, %v2232
    %v2235 = vadd.f32 %v2231, %v2233
    %v2236 = vtanh.pop %v2234
    %v2237 = vtanh.pop %v2235
    %v2238 = vmul.f32 %v2221, %v2236
    %v2239 = vmul.f32 %v2223, %v2237
    %vm2240 = vcmask 1040384
    %v2241 = vsel %vm2240, %v1018, %v1189
    %v2242 = vsel %vm2240, %v1019, %v1190
    %vm2243 = vcmask 1041408
    %v2244 = vsel %vm2243, %v2241, %v1363
    %v2245 = vsel %vm2243, %v2242, %v1364
    %vm2246 = vcmask 1042432
    %v2247 = vsel %vm2246, %v2244, %v1538
    %v2248 = vsel %vm2246, %v2245, %v1539
    %vm2249 = vcmask 1043456
    %v2250 = vsel %vm2249, %v2247, %v1713
    %v2251 = vsel %vm2249, %v2248, %v1714
    %vm2252 = vcmask 1044480
    %v2253 = vsel %vm2252, %v2250, %v1888
    %v2254 = vsel %vm2252, %v2251, %v1889
    %vm2255 = vcmask 1045504
    %v2256 = vsel %vm2255, %v2253, %v2063
    %v2257 = vsel %vm2255, %v2254, %v2064
    %vm2258 = vcmask 1046528
    %v2259 = vsel %vm2258, %v2256, %v2238
    %v2260 = vsel %vm2258, %v2257, %v2239
    %v2261 = vpack.c.bf16 %v2260, %v2259
    %v2262 = vld [vmem:[#allocation7] sm:$0xff]
    %v2263 = vld [vmem:[#allocation7 + $0x8] sm:$0xff]
    %v2264 = vld [vmem:[#allocation7 + $0x10] sm:$0xff]
    %v2265 = vld [vmem:[#allocation7 + $0x18] sm:$0xff]
    %v2266 = vld [vmem:[#allocation7 + $0x20] sm:$0xff]
    %v2267 = vld [vmem:[#allocation7 + $0x28] sm:$0xff]
    %v2268 = vld [vmem:[#allocation7 + $0x30] sm:$0xff]
    %v2269 = vld [vmem:[#allocation7 + $0x38] sm:$0xff]
    %v2270 = vld [vmem:[#allocation7 + $0x40] sm:$0xff]
    %v2271 = vld [vmem:[#allocation7 + $0x48] sm:$0xff]
    %v2272 = vld [vmem:[#allocation7 + $0x50] sm:$0xff]
    %v2273 = vld [vmem:[#allocation7 + $0x58] sm:$0xff]
    %v2274 = vld [vmem:[#allocation7 + $0x60] sm:$0xff]
    %v2275 = vld [vmem:[#allocation7 + $0x68] sm:$0xff]
    %v2276 = vld [vmem:[#allocation7 + $0x70] sm:$0xff]
    %v2277 = vld [vmem:[#allocation7 + $0x78] sm:$0xff]
    %v2278 = vld [vmem:[#allocation7 + $0x80] sm:$0xff]
    %v2279 = vld [vmem:[#allocation7 + $0x88] sm:$0xff]
    %v2280 = vld [vmem:[#allocation7 + $0x90] sm:$0xff]
    %v2281 = vld [vmem:[#allocation7 + $0x98] sm:$0xff]
    %v2282 = vld [vmem:[#allocation7 + $0xa0] sm:$0xff]
    %v2283 = vld [vmem:[#allocation7 + $0xa8] sm:$0xff]
    %v2284 = vld [vmem:[#allocation7 + $0xb0] sm:$0xff]
    %v2285 = vld [vmem:[#allocation7 + $0xb8] sm:$0xff]
    %v2286 = vld [vmem:[#allocation7 + $0xc0] sm:$0xff]
    %v2287 = vld [vmem:[#allocation7 + $0xc8] sm:$0xff]
    %v2288 = vld [vmem:[#allocation7 + $0xd0] sm:$0xff]
    %v2289 = vld [vmem:[#allocation7 + $0xd8] sm:$0xff]
    %v2290 = vld [vmem:[#allocation7 + $0xe0] sm:$0xff]
    %v2291 = vld [vmem:[#allocation7 + $0xe8] sm:$0xff]
    %v2292 = vld [vmem:[#allocation7 + $0xf0] sm:$0xff]
    %v2293 = vld [vmem:[#allocation7 + $0xf8] sm:$0xff]
    %v2294 = vld [vmem:[#allocation10] sm:$0xf]
    %v2296 = vlaneseq
    %v2297 = vshrl.u32 %v2296, 7
    %v2298 = vsub.s32 0, %v2297
    %v2299 = vrot.slane %v2294, %v2298
    %v2300 = vlaneseq
    %v2301 = vshrl.u32 %v2300, 7
    %v2302 = vsub.s32 1, %v2301
    %v2303 = vrot.slane %v2294, %v2302
    %v2304 = vlaneseq
    %v2305 = vshrl.u32 %v2304, 7
    %v2306 = vsub.s32 2, %v2305
    %v2307 = vrot.slane %v2294, %v2306
    %v2308 = vlaneseq
    %v2309 = vshrl.u32 %v2308, 7
    %v2310 = vsub.s32 3, %v2309
    %v2311 = vrot.slane %v2294, %v2310
    %v2348 = vunpack.c.l.b16 %v2262
    %v2349 = vunpack.c.h.b16 %v2262
    %v2350 = vunpack.c.l.b16 %v2263
    %v2351 = vunpack.c.h.b16 %v2263
    %v2352 = vunpack.c.l.b16 %v2264
    %v2353 = vunpack.c.h.b16 %v2264
    %v2354 = vunpack.c.l.b16 %v2265
    %v2355 = vunpack.c.h.b16 %v2265
    %v2356 = vunpack.c.l.b16 %v2266
    %v2357 = vunpack.c.h.b16 %v2266
    %v2358 = vunpack.c.l.b16 %v2267
    %v2359 = vunpack.c.h.b16 %v2267
    %v2360 = vunpack.c.l.b16 %v2268
    %v2361 = vunpack.c.h.b16 %v2268
    %v2362 = vunpack.c.l.b16 %v2269
    %v2363 = vunpack.c.h.b16 %v2269
    %v2364 = vunpack.c.l.b16 %v2270
    %v2365 = vunpack.c.h.b16 %v2270
    %v2366 = vunpack.c.l.b16 %v2271
    %v2367 = vunpack.c.h.b16 %v2271
    %v2368 = vunpack.c.l.b16 %v2272
    %v2369 = vunpack.c.h.b16 %v2272
    %v2370 = vunpack.c.l.b16 %v2273
    %v2371 = vunpack.c.h.b16 %v2273
    %v2372 = vunpack.c.l.b16 %v2274
    %v2373 = vunpack.c.h.b16 %v2274
    %v2374 = vunpack.c.l.b16 %v2275
    %v2375 = vunpack.c.h.b16 %v2275
    %v2376 = vunpack.c.l.b16 %v2276
    %v2377 = vunpack.c.h.b16 %v2276
    %v2378 = vunpack.c.l.b16 %v2277
    %v2379 = vunpack.c.h.b16 %v2277
    %v2380 = vunpack.c.l.b16 %v2278
    %v2381 = vunpack.c.h.b16 %v2278
    %v2382 = vunpack.c.l.b16 %v2279
    %v2383 = vunpack.c.h.b16 %v2279
    %v2384 = vunpack.c.l.b16 %v2280
    %v2385 = vunpack.c.h.b16 %v2280
    %v2386 = vunpack.c.l.b16 %v2281
    %v2387 = vunpack.c.h.b16 %v2281
    %v2388 = vunpack.c.l.b16 %v2282
    %v2389 = vunpack.c.h.b16 %v2282
    %v2390 = vunpack.c.l.b16 %v2283
    %v2391 = vunpack.c.h.b16 %v2283
    %v2392 = vunpack.c.l.b16 %v2284
    %v2393 = vunpack.c.h.b16 %v2284
    %v2394 = vunpack.c.l.b16 %v2285
    %v2395 = vunpack.c.h.b16 %v2285
    %v2396 = vunpack.c.l.b16 %v2286
    %v2397 = vunpack.c.h.b16 %v2286
    %v2398 = vunpack.c.l.b16 %v2287
    %v2399 = vunpack.c.h.b16 %v2287
    %v2400 = vunpack.c.l.b16 %v2288
    %v2401 = vunpack.c.h.b16 %v2288
    %v2402 = vunpack.c.l.b16 %v2289
    %v2403 = vunpack.c.h.b16 %v2289
    %v2404 = vunpack.c.l.b16 %v2290
    %v2405 = vunpack.c.h.b16 %v2290
    %v2406 = vunpack.c.l.b16 %v2291
    %v2407 = vunpack.c.h.b16 %v2291
    %v2408 = vunpack.c.l.b16 %v2292
    %v2409 = vunpack.c.h.b16 %v2292
    %v2410 = vunpack.c.l.b16 %v2293
    %v2411 = vunpack.c.h.b16 %v2293
    %v2412 = vpack.c.b16 %v2352, %v2348
    %v2413 = vpack.c.b16 %v2353, %v2349
    %v2414 = vpack.c.b16 %v2354, %v2350
    %v2415 = vpack.c.b16 %v2355, %v2351
    %v2416 = vpack.c.b16 %v2360, %v2356
    %v2417 = vpack.c.b16 %v2361, %v2357
    %v2418 = vpack.c.b16 %v2362, %v2358
    %v2419 = vpack.c.b16 %v2363, %v2359
    %v2420 = vpack.c.b16 %v2368, %v2364
    %v2421 = vpack.c.b16 %v2369, %v2365
    %v2422 = vpack.c.b16 %v2370, %v2366
    %v2423 = vpack.c.b16 %v2371, %v2367
    %v2424 = vpack.c.b16 %v2376, %v2372
    %v2425 = vpack.c.b16 %v2377, %v2373
    %v2426 = vpack.c.b16 %v2378, %v2374
    %v2427 = vpack.c.b16 %v2379, %v2375
    %v2428 = vpack.c.b16 %v2384, %v2380
    %v2429 = vpack.c.b16 %v2385, %v2381
    %v2430 = vpack.c.b16 %v2386, %v2382
    %v2431 = vpack.c.b16 %v2387, %v2383
    %v2432 = vpack.c.b16 %v2392, %v2388
    %v2433 = vpack.c.b16 %v2393, %v2389
    %v2434 = vpack.c.b16 %v2394, %v2390
    %v2435 = vpack.c.b16 %v2395, %v2391
    %v2436 = vpack.c.b16 %v2400, %v2396
    %v2437 = vpack.c.b16 %v2401, %v2397
    %v2438 = vpack.c.b16 %v2402, %v2398
    %v2439 = vpack.c.b16 %v2403, %v2399
    %v2440 = vpack.c.b16 %v2408, %v2404
    %v2441 = vpack.c.b16 %v2409, %v2405
    %v2442 = vpack.c.b16 %v2410, %v2406
    %v2443 = vpack.c.b16 %v2411, %v2407
    %2476 = vmatprep.subr.bf16.mxu0 %v2441
    %2477 = vmatpush1.bf16.msra.mxu0 %v2440
    %2478 = vmatprep.subr.bf16.mxu0 %v2437
    %2479 = vmatpush1.bf16.msra.mxu0 %v2436
    %2480 = vmatprep.subr.bf16.mxu0 %v2433
    %2481 = vmatpush1.bf16.msra.mxu0 %v2432
    %2482 = vmatprep.subr.bf16.mxu0 %v2429
    %2483 = vmatpush1.bf16.msra.mxu0 %v2428
    %2484 = vmatprep.subr.bf16.mxu0 %v2425
    %2485 = vmatpush1.bf16.msra.mxu0 %v2424
    %2486 = vmatprep.subr.bf16.mxu0 %v2421
    %2487 = vmatpush1.bf16.msra.mxu0 %v2420
    %2488 = vmatprep.subr.bf16.mxu0 %v2417
    %2489 = vmatpush1.bf16.msra.mxu0 %v2416
    %2490 = vmatprep.subr.bf16.mxu0 %v2413
    %2491 = vmatpush1.bf16.msra.mxu0 %v2412
    %2492 = vmatprep.subr.bf16.mxu0 0
    %2493 = vmatpush2.bf16.msra.mxu0 0
    %2494 = vmatprep.subr.bf16.mxu0 0
    %2495 = vmatpush2.bf16.msra.mxu0 0
    %2496 = vmatprep.subr.bf16.mxu0 0
    %2497 = vmatpush2.bf16.msra.mxu0 0
    %2498 = vmatprep.subr.bf16.mxu0 0
    %2499 = vmatpush2.bf16.msra.mxu0 0
    %2500 = vmatprep.subr.bf16.mxu0 0
    %2501 = vmatpush2.bf16.msra.mxu0 0
    %2502 = vmatprep.subr.bf16.mxu0 0
    %2503 = vmatpush2.bf16.msra.mxu0 0
    %2504 = vmatprep.subr.bf16.mxu0 0
    %2505 = vmatpush2.bf16.msra.mxu0 0
    %2506 = vmatprep.subr.bf16.mxu0 0
    %2507 = vmatpush2.bf16.msra.mxu0 0
    %2508 = vmatprep.mubr.bf16.mxu0 0
    %2509 = vmatmul.mubr.bf16.gmra.mxu0 %v2261
    %v2510 = vpop.f32.mrf.mxu0
    %v2511 = vadd.f32 %v2299, %v2510
    %v2512 = vpop.f32.mrf.mxu0
    %v2513 = vadd.f32 %v2303, %v2512
    %v2514 = vpop.f32.mrf.mxu0
    %v2515 = vadd.f32 %v2299, %v2514
    %v2516 = vpop.f32.mrf.mxu0
    %v2517 = vadd.f32 %v2303, %v2516
    %2518 = vdwg.mxu0
    %2519 = vmatprep.subr.bf16.mxu0 %v2443
    %2520 = vmatpush1.bf16.msra.mxu0 %v2442
    %2521 = vmatprep.subr.bf16.mxu0 %v2439
    %2522 = vmatpush1.bf16.msra.mxu0 %v2438
    %2523 = vmatprep.subr.bf16.mxu0 %v2435
    %2524 = vmatpush1.bf16.msra.mxu0 %v2434
    %2525 = vmatprep.subr.bf16.mxu0 %v2431
    %2526 = vmatpush1.bf16.msra.mxu0 %v2430
    %2527 = vmatprep.subr.bf16.mxu0 %v2427
    %2528 = vmatpush1.bf16.msra.mxu0 %v2426
    %2529 = vmatprep.subr.bf16.mxu0 %v2423
    %2530 = vmatpush1.bf16.msra.mxu0 %v2422
    %2531 = vmatprep.subr.bf16.mxu0 %v2419
    %2532 = vmatpush1.bf16.msra.mxu0 %v2418
    %2533 = vmatprep.subr.bf16.mxu0 %v2415
    %2534 = vmatpush1.bf16.msra.mxu0 %v2414
    %2535 = vmatprep.subr.bf16.mxu0 0
    %2536 = vmatpush2.bf16.msra.mxu0 0
    %2537 = vmatprep.subr.bf16.mxu0 0
    %2538 = vmatpush2.bf16.msra.mxu0 0
    %2539 = vmatprep.subr.bf16.mxu0 0
    %2540 = vmatpush2.bf16.msra.mxu0 0
    %2541 = vmatprep.subr.bf16.mxu0 0
    %2542 = vmatpush2.bf16.msra.mxu0 0
    %2543 = vmatprep.subr.bf16.mxu0 0
    %2544 = vmatpush2.bf16.msra.mxu0 0
    %2545 = vmatprep.subr.bf16.mxu0 0
    %2546 = vmatpush2.bf16.msra.mxu0 0
    %2547 = vmatprep.subr.bf16.mxu0 0
    %2548 = vmatpush2.bf16.msra.mxu0 0
    %2549 = vmatprep.subr.bf16.mxu0 0
    %2550 = vmatpush2.bf16.msra.mxu0 0
    %2551 = vmatprep.mubr.bf16.mxu0 0
    %2552 = vmatmul.mubr.bf16.gmra.mxu0 %v2261
    %v2553 = vpop.f32.mrf.mxu0
    %v2554 = vadd.f32 %v2307, %v2553
    %v2555 = vpop.f32.mrf.mxu0
    %v2556 = vadd.f32 %v2311, %v2555
    %v2557 = vpop.f32.mrf.mxu0
    %v2558 = vadd.f32 %v2307, %v2557
    %v2559 = vpop.f32.mrf.mxu0
    %v2560 = vadd.f32 %v2311, %v2559
    %2561 = vdwg.mxu0
    %v2562 = vld [vmem:[#allocation9] sm:$0xff]
    %v2563 = vld [vmem:[#allocation9 + $0x8] sm:$0xff]
    %v2564 = vld [vmem:[#allocation9 + $0x10] sm:$0xff]
    %v2565 = vld [vmem:[#allocation9 + $0x18] sm:$0xff]
    %v2566 = vld [vmem:[#allocation9 + $0x20] sm:$0xff]
    %v2567 = vld [vmem:[#allocation9 + $0x28] sm:$0xff]
    %v2568 = vld [vmem:[#allocation9 + $0x30] sm:$0xff]
    %v2569 = vld [vmem:[#allocation9 + $0x38] sm:$0xff]
    %v2570 = vld [vmem:[#allocation9 + $0x40] sm:$0xff]
    %v2571 = vld [vmem:[#allocation9 + $0x48] sm:$0xff]
    %v2572 = vld [vmem:[#allocation9 + $0x50] sm:$0xff]
    %v2573 = vld [vmem:[#allocation9 + $0x58] sm:$0xff]
    %v2574 = vld [vmem:[#allocation9 + $0x60] sm:$0xff]
    %v2575 = vld [vmem:[#allocation9 + $0x68] sm:$0xff]
    %v2576 = vld [vmem:[#allocation9 + $0x70] sm:$0xff]
    %v2577 = vld [vmem:[#allocation9 + $0x78] sm:$0xff]
    %v2578 = vld [vmem:[#allocation9 + $0x80] sm:$0xff]
    %v2579 = vld [vmem:[#allocation9 + $0x88] sm:$0xff]
    %v2580 = vld [vmem:[#allocation9 + $0x90] sm:$0xff]
    %v2581 = vld [vmem:[#allocation9 + $0x98] sm:$0xff]
    %v2582 = vld [vmem:[#allocation9 + $0xa0] sm:$0xff]
    %v2583 = vld [vmem:[#allocation9 + $0xa8] sm:$0xff]
    %v2584 = vld [vmem:[#allocation9 + $0xb0] sm:$0xff]
    %v2585 = vld [vmem:[#allocation9 + $0xb8] sm:$0xff]
    %v2586 = vld [vmem:[#allocation9 + $0xc0] sm:$0xff]
    %v2587 = vld [vmem:[#allocation9 + $0xc8] sm:$0xff]
    %v2588 = vld [vmem:[#allocation9 + $0xd0] sm:$0xff]
    %v2589 = vld [vmem:[#allocation9 + $0xd8] sm:$0xff]
    %v2590 = vld [vmem:[#allocation9 + $0xe0] sm:$0xff]
    %v2591 = vld [vmem:[#allocation9 + $0xe8] sm:$0xff]
    %v2592 = vld [vmem:[#allocation9 + $0xf0] sm:$0xff]
    %v2593 = vld [vmem:[#allocation9 + $0xf8] sm:$0xff]
    %v2626 = vunpack.c.l.b16 %v2562
    %v2627 = vunpack.c.h.b16 %v2562
    %v2628 = vunpack.c.l.b16 %v2563
    %v2629 = vunpack.c.h.b16 %v2563
    %v2630 = vunpack.c.l.b16 %v2564
    %v2631 = vunpack.c.h.b16 %v2564
    %v2632 = vunpack.c.l.b16 %v2565
    %v2633 = vunpack.c.h.b16 %v2565
    %v2634 = vunpack.c.l.b16 %v2566
    %v2635 = vunpack.c.h.b16 %v2566
    %v2636 = vunpack.c.l.b16 %v2567
    %v2637 = vunpack.c.h.b16 %v2567
    %v2638 = vunpack.c.l.b16 %v2568
    %v2639 = vunpack.c.h.b16 %v2568
    %v2640 = vunpack.c.l.b16 %v2569
    %v2641 = vunpack.c.h.b16 %v2569
    %v2642 = vunpack.c.l.b16 %v2570
    %v2643 = vunpack.c.h.b16 %v2570
    %v2644 = vunpack.c.l.b16 %v2571
    %v2645 = vunpack.c.h.b16 %v2571
    %v2646 = vunpack.c.l.b16 %v2572
    %v2647 = vunpack.c.h.b16 %v2572
    %v2648 = vunpack.c.l.b16 %v2573
    %v2649 = vunpack.c.h.b16 %v2573
    %v2650 = vunpack.c.l.b16 %v2574
    %v2651 = vunpack.c.h.b16 %v2574
    %v2652 = vunpack.c.l.b16 %v2575
    %v2653 = vunpack.c.h.b16 %v2575
    %v2654 = vunpack.c.l.b16 %v2576
    %v2655 = vunpack.c.h.b16 %v2576
    %v2656 = vunpack.c.l.b16 %v2577
    %v2657 = vunpack.c.h.b16 %v2577
    %v2658 = vunpack.c.l.b16 %v2578
    %v2659 = vunpack.c.h.b16 %v2578
    %v2660 = vunpack.c.l.b16 %v2579
    %v2661 = vunpack.c.h.b16 %v2579
    %v2662 = vunpack.c.l.b16 %v2580
    %v2663 = vunpack.c.h.b16 %v2580
    %v2664 = vunpack.c.l.b16 %v2581
    %v2665 = vunpack.c.h.b16 %v2581
    %v2666 = vunpack.c.l.b16 %v2582
    %v2667 = vunpack.c.h.b16 %v2582
    %v2668 = vunpack.c.l.b16 %v2583
    %v2669 = vunpack.c.h.b16 %v2583
    %v2670 = vunpack.c.l.b16 %v2584
    %v2671 = vunpack.c.h.b16 %v2584
    %v2672 = vunpack.c.l.b16 %v2585
    %v2673 = vunpack.c.h.b16 %v2585
    %v2674 = vunpack.c.l.b16 %v2586
    %v2675 = vunpack.c.h.b16 %v2586
    %v2676 = vunpack.c.l.b16 %v2587
    %v2677 = vunpack.c.h.b16 %v2587
    %v2678 = vunpack.c.l.b16 %v2588
    %v2679 = vunpack.c.h.b16 %v2588
    %v2680 = vunpack.c.l.b16 %v2589
    %v2681 = vunpack.c.h.b16 %v2589
    %v2682 = vunpack.c.l.b16 %v2590
    %v2683 = vunpack.c.h.b16 %v2590
    %v2684 = vunpack.c.l.b16 %v2591
    %v2685 = vunpack.c.h.b16 %v2591
    %v2686 = vunpack.c.l.b16 %v2592
    %v2687 = vunpack.c.h.b16 %v2592
    %v2688 = vunpack.c.l.b16 %v2593
    %v2689 = vunpack.c.h.b16 %v2593
    %v2690 = vpack.c.b16 %v2630, %v2626
    %v2691 = vpack.c.b16 %v2631, %v2627
    %v2692 = vpack.c.b16 %v2632, %v2628
    %v2693 = vpack.c.b16 %v2633, %v2629
    %v2694 = vpack.c.b16 %v2638, %v2634
    %v2695 = vpack.c.b16 %v2639, %v2635
    %v2696 = vpack.c.b16 %v2640, %v2636
    %v2697 = vpack.c.b16 %v2641, %v2637
    %v2698 = vpack.c.b16 %v2646, %v2642
    %v2699 = vpack.c.b16 %v2647, %v2643
    %v2700 = vpack.c.b16 %v2648, %v2644
    %v2701 = vpack.c.b16 %v2649, %v2645
    %v2702 = vpack.c.b16 %v2654, %v2650
    %v2703 = vpack.c.b16 %v2655, %v2651
    %v2704 = vpack.c.b16 %v2656, %v2652
    %v2705 = vpack.c.b16 %v2657, %v2653
    %v2706 = vpack.c.b16 %v2662, %v2658
    %v2707 = vpack.c.b16 %v2663, %v2659
    %v2708 = vpack.c.b16 %v2664, %v2660
    %v2709 = vpack.c.b16 %v2665, %v2661
    %v2710 = vpack.c.b16 %v2670, %v2666
    %v2711 = vpack.c.b16 %v2671, %v2667
    %v2712 = vpack.c.b16 %v2672, %v2668
    %v2713 = vpack.c.b16 %v2673, %v2669
    %v2714 = vpack.c.b16 %v2678, %v2674
    %v2715 = vpack.c.b16 %v2679, %v2675
    %v2716 = vpack.c.b16 %v2680, %v2676
    %v2717 = vpack.c.b16 %v2681, %v2677
    %v2718 = vpack.c.b16 %v2686, %v2682
    %v2719 = vpack.c.b16 %v2687, %v2683
    %v2720 = vpack.c.b16 %v2688, %v2684
    %v2721 = vpack.c.b16 %v2689, %v2685
    %2754 = vmatprep.subr.bf16.mxu0 %v2719
    %2755 = vmatpush1.bf16.msra.mxu0 %v2718
    %2756 = vmatprep.subr.bf16.mxu0 %v2715
    %2757 = vmatpush1.bf16.msra.mxu0 %v2714
    %2758 = vmatprep.subr.bf16.mxu0 %v2711
    %2759 = vmatpush1.bf16.msra.mxu0 %v2710
    %2760 = vmatprep.subr.bf16.mxu0 %v2707
    %2761 = vmatpush1.bf16.msra.mxu0 %v2706
    %2762 = vmatprep.subr.bf16.mxu0 %v2703
    %2763 = vmatpush1.bf16.msra.mxu0 %v2702
    %2764 = vmatprep.subr.bf16.mxu0 %v2699
    %2765 = vmatpush1.bf16.msra.mxu0 %v2698
    %2766 = vmatprep.subr.bf16.mxu0 %v2695
    %2767 = vmatpush1.bf16.msra.mxu0 %v2694
    %2768 = vmatprep.subr.bf16.mxu0 %v2691
    %2769 = vmatpush1.bf16.msra.mxu0 %v2690
    %2770 = vmatprep.subr.bf16.mxu0 0
    %2771 = vmatpush2.bf16.msra.mxu0 0
    %2772 = vmatprep.subr.bf16.mxu0 0
    %2773 = vmatpush2.bf16.msra.mxu0 0
    %2774 = vmatprep.subr.bf16.mxu0 0
    %2775 = vmatpush2.bf16.msra.mxu0 0
    %2776 = vmatprep.subr.bf16.mxu0 0
    %2777 = vmatpush2.bf16.msra.mxu0 0
    %2778 = vmatprep.subr.bf16.mxu0 0
    %2779 = vmatpush2.bf16.msra.mxu0 0
    %2780 = vmatprep.subr.bf16.mxu0 0
    %2781 = vmatpush2.bf16.msra.mxu0 0
    %2782 = vmatprep.subr.bf16.mxu0 0
    %2783 = vmatpush2.bf16.msra.mxu0 0
    %2784 = vmatprep.subr.bf16.mxu0 0
    %2785 = vmatpush2.bf16.msra.mxu0 0
    %2786 = vmatprep.mubr.bf16.mxu0 0
    %2787 = vmatmul.mubr.bf16.gmra.mxu0 0
    %v2788 = vpop.f32.mrf.mxu0
    %v2789 = vadd.f32 0.0, %v2788
    %v2790 = vpop.f32.mrf.mxu0
    %v2791 = vadd.f32 0.0, %v2790
    %v2792 = vpop.f32.mrf.mxu0
    %v2793 = vpop.f32.mrf.mxu0
    %2794 = vdwg.mxu0
    %2795 = vmatprep.subr.bf16.mxu0 %v2721
    %2796 = vmatpush1.bf16.msra.mxu0 %v2720
    %2797 = vmatprep.subr.bf16.mxu0 %v2717
    %2798 = vmatpush1.bf16.msra.mxu0 %v2716
    %2799 = vmatprep.subr.bf16.mxu0 %v2713
    %2800 = vmatpush1.bf16.msra.mxu0 %v2712
    %2801 = vmatprep.subr.bf16.mxu0 %v2709
    %2802 = vmatpush1.bf16.msra.mxu0 %v2708
    %2803 = vmatprep.subr.bf16.mxu0 %v2705
    %2804 = vmatpush1.bf16.msra.mxu0 %v2704
    %2805 = vmatprep.subr.bf16.mxu0 %v2701
    %2806 = vmatpush1.bf16.msra.mxu0 %v2700
    %2807 = vmatprep.subr.bf16.mxu0 %v2697
    %2808 = vmatpush1.bf16.msra.mxu0 %v2696
    %2809 = vmatprep.subr.bf16.mxu0 %v2693
    %2810 = vmatpush1.bf16.msra.mxu0 %v2692
    %2811 = vmatprep.subr.bf16.mxu0 0
    %2812 = vmatpush2.bf16.msra.mxu0 0
    %2813 = vmatprep.subr.bf16.mxu0 0
    %2814 = vmatpush2.bf16.msra.mxu0 0
    %2815 = vmatprep.subr.bf16.mxu0 0
    %2816 = vmatpush2.bf16.msra.mxu0 0
    %2817 = vmatprep.subr.bf16.mxu0 0
    %2818 = vmatpush2.bf16.msra.mxu0 0
    %2819 = vmatprep.subr.bf16.mxu0 0
    %2820 = vmatpush2.bf16.msra.mxu0 0
    %2821 = vmatprep.subr.bf16.mxu0 0
    %2822 = vmatpush2.bf16.msra.mxu0 0
    %2823 = vmatprep.subr.bf16.mxu0 0
    %2824 = vmatpush2.bf16.msra.mxu0 0
    %2825 = vmatprep.subr.bf16.mxu0 0
    %2826 = vmatpush2.bf16.msra.mxu0 0
    %2827 = vmatprep.mubr.bf16.mxu0 0
    %2828 = vmatmul.mubr.bf16.gmra.mxu0 0
    %v2829 = vpop.f32.mrf.mxu0
    %v2830 = vadd.f32 0.0, %v2829
    %v2831 = vpop.f32.mrf.mxu0
    %v2832 = vadd.f32 0.0, %v2831
    %v2833 = vpop.f32.mrf.mxu0
    %v2834 = vpop.f32.mrf.mxu0
    %2835 = vdwg.mxu0
    %v2840 = vrot.slane %v2789, 1
    %v2841 = vrot.slane %v2791, 1
    %v2842 = vrot.slane %v2830, 1
    %v2843 = vrot.slane %v2832, 1
    %v2852 = vadd.f32 %v2511, %v2789
    %v2853 = vadd.f32 %v2513, %v2791
    %v2854 = vadd.f32 %v2554, %v2830
    %v2855 = vadd.f32 %v2556, %v2832
    %v2856 = vadd.f32 %v2515, %v2840
    %v2857 = vadd.f32 %v2517, %v2841
    %v2858 = vadd.f32 %v2558, %v2842
    %v2859 = vadd.f32 %v2560, %v2843
    %v2860 = vxor.u32 %v2852, 2147483648
    %v2861 = vxor.u32 %v2856, 2147483648
    %v2862 = vmul.f32 %v2860, 1.442695
    %v2863 = vpow.pop %v2862
    %v2864 = vmul.f32 %v2861, 1.442695
    %v2865 = vpow.pop %v2864
    %v2866 = vadd.f32 %v2863, 1.0
    %v2867 = vadd.f32 %v2865, 1.0
    %v2868 = vrcp.pop %v2866
    %v2869 = vmul.f32 1.0, %v2868
    %v2870 = vrcp.pop %v2867
    %v2871 = vmul.f32 1.0, %v2870
    %v2872 = vxor.u32 %v2853, 2147483648
    %v2873 = vxor.u32 %v2857, 2147483648
    %v2874 = vmul.f32 %v2872, 1.442695
    %v2875 = vpow.pop %v2874
    %v2876 = vmul.f32 %v2873, 1.442695
    %v2877 = vpow.pop %v2876
    %v2878 = vadd.f32 %v2875, 1.0
    %v2879 = vadd.f32 %v2877, 1.0
    %v2880 = vrcp.pop %v2878
    %v2881 = vmul.f32 1.0, %v2880
    %v2882 = vrcp.pop %v2879
    %v2883 = vmul.f32 1.0, %v2882
    %v2884 = vtanh.pop %v2854
    %v2885 = vtanh.pop %v2858
    %v2886 = vxor.u32 %v2855, 2147483648
    %v2887 = vxor.u32 %v2859, 2147483648
    %v2888 = vmul.f32 %v2886, 1.442695
    %v2889 = vpow.pop %v2888
    %v2890 = vmul.f32 %v2887, 1.442695
    %v2891 = vpow.pop %v2890
    %v2892 = vadd.f32 %v2889, 1.0
    %v2893 = vadd.f32 %v2891, 1.0
    %v2894 = vrcp.pop %v2892
    %v2895 = vmul.f32 1.0, %v2894
    %v2896 = vrcp.pop %v2893
    %v2897 = vmul.f32 1.0, %v2896
    %v2898 = vmul.f32 %v2881, 0.0
    %v2899 = vmul.f32 %v2883, 0.0
    %v2900 = vmul.f32 %v2869, %v2884
    %v2901 = vmul.f32 %v2871, %v2885
    %v2902 = vadd.f32 %v2898, %v2900
    %v2903 = vadd.f32 %v2899, %v2901
    %v2904 = vtanh.pop %v2902
    %v2905 = vtanh.pop %v2903
    %v2906 = vmul.f32 %v2895, %v2904
    %v2907 = vmul.f32 %v2897, %v2905
    %v2908 = vpack.c.bf16 %v2906, %v2906
    %v2909 = vpack.c.bf16 %v2907, %v2907
    %v2912 = vunpack.c.l.b16 %v2908
    %v2913 = vunpack.c.l.b16 %v2909
    %v2914 = vrot.slane %v2913, 7
    %v2915 = vsel %vm1027, %v2914, %v2912
    %v2916 = vpack.c.b16 %v2915, %v2915
    %2918 = vmatprep.subr.bf16.mxu0 %v2719
    %2919 = vmatpush1.bf16.msra.mxu0 %v2718
    %2920 = vmatprep.subr.bf16.mxu0 %v2715
    %2921 = vmatpush1.bf16.msra.mxu0 %v2714
    %2922 = vmatprep.subr.bf16.mxu0 %v2711
    %2923 = vmatpush1.bf16.msra.mxu0 %v2710
    %2924 = vmatprep.subr.bf16.mxu0 %v2707
    %2925 = vmatpush1.bf16.msra.mxu0 %v2706
    %2926 = vmatprep.subr.bf16.mxu0 %v2703
    %2927 = vmatpush1.bf16.msra.mxu0 %v2702
    %2928 = vmatprep.subr.bf16.mxu0 %v2699
    %2929 = vmatpush1.bf16.msra.mxu0 %v2698
    %2930 = vmatprep.subr.bf16.mxu0 %v2695
    %2931 = vmatpush1.bf16.msra.mxu0 %v2694
    %2932 = vmatprep.subr.bf16.mxu0 %v2691
    %2933 = vmatpush1.bf16.msra.mxu0 %v2690
    %2934 = vmatprep.subr.bf16.mxu0 0
    %2935 = vmatpush2.bf16.msra.mxu0 0
    %2936 = vmatprep.subr.bf16.mxu0 0
    %2937 = vmatpush2.bf16.msra.mxu0 0
    %2938 = vmatprep.subr.bf16.mxu0 0
    %2939 = vmatpush2.bf16.msra.mxu0 0
    %2940 = vmatprep.subr.bf16.mxu0 0
    %2941 = vmatpush2.bf16.msra.mxu0 0
    %2942 = vmatprep.subr.bf16.mxu0 0
    %2943 = vmatpush2.bf16.msra.mxu0 0
    %2944 = vmatprep.subr.bf16.mxu0 0
    %2945 = vmatpush2.bf16.msra.mxu0 0
    %2946 = vmatprep.subr.bf16.mxu0 0
    %2947 = vmatpush2.bf16.msra.mxu0 0
    %2948 = vmatprep.subr.bf16.mxu0 0
    %2949 = vmatpush2.bf16.msra.mxu0 0
    %2950 = vmatprep.mubr.bf16.mxu0 0
    %2951 = vmatmul.mubr.bf16.gmra.mxu0 %v2916
    %v2952 = vpop.f32.mrf.mxu0
    %v2953 = vadd.f32 0.0, %v2952
    %v2954 = vpop.f32.mrf.mxu0
    %v2955 = vadd.f32 0.0, %v2954
    %v2956 = vpop.f32.mrf.mxu0
    %v2957 = vpop.f32.mrf.mxu0
    %2958 = vdwg.mxu0
    %2959 = vmatprep.subr.bf16.mxu0 %v2721
    %2960 = vmatpush1.bf16.msra.mxu0 %v2720
    %2961 = vmatprep.subr.bf16.mxu0 %v2717
    %2962 = vmatpush1.bf16.msra.mxu0 %v2716
    %2963 = vmatprep.subr.bf16.mxu0 %v2713
    %2964 = vmatpush1.bf16.msra.mxu0 %v2712
    %2965 = vmatprep.subr.bf16.mxu0 %v2709
    %2966 = vmatpush1.bf16.msra.mxu0 %v2708
    %2967 = vmatprep.subr.bf16.mxu0 %v2705
    %2968 = vmatpush1.bf16.msra.mxu0 %v2704
    %2969 = vmatprep.subr.bf16.mxu0 %v2701
    %2970 = vmatpush1.bf16.msra.mxu0 %v2700
    %2971 = vmatprep.subr.bf16.mxu0 %v2697
    %2972 = vmatpush1.bf16.msra.mxu0 %v2696
    %2973 = vmatprep.subr.bf16.mxu0 %v2693
    %2974 = vmatpush1.bf16.msra.mxu0 %v2692
    %2975 = vmatprep.subr.bf16.mxu0 0
    %2976 = vmatpush2.bf16.msra.mxu0 0
    %2977 = vmatprep.subr.bf16.mxu0 0
    %2978 = vmatpush2.bf16.msra.mxu0 0
    %2979 = vmatprep.subr.bf16.mxu0 0
    %2980 = vmatpush2.bf16.msra.mxu0 0
    %2981 = vmatprep.subr.bf16.mxu0 0
    %2982 = vmatpush2.bf16.msra.mxu0 0
    %2983 = vmatprep.subr.bf16.mxu0 0
    %2984 = vmatpush2.bf16.msra.mxu0 0
    %2985 = vmatprep.subr.bf16.mxu0 0
    %2986 = vmatpush2.bf16.msra.mxu0 0
    %2987 = vmatprep.subr.bf16.mxu0 0
    %2988 = vmatpush2.bf16.msra.mxu0 0
    %2989 = vmatprep.subr.bf16.mxu0 0
    %2990 = vmatpush2.bf16.msra.mxu0 0
    %2991 = vmatprep.mubr.bf16.mxu0 0
    %2992 = vmatmul.mubr.bf16.gmra.mxu0 %v2916
    %v2993 = vpop.f32.mrf.mxu0
    %v2994 = vadd.f32 0.0, %v2993
    %v2995 = vpop.f32.mrf.mxu0
    %v2996 = vadd.f32 0.0, %v2995
    %v2997 = vpop.f32.mrf.mxu0
    %v2998 = vpop.f32.mrf.mxu0
    %2999 = vdwg.mxu0
    %v3004 = vrot.slane %v2953, 7
    %v3005 = vrot.slane %v2955, 7
    %v3006 = vrot.slane %v2994, 7
    %v3007 = vrot.slane %v2996, 7
    %v3016 = vadd.f32 %v2511, %v3004
    %v3017 = vadd.f32 %v2513, %v3005
    %v3018 = vadd.f32 %v2554, %v3006
    %v3019 = vadd.f32 %v2556, %v3007
    %v3020 = vadd.f32 %v2515, %v2953
    %v3021 = vadd.f32 %v2517, %v2955
    %v3022 = vadd.f32 %v2558, %v2994
    %v3023 = vadd.f32 %v2560, %v2996
    %v3024 = vxor.u32 %v3016, 2147483648
    %v3025 = vxor.u32 %v3020, 2147483648
    %v3026 = vmul.f32 %v3024, 1.442695
    %v3027 = vpow.pop %v3026
    %v3028 = vmul.f32 %v3025, 1.442695
    %v3029 = vpow.pop %v3028
    %v3030 = vadd.f32 %v3027, 1.0
    %v3031 = vadd.f32 %v3029, 1.0
    %v3032 = vrcp.pop %v3030
    %v3033 = vmul.f32 1.0, %v3032
    %v3034 = vrcp.pop %v3031
    %v3035 = vmul.f32 1.0, %v3034
    %v3036 = vxor.u32 %v3017, 2147483648
    %v3037 = vxor.u32 %v3021, 2147483648
    %v3038 = vmul.f32 %v3036, 1.442695
    %v3039 = vpow.pop %v3038
    %v3040 = vmul.f32 %v3037, 1.442695
    %v3041 = vpow.pop %v3040
    %v3042 = vadd.f32 %v3039, 1.0
    %v3043 = vadd.f32 %v3041, 1.0
    %v3044 = vrcp.pop %v3042
    %v3045 = vmul.f32 1.0, %v3044
    %v3046 = vrcp.pop %v3043
    %v3047 = vmul.f32 1.0, %v3046
    %v3048 = vtanh.pop %v3018
    %v3049 = vtanh.pop %v3022
    %v3050 = vxor.u32 %v3019, 2147483648
    %v3051 = vxor.u32 %v3023, 2147483648
    %v3052 = vmul.f32 %v3050, 1.442695
    %v3053 = vpow.pop %v3052
    %v3054 = vmul.f32 %v3051, 1.442695
    %v3055 = vpow.pop %v3054
    %v3056 = vadd.f32 %v3053, 1.0
    %v3057 = vadd.f32 %v3055, 1.0
    %v3058 = vrcp.pop %v3056
    %v3059 = vmul.f32 1.0, %v3058
    %v3060 = vrcp.pop %v3057
    %v3061 = vmul.f32 1.0, %v3060
    %v3064 = vrot.slane %v2902, 7
    %v3065 = vrot.slane %v2903, 7
    %v3068 = vmul.f32 %v3045, %v3064
    %v3069 = vmul.f32 %v3047, %v3065
    %v3070 = vmul.f32 %v3033, %v3048
    %v3071 = vmul.f32 %v3035, %v3049
    %v3072 = vadd.f32 %v3068, %v3070
    %v3073 = vadd.f32 %v3069, %v3071
    %v3074 = vtanh.pop %v3072
    %v3075 = vtanh.pop %v3073
    %v3076 = vmul.f32 %v3059, %v3074
    %v3077 = vmul.f32 %v3061, %v3075
    %v3078 = vpack.c.bf16 %v3076, %v3076
    %v3079 = vpack.c.bf16 %v3077, %v3077
    %v3082 = vunpack.c.l.b16 %v3078
    %v3083 = vunpack.c.l.b16 %v3079
    %v3084 = vrot.slane %v3082, 1
    %v3085 = vsel %vm1027, %v3083, %v3084
    %v3086 = vpack.c.b16 %v3085, %v3085
    %3088 = vmatprep.subr.bf16.mxu0 %v2719
    %3089 = vmatpush1.bf16.msra.mxu0 %v2718
    %3090 = vmatprep.subr.bf16.mxu0 %v2715
    %3091 = vmatpush1.bf16.msra.mxu0 %v2714
    %3092 = vmatprep.subr.bf16.mxu0 %v2711
    %3093 = vmatpush1.bf16.msra.mxu0 %v2710
    %3094 = vmatprep.subr.bf16.mxu0 %v2707
    %3095 = vmatpush1.bf16.msra.mxu0 %v2706
    %3096 = vmatprep.subr.bf16.mxu0 %v2703
    %3097 = vmatpush1.bf16.msra.mxu0 %v2702
    %3098 = vmatprep.subr.bf16.mxu0 %v2699
    %3099 = vmatpush1.bf16.msra.mxu0 %v2698
    %3100 = vmatprep.subr.bf16.mxu0 %v2695
    %3101 = vmatpush1.bf16.msra.mxu0 %v2694
    %3102 = vmatprep.subr.bf16.mxu0 %v2691
    %3103 = vmatpush1.bf16.msra.mxu0 %v2690
    %3104 = vmatprep.subr.bf16.mxu0 0
    %3105 = vmatpush2.bf16.msra.mxu0 0
    %3106 = vmatprep.subr.bf16.mxu0 0
    %3107 = vmatpush2.bf16.msra.mxu0 0
    %3108 = vmatprep.subr.bf16.mxu0 0
    %3109 = vmatpush2.bf16.msra.mxu0 0
    %3110 = vmatprep.subr.bf16.mxu0 0
    %3111 = vmatpush2.bf16.msra.mxu0 0
    %3112 = vmatprep.subr.bf16.mxu0 0
    %3113 = vmatpush2.bf16.msra.mxu0 0
    %3114 = vmatprep.subr.bf16.mxu0 0
    %3115 = vmatpush2.bf16.msra.mxu0 0
    %3116 = vmatprep.subr.bf16.mxu0 0
    %3117 = vmatpush2.bf16.msra.mxu0 0
    %3118 = vmatprep.subr.bf16.mxu0 0
    %3119 = vmatpush2.bf16.msra.mxu0 0
    %3120 = vmatprep.mubr.bf16.mxu0 0
    %3121 = vmatmul.mubr.bf16.gmra.mxu0 %v3086
    %v3122 = vpop.f32.mrf.mxu0
    %v3123 = vadd.f32 0.0, %v3122
    %v3124 = vpop.f32.mrf.mxu0
    %v3125 = vadd.f32 0.0, %v3124
    %v3126 = vpop.f32.mrf.mxu0
    %v3127 = vpop.f32.mrf.mxu0
    %3128 = vdwg.mxu0
    %3129 = vmatprep.subr.bf16.mxu0 %v2721
    %3130 = vmatpush1.bf16.msra.mxu0 %v2720
    %3131 = vmatprep.subr.bf16.mxu0 %v2717
    %3132 = vmatpush1.bf16.msra.mxu0 %v2716
    %3133 = vmatprep.subr.bf16.mxu0 %v2713
    %3134 = vmatpush1.bf16.msra.mxu0 %v2712
    %3135 = vmatprep.subr.bf16.mxu0 %v2709
    %3136 = vmatpush1.bf16.msra.mxu0 %v2708
    %3137 = vmatprep.subr.bf16.mxu0 %v2705
    %3138 = vmatpush1.bf16.msra.mxu0 %v2704
    %3139 = vmatprep.subr.bf16.mxu0 %v2701
    %3140 = vmatpush1.bf16.msra.mxu0 %v2700
    %3141 = vmatprep.subr.bf16.mxu0 %v2697
    %3142 = vmatpush1.bf16.msra.mxu0 %v2696
    %3143 = vmatprep.subr.bf16.mxu0 %v2693
    %3144 = vmatpush1.bf16.msra.mxu0 %v2692
    %3145 = vmatprep.subr.bf16.mxu0 0
    %3146 = vmatpush2.bf16.msra.mxu0 0
    %3147 = vmatprep.subr.bf16.mxu0 0
    %3148 = vmatpush2.bf16.msra.mxu0 0
    %3149 = vmatprep.subr.bf16.mxu0 0
    %3150 = vmatpush2.bf16.msra.mxu0 0
    %3151 = vmatprep.subr.bf16.mxu0 0
    %3152 = vmatpush2.bf16.msra.mxu0 0
    %3153 = vmatprep.subr.bf16.mxu0 0
    %3154 = vmatpush2.bf16.msra.mxu0 0
    %3155 = vmatprep.subr.bf16.mxu0 0
    %3156 = vmatpush2.bf16.msra.mxu0 0
    %3157 = vmatprep.subr.bf16.mxu0 0
    %3158 = vmatpush2.bf16.msra.mxu0 0
    %3159 = vmatprep.subr.bf16.mxu0 0
    %3160 = vmatpush2.bf16.msra.mxu0 0
    %3161 = vmatprep.mubr.bf16.mxu0 0
    %3162 = vmatmul.mubr.bf16.gmra.mxu0 %v3086
    %v3163 = vpop.f32.mrf.mxu0
    %v3164 = vadd.f32 0.0, %v3163
    %v3165 = vpop.f32.mrf.mxu0
    %v3166 = vadd.f32 0.0, %v3165
    %v3167 = vpop.f32.mrf.mxu0
    %v3168 = vpop.f32.mrf.mxu0
    %3169 = vdwg.mxu0
    %v3174 = vrot.slane %v3123, 6
    %v3175 = vrot.slane %v3125, 6
    %v3176 = vrot.slane %v3164, 6
    %v3177 = vrot.slane %v3166, 6
    %v3178 = vrot.slane %v3123, 7
    %v3179 = vrot.slane %v3125, 7
    %v3180 = vrot.slane %v3164, 7
    %v3181 = vrot.slane %v3166, 7
    %v3190 = vadd.f32 %v2511, %v3174
    %v3191 = vadd.f32 %v2513, %v3175
    %v3192 = vadd.f32 %v2554, %v3176
    %v3193 = vadd.f32 %v2556, %v3177
    %v3194 = vadd.f32 %v2515, %v3178
    %v3195 = vadd.f32 %v2517, %v3179
    %v3196 = vadd.f32 %v2558, %v3180
    %v3197 = vadd.f32 %v2560, %v3181
    %v3198 = vxor.u32 %v3190, 2147483648
    %v3199 = vxor.u32 %v3194, 2147483648
    %v3200 = vmul.f32 %v3198, 1.442695
    %v3201 = vpow.pop %v3200
    %v3202 = vmul.f32 %v3199, 1.442695
    %v3203 = vpow.pop %v3202
    %v3204 = vadd.f32 %v3201, 1.0
    %v3205 = vadd.f32 %v3203, 1.0
    %v3206 = vrcp.pop %v3204
    %v3207 = vmul.f32 1.0, %v3206
    %v3208 = vrcp.pop %v3205
    %v3209 = vmul.f32 1.0, %v3208
    %v3210 = vxor.u32 %v3191, 2147483648
    %v3211 = vxor.u32 %v3195, 2147483648
    %v3212 = vmul.f32 %v3210, 1.442695
    %v3213 = vpow.pop %v3212
    %v3214 = vmul.f32 %v3211, 1.442695
    %v3215 = vpow.pop %v3214
    %v3216 = vadd.f32 %v3213, 1.0
    %v3217 = vadd.f32 %v3215, 1.0
    %v3218 = vrcp.pop %v3216
    %v3219 = vmul.f32 1.0, %v3218
    %v3220 = vrcp.pop %v3217
    %v3221 = vmul.f32 1.0, %v3220
    %v3222 = vtanh.pop %v3192
    %v3223 = vtanh.pop %v3196
    %v3224 = vxor.u32 %v3193, 2147483648
    %v3225 = vxor.u32 %v3197, 2147483648
    %v3226 = vmul.f32 %v3224, 1.442695
    %v3227 = vpow.pop %v3226
    %v3228 = vmul.f32 %v3225, 1.442695
    %v3229 = vpow.pop %v3228
    %v3230 = vadd.f32 %v3227, 1.0
    %v3231 = vadd.f32 %v3229, 1.0
    %v3232 = vrcp.pop %v3230
    %v3233 = vmul.f32 1.0, %v3232
    %v3234 = vrcp.pop %v3231
    %v3235 = vmul.f32 1.0, %v3234
    %v3238 = vrot.slane %v3072, 7
    %v3239 = vrot.slane %v3073, 7
    %v3242 = vmul.f32 %v3219, %v3238
    %v3243 = vmul.f32 %v3221, %v3239
    %v3244 = vmul.f32 %v3207, %v3222
    %v3245 = vmul.f32 %v3209, %v3223
    %v3246 = vadd.f32 %v3242, %v3244
    %v3247 = vadd.f32 %v3243, %v3245
    %v3248 = vtanh.pop %v3246
    %v3249 = vtanh.pop %v3247
    %v3250 = vmul.f32 %v3233, %v3248
    %v3251 = vmul.f32 %v3235, %v3249
    %v3252 = vpack.c.bf16 %v3250, %v3250
    %v3253 = vpack.c.bf16 %v3251, %v3251
    %v3256 = vunpack.c.l.b16 %v3252
    %v3257 = vunpack.c.l.b16 %v3253
    %v3258 = vrot.slane %v3256, 2
    %v3259 = vrot.slane %v3257, 1
    %v3260 = vsel %vm1027, %v3259, %v3258
    %v3261 = vpack.c.b16 %v3260, %v3260
    %3263 = vmatprep.subr.bf16.mxu0 %v2719
    %3264 = vmatpush1.bf16.msra.mxu0 %v2718
    %3265 = vmatprep.subr.bf16.mxu0 %v2715
    %3266 = vmatpush1.bf16.msra.mxu0 %v2714
    %3267 = vmatprep.subr.bf16.mxu0 %v2711
    %3268 = vmatpush1.bf16.msra.mxu0 %v2710
    %3269 = vmatprep.subr.bf16.mxu0 %v2707
    %3270 = vmatpush1.bf16.msra.mxu0 %v2706
    %3271 = vmatprep.subr.bf16.mxu0 %v2703
    %3272 = vmatpush1.bf16.msra.mxu0 %v2702
    %3273 = vmatprep.subr.bf16.mxu0 %v2699
    %3274 = vmatpush1.bf16.msra.mxu0 %v2698
    %3275 = vmatprep.subr.bf16.mxu0 %v2695
    %3276 = vmatpush1.bf16.msra.mxu0 %v2694
    %3277 = vmatprep.subr.bf16.mxu0 %v2691
    %3278 = vmatpush1.bf16.msra.mxu0 %v2690
    %3279 = vmatprep.subr.bf16.mxu0 0
    %3280 = vmatpush2.bf16.msra.mxu0 0
    %3281 = vmatprep.subr.bf16.mxu0 0
    %3282 = vmatpush2.bf16.msra.mxu0 0
    %3283 = vmatprep.subr.bf16.mxu0 0
    %3284 = vmatpush2.bf16.msra.mxu0 0
    %3285 = vmatprep.subr.bf16.mxu0 0
    %3286 = vmatpush2.bf16.msra.mxu0 0
    %3287 = vmatprep.subr.bf16.mxu0 0
    %3288 = vmatpush2.bf16.msra.mxu0 0
    %3289 = vmatprep.subr.bf16.mxu0 0
    %3290 = vmatpush2.bf16.msra.mxu0 0
    %3291 = vmatprep.subr.bf16.mxu0 0
    %3292 = vmatpush2.bf16.msra.mxu0 0
    %3293 = vmatprep.subr.bf16.mxu0 0
    %3294 = vmatpush2.bf16.msra.mxu0 0
    %3295 = vmatprep.mubr.bf16.mxu0 0
    %3296 = vmatmul.mubr.bf16.gmra.mxu0 %v3261
    %v3297 = vpop.f32.mrf.mxu0
    %v3298 = vadd.f32 0.0, %v3297
    %v3299 = vpop.f32.mrf.mxu0
    %v3300 = vadd.f32 0.0, %v3299
    %v3301 = vpop.f32.mrf.mxu0
    %v3302 = vpop.f32.mrf.mxu0
    %3303 = vdwg.mxu0
    %3304 = vmatprep.subr.bf16.mxu0 %v2721
    %3305 = vmatpush1.bf16.msra.mxu0 %v2720
    %3306 = vmatprep.subr.bf16.mxu0 %v2717
    %3307 = vmatpush1.bf16.msra.mxu0 %v2716
    %3308 = vmatprep.subr.bf16.mxu0 %v2713
    %3309 = vmatpush1.bf16.msra.mxu0 %v2712
    %3310 = vmatprep.subr.bf16.mxu0 %v2709
    %3311 = vmatpush1.bf16.msra.mxu0 %v2708
    %3312 = vmatprep.subr.bf16.mxu0 %v2705
    %3313 = vmatpush1.bf16.msra.mxu0 %v2704
    %3314 = vmatprep.subr.bf16.mxu0 %v2701
    %3315 = vmatpush1.bf16.msra.mxu0 %v2700
    %3316 = vmatprep.subr.bf16.mxu0 %v2697
    %3317 = vmatpush1.bf16.msra.mxu0 %v2696
    %3318 = vmatprep.subr.bf16.mxu0 %v2693
    %3319 = vmatpush1.bf16.msra.mxu0 %v2692
    %3320 = vmatprep.subr.bf16.mxu0 0
    %3321 = vmatpush2.bf16.msra.mxu0 0
    %3322 = vmatprep.subr.bf16.mxu0 0
    %3323 = vmatpush2.bf16.msra.mxu0 0
    %3324 = vmatprep.subr.bf16.mxu0 0
    %3325 = vmatpush2.bf16.msra.mxu0 0
    %3326 = vmatprep.subr.bf16.mxu0 0
    %3327 = vmatpush2.bf16.msra.mxu0 0
    %3328 = vmatprep.subr.bf16.mxu0 0
    %3329 = vmatpush2.bf16.msra.mxu0 0
    %3330 = vmatprep.subr.bf16.mxu0 0
    %3331 = vmatpush2.bf16.msra.mxu0 0
    %3332 = vmatprep.subr.bf16.mxu0 0
    %3333 = vmatpush2.bf16.msra.mxu0 0
    %3334 = vmatprep.subr.bf16.mxu0 0
    %3335 = vmatpush2.bf16.msra.mxu0 0
    %3336 = vmatprep.mubr.bf16.mxu0 0
    %3337 = vmatmul.mubr.bf16.gmra.mxu0 %v3261
    %v3338 = vpop.f32.mrf.mxu0
    %v3339 = vadd.f32 0.0, %v3338
    %v3340 = vpop.f32.mrf.mxu0
    %v3341 = vadd.f32 0.0, %v3340
    %v3342 = vpop.f32.mrf.mxu0
    %v3343 = vpop.f32.mrf.mxu0
    %3344 = vdwg.mxu0
    %v3349 = vrot.slane %v3298, 5
    %v3350 = vrot.slane %v3300, 5
    %v3351 = vrot.slane %v3339, 5
    %v3352 = vrot.slane %v3341, 5
    %v3353 = vrot.slane %v3298, 6
    %v3354 = vrot.slane %v3300, 6
    %v3355 = vrot.slane %v3339, 6
    %v3356 = vrot.slane %v3341, 6
    %v3365 = vadd.f32 %v2511, %v3349
    %v3366 = vadd.f32 %v2513, %v3350
    %v3367 = vadd.f32 %v2554, %v3351
    %v3368 = vadd.f32 %v2556, %v3352
    %v3369 = vadd.f32 %v2515, %v3353
    %v3370 = vadd.f32 %v2517, %v3354
    %v3371 = vadd.f32 %v2558, %v3355
    %v3372 = vadd.f32 %v2560, %v3356
    %v3373 = vxor.u32 %v3365, 2147483648
    %v3374 = vxor.u32 %v3369, 2147483648
    %v3375 = vmul.f32 %v3373, 1.442695
    %v3376 = vpow.pop %v3375
    %v3377 = vmul.f32 %v3374, 1.442695
    %v3378 = vpow.pop %v3377
    %v3379 = vadd.f32 %v3376, 1.0
    %v3380 = vadd.f32 %v3378, 1.0
    %v3381 = vrcp.pop %v3379
    %v3382 = vmul.f32 1.0, %v3381
    %v3383 = vrcp.pop %v3380
    %v3384 = vmul.f32 1.0, %v3383
    %v3385 = vxor.u32 %v3366, 2147483648
    %v3386 = vxor.u32 %v3370, 2147483648
    %v3387 = vmul.f32 %v3385, 1.442695
    %v3388 = vpow.pop %v3387
    %v3389 = vmul.f32 %v3386, 1.442695
    %v3390 = vpow.pop %v3389
    %v3391 = vadd.f32 %v3388, 1.0
    %v3392 = vadd.f32 %v3390, 1.0
    %v3393 = vrcp.pop %v3391
    %v3394 = vmul.f32 1.0, %v3393
    %v3395 = vrcp.pop %v3392
    %v3396 = vmul.f32 1.0, %v3395
    %v3397 = vtanh.pop %v3367
    %v3398 = vtanh.pop %v3371
    %v3399 = vxor.u32 %v3368, 2147483648
    %v3400 = vxor.u32 %v3372, 2147483648
    %v3401 = vmul.f32 %v3399, 1.442695
    %v3402 = vpow.pop %v3401
    %v3403 = vmul.f32 %v3400, 1.442695
    %v3404 = vpow.pop %v3403
    %v3405 = vadd.f32 %v3402, 1.0
    %v3406 = vadd.f32 %v3404, 1.0
    %v3407 = vrcp.pop %v3405
    %v3408 = vmul.f32 1.0, %v3407
    %v3409 = vrcp.pop %v3406
    %v3410 = vmul.f32 1.0, %v3409
    %v3413 = vrot.slane %v3246, 7
    %v3414 = vrot.slane %v3247, 7
    %v3417 = vmul.f32 %v3394, %v3413
    %v3418 = vmul.f32 %v3396, %v3414
    %v3419 = vmul.f32 %v3382, %v3397
    %v3420 = vmul.f32 %v3384, %v3398
    %v3421 = vadd.f32 %v3417, %v3419
    %v3422 = vadd.f32 %v3418, %v3420
    %v3423 = vtanh.pop %v3421
    %v3424 = vtanh.pop %v3422
    %v3425 = vmul.f32 %v3408, %v3423
    %v3426 = vmul.f32 %v3410, %v3424
    %v3427 = vpack.c.bf16 %v3425, %v3425
    %v3428 = vpack.c.bf16 %v3426, %v3426
    %v3431 = vunpack.c.l.b16 %v3427
    %v3432 = vunpack.c.l.b16 %v3428
    %v3433 = vrot.slane %v3431, 3
    %v3434 = vrot.slane %v3432, 2
    %v3435 = vsel %vm1027, %v3434, %v3433
    %v3436 = vpack.c.b16 %v3435, %v3435
    %3438 = vmatprep.subr.bf16.mxu0 %v2719
    %3439 = vmatpush1.bf16.msra.mxu0 %v2718
    %3440 = vmatprep.subr.bf16.mxu0 %v2715
    %3441 = vmatpush1.bf16.msra.mxu0 %v2714
    %3442 = vmatprep.subr.bf16.mxu0 %v2711
    %3443 = vmatpush1.bf16.msra.mxu0 %v2710
    %3444 = vmatprep.subr.bf16.mxu0 %v2707
    %3445 = vmatpush1.bf16.msra.mxu0 %v2706
    %3446 = vmatprep.subr.bf16.mxu0 %v2703
    %3447 = vmatpush1.bf16.msra.mxu0 %v2702
    %3448 = vmatprep.subr.bf16.mxu0 %v2699
    %3449 = vmatpush1.bf16.msra.mxu0 %v2698
    %3450 = vmatprep.subr.bf16.mxu0 %v2695
    %3451 = vmatpush1.bf16.msra.mxu0 %v2694
    %3452 = vmatprep.subr.bf16.mxu0 %v2691
    %3453 = vmatpush1.bf16.msra.mxu0 %v2690
    %3454 = vmatprep.subr.bf16.mxu0 0
    %3455 = vmatpush2.bf16.msra.mxu0 0
    %3456 = vmatprep.subr.bf16.mxu0 0
    %3457 = vmatpush2.bf16.msra.mxu0 0
    %3458 = vmatprep.subr.bf16.mxu0 0
    %3459 = vmatpush2.bf16.msra.mxu0 0
    %3460 = vmatprep.subr.bf16.mxu0 0
    %3461 = vmatpush2.bf16.msra.mxu0 0
    %3462 = vmatprep.subr.bf16.mxu0 0
    %3463 = vmatpush2.bf16.msra.mxu0 0
    %3464 = vmatprep.subr.bf16.mxu0 0
    %3465 = vmatpush2.bf16.msra.mxu0 0
    %3466 = vmatprep.subr.bf16.mxu0 0
    %3467 = vmatpush2.bf16.msra.mxu0 0
    %3468 = vmatprep.subr.bf16.mxu0 0
    %3469 = vmatpush2.bf16.msra.mxu0 0
    %3470 = vmatprep.mubr.bf16.mxu0 0
    %3471 = vmatmul.mubr.bf16.gmra.mxu0 %v3436
    %v3472 = vpop.f32.mrf.mxu0
    %v3473 = vadd.f32 0.0, %v3472
    %v3474 = vpop.f32.mrf.mxu0
    %v3475 = vadd.f32 0.0, %v3474
    %v3476 = vpop.f32.mrf.mxu0
    %v3477 = vpop.f32.mrf.mxu0
    %3478 = vdwg.mxu0
    %3479 = vmatprep.subr.bf16.mxu0 %v2721
    %3480 = vmatpush1.bf16.msra.mxu0 %v2720
    %3481 = vmatprep.subr.bf16.mxu0 %v2717
    %3482 = vmatpush1.bf16.msra.mxu0 %v2716
    %3483 = vmatprep.subr.bf16.mxu0 %v2713
    %3484 = vmatpush1.bf16.msra.mxu0 %v2712
    %3485 = vmatprep.subr.bf16.mxu0 %v2709
    %3486 = vmatpush1.bf16.msra.mxu0 %v2708
    %3487 = vmatprep.subr.bf16.mxu0 %v2705
    %3488 = vmatpush1.bf16.msra.mxu0 %v2704
    %3489 = vmatprep.subr.bf16.mxu0 %v2701
    %3490 = vmatpush1.bf16.msra.mxu0 %v2700
    %3491 = vmatprep.subr.bf16.mxu0 %v2697
    %3492 = vmatpush1.bf16.msra.mxu0 %v2696
    %3493 = vmatprep.subr.bf16.mxu0 %v2693
    %3494 = vmatpush1.bf16.msra.mxu0 %v2692
    %3495 = vmatprep.subr.bf16.mxu0 0
    %3496 = vmatpush2.bf16.msra.mxu0 0
    %3497 = vmatprep.subr.bf16.mxu0 0
    %3498 = vmatpush2.bf16.msra.mxu0 0
    %3499 = vmatprep.subr.bf16.mxu0 0
    %3500 = vmatpush2.bf16.msra.mxu0 0
    %3501 = vmatprep.subr.bf16.mxu0 0
    %3502 = vmatpush2.bf16.msra.mxu0 0
    %3503 = vmatprep.subr.bf16.mxu0 0
    %3504 = vmatpush2.bf16.msra.mxu0 0
    %3505 = vmatprep.subr.bf16.mxu0 0
    %3506 = vmatpush2.bf16.msra.mxu0 0
    %3507 = vmatprep.subr.bf16.mxu0 0
    %3508 = vmatpush2.bf16.msra.mxu0 0
    %3509 = vmatprep.subr.bf16.mxu0 0
    %3510 = vmatpush2.bf16.msra.mxu0 0
    %3511 = vmatprep.mubr.bf16.mxu0 0
    %3512 = vmatmul.mubr.bf16.gmra.mxu0 %v3436
    %v3513 = vpop.f32.mrf.mxu0
    %v3514 = vadd.f32 0.0, %v3513
    %v3515 = vpop.f32.mrf.mxu0
    %v3516 = vadd.f32 0.0, %v3515
    %v3517 = vpop.f32.mrf.mxu0
    %v3518 = vpop.f32.mrf.mxu0
    %3519 = vdwg.mxu0
    %v3524 = vrot.slane %v3473, 4
    %v3525 = vrot.slane %v3475, 4
    %v3526 = vrot.slane %v3514, 4
    %v3527 = vrot.slane %v3516, 4
    %v3528 = vrot.slane %v3473, 5
    %v3529 = vrot.slane %v3475, 5
    %v3530 = vrot.slane %v3514, 5
    %v3531 = vrot.slane %v3516, 5
    %v3540 = vadd.f32 %v2511, %v3524
    %v3541 = vadd.f32 %v2513, %v3525
    %v3542 = vadd.f32 %v2554, %v3526
    %v3543 = vadd.f32 %v2556, %v3527
    %v3544 = vadd.f32 %v2515, %v3528
    %v3545 = vadd.f32 %v2517, %v3529
    %v3546 = vadd.f32 %v2558, %v3530
    %v3547 = vadd.f32 %v2560, %v3531
    %v3548 = vxor.u32 %v3540, 2147483648
    %v3549 = vxor.u32 %v3544, 2147483648
    %v3550 = vmul.f32 %v3548, 1.442695
    %v3551 = vpow.pop %v3550
    %v3552 = vmul.f32 %v3549, 1.442695
    %v3553 = vpow.pop %v3552
    %v3554 = vadd.f32 %v3551, 1.0
    %v3555 = vadd.f32 %v3553, 1.0
    %v3556 = vrcp.pop %v3554
    %v3557 = vmul.f32 1.0, %v3556
    %v3558 = vrcp.pop %v3555
    %v3559 = vmul.f32 1.0, %v3558
    %v3560 = vxor.u32 %v3541, 2147483648
    %v3561 = vxor.u32 %v3545, 2147483648
    %v3562 = vmul.f32 %v3560, 1.442695
    %v3563 = vpow.pop %v3562
    %v3564 = vmul.f32 %v3561, 1.442695
    %v3565 = vpow.pop %v3564
    %v3566 = vadd.f32 %v3563, 1.0
    %v3567 = vadd.f32 %v3565, 1.0
    %v3568 = vrcp.pop %v3566
    %v3569 = vmul.f32 1.0, %v3568
    %v3570 = vrcp.pop %v3567
    %v3571 = vmul.f32 1.0, %v3570
    %v3572 = vtanh.pop %v3542
    %v3573 = vtanh.pop %v3546
    %v3574 = vxor.u32 %v3543, 2147483648
    %v3575 = vxor.u32 %v3547, 2147483648
    %v3576 = vmul.f32 %v3574, 1.442695
    %v3577 = vpow.pop %v3576
    %v3578 = vmul.f32 %v3575, 1.442695
    %v3579 = vpow.pop %v3578
    %v3580 = vadd.f32 %v3577, 1.0
    %v3581 = vadd.f32 %v3579, 1.0
    %v3582 = vrcp.pop %v3580
    %v3583 = vmul.f32 1.0, %v3582
    %v3584 = vrcp.pop %v3581
    %v3585 = vmul.f32 1.0, %v3584
    %v3588 = vrot.slane %v3421, 7
    %v3589 = vrot.slane %v3422, 7
    %v3592 = vmul.f32 %v3569, %v3588
    %v3593 = vmul.f32 %v3571, %v3589
    %v3594 = vmul.f32 %v3557, %v3572
    %v3595 = vmul.f32 %v3559, %v3573
    %v3596 = vadd.f32 %v3592, %v3594
    %v3597 = vadd.f32 %v3593, %v3595
    %v3598 = vtanh.pop %v3596
    %v3599 = vtanh.pop %v3597
    %v3600 = vmul.f32 %v3583, %v3598
    %v3601 = vmul.f32 %v3585, %v3599
    %v3602 = vpack.c.bf16 %v3600, %v3600
    %v3603 = vpack.c.bf16 %v3601, %v3601
    %v3606 = vunpack.c.l.b16 %v3602
    %v3607 = vunpack.c.l.b16 %v3603
    %v3608 = vrot.slane %v3606, 4
    %v3609 = vrot.slane %v3607, 3
    %v3610 = vsel %vm1027, %v3609, %v3608
    %v3611 = vpack.c.b16 %v3610, %v3610
    %3613 = vmatprep.subr.bf16.mxu0 %v2719
    %3614 = vmatpush1.bf16.msra.mxu0 %v2718
    %3615 = vmatprep.subr.bf16.mxu0 %v2715
    %3616 = vmatpush1.bf16.msra.mxu0 %v2714
    %3617 = vmatprep.subr.bf16.mxu0 %v2711
    %3618 = vmatpush1.bf16.msra.mxu0 %v2710
    %3619 = vmatprep.subr.bf16.mxu0 %v2707
    %3620 = vmatpush1.bf16.msra.mxu0 %v2706
    %3621 = vmatprep.subr.bf16.mxu0 %v2703
    %3622 = vmatpush1.bf16.msra.mxu0 %v2702
    %3623 = vmatprep.subr.bf16.mxu0 %v2699
    %3624 = vmatpush1.bf16.msra.mxu0 %v2698
    %3625 = vmatprep.subr.bf16.mxu0 %v2695
    %3626 = vmatpush1.bf16.msra.mxu0 %v2694
    %3627 = vmatprep.subr.bf16.mxu0 %v2691
    %3628 = vmatpush1.bf16.msra.mxu0 %v2690
    %3629 = vmatprep.subr.bf16.mxu0 0
    %3630 = vmatpush2.bf16.msra.mxu0 0
    %3631 = vmatprep.subr.bf16.mxu0 0
    %3632 = vmatpush2.bf16.msra.mxu0 0
    %3633 = vmatprep.subr.bf16.mxu0 0
    %3634 = vmatpush2.bf16.msra.mxu0 0
    %3635 = vmatprep.subr.bf16.mxu0 0
    %3636 = vmatpush2.bf16.msra.mxu0 0
    %3637 = vmatprep.subr.bf16.mxu0 0
    %3638 = vmatpush2.bf16.msra.mxu0 0
    %3639 = vmatprep.subr.bf16.mxu0 0
    %3640 = vmatpush2.bf16.msra.mxu0 0
    %3641 = vmatprep.subr.bf16.mxu0 0
    %3642 = vmatpush2.bf16.msra.mxu0 0
    %3643 = vmatprep.subr.bf16.mxu0 0
    %3644 = vmatpush2.bf16.msra.mxu0 0
    %3645 = vmatprep.mubr.bf16.mxu0 0
    %3646 = vmatmul.mubr.bf16.gmra.mxu0 %v3611
    %v3647 = vpop.f32.mrf.mxu0
    %v3648 = vadd.f32 0.0, %v3647
    %v3649 = vpop.f32.mrf.mxu0
    %v3650 = vadd.f32 0.0, %v3649
    %v3651 = vpop.f32.mrf.mxu0
    %v3652 = vpop.f32.mrf.mxu0
    %3653 = vdwg.mxu0
    %3654 = vmatprep.subr.bf16.mxu0 %v2721
    %3655 = vmatpush1.bf16.msra.mxu0 %v2720
    %3656 = vmatprep.subr.bf16.mxu0 %v2717
    %3657 = vmatpush1.bf16.msra.mxu0 %v2716
    %3658 = vmatprep.subr.bf16.mxu0 %v2713
    %3659 = vmatpush1.bf16.msra.mxu0 %v2712
    %3660 = vmatprep.subr.bf16.mxu0 %v2709
    %3661 = vmatpush1.bf16.msra.mxu0 %v2708
    %3662 = vmatprep.subr.bf16.mxu0 %v2705
    %3663 = vmatpush1.bf16.msra.mxu0 %v2704
    %3664 = vmatprep.subr.bf16.mxu0 %v2701
    %3665 = vmatpush1.bf16.msra.mxu0 %v2700
    %3666 = vmatprep.subr.bf16.mxu0 %v2697
    %3667 = vmatpush1.bf16.msra.mxu0 %v2696
    %3668 = vmatprep.subr.bf16.mxu0 %v2693
    %3669 = vmatpush1.bf16.msra.mxu0 %v2692
    %3670 = vmatprep.subr.bf16.mxu0 0
    %3671 = vmatpush2.bf16.msra.mxu0 0
    %3672 = vmatprep.subr.bf16.mxu0 0
    %3673 = vmatpush2.bf16.msra.mxu0 0
    %3674 = vmatprep.subr.bf16.mxu0 0
    %3675 = vmatpush2.bf16.msra.mxu0 0
    %3676 = vmatprep.subr.bf16.mxu0 0
    %3677 = vmatpush2.bf16.msra.mxu0 0
    %3678 = vmatprep.subr.bf16.mxu0 0
    %3679 = vmatpush2.bf16.msra.mxu0 0
    %3680 = vmatprep.subr.bf16.mxu0 0
    %3681 = vmatpush2.bf16.msra.mxu0 0
    %3682 = vmatprep.subr.bf16.mxu0 0
    %3683 = vmatpush2.bf16.msra.mxu0 0
    %3684 = vmatprep.subr.bf16.mxu0 0
    %3685 = vmatpush2.bf16.msra.mxu0 0
    %3686 = vmatprep.mubr.bf16.mxu0 0
    %3687 = vmatmul.mubr.bf16.gmra.mxu0 %v3611
    %v3688 = vpop.f32.mrf.mxu0
    %v3689 = vadd.f32 0.0, %v3688
    %v3690 = vpop.f32.mrf.mxu0
    %v3691 = vadd.f32 0.0, %v3690
    %v3692 = vpop.f32.mrf.mxu0
    %v3693 = vpop.f32.mrf.mxu0
    %3694 = vdwg.mxu0
    %v3699 = vrot.slane %v3648, 3
    %v3700 = vrot.slane %v3650, 3
    %v3701 = vrot.slane %v3689, 3
    %v3702 = vrot.slane %v3691, 3
    %v3703 = vrot.slane %v3648, 4
    %v3704 = vrot.slane %v3650, 4
    %v3705 = vrot.slane %v3689, 4
    %v3706 = vrot.slane %v3691, 4
    %v3715 = vadd.f32 %v2511, %v3699
    %v3716 = vadd.f32 %v2513, %v3700
    %v3717 = vadd.f32 %v2554, %v3701
    %v3718 = vadd.f32 %v2556, %v3702
    %v3719 = vadd.f32 %v2515, %v3703
    %v3720 = vadd.f32 %v2517, %v3704
    %v3721 = vadd.f32 %v2558, %v3705
    %v3722 = vadd.f32 %v2560, %v3706
    %v3723 = vxor.u32 %v3715, 2147483648
    %v3724 = vxor.u32 %v3719, 2147483648
    %v3725 = vmul.f32 %v3723, 1.442695
    %v3726 = vpow.pop %v3725
    %v3727 = vmul.f32 %v3724, 1.442695
    %v3728 = vpow.pop %v3727
    %v3729 = vadd.f32 %v3726, 1.0
    %v3730 = vadd.f32 %v3728, 1.0
    %v3731 = vrcp.pop %v3729
    %v3732 = vmul.f32 1.0, %v3731
    %v3733 = vrcp.pop %v3730
    %v3734 = vmul.f32 1.0, %v3733
    %v3735 = vxor.u32 %v3716, 2147483648
    %v3736 = vxor.u32 %v3720, 2147483648
    %v3737 = vmul.f32 %v3735, 1.442695
    %v3738 = vpow.pop %v3737
    %v3739 = vmul.f32 %v3736, 1.442695
    %v3740 = vpow.pop %v3739
    %v3741 = vadd.f32 %v3738, 1.0
    %v3742 = vadd.f32 %v3740, 1.0
    %v3743 = vrcp.pop %v3741
    %v3744 = vmul.f32 1.0, %v3743
    %v3745 = vrcp.pop %v3742
    %v3746 = vmul.f32 1.0, %v3745
    %v3747 = vtanh.pop %v3717
    %v3748 = vtanh.pop %v3721
    %v3749 = vxor.u32 %v3718, 2147483648
    %v3750 = vxor.u32 %v3722, 2147483648
    %v3751 = vmul.f32 %v3749, 1.442695
    %v3752 = vpow.pop %v3751
    %v3753 = vmul.f32 %v3750, 1.442695
    %v3754 = vpow.pop %v3753
    %v3755 = vadd.f32 %v3752, 1.0
    %v3756 = vadd.f32 %v3754, 1.0
    %v3757 = vrcp.pop %v3755
    %v3758 = vmul.f32 1.0, %v3757
    %v3759 = vrcp.pop %v3756
    %v3760 = vmul.f32 1.0, %v3759
    %v3763 = vrot.slane %v3596, 7
    %v3764 = vrot.slane %v3597, 7
    %v3767 = vmul.f32 %v3744, %v3763
    %v3768 = vmul.f32 %v3746, %v3764
    %v3769 = vmul.f32 %v3732, %v3747
    %v3770 = vmul.f32 %v3734, %v3748
    %v3771 = vadd.f32 %v3767, %v3769
    %v3772 = vadd.f32 %v3768, %v3770
    %v3773 = vtanh.pop %v3771
    %v3774 = vtanh.pop %v3772
    %v3775 = vmul.f32 %v3758, %v3773
    %v3776 = vmul.f32 %v3760, %v3774
    %v3777 = vpack.c.bf16 %v3775, %v3775
    %v3778 = vpack.c.bf16 %v3776, %v3776
    %v3781 = vunpack.c.l.b16 %v3777
    %v3782 = vunpack.c.l.b16 %v3778
    %v3783 = vrot.slane %v3781, 5
    %v3784 = vrot.slane %v3782, 4
    %v3785 = vsel %vm1027, %v3784, %v3783
    %v3786 = vpack.c.b16 %v3785, %v3785
    %3788 = vmatprep.subr.bf16.mxu0 %v2719
    %3789 = vmatpush1.bf16.msra.mxu0 %v2718
    %3790 = vmatprep.subr.bf16.mxu0 %v2715
    %3791 = vmatpush1.bf16.msra.mxu0 %v2714
    %3792 = vmatprep.subr.bf16.mxu0 %v2711
    %3793 = vmatpush1.bf16.msra.mxu0 %v2710
    %3794 = vmatprep.subr.bf16.mxu0 %v2707
    %3795 = vmatpush1.bf16.msra.mxu0 %v2706
    %3796 = vmatprep.subr.bf16.mxu0 %v2703
    %3797 = vmatpush1.bf16.msra.mxu0 %v2702
    %3798 = vmatprep.subr.bf16.mxu0 %v2699
    %3799 = vmatpush1.bf16.msra.mxu0 %v2698
    %3800 = vmatprep.subr.bf16.mxu0 %v2695
    %3801 = vmatpush1.bf16.msra.mxu0 %v2694
    %3802 = vmatprep.subr.bf16.mxu0 %v2691
    %3803 = vmatpush1.bf16.msra.mxu0 %v2690
    %3804 = vmatprep.subr.bf16.mxu0 0
    %3805 = vmatpush2.bf16.msra.mxu0 0
    %3806 = vmatprep.subr.bf16.mxu0 0
    %3807 = vmatpush2.bf16.msra.mxu0 0
    %3808 = vmatprep.subr.bf16.mxu0 0
    %3809 = vmatpush2.bf16.msra.mxu0 0
    %3810 = vmatprep.subr.bf16.mxu0 0
    %3811 = vmatpush2.bf16.msra.mxu0 0
    %3812 = vmatprep.subr.bf16.mxu0 0
    %3813 = vmatpush2.bf16.msra.mxu0 0
    %3814 = vmatprep.subr.bf16.mxu0 0
    %3815 = vmatpush2.bf16.msra.mxu0 0
    %3816 = vmatprep.subr.bf16.mxu0 0
    %3817 = vmatpush2.bf16.msra.mxu0 0
    %3818 = vmatprep.subr.bf16.mxu0 0
    %3819 = vmatpush2.bf16.msra.mxu0 0
    %3820 = vmatprep.mubr.bf16.mxu0 0
    %3821 = vmatmul.mubr.bf16.gmra.mxu0 %v3786
    %v3822 = vpop.f32.mrf.mxu0
    %v3823 = vadd.f32 0.0, %v3822
    %v3824 = vpop.f32.mrf.mxu0
    %v3825 = vadd.f32 0.0, %v3824
    %v3826 = vpop.f32.mrf.mxu0
    %v3827 = vpop.f32.mrf.mxu0
    %3828 = vdwg.mxu0
    %3829 = vmatprep.subr.bf16.mxu0 %v2721
    %3830 = vmatpush1.bf16.msra.mxu0 %v2720
    %3831 = vmatprep.subr.bf16.mxu0 %v2717
    %3832 = vmatpush1.bf16.msra.mxu0 %v2716
    %3833 = vmatprep.subr.bf16.mxu0 %v2713
    %3834 = vmatpush1.bf16.msra.mxu0 %v2712
    %3835 = vmatprep.subr.bf16.mxu0 %v2709
    %3836 = vmatpush1.bf16.msra.mxu0 %v2708
    %3837 = vmatprep.subr.bf16.mxu0 %v2705
    %3838 = vmatpush1.bf16.msra.mxu0 %v2704
    %3839 = vmatprep.subr.bf16.mxu0 %v2701
    %3840 = vmatpush1.bf16.msra.mxu0 %v2700
    %3841 = vmatprep.subr.bf16.mxu0 %v2697
    %3842 = vmatpush1.bf16.msra.mxu0 %v2696
    %3843 = vmatprep.subr.bf16.mxu0 %v2693
    %3844 = vmatpush1.bf16.msra.mxu0 %v2692
    %3845 = vmatprep.subr.bf16.mxu0 0
    %3846 = vmatpush2.bf16.msra.mxu0 0
    %3847 = vmatprep.subr.bf16.mxu0 0
    %3848 = vmatpush2.bf16.msra.mxu0 0
    %3849 = vmatprep.subr.bf16.mxu0 0
    %3850 = vmatpush2.bf16.msra.mxu0 0
    %3851 = vmatprep.subr.bf16.mxu0 0
    %3852 = vmatpush2.bf16.msra.mxu0 0
    %3853 = vmatprep.subr.bf16.mxu0 0
    %3854 = vmatpush2.bf16.msra.mxu0 0
    %3855 = vmatprep.subr.bf16.mxu0 0
    %3856 = vmatpush2.bf16.msra.mxu0 0
    %3857 = vmatprep.subr.bf16.mxu0 0
    %3858 = vmatpush2.bf16.msra.mxu0 0
    %3859 = vmatprep.subr.bf16.mxu0 0
    %3860 = vmatpush2.bf16.msra.mxu0 0
    %3861 = vmatprep.mubr.bf16.mxu0 0
    %3862 = vmatmul.mubr.bf16.gmra.mxu0 %v3786
    %v3863 = vpop.f32.mrf.mxu0
    %v3864 = vadd.f32 0.0, %v3863
    %v3865 = vpop.f32.mrf.mxu0
    %v3866 = vadd.f32 0.0, %v3865
    %v3867 = vpop.f32.mrf.mxu0
    %v3868 = vpop.f32.mrf.mxu0
    %3869 = vdwg.mxu0
    %v3874 = vrot.slane %v3823, 2
    %v3875 = vrot.slane %v3825, 2
    %v3876 = vrot.slane %v3864, 2
    %v3877 = vrot.slane %v3866, 2
    %v3878 = vrot.slane %v3823, 3
    %v3879 = vrot.slane %v3825, 3
    %v3880 = vrot.slane %v3864, 3
    %v3881 = vrot.slane %v3866, 3
    %v3890 = vadd.f32 %v2511, %v3874
    %v3891 = vadd.f32 %v2513, %v3875
    %v3892 = vadd.f32 %v2554, %v3876
    %v3893 = vadd.f32 %v2556, %v3877
    %v3894 = vadd.f32 %v2515, %v3878
    %v3895 = vadd.f32 %v2517, %v3879
    %v3896 = vadd.f32 %v2558, %v3880
    %v3897 = vadd.f32 %v2560, %v3881
    %v3898 = vxor.u32 %v3890, 2147483648
    %v3899 = vxor.u32 %v3894, 2147483648
    %v3900 = vmul.f32 %v3898, 1.442695
    %v3901 = vpow.pop %v3900
    %v3902 = vmul.f32 %v3899, 1.442695
    %v3903 = vpow.pop %v3902
    %v3904 = vadd.f32 %v3901, 1.0
    %v3905 = vadd.f32 %v3903, 1.0
    %v3906 = vrcp.pop %v3904
    %v3907 = vmul.f32 1.0, %v3906
    %v3908 = vrcp.pop %v3905
    %v3909 = vmul.f32 1.0, %v3908
    %v3910 = vxor.u32 %v3891, 2147483648
    %v3911 = vxor.u32 %v3895, 2147483648
    %v3912 = vmul.f32 %v3910, 1.442695
    %v3913 = vpow.pop %v3912
    %v3914 = vmul.f32 %v3911, 1.442695
    %v3915 = vpow.pop %v3914
    %v3916 = vadd.f32 %v3913, 1.0
    %v3917 = vadd.f32 %v3915, 1.0
    %v3918 = vrcp.pop %v3916
    %v3919 = vmul.f32 1.0, %v3918
    %v3920 = vrcp.pop %v3917
    %v3921 = vmul.f32 1.0, %v3920
    %v3922 = vtanh.pop %v3892
    %v3923 = vtanh.pop %v3896
    %v3924 = vxor.u32 %v3893, 2147483648
    %v3925 = vxor.u32 %v3897, 2147483648
    %v3926 = vmul.f32 %v3924, 1.442695
    %v3927 = vpow.pop %v3926
    %v3928 = vmul.f32 %v3925, 1.442695
    %v3929 = vpow.pop %v3928
    %v3930 = vadd.f32 %v3927, 1.0
    %v3931 = vadd.f32 %v3929, 1.0
    %v3932 = vrcp.pop %v3930
    %v3933 = vmul.f32 1.0, %v3932
    %v3934 = vrcp.pop %v3931
    %v3935 = vmul.f32 1.0, %v3934
    %v3938 = vrot.slane %v3771, 7
    %v3939 = vrot.slane %v3772, 7
    %v3942 = vmul.f32 %v3919, %v3938
    %v3943 = vmul.f32 %v3921, %v3939
    %v3944 = vmul.f32 %v3907, %v3922
    %v3945 = vmul.f32 %v3909, %v3923
    %v3946 = vadd.f32 %v3942, %v3944
    %v3947 = vadd.f32 %v3943, %v3945
    %v3948 = vtanh.pop %v3946
    %v3949 = vtanh.pop %v3947
    %v3950 = vmul.f32 %v3933, %v3948
    %v3951 = vmul.f32 %v3935, %v3949
    %v3952 = vpack.c.bf16 %v3950, %v3950
    %v3953 = vpack.c.bf16 %v3951, %v3951
    %v3956 = vunpack.c.l.b16 %v3952
    %v3957 = vunpack.c.l.b16 %v3953
    %v3958 = vrot.slane %v3956, 6
    %v3959 = vrot.slane %v3957, 5
    %v3960 = vsel %vm1027, %v3959, %v3958
    %v3961 = vpack.c.b16 %v3960, %v3960
    %3963 = vmatprep.subr.bf16.mxu0 %v2719
    %3964 = vmatpush1.bf16.msra.mxu0 %v2718
    %3965 = vmatprep.subr.bf16.mxu0 %v2715
    %3966 = vmatpush1.bf16.msra.mxu0 %v2714
    %3967 = vmatprep.subr.bf16.mxu0 %v2711
    %3968 = vmatpush1.bf16.msra.mxu0 %v2710
    %3969 = vmatprep.subr.bf16.mxu0 %v2707
    %3970 = vmatpush1.bf16.msra.mxu0 %v2706
    %3971 = vmatprep.subr.bf16.mxu0 %v2703
    %3972 = vmatpush1.bf16.msra.mxu0 %v2702
    %3973 = vmatprep.subr.bf16.mxu0 %v2699
    %3974 = vmatpush1.bf16.msra.mxu0 %v2698
    %3975 = vmatprep.subr.bf16.mxu0 %v2695
    %3976 = vmatpush1.bf16.msra.mxu0 %v2694
    %3977 = vmatprep.subr.bf16.mxu0 %v2691
    %3978 = vmatpush1.bf16.msra.mxu0 %v2690
    %3979 = vmatprep.subr.bf16.mxu0 0
    %3980 = vmatpush2.bf16.msra.mxu0 0
    %3981 = vmatprep.subr.bf16.mxu0 0
    %3982 = vmatpush2.bf16.msra.mxu0 0
    %3983 = vmatprep.subr.bf16.mxu0 0
    %3984 = vmatpush2.bf16.msra.mxu0 0
    %3985 = vmatprep.subr.bf16.mxu0 0
    %3986 = vmatpush2.bf16.msra.mxu0 0
    %3987 = vmatprep.subr.bf16.mxu0 0
    %3988 = vmatpush2.bf16.msra.mxu0 0
    %3989 = vmatprep.subr.bf16.mxu0 0
    %3990 = vmatpush2.bf16.msra.mxu0 0
    %3991 = vmatprep.subr.bf16.mxu0 0
    %3992 = vmatpush2.bf16.msra.mxu0 0
    %3993 = vmatprep.subr.bf16.mxu0 0
    %3994 = vmatpush2.bf16.msra.mxu0 0
    %3995 = vmatprep.mubr.bf16.mxu0 0
    %3996 = vmatmul.mubr.bf16.gmra.mxu0 %v3961
    %v3997 = vpop.f32.mrf.mxu0
    %v3998 = vadd.f32 0.0, %v3997
    %v3999 = vpop.f32.mrf.mxu0
    %v4000 = vadd.f32 0.0, %v3999
    %v4001 = vpop.f32.mrf.mxu0
    %v4002 = vpop.f32.mrf.mxu0
    %4003 = vdwg.mxu0
    %4004 = vmatprep.subr.bf16.mxu0 %v2721
    %4005 = vmatpush1.bf16.msra.mxu0 %v2720
    %4006 = vmatprep.subr.bf16.mxu0 %v2717
    %4007 = vmatpush1.bf16.msra.mxu0 %v2716
    %4008 = vmatprep.subr.bf16.mxu0 %v2713
    %4009 = vmatpush1.bf16.msra.mxu0 %v2712
    %4010 = vmatprep.subr.bf16.mxu0 %v2709
    %4011 = vmatpush1.bf16.msra.mxu0 %v2708
    %4012 = vmatprep.subr.bf16.mxu0 %v2705
    %4013 = vmatpush1.bf16.msra.mxu0 %v2704
    %4014 = vmatprep.subr.bf16.mxu0 %v2701
    %4015 = vmatpush1.bf16.msra.mxu0 %v2700
    %4016 = vmatprep.subr.bf16.mxu0 %v2697
    %4017 = vmatpush1.bf16.msra.mxu0 %v2696
    %4018 = vmatprep.subr.bf16.mxu0 %v2693
    %4019 = vmatpush1.bf16.msra.mxu0 %v2692
    %4020 = vmatprep.subr.bf16.mxu0 0
    %4021 = vmatpush2.bf16.msra.mxu0 0
    %4022 = vmatprep.subr.bf16.mxu0 0
    %4023 = vmatpush2.bf16.msra.mxu0 0
    %4024 = vmatprep.subr.bf16.mxu0 0
    %4025 = vmatpush2.bf16.msra.mxu0 0
    %4026 = vmatprep.subr.bf16.mxu0 0
    %4027 = vmatpush2.bf16.msra.mxu0 0
    %4028 = vmatprep.subr.bf16.mxu0 0
    %4029 = vmatpush2.bf16.msra.mxu0 0
    %4030 = vmatprep.subr.bf16.mxu0 0
    %4031 = vmatpush2.bf16.msra.mxu0 0
    %4032 = vmatprep.subr.bf16.mxu0 0
    %4033 = vmatpush2.bf16.msra.mxu0 0
    %4034 = vmatprep.subr.bf16.mxu0 0
    %4035 = vmatpush2.bf16.msra.mxu0 0
    %4036 = vmatprep.mubr.bf16.mxu0 0
    %4037 = vmatmul.mubr.bf16.gmra.mxu0 %v3961
    %v4038 = vpop.f32.mrf.mxu0
    %v4039 = vadd.f32 0.0, %v4038
    %v4040 = vpop.f32.mrf.mxu0
    %v4041 = vadd.f32 0.0, %v4040
    %v4042 = vpop.f32.mrf.mxu0
    %v4043 = vpop.f32.mrf.mxu0
    %4044 = vdwg.mxu0
    %v4049 = vrot.slane %v3998, 1
    %v4050 = vrot.slane %v4000, 1
    %v4051 = vrot.slane %v4039, 1
    %v4052 = vrot.slane %v4041, 1
    %v4053 = vrot.slane %v3998, 2
    %v4054 = vrot.slane %v4000, 2
    %v4055 = vrot.slane %v4039, 2
    %v4056 = vrot.slane %v4041, 2
    %v4065 = vadd.f32 %v2511, %v4049
    %v4066 = vadd.f32 %v2513, %v4050
    %v4067 = vadd.f32 %v2554, %v4051
    %v4068 = vadd.f32 %v2556, %v4052
    %v4069 = vadd.f32 %v2515, %v4053
    %v4070 = vadd.f32 %v2517, %v4054
    %v4071 = vadd.f32 %v2558, %v4055
    %v4072 = vadd.f32 %v2560, %v4056
    %v4073 = vxor.u32 %v4065, 2147483648
    %v4074 = vxor.u32 %v4069, 2147483648
    %v4075 = vmul.f32 %v4073, 1.442695
    %v4076 = vpow.pop %v4075
    %v4077 = vmul.f32 %v4074, 1.442695
    %v4078 = vpow.pop %v4077
    %v4079 = vadd.f32 %v4076, 1.0
    %v4080 = vadd.f32 %v4078, 1.0
    %v4081 = vrcp.pop %v4079
    %v4082 = vmul.f32 1.0, %v4081
    %v4083 = vrcp.pop %v4080
    %v4084 = vmul.f32 1.0, %v4083
    %v4085 = vxor.u32 %v4066, 2147483648
    %v4086 = vxor.u32 %v4070, 2147483648
    %v4087 = vmul.f32 %v4085, 1.442695
    %v4088 = vpow.pop %v4087
    %v4089 = vmul.f32 %v4086, 1.442695
    %v4090 = vpow.pop %v4089
    %v4091 = vadd.f32 %v4088, 1.0
    %v4092 = vadd.f32 %v4090, 1.0
    %v4093 = vrcp.pop %v4091
    %v4094 = vmul.f32 1.0, %v4093
    %v4095 = vrcp.pop %v4092
    %v4096 = vmul.f32 1.0, %v4095
    %v4097 = vtanh.pop %v4067
    %v4098 = vtanh.pop %v4071
    %v4099 = vxor.u32 %v4068, 2147483648
    %v4100 = vxor.u32 %v4072, 2147483648
    %v4101 = vmul.f32 %v4099, 1.442695
    %v4102 = vpow.pop %v4101
    %v4103 = vmul.f32 %v4100, 1.442695
    %v4104 = vpow.pop %v4103
    %v4105 = vadd.f32 %v4102, 1.0
    %v4106 = vadd.f32 %v4104, 1.0
    %v4107 = vrcp.pop %v4105
    %v4108 = vmul.f32 1.0, %v4107
    %v4109 = vrcp.pop %v4106
    %v4110 = vmul.f32 1.0, %v4109
    %v4113 = vrot.slane %v3946, 7
    %v4114 = vrot.slane %v3947, 7
    %v4117 = vmul.f32 %v4094, %v4113
    %v4118 = vmul.f32 %v4096, %v4114
    %v4119 = vmul.f32 %v4082, %v4097
    %v4120 = vmul.f32 %v4084, %v4098
    %v4121 = vadd.f32 %v4117, %v4119
    %v4122 = vadd.f32 %v4118, %v4120
    %v4123 = vtanh.pop %v4121
    %v4124 = vtanh.pop %v4122
    %v4125 = vmul.f32 %v4108, %v4123
    %v4126 = vmul.f32 %v4110, %v4124
    %v4127 = vsel %vm2240, %v2906, %v3076
    %v4128 = vsel %vm2240, %v2907, %v3077
    %v4129 = vsel %vm2243, %v4127, %v3250
    %v4130 = vsel %vm2243, %v4128, %v3251
    %v4131 = vsel %vm2246, %v4129, %v3425
    %v4132 = vsel %vm2246, %v4130, %v3426
    %v4133 = vsel %vm2249, %v4131, %v3600
    %v4134 = vsel %vm2249, %v4132, %v3601
    %v4135 = vsel %vm2252, %v4133, %v3775
    %v4136 = vsel %vm2252, %v4134, %v3776
    %v4137 = vsel %vm2255, %v4135, %v3950
    %v4138 = vsel %vm2255, %v4136, %v3951
    %v4139 = vsel %vm2258, %v4137, %v4125
    %v4140 = vsel %vm2258, %v4138, %v4126
    %v4141 = vpack.c.bf16 %v4140, %v4139
    %v4142 = vld [vmem:[#allocation12] sm:$0xf]
    %v4143 = vld [vmem:[#allocation12 + $0x4] sm:$0xf]
    %v4144 = vld [vmem:[#allocation12 + $0x8] sm:$0xf]
    %v4145 = vld [vmem:[#allocation12 + $0xc] sm:$0xf]
    %v4146 = vld [vmem:[#allocation12 + $0x10] sm:$0xf]
    %v4147 = vld [vmem:[#allocation12 + $0x14] sm:$0xf]
    %v4148 = vld [vmem:[#allocation12 + $0x18] sm:$0xf]
    %v4149 = vld [vmem:[#allocation12 + $0x1c] sm:$0xf]
    %v4150 = vld [vmem:[#allocation12 + $0x20] sm:$0xf]
    %v4151 = vld [vmem:[#allocation12 + $0x24] sm:$0xf]
    %v4152 = vld [vmem:[#allocation12 + $0x28] sm:$0xf]
    %v4153 = vld [vmem:[#allocation12 + $0x2c] sm:$0xf]
    %v4154 = vld [vmem:[#allocation12 + $0x30] sm:$0xf]
    %v4155 = vld [vmem:[#allocation12 + $0x34] sm:$0xf]
    %v4156 = vld [vmem:[#allocation12 + $0x38] sm:$0xf]
    %v4157 = vld [vmem:[#allocation12 + $0x3c] sm:$0xf]
    %v4158 = vld [vmem:[#allocation13] sm:$0x1]
    %v4160 = vlaneseq
    %v4161 = vshrl.u32 %v4160, 7
    %v4162 = vsub.s32 0, %v4161
    %v4163 = vrot.slane %v4158, %v4162
    %v4181 = vunpack.c.l.b16 %v4142
    %v4182 = vunpack.c.l.b16 %v4143
    %v4183 = vunpack.c.l.b16 %v4144
    %v4184 = vunpack.c.l.b16 %v4145
    %v4185 = vunpack.c.l.b16 %v4146
    %v4186 = vunpack.c.l.b16 %v4147
    %v4187 = vunpack.c.l.b16 %v4148
    %v4188 = vunpack.c.l.b16 %v4149
    %v4189 = vunpack.c.l.b16 %v4150
    %v4190 = vunpack.c.l.b16 %v4151
    %v4191 = vunpack.c.l.b16 %v4152
    %v4192 = vunpack.c.l.b16 %v4153
    %v4193 = vunpack.c.l.b16 %v4154
    %v4194 = vunpack.c.l.b16 %v4155
    %v4195 = vunpack.c.l.b16 %v4156
    %v4196 = vunpack.c.l.b16 %v4157
    %v4197 = vpack.c.b16 %v4182, %v4181
    %v4198 = vpack.c.b16 %v4184, %v4183
    %v4199 = vpack.c.b16 %v4186, %v4185
    %v4200 = vpack.c.b16 %v4188, %v4187
    %v4201 = vpack.c.b16 %v4190, %v4189
    %v4202 = vpack.c.b16 %v4192, %v4191
    %v4203 = vpack.c.b16 %v4194, %v4193
    %v4204 = vpack.c.b16 %v4196, %v4195
    %4213 = vmatprep.subr.bf16.mxu0 0
    %4214 = vmatpush1.bf16.msra.mxu0 %v4204
    %4215 = vmatprep.subr.bf16.mxu0 0
    %4216 = vmatpush1.bf16.msra.mxu0 %v4203
    %4217 = vmatprep.subr.bf16.mxu0 0
    %4218 = vmatpush1.bf16.msra.mxu0 %v4202
    %4219 = vmatprep.subr.bf16.mxu0 0
    %4220 = vmatpush1.bf16.msra.mxu0 %v4201
    %4221 = vmatprep.subr.bf16.mxu0 0
    %4222 = vmatpush1.bf16.msra.mxu0 %v4200
    %4223 = vmatprep.subr.bf16.mxu0 0
    %4224 = vmatpush1.bf16.msra.mxu0 %v4199
    %4225 = vmatprep.subr.bf16.mxu0 0
    %4226 = vmatpush1.bf16.msra.mxu0 %v4198
    %4227 = vmatprep.subr.bf16.mxu0 0
    %4228 = vmatpush1.bf16.msra.mxu0 %v4197
    %4229 = vmatprep.subr.bf16.mxu0 0
    %4230 = vmatpush2.bf16.msra.mxu0 0
    %4231 = vmatprep.subr.bf16.mxu0 0
    %4232 = vmatpush2.bf16.msra.mxu0 0
    %4233 = vmatprep.subr.bf16.mxu0 0
    %4234 = vmatpush2.bf16.msra.mxu0 0
    %4235 = vmatprep.subr.bf16.mxu0 0
    %4236 = vmatpush2.bf16.msra.mxu0 0
    %4237 = vmatprep.subr.bf16.mxu0 0
    %4238 = vmatpush2.bf16.msra.mxu0 0
    %4239 = vmatprep.subr.bf16.mxu0 0
    %4240 = vmatpush2.bf16.msra.mxu0 0
    %4241 = vmatprep.subr.bf16.mxu0 0
    %4242 = vmatpush2.bf16.msra.mxu0 0
    %4243 = vmatprep.subr.bf16.mxu0 0
    %4244 = vmatpush2.bf16.msra.mxu0 0
    %4245 = vmatprep.mubr.bf16.mxu0 0
    %4246 = vmatmul.mubr.bf16.gmra.mxu0 %v4141
    %v4247 = vpop.f32.mrf.mxu0
    %v4248 = vadd.f32 %v4163, %v4247
    %v4249 = vpop.f32.mrf.mxu0
    %v4250 = vpop.f32.mrf.mxu0
    %v4251 = vadd.f32 %v4163, %v4250
    %v4252 = vpop.f32.mrf.mxu0
    %4253 = vdwg.mxu0
    %v4254 = vpack.c.bf16 %v4251, %v4248
    %v4255 = vld [vmem:[#allocation15] sm:$0xf]
    %v4256 = vld [vmem:[#allocation15 + $0x4] sm:$0xf]
    %v4257 = vld [vmem:[#allocation15 + $0x8] sm:$0xf]
    %v4258 = vld [vmem:[#allocation15 + $0xc] sm:$0xf]
    %v4259 = vld [vmem:[#allocation15 + $0x10] sm:$0xf]
    %v4260 = vld [vmem:[#allocation15 + $0x14] sm:$0xf]
    %v4261 = vld [vmem:[#allocation15 + $0x18] sm:$0xf]
    %v4262 = vld [vmem:[#allocation15 + $0x1c] sm:$0xf]
    %v4263 = vld [vmem:[#allocation15 + $0x20] sm:$0xf]
    %v4264 = vld [vmem:[#allocation15 + $0x24] sm:$0xf]
    %v4265 = vld [vmem:[#allocation15 + $0x28] sm:$0xf]
    %v4266 = vld [vmem:[#allocation15 + $0x2c] sm:$0xf]
    %v4267 = vld [vmem:[#allocation15 + $0x30] sm:$0xf]
    %v4268 = vld [vmem:[#allocation15 + $0x34] sm:$0xf]
    %v4269 = vld [vmem:[#allocation15 + $0x38] sm:$0xf]
    %v4270 = vld [vmem:[#allocation15 + $0x3c] sm:$0xf]
    %v4271 = vld [vmem:[#allocation16] sm:$0x1]
    %v4273 = vlaneseq
    %v4274 = vshrl.u32 %v4273, 7
    %v4275 = vsub.s32 0, %v4274
    %v4276 = vrot.slane %v4271, %v4275
    %v4294 = vunpack.c.l.b16 %v4255
    %v4295 = vunpack.c.l.b16 %v4256
    %v4296 = vunpack.c.l.b16 %v4257
    %v4297 = vunpack.c.l.b16 %v4258
    %v4298 = vunpack.c.l.b16 %v4259
    %v4299 = vunpack.c.l.b16 %v4260
    %v4300 = vunpack.c.l.b16 %v4261
    %v4301 = vunpack.c.l.b16 %v4262
    %v4302 = vunpack.c.l.b16 %v4263
    %v4303 = vunpack.c.l.b16 %v4264
    %v4304 = vunpack.c.l.b16 %v4265
    %v4305 = vunpack.c.l.b16 %v4266
    %v4306 = vunpack.c.l.b16 %v4267
    %v4307 = vunpack.c.l.b16 %v4268
    %v4308 = vunpack.c.l.b16 %v4269
    %v4309 = vunpack.c.l.b16 %v4270
    %v4310 = vpack.c.b16 %v4295, %v4294
    %v4311 = vpack.c.b16 %v4297, %v4296
    %v4312 = vpack.c.b16 %v4299, %v4298
    %v4313 = vpack.c.b16 %v4301, %v4300
    %v4314 = vpack.c.b16 %v4303, %v4302
    %v4315 = vpack.c.b16 %v4305, %v4304
    %v4316 = vpack.c.b16 %v4307, %v4306
    %v4317 = vpack.c.b16 %v4309, %v4308
    %4326 = vmatprep.subr.bf16.mxu0 0
    %4327 = vmatpush1.bf16.msra.mxu0 %v4317
    %4328 = vmatprep.subr.bf16.mxu0 0
    %4329 = vmatpush1.bf16.msra.mxu0 %v4316
    %4330 = vmatprep.subr.bf16.mxu0 0
    %4331 = vmatpush1.bf16.msra.mxu0 %v4315
    %4332 = vmatprep.subr.bf16.mxu0 0
    %4333 = vmatpush1.bf16.msra.mxu0 %v4314
    %4334 = vmatprep.subr.bf16.mxu0 0
    %4335 = vmatpush1.bf16.msra.mxu0 %v4313
    %4336 = vmatprep.subr.bf16.mxu0 0
    %4337 = vmatpush1.bf16.msra.mxu0 %v4312
    %4338 = vmatprep.subr.bf16.mxu0 0
    %4339 = vmatpush1.bf16.msra.mxu0 %v4311
    %4340 = vmatprep.subr.bf16.mxu0 0
    %4341 = vmatpush1.bf16.msra.mxu0 %v4310
    %4342 = vmatprep.subr.bf16.mxu0 0
    %4343 = vmatpush2.bf16.msra.mxu0 0
    %4344 = vmatprep.subr.bf16.mxu0 0
    %4345 = vmatpush2.bf16.msra.mxu0 0
    %4346 = vmatprep.subr.bf16.mxu0 0
    %4347 = vmatpush2.bf16.msra.mxu0 0
    %4348 = vmatprep.subr.bf16.mxu0 0
    %4349 = vmatpush2.bf16.msra.mxu0 0
    %4350 = vmatprep.subr.bf16.mxu0 0
    %4351 = vmatpush2.bf16.msra.mxu0 0
    %4352 = vmatprep.subr.bf16.mxu0 0
    %4353 = vmatpush2.bf16.msra.mxu0 0
    %4354 = vmatprep.subr.bf16.mxu0 0
    %4355 = vmatpush2.bf16.msra.mxu0 0
    %4356 = vmatprep.subr.bf16.mxu0 0
    %4357 = vmatpush2.bf16.msra.mxu0 0
    %4358 = vmatprep.mubr.bf16.mxu0 0
    %4359 = vmatmul.mubr.bf16.gmra.mxu0 %v4254
    %v4360 = vpop.f32.mrf.mxu0
    %v4361 = vadd.f32 %v4276, %v4360
    %v4362 = vpop.f32.mrf.mxu0
    %v4363 = vpop.f32.mrf.mxu0
    %v4364 = vadd.f32 %v4276, %v4363
    %v4365 = vpop.f32.mrf.mxu0
    %4366 = vdwg.mxu0
    %v4367 = vmul.f32 %v4361, 0.17677669
    %v4368 = vmul.f32 %v4364, 0.17677669
    %v4369 = vld [vmem:[%s1] sm:$0xff]
    %v4370 = vld [vmem:[%s1 + $0x8] sm:$0xff]
    %v4371 = vpack.c.bf16 %v4370, %v4369
    %v4372 = vld [vmem:[#allocation18] sm:$0xff]
    %v4373 = vld [vmem:[#allocation18 + $0x8] sm:$0xff]
    %v4374 = vld [vmem:[#allocation18 + $0x10] sm:$0xff]
    %v4375 = vld [vmem:[#allocation18 + $0x18] sm:$0xff]
    %v4376 = vld [vmem:[#allocation18 + $0x20] sm:$0xff]
    %v4377 = vld [vmem:[#allocation18 + $0x28] sm:$0xff]
    %v4378 = vld [vmem:[#allocation18 + $0x30] sm:$0xff]
    %v4379 = vld [vmem:[#allocation18 + $0x38] sm:$0xff]
    %v4380 = vld [vmem:[#allocation18 + $0x40] sm:$0xff]
    %v4381 = vld [vmem:[#allocation18 + $0x48] sm:$0xff]
    %v4382 = vld [vmem:[#allocation18 + $0x50] sm:$0xff]
    %v4383 = vld [vmem:[#allocation18 + $0x58] sm:$0xff]
    %v4384 = vld [vmem:[#allocation18 + $0x60] sm:$0xff]
    %v4385 = vld [vmem:[#allocation18 + $0x68] sm:$0xff]
    %v4386 = vld [vmem:[#allocation18 + $0x70] sm:$0xff]
    %v4387 = vld [vmem:[#allocation18 + $0x78] sm:$0xff]
    %v4388 = vld [vmem:[#allocation19] sm:$0x3]
    %v4390 = vlaneseq
    %v4391 = vshrl.u32 %v4390, 7
    %v4392 = vsub.s32 0, %v4391
    %v4393 = vrot.slane %v4388, %v4392
    %v4394 = vlaneseq
    %v4395 = vshrl.u32 %v4394, 7
    %v4396 = vsub.s32 1, %v4395
    %v4397 = vrot.slane %v4388, %v4396
    %v4416 = vunpack.c.l.b16 %v4372
    %v4417 = vunpack.c.h.b16 %v4372
    %v4418 = vunpack.c.l.b16 %v4373
    %v4419 = vunpack.c.h.b16 %v4373
    %v4420 = vunpack.c.l.b16 %v4374
    %v4421 = vunpack.c.h.b16 %v4374
    %v4422 = vunpack.c.l.b16 %v4375
    %v4423 = vunpack.c.h.b16 %v4375
    %v4424 = vunpack.c.l.b16 %v4376
    %v4425 = vunpack.c.h.b16 %v4376
    %v4426 = vunpack.c.l.b16 %v4377
    %v4427 = vunpack.c.h.b16 %v4377
    %v4428 = vunpack.c.l.b16 %v4378
    %v4429 = vunpack.c.h.b16 %v4378
    %v4430 = vunpack.c.l.b16 %v4379
    %v4431 = vunpack.c.h.b16 %v4379
    %v4432 = vunpack.c.l.b16 %v4380
    %v4433 = vunpack.c.h.b16 %v4380
    %v4434 = vunpack.c.l.b16 %v4381
    %v4435 = vunpack.c.h.b16 %v4381
    %v4436 = vunpack.c.l.b16 %v4382
    %v4437 = vunpack.c.h.b16 %v4382
    %v4438 = vunpack.c.l.b16 %v4383
    %v4439 = vunpack.c.h.b16 %v4383
    %v4440 = vunpack.c.l.b16 %v4384
    %v4441 = vunpack.c.h.b16 %v4384
    %v4442 = vunpack.c.l.b16 %v4385
    %v4443 = vunpack.c.h.b16 %v4385
    %v4444 = vunpack.c.l.b16 %v4386
    %v4445 = vunpack.c.h.b16 %v4386
    %v4446 = vunpack.c.l.b16 %v4387
    %v4447 = vunpack.c.h.b16 %v4387
    %v4448 = vpack.c.b16 %v4418, %v4416
    %v4449 = vpack.c.b16 %v4419, %v4417
    %v4450 = vpack.c.b16 %v4422, %v4420
    %v4451 = vpack.c.b16 %v4423, %v4421
    %v4452 = vpack.c.b16 %v4426, %v4424
    %v4453 = vpack.c.b16 %v4427, %v4425
    %v4454 = vpack.c.b16 %v4430, %v4428
    %v4455 = vpack.c.b16 %v4431, %v4429
    %v4456 = vpack.c.b16 %v4434, %v4432
    %v4457 = vpack.c.b16 %v4435, %v4433
    %v4458 = vpack.c.b16 %v4438, %v4436
    %v4459 = vpack.c.b16 %v4439, %v4437
    %v4460 = vpack.c.b16 %v4442, %v4440
    %v4461 = vpack.c.b16 %v4443, %v4441
    %v4462 = vpack.c.b16 %v4446, %v4444
    %v4463 = vpack.c.b16 %v4447, %v4445
    %4480 = vmatprep.subr.bf16.mxu0 %v4463
    %4481 = vmatpush1.bf16.msra.mxu0 %v4462
    %4482 = vmatprep.subr.bf16.mxu0 %v4461
    %4483 = vmatpush1.bf16.msra.mxu0 %v4460
    %4484 = vmatprep.subr.bf16.mxu0 %v4459
    %4485 = vmatpush1.bf16.msra.mxu0 %v4458
    %4486 = vmatprep.subr.bf16.mxu0 %v4457
    %4487 = vmatpush1.bf16.msra.mxu0 %v4456
    %4488 = vmatprep.subr.bf16.mxu0 %v4455
    %4489 = vmatpush1.bf16.msra.mxu0 %v4454
    %4490 = vmatprep.subr.bf16.mxu0 %v4453
    %4491 = vmatpush1.bf16.msra.mxu0 %v4452
    %4492 = vmatprep.subr.bf16.mxu0 %v4451
    %4493 = vmatpush1.bf16.msra.mxu0 %v4450
    %4494 = vmatprep.subr.bf16.mxu0 %v4449
    %4495 = vmatpush1.bf16.msra.mxu0 %v4448
    %4496 = vmatprep.subr.bf16.mxu0 0
    %4497 = vmatpush2.bf16.msra.mxu0 0
    %4498 = vmatprep.subr.bf16.mxu0 0
    %4499 = vmatpush2.bf16.msra.mxu0 0
    %4500 = vmatprep.subr.bf16.mxu0 0
    %4501 = vmatpush2.bf16.msra.mxu0 0
    %4502 = vmatprep.subr.bf16.mxu0 0
    %4503 = vmatpush2.bf16.msra.mxu0 0
    %4504 = vmatprep.subr.bf16.mxu0 0
    %4505 = vmatpush2.bf16.msra.mxu0 0
    %4506 = vmatprep.subr.bf16.mxu0 0
    %4507 = vmatpush2.bf16.msra.mxu0 0
    %4508 = vmatprep.subr.bf16.mxu0 0
    %4509 = vmatpush2.bf16.msra.mxu0 0
    %4510 = vmatprep.subr.bf16.mxu0 0
    %4511 = vmatpush2.bf16.msra.mxu0 0
    %4512 = vmatprep.mubr.bf16.mxu0 0
    %4513 = vmatmul.mubr.bf16.gmra.mxu0 %v4371
    %v4514 = vpop.f32.mrf.mxu0
    %v4515 = vadd.f32 %v4393, %v4514
    %v4516 = vpop.f32.mrf.mxu0
    %v4517 = vadd.f32 %v4397, %v4516
    %v4518 = vpop.f32.mrf.mxu0
    %v4519 = vadd.f32 %v4393, %v4518
    %v4520 = vpop.f32.mrf.mxu0
    %v4521 = vadd.f32 %v4397, %v4520
    %4522 = vdwg.mxu0
    %v4523 = vpack.c.bf16 %v4368, %v4367
    %v4524 = vpack.c.bf16 %v4519, %v4515
    %v4525 = vpack.c.bf16 %v4521, %v4517
    %vm4526 = vcmask 261120
    %v4528 = vsel %vm4526, %v4523, 0
    %v4531 = vsel %vm4526, %v4524, 0
    %4533 = vmatprep.subr.bf16.mxu0 0
    %4534 = vmatpush1.bf16.xpose.msra.mxu0 0
    %4535 = vmatprep.subr.bf16.mxu0 0
    %4536 = vmatpush1.bf16.xpose.msra.mxu0 0
    %4537 = vmatprep.subr.bf16.mxu0 0
    %4538 = vmatpush1.bf16.xpose.msra.mxu0 0
    %4539 = vmatprep.subr.bf16.mxu0 0
    %4540 = vmatpush1.bf16.xpose.msra.mxu0 0
    %4541 = vmatprep.subr.bf16.mxu0 0
    %4542 = vmatpush1.bf16.xpose.msra.mxu0 0
    %4543 = vmatprep.subr.bf16.mxu0 0
    %4544 = vmatpush1.bf16.xpose.msra.mxu0 0
    %4545 = vmatprep.subr.bf16.mxu0 0
    %4546 = vmatpush1.bf16.xpose.msra.mxu0 0
    %4547 = vmatprep.subr.bf16.mxu0 0
    %4548 = vmatpush1.bf16.xpose.msra.mxu0 %v4531
    %4549 = vmatprep.subr.bf16.mxu0 0
    %4550 = vmatpush2.bf16.xpose.msra.mxu0 0
    %4551 = vmatprep.subr.bf16.mxu0 0
    %4552 = vmatpush2.bf16.xpose.msra.mxu0 0
    %4553 = vmatprep.subr.bf16.mxu0 0
    %4554 = vmatpush2.bf16.xpose.msra.mxu0 0
    %4555 = vmatprep.subr.bf16.mxu0 0
    %4556 = vmatpush2.bf16.xpose.msra.mxu0 0
    %4557 = vmatprep.subr.bf16.mxu0 0
    %4558 = vmatpush2.bf16.xpose.msra.mxu0 0
    %4559 = vmatprep.subr.bf16.mxu0 0
    %4560 = vmatpush2.bf16.xpose.msra.mxu0 0
    %4561 = vmatprep.subr.bf16.mxu0 0
    %4562 = vmatpush2.bf16.xpose.msra.mxu0 0
    %4563 = vmatprep.subr.bf16.mxu0 0
    %4564 = vmatpush2.bf16.xpose.msra.mxu0 0
    %4565 = vmatprep.mubr.bf16.mxu0 0
    %4566 = vmatmul.mubr.bf16.gmra.mxu0 %v4528
    %v4567 = vpop.f32.mrf.mxu0
    %v4568 = vadd.f32 0.0, %v4567
    %v4569 = vpop.f32.mrf.mxu0
    %v4570 = vpop.f32.mrf.mxu0
    %v4571 = vpop.f32.mrf.mxu0
    %4572 = vdwg.mxu0
    %vm4573 = vcmask 64512
    %v4574 = vsel %vm4573, %v4568, -inf
    %4575 = vmax.xlane.f32.xlu0 %v4574
    %v4576 = vpop.xlane.xlu0 %4575
    %v4577 = vsub.f32 %v4568, %v4576
    %v4578 = vmul.f32 %v4577, 1.442695
    %v4579 = vpow.pop %v4578
    %v4580 = vsel %vm4573, %v4579, 0.0
    %4581 = vadd.xlane.f32.xlu0 %v4580
    %v4582 = vpop.xlane.xlu0 %4581
    %v4583 = vrcp.pop %v4582
    %v4584 = vmul.f32 %v4579, %v4583
    %v4585 = vpack.c.bf16 %v4584, %v4584
    %v4587 = vsel %vm4573, %v4585, 0
    %v4590 = vsel %vm2249, %v4525, 0
    %4592 = vmatprep.subr.bf16.mxu0 0
    %4593 = vmatpush1.bf16.msra.mxu0 0
    %4594 = vmatprep.subr.bf16.mxu0 0
    %4595 = vmatpush1.bf16.msra.mxu0 0
    %4596 = vmatprep.subr.bf16.mxu0 0
    %4597 = vmatpush1.bf16.msra.mxu0 0
    %4598 = vmatprep.subr.bf16.mxu0 0
    %4599 = vmatpush1.bf16.msra.mxu0 0
    %4600 = vmatprep.subr.bf16.mxu0 0
    %4601 = vmatpush1.bf16.msra.mxu0 0
    %4602 = vmatprep.subr.bf16.mxu0 0
    %4603 = vmatpush1.bf16.msra.mxu0 0
    %4604 = vmatprep.subr.bf16.mxu0 0
    %4605 = vmatpush1.bf16.msra.mxu0 0
    %4606 = vmatprep.subr.bf16.mxu0 0
    %4607 = vmatpush1.bf16.msra.mxu0 %v4590
    %4608 = vmatprep.subr.bf16.mxu0 0
    %4609 = vmatpush2.bf16.msra.mxu0 0
    %4610 = vmatprep.subr.bf16.mxu0 0
    %4611 = vmatpush2.bf16.msra.mxu0 0
    %4612 = vmatprep.subr.bf16.mxu0 0
    %4613 = vmatpush2.bf16.msra.mxu0 0
    %4614 = vmatprep.subr.bf16.mxu0 0
    %4615 = vmatpush2.bf16.msra.mxu0 0
    %4616 = vmatprep.subr.bf16.mxu0 0
    %4617 = vmatpush2.bf16.msra.mxu0 0
    %4618 = vmatprep.subr.bf16.mxu0 0
    %4619 = vmatpush2.bf16.msra.mxu0 0
    %4620 = vmatprep.subr.bf16.mxu0 0
    %4621 = vmatpush2.bf16.msra.mxu0 0
    %4622 = vmatprep.subr.bf16.mxu0 0
    %4623 = vmatpush2.bf16.msra.mxu0 0
    %4624 = vmatprep.mubr.bf16.mxu0 0
    %4625 = vmatmul.mubr.bf16.gmra.mxu0 %v4587
    %v4626 = vpop.f32.mrf.mxu0
    %v4627 = vadd.f32 0.0, %v4626
    %v4628 = vpop.f32.mrf.mxu0
    %v4629 = vpop.f32.mrf.mxu0
    %v4630 = vpop.f32.mrf.mxu0
    %4631 = vdwg.mxu0
    %4633 = vrot.lane.b32.xlu0 %v4523, 96
    %v4634 = vpop.permute.xlu0 %4633
    %4636 = vrot.lane.b32.xlu0 %v4524, 96
    %v4637 = vpop.permute.xlu0 %4636
    %v4639 = vsel %vm4526, %v4634, 0
    %v4642 = vsel %vm4526, %v4637, 0
    %4644 = vmatprep.subr.bf16.mxu0 0
    %4645 = vmatpush1.bf16.xpose.msra.mxu0 0
    %4646 = vmatprep.subr.bf16.mxu0 0
    %4647 = vmatpush1.bf16.xpose.msra.mxu0 0
    %4648 = vmatprep.subr.bf16.mxu0 0
    %4649 = vmatpush1.bf16.xpose.msra.mxu0 0
    %4650 = vmatprep.subr.bf16.mxu0 0
    %4651 = vmatpush1.bf16.xpose.msra.mxu0 0
    %4652 = vmatprep.subr.bf16.mxu0 0
    %4653 = vmatpush1.bf16.xpose.msra.mxu0 0
    %4654 = vmatprep.subr.bf16.mxu0 0
    %4655 = vmatpush1.bf16.xpose.msra.mxu0 0
    %4656 = vmatprep.subr.bf16.mxu0 0
    %4657 = vmatpush1.bf16.xpose.msra.mxu0 0
    %4658 = vmatprep.subr.bf16.mxu0 0
    %4659 = vmatpush1.bf16.xpose.msra.mxu0 %v4642
    %4660 = vmatprep.subr.bf16.mxu0 0
    %4661 = vmatpush2.bf16.xpose.msra.mxu0 0
    %4662 = vmatprep.subr.bf16.mxu0 0
    %4663 = vmatpush2.bf16.xpose.msra.mxu0 0
    %4664 = vmatprep.subr.bf16.mxu0 0
    %4665 = vmatpush2.bf16.xpose.msra.mxu0 0
    %4666 = vmatprep.subr.bf16.mxu0 0
    %4667 = vmatpush2.bf16.xpose.msra.mxu0 0
    %4668 = vmatprep.subr.bf16.mxu0 0
    %4669 = vmatpush2.bf16.xpose.msra.mxu0 0
    %4670 = vmatprep.subr.bf16.mxu0 0
    %4671 = vmatpush2.bf16.xpose.msra.mxu0 0
    %4672 = vmatprep.subr.bf16.mxu0 0
    %4673 = vmatpush2.bf16.xpose.msra.mxu0 0
    %4674 = vmatprep.subr.bf16.mxu0 0
    %4675 = vmatpush2.bf16.xpose.msra.mxu0 0
    %4676 = vmatprep.mubr.bf16.mxu0 0
    %4677 = vmatmul.mubr.bf16.gmra.mxu0 %v4639
    %v4678 = vpop.f32.mrf.mxu0
    %v4679 = vadd.f32 0.0, %v4678
    %v4680 = vpop.f32.mrf.mxu0
    %v4681 = vpop.f32.mrf.mxu0
    %v4682 = vpop.f32.mrf.mxu0
    %4683 = vdwg.mxu0
    %v4684 = vsel %vm4573, %v4679, -inf
    %4685 = vmax.xlane.f32.xlu0 %v4684
    %v4686 = vpop.xlane.xlu0 %4685
    %v4687 = vsub.f32 %v4679, %v4686
    %v4688 = vmul.f32 %v4687, 1.442695
    %v4689 = vpow.pop %v4688
    %v4690 = vsel %vm4573, %v4689, 0.0
    %4691 = vadd.xlane.f32.xlu0 %v4690
    %v4692 = vpop.xlane.xlu0 %4691
    %v4693 = vrcp.pop %v4692
    %v4694 = vmul.f32 %v4689, %v4693
    %v4695 = vpack.c.bf16 %v4694, %v4694
    %4697 = vrot.lane.b32.xlu0 %v4525, 96
    %v4698 = vpop.permute.xlu0 %4697
    %v4700 = vsel %vm4573, %v4695, 0
    %v4703 = vsel %vm2249, %v4698, 0
    %4705 = vmatprep.subr.bf16.mxu0 0
    %4706 = vmatpush1.bf16.msra.mxu0 0
    %4707 = vmatprep.subr.bf16.mxu0 0
    %4708 = vmatpush1.bf16.msra.mxu0 0
    %4709 = vmatprep.subr.bf16.mxu0 0
    %4710 = vmatpush1.bf16.msra.mxu0 0
    %4711 = vmatprep.subr.bf16.mxu0 0
    %4712 = vmatpush1.bf16.msra.mxu0 0
    %4713 = vmatprep.subr.bf16.mxu0 0
    %4714 = vmatpush1.bf16.msra.mxu0 0
    %4715 = vmatprep.subr.bf16.mxu0 0
    %4716 = vmatpush1.bf16.msra.mxu0 0
    %4717 = vmatprep.subr.bf16.mxu0 0
    %4718 = vmatpush1.bf16.msra.mxu0 0
    %4719 = vmatprep.subr.bf16.mxu0 0
    %4720 = vmatpush1.bf16.msra.mxu0 %v4703
    %4721 = vmatprep.subr.bf16.mxu0 0
    %4722 = vmatpush2.bf16.msra.mxu0 0
    %4723 = vmatprep.subr.bf16.mxu0 0
    %4724 = vmatpush2.bf16.msra.mxu0 0
    %4725 = vmatprep.subr.bf16.mxu0 0
    %4726 = vmatpush2.bf16.msra.mxu0 0
    %4727 = vmatprep.subr.bf16.mxu0 0
    %4728 = vmatpush2.bf16.msra.mxu0 0
    %4729 = vmatprep.subr.bf16.mxu0 0
    %4730 = vmatpush2.bf16.msra.mxu0 0
    %4731 = vmatprep.subr.bf16.mxu0 0
    %4732 = vmatpush2.bf16.msra.mxu0 0
    %4733 = vmatprep.subr.bf16.mxu0 0
    %4734 = vmatpush2.bf16.msra.mxu0 0
    %4735 = vmatprep.subr.bf16.mxu0 0
    %4736 = vmatpush2.bf16.msra.mxu0 0
    %4737 = vmatprep.mubr.bf16.mxu0 0
    %4738 = vmatmul.mubr.bf16.gmra.mxu0 %v4700
    %v4739 = vpop.f32.mrf.mxu0
    %v4740 = vadd.f32 0.0, %v4739
    %v4741 = vpop.f32.mrf.mxu0
    %v4742 = vpop.f32.mrf.mxu0
    %v4743 = vpop.f32.mrf.mxu0
    %4744 = vdwg.mxu0
    %4745 = vrot.lane.b32.xlu0 %v4523, 64
    %v4746 = vpop.permute.xlu0 %4745
    %4747 = vrot.lane.b32.xlu0 %v4524, 64
    %v4748 = vpop.permute.xlu0 %4747
    %v4750 = vsel %vm4526, %v4746, 0
    %v4753 = vsel %vm4526, %v4748, 0
    %4755 = vmatprep.subr.bf16.mxu0 0
    %4756 = vmatpush1.bf16.xpose.msra.mxu0 0
    %4757 = vmatprep.subr.bf16.mxu0 0
    %4758 = vmatpush1.bf16.xpose.msra.mxu0 0
    %4759 = vmatprep.subr.bf16.mxu0 0
    %4760 = vmatpush1.bf16.xpose.msra.mxu0 0
    %4761 = vmatprep.subr.bf16.mxu0 0
    %4762 = vmatpush1.bf16.xpose.msra.mxu0 0
    %4763 = vmatprep.subr.bf16.mxu0 0
    %4764 = vmatpush1.bf16.xpose.msra.mxu0 0
    %4765 = vmatprep.subr.bf16.mxu0 0
    %4766 = vmatpush1.bf16.xpose.msra.mxu0 0
    %4767 = vmatprep.subr.bf16.mxu0 0
    %4768 = vmatpush1.bf16.xpose.msra.mxu0 0
    %4769 = vmatprep.subr.bf16.mxu0 0
    %4770 = vmatpush1.bf16.xpose.msra.mxu0 %v4753
    %4771 = vmatprep.subr.bf16.mxu0 0
    %4772 = vmatpush2.bf16.xpose.msra.mxu0 0
    %4773 = vmatprep.subr.bf16.mxu0 0
    %4774 = vmatpush2.bf16.xpose.msra.mxu0 0
    %4775 = vmatprep.subr.bf16.mxu0 0
    %4776 = vmatpush2.bf16.xpose.msra.mxu0 0
    %4777 = vmatprep.subr.bf16.mxu0 0
    %4778 = vmatpush2.bf16.xpose.msra.mxu0 0
    %4779 = vmatprep.subr.bf16.mxu0 0
    %4780 = vmatpush2.bf16.xpose.msra.mxu0 0
    %4781 = vmatprep.subr.bf16.mxu0 0
    %4782 = vmatpush2.bf16.xpose.msra.mxu0 0
    %4783 = vmatprep.subr.bf16.mxu0 0
    %4784 = vmatpush2.bf16.xpose.msra.mxu0 0
    %4785 = vmatprep.subr.bf16.mxu0 0
    %4786 = vmatpush2.bf16.xpose.msra.mxu0 0
    %4787 = vmatprep.mubr.bf16.mxu0 0
    %4788 = vmatmul.mubr.bf16.gmra.mxu0 %v4750
    %v4789 = vpop.f32.mrf.mxu0
    %v4790 = vadd.f32 0.0, %v4789
    %v4791 = vpop.f32.mrf.mxu0
    %v4792 = vpop.f32.mrf.mxu0
    %v4793 = vpop.f32.mrf.mxu0
    %4794 = vdwg.mxu0
    %v4795 = vsel %vm4573, %v4790, -inf
    %4796 = vmax.xlane.f32.xlu0 %v4795
    %v4797 = vpop.xlane.xlu0 %4796
    %v4798 = vsub.f32 %v4790, %v4797
    %v4799 = vmul.f32 %v4798, 1.442695
    %v4800 = vpow.pop %v4799
    %v4801 = vsel %vm4573, %v4800, 0.0
    %4802 = vadd.xlane.f32.xlu0 %v4801
    %v4803 = vpop.xlane.xlu0 %4802
    %v4804 = vrcp.pop %v4803
    %v4805 = vmul.f32 %v4800, %v4804
    %v4806 = vpack.c.bf16 %v4805, %v4805
    %4807 = vrot.lane.b32.xlu0 %v4525, 64
    %v4808 = vpop.permute.xlu0 %4807
    %v4810 = vsel %vm4573, %v4806, 0
    %v4813 = vsel %vm2249, %v4808, 0
    %4815 = vmatprep.subr.bf16.mxu0 0
    %4816 = vmatpush1.bf16.msra.mxu0 0
    %4817 = vmatprep.subr.bf16.mxu0 0
    %4818 = vmatpush1.bf16.msra.mxu0 0
    %4819 = vmatprep.subr.bf16.mxu0 0
    %4820 = vmatpush1.bf16.msra.mxu0 0
    %4821 = vmatprep.subr.bf16.mxu0 0
    %4822 = vmatpush1.bf16.msra.mxu0 0
    %4823 = vmatprep.subr.bf16.mxu0 0
    %4824 = vmatpush1.bf16.msra.mxu0 0
    %4825 = vmatprep.subr.bf16.mxu0 0
    %4826 = vmatpush1.bf16.msra.mxu0 0
    %4827 = vmatprep.subr.bf16.mxu0 0
    %4828 = vmatpush1.bf16.msra.mxu0 0
    %4829 = vmatprep.subr.bf16.mxu0 0
    %4830 = vmatpush1.bf16.msra.mxu0 %v4813
    %4831 = vmatprep.subr.bf16.mxu0 0
    %4832 = vmatpush2.bf16.msra.mxu0 0
    %4833 = vmatprep.subr.bf16.mxu0 0
    %4834 = vmatpush2.bf16.msra.mxu0 0
    %4835 = vmatprep.subr.bf16.mxu0 0
    %4836 = vmatpush2.bf16.msra.mxu0 0
    %4837 = vmatprep.subr.bf16.mxu0 0
    %4838 = vmatpush2.bf16.msra.mxu0 0
    %4839 = vmatprep.subr.bf16.mxu0 0
    %4840 = vmatpush2.bf16.msra.mxu0 0
    %4841 = vmatprep.subr.bf16.mxu0 0
    %4842 = vmatpush2.bf16.msra.mxu0 0
    %4843 = vmatprep.subr.bf16.mxu0 0
    %4844 = vmatpush2.bf16.msra.mxu0 0
    %4845 = vmatprep.subr.bf16.mxu0 0
    %4846 = vmatpush2.bf16.msra.mxu0 0
    %4847 = vmatprep.mubr.bf16.mxu0 0
    %4848 = vmatmul.mubr.bf16.gmra.mxu0 %v4810
    %v4849 = vpop.f32.mrf.mxu0
    %v4850 = vadd.f32 0.0, %v4849
    %v4851 = vpop.f32.mrf.mxu0
    %v4852 = vpop.f32.mrf.mxu0
    %v4853 = vpop.f32.mrf.mxu0
    %4854 = vdwg.mxu0
    %4855 = vrot.lane.b32.xlu0 %v4523, 32
    %v4856 = vpop.permute.xlu0 %4855
    %4857 = vrot.lane.b32.xlu0 %v4524, 32
    %v4858 = vpop.permute.xlu0 %4857
    %v4860 = vsel %vm4526, %v4856, 0
    %v4863 = vsel %vm4526, %v4858, 0
    %4865 = vmatprep.subr.bf16.mxu0 0
    %4866 = vmatpush1.bf16.xpose.msra.mxu0 0
    %4867 = vmatprep.subr.bf16.mxu0 0
    %4868 = vmatpush1.bf16.xpose.msra.mxu0 0
    %4869 = vmatprep.subr.bf16.mxu0 0
    %4870 = vmatpush1.bf16.xpose.msra.mxu0 0
    %4871 = vmatprep.subr.bf16.mxu0 0
    %4872 = vmatpush1.bf16.xpose.msra.mxu0 0
    %4873 = vmatprep.subr.bf16.mxu0 0
    %4874 = vmatpush1.bf16.xpose.msra.mxu0 0
    %4875 = vmatprep.subr.bf16.mxu0 0
    %4876 = vmatpush1.bf16.xpose.msra.mxu0 0
    %4877 = vmatprep.subr.bf16.mxu0 0
    %4878 = vmatpush1.bf16.xpose.msra.mxu0 0
    %4879 = vmatprep.subr.bf16.mxu0 0
    %4880 = vmatpush1.bf16.xpose.msra.mxu0 %v4863
    %4881 = vmatprep.subr.bf16.mxu0 0
    %4882 = vmatpush2.bf16.xpose.msra.mxu0 0
    %4883 = vmatprep.subr.bf16.mxu0 0
    %4884 = vmatpush2.bf16.xpose.msra.mxu0 0
    %4885 = vmatprep.subr.bf16.mxu0 0
    %4886 = vmatpush2.bf16.xpose.msra.mxu0 0
    %4887 = vmatprep.subr.bf16.mxu0 0
    %4888 = vmatpush2.bf16.xpose.msra.mxu0 0
    %4889 = vmatprep.subr.bf16.mxu0 0
    %4890 = vmatpush2.bf16.xpose.msra.mxu0 0
    %4891 = vmatprep.subr.bf16.mxu0 0
    %4892 = vmatpush2.bf16.xpose.msra.mxu0 0
    %4893 = vmatprep.subr.bf16.mxu0 0
    %4894 = vmatpush2.bf16.xpose.msra.mxu0 0
    %4895 = vmatprep.subr.bf16.mxu0 0
    %4896 = vmatpush2.bf16.xpose.msra.mxu0 0
    %4897 = vmatprep.mubr.bf16.mxu0 0
    %4898 = vmatmul.mubr.bf16.gmra.mxu0 %v4860
    %v4899 = vpop.f32.mrf.mxu0
    %v4900 = vadd.f32 0.0, %v4899
    %v4901 = vpop.f32.mrf.mxu0
    %v4902 = vpop.f32.mrf.mxu0
    %v4903 = vpop.f32.mrf.mxu0
    %4904 = vdwg.mxu0
    %v4905 = vsel %vm4573, %v4900, -inf
    %4906 = vmax.xlane.f32.xlu0 %v4905
    %v4907 = vpop.xlane.xlu0 %4906
    %v4908 = vsub.f32 %v4900, %v4907
    %v4909 = vmul.f32 %v4908, 1.442695
    %v4910 = vpow.pop %v4909
    %v4911 = vsel %vm4573, %v4910, 0.0
    %4912 = vadd.xlane.f32.xlu0 %v4911
    %v4913 = vpop.xlane.xlu0 %4912
    %v4914 = vrcp.pop %v4913
    %v4915 = vmul.f32 %v4910, %v4914
    %v4916 = vpack.c.bf16 %v4915, %v4915
    %4917 = vrot.lane.b32.xlu0 %v4525, 32
    %v4918 = vpop.permute.xlu0 %4917
    %v4920 = vsel %vm4573, %v4916, 0
    %v4923 = vsel %vm2249, %v4918, 0
    %4925 = vmatprep.subr.bf16.mxu0 0
    %4926 = vmatpush1.bf16.msra.mxu0 0
    %4927 = vmatprep.subr.bf16.mxu0 0
    %4928 = vmatpush1.bf16.msra.mxu0 0
    %4929 = vmatprep.subr.bf16.mxu0 0
    %4930 = vmatpush1.bf16.msra.mxu0 0
    %4931 = vmatprep.subr.bf16.mxu0 0
    %4932 = vmatpush1.bf16.msra.mxu0 0
    %4933 = vmatprep.subr.bf16.mxu0 0
    %4934 = vmatpush1.bf16.msra.mxu0 0
    %4935 = vmatprep.subr.bf16.mxu0 0
    %4936 = vmatpush1.bf16.msra.mxu0 0
    %4937 = vmatprep.subr.bf16.mxu0 0
    %4938 = vmatpush1.bf16.msra.mxu0 0
    %4939 = vmatprep.subr.bf16.mxu0 0
    %4940 = vmatpush1.bf16.msra.mxu0 %v4923
    %4941 = vmatprep.subr.bf16.mxu0 0
    %4942 = vmatpush2.bf16.msra.mxu0 0
    %4943 = vmatprep.subr.bf16.mxu0 0
    %4944 = vmatpush2.bf16.msra.mxu0 0
    %4945 = vmatprep.subr.bf16.mxu0 0
    %4946 = vmatpush2.bf16.msra.mxu0 0
    %4947 = vmatprep.subr.bf16.mxu0 0
    %4948 = vmatpush2.bf16.msra.mxu0 0
    %4949 = vmatprep.subr.bf16.mxu0 0
    %4950 = vmatpush2.bf16.msra.mxu0 0
    %4951 = vmatprep.subr.bf16.mxu0 0
    %4952 = vmatpush2.bf16.msra.mxu0 0
    %4953 = vmatprep.subr.bf16.mxu0 0
    %4954 = vmatpush2.bf16.msra.mxu0 0
    %4955 = vmatprep.subr.bf16.mxu0 0
    %4956 = vmatpush2.bf16.msra.mxu0 0
    %4957 = vmatprep.mubr.bf16.mxu0 0
    %4958 = vmatmul.mubr.bf16.gmra.mxu0 %v4920
    %v4959 = vpop.f32.mrf.mxu0
    %v4960 = vadd.f32 0.0, %v4959
    %v4961 = vpop.f32.mrf.mxu0
    %v4962 = vpop.f32.mrf.mxu0
    %v4963 = vpop.f32.mrf.mxu0
    %4964 = vdwg.mxu0
    %4966 = vrot.lane.b32.xlu0 %v4740, 32
    %v4967 = vpop.permute.xlu0 %4966
    %4970 = vrot.lane.b32.xlu0 %v4850, 64
    %v4971 = vpop.permute.xlu0 %4970
    %4974 = vrot.lane.b32.xlu0 %v4960, 96
    %v4975 = vpop.permute.xlu0 %4974
    %v4977 = vsel %vm4526, %v4627, %v4967
    %vm4978 = vcmask 523264
    %v4979 = vsel %vm4978, %v4977, %v4971
    %vm4980 = vcmask 785408
    %v4981 = vsel %vm4980, %v4979, %v4975
    %v4982 = vrot.slane %v4523, 4
    %v4983 = vrot.slane %v4524, 4
    %v4985 = vsel %vm4526, %v4982, 0
    %v4988 = vsel %vm4526, %v4983, 0
    %4990 = vmatprep.subr.bf16.mxu0 0
    %4991 = vmatpush1.bf16.xpose.msra.mxu0 0
    %4992 = vmatprep.subr.bf16.mxu0 0
    %4993 = vmatpush1.bf16.xpose.msra.mxu0 0
    %4994 = vmatprep.subr.bf16.mxu0 0
    %4995 = vmatpush1.bf16.xpose.msra.mxu0 0
    %4996 = vmatprep.subr.bf16.mxu0 0
    %4997 = vmatpush1.bf16.xpose.msra.mxu0 0
    %4998 = vmatprep.subr.bf16.mxu0 0
    %4999 = vmatpush1.bf16.xpose.msra.mxu0 0
    %5000 = vmatprep.subr.bf16.mxu0 0
    %5001 = vmatpush1.bf16.xpose.msra.mxu0 0
    %5002 = vmatprep.subr.bf16.mxu0 0
    %5003 = vmatpush1.bf16.xpose.msra.mxu0 0
    %5004 = vmatprep.subr.bf16.mxu0 0
    %5005 = vmatpush1.bf16.xpose.msra.mxu0 %v4988
    %5006 = vmatprep.subr.bf16.mxu0 0
    %5007 = vmatpush2.bf16.xpose.msra.mxu0 0
    %5008 = vmatprep.subr.bf16.mxu0 0
    %5009 = vmatpush2.bf16.xpose.msra.mxu0 0
    %5010 = vmatprep.subr.bf16.mxu0 0
    %5011 = vmatpush2.bf16.xpose.msra.mxu0 0
    %5012 = vmatprep.subr.bf16.mxu0 0
    %5013 = vmatpush2.bf16.xpose.msra.mxu0 0
    %5014 = vmatprep.subr.bf16.mxu0 0
    %5015 = vmatpush2.bf16.xpose.msra.mxu0 0
    %5016 = vmatprep.subr.bf16.mxu0 0
    %5017 = vmatpush2.bf16.xpose.msra.mxu0 0
    %5018 = vmatprep.subr.bf16.mxu0 0
    %5019 = vmatpush2.bf16.xpose.msra.mxu0 0
    %5020 = vmatprep.subr.bf16.mxu0 0
    %5021 = vmatpush2.bf16.xpose.msra.mxu0 0
    %5022 = vmatprep.mubr.bf16.mxu0 0
    %5023 = vmatmul.mubr.bf16.gmra.mxu0 %v4985
    %v5024 = vpop.f32.mrf.mxu0
    %v5025 = vadd.f32 0.0, %v5024
    %v5026 = vpop.f32.mrf.mxu0
    %v5027 = vpop.f32.mrf.mxu0
    %v5028 = vpop.f32.mrf.mxu0
    %5029 = vdwg.mxu0
    %v5030 = vsel %vm4573, %v5025, -inf
    %5031 = vmax.xlane.f32.xlu0 %v5030
    %v5032 = vpop.xlane.xlu0 %5031
    %v5033 = vsub.f32 %v5025, %v5032
    %v5034 = vmul.f32 %v5033, 1.442695
    %v5035 = vpow.pop %v5034
    %v5036 = vsel %vm4573, %v5035, 0.0
    %5037 = vadd.xlane.f32.xlu0 %v5036
    %v5038 = vpop.xlane.xlu0 %5037
    %v5039 = vrcp.pop %v5038
    %v5040 = vmul.f32 %v5035, %v5039
    %v5041 = vpack.c.bf16 %v5040, %v5040
    %v5042 = vrot.slane %v4525, 4
    %v5044 = vsel %vm4573, %v5041, 0
    %v5047 = vsel %vm2249, %v5042, 0
    %5049 = vmatprep.subr.bf16.mxu0 0
    %5050 = vmatpush1.bf16.msra.mxu0 0
    %5051 = vmatprep.subr.bf16.mxu0 0
    %5052 = vmatpush1.bf16.msra.mxu0 0
    %5053 = vmatprep.subr.bf16.mxu0 0
    %5054 = vmatpush1.bf16.msra.mxu0 0
    %5055 = vmatprep.subr.bf16.mxu0 0
    %5056 = vmatpush1.bf16.msra.mxu0 0
    %5057 = vmatprep.subr.bf16.mxu0 0
    %5058 = vmatpush1.bf16.msra.mxu0 0
    %5059 = vmatprep.subr.bf16.mxu0 0
    %5060 = vmatpush1.bf16.msra.mxu0 0
    %5061 = vmatprep.subr.bf16.mxu0 0
    %5062 = vmatpush1.bf16.msra.mxu0 0
    %5063 = vmatprep.subr.bf16.mxu0 0
    %5064 = vmatpush1.bf16.msra.mxu0 %v5047
    %5065 = vmatprep.subr.bf16.mxu0 0
    %5066 = vmatpush2.bf16.msra.mxu0 0
    %5067 = vmatprep.subr.bf16.mxu0 0
    %5068 = vmatpush2.bf16.msra.mxu0 0
    %5069 = vmatprep.subr.bf16.mxu0 0
    %5070 = vmatpush2.bf16.msra.mxu0 0
    %5071 = vmatprep.subr.bf16.mxu0 0
    %5072 = vmatpush2.bf16.msra.mxu0 0
    %5073 = vmatprep.subr.bf16.mxu0 0
    %5074 = vmatpush2.bf16.msra.mxu0 0
    %5075 = vmatprep.subr.bf16.mxu0 0
    %5076 = vmatpush2.bf16.msra.mxu0 0
    %5077 = vmatprep.subr.bf16.mxu0 0
    %5078 = vmatpush2.bf16.msra.mxu0 0
    %5079 = vmatprep.subr.bf16.mxu0 0
    %5080 = vmatpush2.bf16.msra.mxu0 0
    %5081 = vmatprep.mubr.bf16.mxu0 0
    %5082 = vmatmul.mubr.bf16.gmra.mxu0 %v5044
    %v5083 = vpop.f32.mrf.mxu0
    %v5084 = vadd.f32 0.0, %v5083
    %v5085 = vpop.f32.mrf.mxu0
    %v5086 = vpop.f32.mrf.mxu0
    %v5087 = vpop.f32.mrf.mxu0
    %5088 = vdwg.mxu0
    %5089 = vrot.lane.b32.xlu0 %v4982, 96
    %v5090 = vpop.permute.xlu0 %5089
    %5091 = vrot.lane.b32.xlu0 %v4983, 96
    %v5092 = vpop.permute.xlu0 %5091
    %v5094 = vsel %vm4526, %v5090, 0
    %v5097 = vsel %vm4526, %v5092, 0
    %5099 = vmatprep.subr.bf16.mxu0 0
    %5100 = vmatpush1.bf16.xpose.msra.mxu0 0
    %5101 = vmatprep.subr.bf16.mxu0 0
    %5102 = vmatpush1.bf16.xpose.msra.mxu0 0
    %5103 = vmatprep.subr.bf16.mxu0 0
    %5104 = vmatpush1.bf16.xpose.msra.mxu0 0
    %5105 = vmatprep.subr.bf16.mxu0 0
    %5106 = vmatpush1.bf16.xpose.msra.mxu0 0
    %5107 = vmatprep.subr.bf16.mxu0 0
    %5108 = vmatpush1.bf16.xpose.msra.mxu0 0
    %5109 = vmatprep.subr.bf16.mxu0 0
    %5110 = vmatpush1.bf16.xpose.msra.mxu0 0
    %5111 = vmatprep.subr.bf16.mxu0 0
    %5112 = vmatpush1.bf16.xpose.msra.mxu0 0
    %5113 = vmatprep.subr.bf16.mxu0 0
    %5114 = vmatpush1.bf16.xpose.msra.mxu0 %v5097
    %5115 = vmatprep.subr.bf16.mxu0 0
    %5116 = vmatpush2.bf16.xpose.msra.mxu0 0
    %5117 = vmatprep.subr.bf16.mxu0 0
    %5118 = vmatpush2.bf16.xpose.msra.mxu0 0
    %5119 = vmatprep.subr.bf16.mxu0 0
    %5120 = vmatpush2.bf16.xpose.msra.mxu0 0
    %5121 = vmatprep.subr.bf16.mxu0 0
    %5122 = vmatpush2.bf16.xpose.msra.mxu0 0
    %5123 = vmatprep.subr.bf16.mxu0 0
    %5124 = vmatpush2.bf16.xpose.msra.mxu0 0
    %5125 = vmatprep.subr.bf16.mxu0 0
    %5126 = vmatpush2.bf16.xpose.msra.mxu0 0
    %5127 = vmatprep.subr.bf16.mxu0 0
    %5128 = vmatpush2.bf16.xpose.msra.mxu0 0
    %5129 = vmatprep.subr.bf16.mxu0 0
    %5130 = vmatpush2.bf16.xpose.msra.mxu0 0
    %5131 = vmatprep.mubr.bf16.mxu0 0
    %5132 = vmatmul.mubr.bf16.gmra.mxu0 %v5094
    %v5133 = vpop.f32.mrf.mxu0
    %v5134 = vadd.f32 0.0, %v5133
    %v5135 = vpop.f32.mrf.mxu0
    %v5136 = vpop.f32.mrf.mxu0
    %v5137 = vpop.f32.mrf.mxu0
    %5138 = vdwg.mxu0
    %v5139 = vsel %vm4573, %v5134, -inf
    %5140 = vmax.xlane.f32.xlu0 %v5139
    %v5141 = vpop.xlane.xlu0 %5140
    %v5142 = vsub.f32 %v5134, %v5141
    %v5143 = vmul.f32 %v5142, 1.442695
    %v5144 = vpow.pop %v5143
    %v5145 = vsel %vm4573, %v5144, 0.0
    %5146 = vadd.xlane.f32.xlu0 %v5145
    %v5147 = vpop.xlane.xlu0 %5146
    %v5148 = vrcp.pop %v5147
    %v5149 = vmul.f32 %v5144, %v5148
    %v5150 = vpack.c.bf16 %v5149, %v5149
    %5151 = vrot.lane.b32.xlu0 %v5042, 96
    %v5152 = vpop.permute.xlu0 %5151
    %v5154 = vsel %vm4573, %v5150, 0
    %v5157 = vsel %vm2249, %v5152, 0
    %5159 = vmatprep.subr.bf16.mxu0 0
    %5160 = vmatpush1.bf16.msra.mxu0 0
    %5161 = vmatprep.subr.bf16.mxu0 0
    %5162 = vmatpush1.bf16.msra.mxu0 0
    %5163 = vmatprep.subr.bf16.mxu0 0
    %5164 = vmatpush1.bf16.msra.mxu0 0
    %5165 = vmatprep.subr.bf16.mxu0 0
    %5166 = vmatpush1.bf16.msra.mxu0 0
    %5167 = vmatprep.subr.bf16.mxu0 0
    %5168 = vmatpush1.bf16.msra.mxu0 0
    %5169 = vmatprep.subr.bf16.mxu0 0
    %5170 = vmatpush1.bf16.msra.mxu0 0
    %5171 = vmatprep.subr.bf16.mxu0 0
    %5172 = vmatpush1.bf16.msra.mxu0 0
    %5173 = vmatprep.subr.bf16.mxu0 0
    %5174 = vmatpush1.bf16.msra.mxu0 %v5157
    %5175 = vmatprep.subr.bf16.mxu0 0
    %5176 = vmatpush2.bf16.msra.mxu0 0
    %5177 = vmatprep.subr.bf16.mxu0 0
    %5178 = vmatpush2.bf16.msra.mxu0 0
    %5179 = vmatprep.subr.bf16.mxu0 0
    %5180 = vmatpush2.bf16.msra.mxu0 0
    %5181 = vmatprep.subr.bf16.mxu0 0
    %5182 = vmatpush2.bf16.msra.mxu0 0
    %5183 = vmatprep.subr.bf16.mxu0 0
    %5184 = vmatpush2.bf16.msra.mxu0 0
    %5185 = vmatprep.subr.bf16.mxu0 0
    %5186 = vmatpush2.bf16.msra.mxu0 0
    %5187 = vmatprep.subr.bf16.mxu0 0
    %5188 = vmatpush2.bf16.msra.mxu0 0
    %5189 = vmatprep.subr.bf16.mxu0 0
    %5190 = vmatpush2.bf16.msra.mxu0 0
    %5191 = vmatprep.mubr.bf16.mxu0 0
    %5192 = vmatmul.mubr.bf16.gmra.mxu0 %v5154
    %v5193 = vpop.f32.mrf.mxu0
    %v5194 = vadd.f32 0.0, %v5193
    %v5195 = vpop.f32.mrf.mxu0
    %v5196 = vpop.f32.mrf.mxu0
    %v5197 = vpop.f32.mrf.mxu0
    %5198 = vdwg.mxu0
    %5199 = vrot.lane.b32.xlu0 %v4982, 64
    %v5200 = vpop.permute.xlu0 %5199
    %5201 = vrot.lane.b32.xlu0 %v4983, 64
    %v5202 = vpop.permute.xlu0 %5201
    %v5204 = vsel %vm4526, %v5200, 0
    %v5207 = vsel %vm4526, %v5202, 0
    %5209 = vmatprep.subr.bf16.mxu0 0
    %5210 = vmatpush1.bf16.xpose.msra.mxu0 0
    %5211 = vmatprep.subr.bf16.mxu0 0
    %5212 = vmatpush1.bf16.xpose.msra.mxu0 0
    %5213 = vmatprep.subr.bf16.mxu0 0
    %5214 = vmatpush1.bf16.xpose.msra.mxu0 0
    %5215 = vmatprep.subr.bf16.mxu0 0
    %5216 = vmatpush1.bf16.xpose.msra.mxu0 0
    %5217 = vmatprep.subr.bf16.mxu0 0
    %5218 = vmatpush1.bf16.xpose.msra.mxu0 0
    %5219 = vmatprep.subr.bf16.mxu0 0
    %5220 = vmatpush1.bf16.xpose.msra.mxu0 0
    %5221 = vmatprep.subr.bf16.mxu0 0
    %5222 = vmatpush1.bf16.xpose.msra.mxu0 0
    %5223 = vmatprep.subr.bf16.mxu0 0
    %5224 = vmatpush1.bf16.xpose.msra.mxu0 %v5207
    %5225 = vmatprep.subr.bf16.mxu0 0
    %5226 = vmatpush2.bf16.xpose.msra.mxu0 0
    %5227 = vmatprep.subr.bf16.mxu0 0
    %5228 = vmatpush2.bf16.xpose.msra.mxu0 0
    %5229 = vmatprep.subr.bf16.mxu0 0
    %5230 = vmatpush2.bf16.xpose.msra.mxu0 0
    %5231 = vmatprep.subr.bf16.mxu0 0
    %5232 = vmatpush2.bf16.xpose.msra.mxu0 0
    %5233 = vmatprep.subr.bf16.mxu0 0
    %5234 = vmatpush2.bf16.xpose.msra.mxu0 0
    %5235 = vmatprep.subr.bf16.mxu0 0
    %5236 = vmatpush2.bf16.xpose.msra.mxu0 0
    %5237 = vmatprep.subr.bf16.mxu0 0
    %5238 = vmatpush2.bf16.xpose.msra.mxu0 0
    %5239 = vmatprep.subr.bf16.mxu0 0
    %5240 = vmatpush2.bf16.xpose.msra.mxu0 0
    %5241 = vmatprep.mubr.bf16.mxu0 0
    %5242 = vmatmul.mubr.bf16.gmra.mxu0 %v5204
    %v5243 = vpop.f32.mrf.mxu0
    %v5244 = vadd.f32 0.0, %v5243
    %v5245 = vpop.f32.mrf.mxu0
    %v5246 = vpop.f32.mrf.mxu0
    %v5247 = vpop.f32.mrf.mxu0
    %5248 = vdwg.mxu0
    %v5249 = vsel %vm4573, %v5244, -inf
    %5250 = vmax.xlane.f32.xlu0 %v5249
    %v5251 = vpop.xlane.xlu0 %5250
    %v5252 = vsub.f32 %v5244, %v5251
    %v5253 = vmul.f32 %v5252, 1.442695
    %v5254 = vpow.pop %v5253
    %v5255 = vsel %vm4573, %v5254, 0.0
    %5256 = vadd.xlane.f32.xlu0 %v5255
    %v5257 = vpop.xlane.xlu0 %5256
    %v5258 = vrcp.pop %v5257
    %v5259 = vmul.f32 %v5254, %v5258
    %v5260 = vpack.c.bf16 %v5259, %v5259
    %5261 = vrot.lane.b32.xlu0 %v5042, 64
    %v5262 = vpop.permute.xlu0 %5261
    %v5264 = vsel %vm4573, %v5260, 0
    %v5267 = vsel %vm2249, %v5262, 0
    %5269 = vmatprep.subr.bf16.mxu0 0
    %5270 = vmatpush1.bf16.msra.mxu0 0
    %5271 = vmatprep.subr.bf16.mxu0 0
    %5272 = vmatpush1.bf16.msra.mxu0 0
    %5273 = vmatprep.subr.bf16.mxu0 0
    %5274 = vmatpush1.bf16.msra.mxu0 0
    %5275 = vmatprep.subr.bf16.mxu0 0
    %5276 = vmatpush1.bf16.msra.mxu0 0
    %5277 = vmatprep.subr.bf16.mxu0 0
    %5278 = vmatpush1.bf16.msra.mxu0 0
    %5279 = vmatprep.subr.bf16.mxu0 0
    %5280 = vmatpush1.bf16.msra.mxu0 0
    %5281 = vmatprep.subr.bf16.mxu0 0
    %5282 = vmatpush1.bf16.msra.mxu0 0
    %5283 = vmatprep.subr.bf16.mxu0 0
    %5284 = vmatpush1.bf16.msra.mxu0 %v5267
    %5285 = vmatprep.subr.bf16.mxu0 0
    %5286 = vmatpush2.bf16.msra.mxu0 0
    %5287 = vmatprep.subr.bf16.mxu0 0
    %5288 = vmatpush2.bf16.msra.mxu0 0
    %5289 = vmatprep.subr.bf16.mxu0 0
    %5290 = vmatpush2.bf16.msra.mxu0 0
    %5291 = vmatprep.subr.bf16.mxu0 0
    %5292 = vmatpush2.bf16.msra.mxu0 0
    %5293 = vmatprep.subr.bf16.mxu0 0
    %5294 = vmatpush2.bf16.msra.mxu0 0
    %5295 = vmatprep.subr.bf16.mxu0 0
    %5296 = vmatpush2.bf16.msra.mxu0 0
    %5297 = vmatprep.subr.bf16.mxu0 0
    %5298 = vmatpush2.bf16.msra.mxu0 0
    %5299 = vmatprep.subr.bf16.mxu0 0
    %5300 = vmatpush2.bf16.msra.mxu0 0
    %5301 = vmatprep.mubr.bf16.mxu0 0
    %5302 = vmatmul.mubr.bf16.gmra.mxu0 %v5264
    %v5303 = vpop.f32.mrf.mxu0
    %v5304 = vadd.f32 0.0, %v5303
    %v5305 = vpop.f32.mrf.mxu0
    %v5306 = vpop.f32.mrf.mxu0
    %v5307 = vpop.f32.mrf.mxu0
    %5308 = vdwg.mxu0
    %5309 = vrot.lane.b32.xlu0 %v4982, 32
    %v5310 = vpop.permute.xlu0 %5309
    %5311 = vrot.lane.b32.xlu0 %v4983, 32
    %v5312 = vpop.permute.xlu0 %5311
    %v5314 = vsel %vm4526, %v5310, 0
    %v5317 = vsel %vm4526, %v5312, 0
    %5319 = vmatprep.subr.bf16.mxu0 0
    %5320 = vmatpush1.bf16.xpose.msra.mxu0 0
    %5321 = vmatprep.subr.bf16.mxu0 0
    %5322 = vmatpush1.bf16.xpose.msra.mxu0 0
    %5323 = vmatprep.subr.bf16.mxu0 0
    %5324 = vmatpush1.bf16.xpose.msra.mxu0 0
    %5325 = vmatprep.subr.bf16.mxu0 0
    %5326 = vmatpush1.bf16.xpose.msra.mxu0 0
    %5327 = vmatprep.subr.bf16.mxu0 0
    %5328 = vmatpush1.bf16.xpose.msra.mxu0 0
    %5329 = vmatprep.subr.bf16.mxu0 0
    %5330 = vmatpush1.bf16.xpose.msra.mxu0 0
    %5331 = vmatprep.subr.bf16.mxu0 0
    %5332 = vmatpush1.bf16.xpose.msra.mxu0 0
    %5333 = vmatprep.subr.bf16.mxu0 0
    %5334 = vmatpush1.bf16.xpose.msra.mxu0 %v5317
    %5335 = vmatprep.subr.bf16.mxu0 0
    %5336 = vmatpush2.bf16.xpose.msra.mxu0 0
    %5337 = vmatprep.subr.bf16.mxu0 0
    %5338 = vmatpush2.bf16.xpose.msra.mxu0 0
    %5339 = vmatprep.subr.bf16.mxu0 0
    %5340 = vmatpush2.bf16.xpose.msra.mxu0 0
    %5341 = vmatprep.subr.bf16.mxu0 0
    %5342 = vmatpush2.bf16.xpose.msra.mxu0 0
    %5343 = vmatprep.subr.bf16.mxu0 0
    %5344 = vmatpush2.bf16.xpose.msra.mxu0 0
    %5345 = vmatprep.subr.bf16.mxu0 0
    %5346 = vmatpush2.bf16.xpose.msra.mxu0 0
    %5347 = vmatprep.subr.bf16.mxu0 0
    %5348 = vmatpush2.bf16.xpose.msra.mxu0 0
    %5349 = vmatprep.subr.bf16.mxu0 0
    %5350 = vmatpush2.bf16.xpose.msra.mxu0 0
    %5351 = vmatprep.mubr.bf16.mxu0 0
    %5352 = vmatmul.mubr.bf16.gmra.mxu0 %v5314
    %v5353 = vpop.f32.mrf.mxu0
    %v5354 = vadd.f32 0.0, %v5353
    %v5355 = vpop.f32.mrf.mxu0
    %v5356 = vpop.f32.mrf.mxu0
    %v5357 = vpop.f32.mrf.mxu0
    %5358 = vdwg.mxu0
    %v5359 = vsel %vm4573, %v5354, -inf
    %5360 = vmax.xlane.f32.xlu0 %v5359
    %v5361 = vpop.xlane.xlu0 %5360
    %v5362 = vsub.f32 %v5354, %v5361
    %v5363 = vmul.f32 %v5362, 1.442695
    %v5364 = vpow.pop %v5363
    %v5365 = vsel %vm4573, %v5364, 0.0
    %5366 = vadd.xlane.f32.xlu0 %v5365
    %v5367 = vpop.xlane.xlu0 %5366
    %v5368 = vrcp.pop %v5367
    %v5369 = vmul.f32 %v5364, %v5368
    %v5370 = vpack.c.bf16 %v5369, %v5369
    %5371 = vrot.lane.b32.xlu0 %v5042, 32
    %v5372 = vpop.permute.xlu0 %5371
    %v5374 = vsel %vm4573, %v5370, 0
    %v5377 = vsel %vm2249, %v5372, 0
    %5379 = vmatprep.subr.bf16.mxu0 0
    %5380 = vmatpush1.bf16.msra.mxu0 0
    %5381 = vmatprep.subr.bf16.mxu0 0
    %5382 = vmatpush1.bf16.msra.mxu0 0
    %5383 = vmatprep.subr.bf16.mxu0 0
    %5384 = vmatpush1.bf16.msra.mxu0 0
    %5385 = vmatprep.subr.bf16.mxu0 0
    %5386 = vmatpush1.bf16.msra.mxu0 0
    %5387 = vmatprep.subr.bf16.mxu0 0
    %5388 = vmatpush1.bf16.msra.mxu0 0
    %5389 = vmatprep.subr.bf16.mxu0 0
    %5390 = vmatpush1.bf16.msra.mxu0 0
    %5391 = vmatprep.subr.bf16.mxu0 0
    %5392 = vmatpush1.bf16.msra.mxu0 0
    %5393 = vmatprep.subr.bf16.mxu0 0
    %5394 = vmatpush1.bf16.msra.mxu0 %v5377
    %5395 = vmatprep.subr.bf16.mxu0 0
    %5396 = vmatpush2.bf16.msra.mxu0 0
    %5397 = vmatprep.subr.bf16.mxu0 0
    %5398 = vmatpush2.bf16.msra.mxu0 0
    %5399 = vmatprep.subr.bf16.mxu0 0
    %5400 = vmatpush2.bf16.msra.mxu0 0
    %5401 = vmatprep.subr.bf16.mxu0 0
    %5402 = vmatpush2.bf16.msra.mxu0 0
    %5403 = vmatprep.subr.bf16.mxu0 0
    %5404 = vmatpush2.bf16.msra.mxu0 0
    %5405 = vmatprep.subr.bf16.mxu0 0
    %5406 = vmatpush2.bf16.msra.mxu0 0
    %5407 = vmatprep.subr.bf16.mxu0 0
    %5408 = vmatpush2.bf16.msra.mxu0 0
    %5409 = vmatprep.subr.bf16.mxu0 0
    %5410 = vmatpush2.bf16.msra.mxu0 0
    %5411 = vmatprep.mubr.bf16.mxu0 0
    %5412 = vmatmul.mubr.bf16.gmra.mxu0 %v5374
    %v5413 = vpop.f32.mrf.mxu0
    %v5414 = vadd.f32 0.0, %v5413
    %v5415 = vpop.f32.mrf.mxu0
    %v5416 = vpop.f32.mrf.mxu0
    %v5417 = vpop.f32.mrf.mxu0
    %5418 = vdwg.mxu0
    %5420 = vrot.lane.b32.xlu0 %v5194, 32
    %v5421 = vpop.permute.xlu0 %5420
    %5424 = vrot.lane.b32.xlu0 %v5304, 64
    %v5425 = vpop.permute.xlu0 %5424
    %5428 = vrot.lane.b32.xlu0 %v5414, 96
    %v5429 = vpop.permute.xlu0 %5428
    %v5431 = vsel %vm4526, %v5084, %v5421
    %v5432 = vsel %vm4978, %v5431, %v5425
    %v5433 = vsel %vm4980, %v5432, %v5429
    %v5434 = vpack.c.bf16 %v5433, %v4981
    %v5435 = vld [vmem:[#allocation21] sm:$0xf]
    %v5436 = vld [vmem:[#allocation21 + $0x4] sm:$0xf]
    %v5437 = vld [vmem:[#allocation21 + $0x8] sm:$0xf]
    %v5438 = vld [vmem:[#allocation21 + $0xc] sm:$0xf]
    %v5439 = vld [vmem:[#allocation21 + $0x10] sm:$0xf]
    %v5440 = vld [vmem:[#allocation21 + $0x14] sm:$0xf]
    %v5441 = vld [vmem:[#allocation21 + $0x18] sm:$0xf]
    %v5442 = vld [vmem:[#allocation21 + $0x1c] sm:$0xf]
    %v5443 = vld [vmem:[#allocation21 + $0x20] sm:$0xf]
    %v5444 = vld [vmem:[#allocation21 + $0x24] sm:$0xf]
    %v5445 = vld [vmem:[#allocation21 + $0x28] sm:$0xf]
    %v5446 = vld [vmem:[#allocation21 + $0x2c] sm:$0xf]
    %v5447 = vld [vmem:[#allocation21 + $0x30] sm:$0xf]
    %v5448 = vld [vmem:[#allocation21 + $0x34] sm:$0xf]
    %v5449 = vld [vmem:[#allocation21 + $0x38] sm:$0xf]
    %v5450 = vld [vmem:[#allocation21 + $0x3c] sm:$0xf]
    %v5451 = vld [vmem:[#allocation22] sm:$0x1]
    %v5453 = vlaneseq
    %v5454 = vshrl.u32 %v5453, 7
    %v5455 = vsub.s32 0, %v5454
    %v5456 = vrot.slane %v5451, %v5455
    %v5474 = vunpack.c.l.b16 %v5435
    %v5475 = vunpack.c.l.b16 %v5436
    %v5476 = vunpack.c.l.b16 %v5437
    %v5477 = vunpack.c.l.b16 %v5438
    %v5478 = vunpack.c.l.b16 %v5439
    %v5479 = vunpack.c.l.b16 %v5440
    %v5480 = vunpack.c.l.b16 %v5441
    %v5481 = vunpack.c.l.b16 %v5442
    %v5482 = vunpack.c.l.b16 %v5443
    %v5483 = vunpack.c.l.b16 %v5444
    %v5484 = vunpack.c.l.b16 %v5445
    %v5485 = vunpack.c.l.b16 %v5446
    %v5486 = vunpack.c.l.b16 %v5447
    %v5487 = vunpack.c.l.b16 %v5448
    %v5488 = vunpack.c.l.b16 %v5449
    %v5489 = vunpack.c.l.b16 %v5450
    %v5490 = vpack.c.b16 %v5475, %v5474
    %v5491 = vpack.c.b16 %v5477, %v5476
    %v5492 = vpack.c.b16 %v5479, %v5478
    %v5493 = vpack.c.b16 %v5481, %v5480
    %v5494 = vpack.c.b16 %v5483, %v5482
    %v5495 = vpack.c.b16 %v5485, %v5484
    %v5496 = vpack.c.b16 %v5487, %v5486
    %v5497 = vpack.c.b16 %v5489, %v5488
    %5506 = vmatprep.subr.bf16.mxu0 0
    %5507 = vmatpush1.bf16.msra.mxu0 %v5497
    %5508 = vmatprep.subr.bf16.mxu0 0
    %5509 = vmatpush1.bf16.msra.mxu0 %v5496
    %5510 = vmatprep.subr.bf16.mxu0 0
    %5511 = vmatpush1.bf16.msra.mxu0 %v5495
    %5512 = vmatprep.subr.bf16.mxu0 0
    %5513 = vmatpush1.bf16.msra.mxu0 %v5494
    %5514 = vmatprep.subr.bf16.mxu0 0
    %5515 = vmatpush1.bf16.msra.mxu0 %v5493
    %5516 = vmatprep.subr.bf16.mxu0 0
    %5517 = vmatpush1.bf16.msra.mxu0 %v5492
    %5518 = vmatprep.subr.bf16.mxu0 0
    %5519 = vmatpush1.bf16.msra.mxu0 %v5491
    %5520 = vmatprep.subr.bf16.mxu0 0
    %5521 = vmatpush1.bf16.msra.mxu0 %v5490
    %5522 = vmatprep.subr.bf16.mxu0 0
    %5523 = vmatpush2.bf16.msra.mxu0 0
    %5524 = vmatprep.subr.bf16.mxu0 0
    %5525 = vmatpush2.bf16.msra.mxu0 0
    %5526 = vmatprep.subr.bf16.mxu0 0
    %5527 = vmatpush2.bf16.msra.mxu0 0
    %5528 = vmatprep.subr.bf16.mxu0 0
    %5529 = vmatpush2.bf16.msra.mxu0 0
    %5530 = vmatprep.subr.bf16.mxu0 0
    %5531 = vmatpush2.bf16.msra.mxu0 0
    %5532 = vmatprep.subr.bf16.mxu0 0
    %5533 = vmatpush2.bf16.msra.mxu0 0
    %5534 = vmatprep.subr.bf16.mxu0 0
    %5535 = vmatpush2.bf16.msra.mxu0 0
    %5536 = vmatprep.subr.bf16.mxu0 0
    %5537 = vmatpush2.bf16.msra.mxu0 0
    %5538 = vmatprep.mubr.bf16.mxu0 0
    %5539 = vmatmul.mubr.bf16.gmra.mxu0 %v5434
    %v5540 = vpop.f32.mrf.mxu0
    %v5541 = vadd.f32 %v5456, %v5540
    %v5542 = vpop.f32.mrf.mxu0
    %v5543 = vpop.f32.mrf.mxu0
    %v5544 = vadd.f32 %v5456, %v5543
    %v5545 = vpop.f32.mrf.mxu0
    %5546 = vdwg.mxu0
    %v5547 = vadd.f32 %v5541, %v371
    %v5548 = vadd.f32 %v5544, %v372
    %5549 = vadd.xlane.f32.xlu0 %v5547
    %v5550 = vpop.xlane.xlu0 %5549
    %5551 = vadd.xlane.f32.xlu0 %v5548
    %v5552 = vpop.xlane.xlu0 %5551
    %v5553 = vrcp.pop 128.0
    %v5554 = vmul.f32 %v5550, %v5553
    %v5555 = vmul.f32 %v5552, %v5553
    %v5556 = vsub.f32 %v5547, %v5554
    %v5557 = vsub.f32 %v5548, %v5555
    %v5558 = vmul.f32 %v5556, %v5556
    %v5559 = vmul.f32 %v5557, %v5557
    %5560 = vadd.xlane.f32.xlu0 %v5558
    %v5561 = vpop.xlane.xlu0 %5560
    %5562 = vadd.xlane.f32.xlu0 %v5559
    %v5563 = vpop.xlane.xlu0 %5562
    %v5564 = vmul.f32 %v5561, %v5553
    %v5565 = vmul.f32 %v5563, %v5553
    %v5566 = vadd.f32 %v5564, 1e-12
    %v5567 = vadd.f32 %v5565, 1e-12
    %v5568 = vrsqrt.pop %v5566
    %v5569 = vrsqrt.pop %v5567
    %v5570 = vmul.f32 %v5556, %v5568
    %v5571 = vmul.f32 %v5557, %v5569
    %v5572 = vld [vmem:[#allocation24] sm:$0x1]
    %v5574 = vlaneseq
    %v5575 = vshrl.u32 %v5574, 7
    %v5576 = vsub.s32 0, %v5575
    %v5577 = vrot.slane %v5572, %v5576
    %v5579 = vmul.f32 %v5570, %v5577
    %v5580 = vmul.f32 %v5571, %v5577
    %v5581 = vld [vmem:[#allocation25] sm:$0x1]
    %v5583 = vlaneseq
    %v5584 = vshrl.u32 %v5583, 7
    %v5585 = vsub.s32 0, %v5584
    %v5586 = vrot.slane %v5581, %v5585
    %v5588 = vadd.f32 %v5579, %v5586
    %v5589 = vadd.f32 %v5580, %v5586
    %v5590 = vpack.c.bf16 %v5589, %v5588
    %v5591 = vld [vmem:[#allocation27] sm:$0xff]
    %v5592 = vld [vmem:[#allocation27 + $0x8] sm:$0xff]
    %v5593 = vld [vmem:[#allocation27 + $0x10] sm:$0xff]
    %v5594 = vld [vmem:[#allocation27 + $0x18] sm:$0xff]
    %v5595 = vld [vmem:[#allocation27 + $0x20] sm:$0xff]
    %v5596 = vld [vmem:[#allocation27 + $0x28] sm:$0xff]
    %v5597 = vld [vmem:[#allocation27 + $0x30] sm:$0xff]
    %v5598 = vld [vmem:[#allocation27 + $0x38] sm:$0xff]
    %v5599 = vld [vmem:[#allocation27 + $0x40] sm:$0xff]
    %v5600 = vld [vmem:[#allocation27 + $0x48] sm:$0xff]
    %v5601 = vld [vmem:[#allocation27 + $0x50] sm:$0xff]
    %v5602 = vld [vmem:[#allocation27 + $0x58] sm:$0xff]
    %v5603 = vld [vmem:[#allocation27 + $0x60] sm:$0xff]
    %v5604 = vld [vmem:[#allocation27 + $0x68] sm:$0xff]
    %v5605 = vld [vmem:[#allocation27 + $0x70] sm:$0xff]
    %v5606 = vld [vmem:[#allocation27 + $0x78] sm:$0xff]
    %v5607 = vld [vmem:[#allocation28] sm:$0x3]
    %v5609 = vlaneseq
    %v5610 = vshrl.u32 %v5609, 7
    %v5611 = vsub.s32 0, %v5610
    %v5612 = vrot.slane %v5607, %v5611
    %v5613 = vlaneseq
    %v5614 = vshrl.u32 %v5613, 7
    %v5615 = vsub.s32 1, %v5614
    %v5616 = vrot.slane %v5607, %v5615
    %v5635 = vunpack.c.l.b16 %v5591
    %v5636 = vunpack.c.h.b16 %v5591
    %v5637 = vunpack.c.l.b16 %v5592
    %v5638 = vunpack.c.h.b16 %v5592
    %v5639 = vunpack.c.l.b16 %v5593
    %v5640 = vunpack.c.h.b16 %v5593
    %v5641 = vunpack.c.l.b16 %v5594
    %v5642 = vunpack.c.h.b16 %v5594
    %v5643 = vunpack.c.l.b16 %v5595
    %v5644 = vunpack.c.h.b16 %v5595
    %v5645 = vunpack.c.l.b16 %v5596
    %v5646 = vunpack.c.h.b16 %v5596
    %v5647 = vunpack.c.l.b16 %v5597
    %v5648 = vunpack.c.h.b16 %v5597
    %v5649 = vunpack.c.l.b16 %v5598
    %v5650 = vunpack.c.h.b16 %v5598
    %v5651 = vunpack.c.l.b16 %v5599
    %v5652 = vunpack.c.h.b16 %v5599
    %v5653 = vunpack.c.l.b16 %v5600
    %v5654 = vunpack.c.h.b16 %v5600
    %v5655 = vunpack.c.l.b16 %v5601
    %v5656 = vunpack.c.h.b16 %v5601
    %v5657 = vunpack.c.l.b16 %v5602
    %v5658 = vunpack.c.h.b16 %v5602
    %v5659 = vunpack.c.l.b16 %v5603
    %v5660 = vunpack.c.h.b16 %v5603
    %v5661 = vunpack.c.l.b16 %v5604
    %v5662 = vunpack.c.h.b16 %v5604
    %v5663 = vunpack.c.l.b16 %v5605
    %v5664 = vunpack.c.h.b16 %v5605
    %v5665 = vunpack.c.l.b16 %v5606
    %v5666 = vunpack.c.h.b16 %v5606
    %v5667 = vpack.c.b16 %v5637, %v5635
    %v5668 = vpack.c.b16 %v5638, %v5636
    %v5669 = vpack.c.b16 %v5641, %v5639
    %v5670 = vpack.c.b16 %v5642, %v5640
    %v5671 = vpack.c.b16 %v5645, %v5643
    %v5672 = vpack.c.b16 %v5646, %v5644
    %v5673 = vpack.c.b16 %v5649, %v5647
    %v5674 = vpack.c.b16 %v5650, %v5648
    %v5675 = vpack.c.b16 %v5653, %v5651
    %v5676 = vpack.c.b16 %v5654, %v5652
    %v5677 = vpack.c.b16 %v5657, %v5655
    %v5678 = vpack.c.b16 %v5658, %v5656
    %v5679 = vpack.c.b16 %v5661, %v5659
    %v5680 = vpack.c.b16 %v5662, %v5660
    %v5681 = vpack.c.b16 %v5665, %v5663
    %v5682 = vpack.c.b16 %v5666, %v5664
    %5699 = vmatprep.subr.bf16.mxu0 %v5682
    %5700 = vmatpush1.bf16.msra.mxu0 %v5681
    %5701 = vmatprep.subr.bf16.mxu0 %v5680
    %5702 = vmatpush1.bf16.msra.mxu0 %v5679
    %5703 = vmatprep.subr.bf16.mxu0 %v5678
    %5704 = vmatpush1.bf16.msra.mxu0 %v5677
    %5705 = vmatprep.subr.bf16.mxu0 %v5676
    %5706 = vmatpush1.bf16.msra.mxu0 %v5675
    %5707 = vmatprep.subr.bf16.mxu0 %v5674
    %5708 = vmatpush1.bf16.msra.mxu0 %v5673
    %5709 = vmatprep.subr.bf16.mxu0 %v5672
    %5710 = vmatpush1.bf16.msra.mxu0 %v5671
    %5711 = vmatprep.subr.bf16.mxu0 %v5670
    %5712 = vmatpush1.bf16.msra.mxu0 %v5669
    %5713 = vmatprep.subr.bf16.mxu0 %v5668
    %5714 = vmatpush1.bf16.msra.mxu0 %v5667
    %5715 = vmatprep.subr.bf16.mxu0 0
    %5716 = vmatpush2.bf16.msra.mxu0 0
    %5717 = vmatprep.subr.bf16.mxu0 0
    %5718 = vmatpush2.bf16.msra.mxu0 0
    %5719 = vmatprep.subr.bf16.mxu0 0
    %5720 = vmatpush2.bf16.msra.mxu0 0
    %5721 = vmatprep.subr.bf16.mxu0 0
    %5722 = vmatpush2.bf16.msra.mxu0 0
    %5723 = vmatprep.subr.bf16.mxu0 0
    %5724 = vmatpush2.bf16.msra.mxu0 0
    %5725 = vmatprep.subr.bf16.mxu0 0
    %5726 = vmatpush2.bf16.msra.mxu0 0
    %5727 = vmatprep.subr.bf16.mxu0 0
    %5728 = vmatpush2.bf16.msra.mxu0 0
    %5729 = vmatprep.subr.bf16.mxu0 0
    %5730 = vmatpush2.bf16.msra.mxu0 0
    %5731 = vmatprep.mubr.bf16.mxu0 0
    %5732 = vmatmul.mubr.bf16.gmra.mxu0 %v5590
    %v5733 = vpop.f32.mrf.mxu0
    %v5734 = vadd.f32 %v5612, %v5733
    %v5735 = vpop.f32.mrf.mxu0
    %v5736 = vadd.f32 %v5616, %v5735
    %v5737 = vpop.f32.mrf.mxu0
    %v5738 = vadd.f32 %v5612, %v5737
    %v5739 = vpop.f32.mrf.mxu0
    %v5740 = vadd.f32 %v5616, %v5739
    %5741 = vdwg.mxu0
    %v5742 = vmul.f32 %v5734, %v5734
    %v5743 = vmul.f32 %v5736, %v5736
    %v5744 = vmul.f32 %v5738, %v5738
    %v5745 = vmul.f32 %v5740, %v5740
    %v5746 = vmul.f32 %v5734, %v5742
    %v5747 = vmul.f32 %v5736, %v5743
    %v5748 = vmul.f32 %v5738, %v5744
    %v5749 = vmul.f32 %v5740, %v5745
    %v5750 = vmul.f32 %v5746, 0.044715
    %v5751 = vmul.f32 %v5747, 0.044715
    %v5752 = vmul.f32 %v5748, 0.044715
    %v5753 = vmul.f32 %v5749, 0.044715
    %v5754 = vadd.f32 %v5734, %v5750
    %v5755 = vadd.f32 %v5736, %v5751
    %v5756 = vadd.f32 %v5738, %v5752
    %v5757 = vadd.f32 %v5740, %v5753
    %v5758 = vmul.f32 %v5754, 0.7978846
    %v5759 = vmul.f32 %v5755, 0.7978846
    %v5760 = vmul.f32 %v5756, 0.7978846
    %v5761 = vmul.f32 %v5757, 0.7978846
    %v5762 = vtanh.pop %v5758
    %v5763 = vtanh.pop %v5759
    %v5764 = vtanh.pop %v5760
    %v5765 = vtanh.pop %v5761
    %v5766 = vadd.f32 %v5762, 1.0
    %v5767 = vadd.f32 %v5763, 1.0
    %v5768 = vadd.f32 %v5764, 1.0
    %v5769 = vadd.f32 %v5765, 1.0
    %v5770 = vmul.f32 %v5766, 0.5
    %v5771 = vmul.f32 %v5767, 0.5
    %v5772 = vmul.f32 %v5768, 0.5
    %v5773 = vmul.f32 %v5769, 0.5
    %v5774 = vmul.f32 %v5734, %v5770
    %v5775 = vmul.f32 %v5736, %v5771
    %v5776 = vmul.f32 %v5738, %v5772
    %v5777 = vmul.f32 %v5740, %v5773
    %v5778 = vpack.c.bf16 %v5776, %v5774
    %v5779 = vpack.c.bf16 %v5777, %v5775
    %v5780 = vld [vmem:[#allocation30] sm:$0xf]
    %v5781 = vld [vmem:[#allocation30 + $0x4] sm:$0xf]
    %v5782 = vld [vmem:[#allocation30 + $0x8] sm:$0xf]
    %v5783 = vld [vmem:[#allocation30 + $0xc] sm:$0xf]
    %v5784 = vld [vmem:[#allocation30 + $0x10] sm:$0xf]
    %v5785 = vld [vmem:[#allocation30 + $0x14] sm:$0xf]
    %v5786 = vld [vmem:[#allocation30 + $0x18] sm:$0xf]
    %v5787 = vld [vmem:[#allocation30 + $0x1c] sm:$0xf]
    %v5788 = vld [vmem:[#allocation30 + $0x20] sm:$0xf]
    %v5789 = vld [vmem:[#allocation30 + $0x24] sm:$0xf]
    %v5790 = vld [vmem:[#allocation30 + $0x28] sm:$0xf]
    %v5791 = vld [vmem:[#allocation30 + $0x2c] sm:$0xf]
    %v5792 = vld [vmem:[#allocation30 + $0x30] sm:$0xf]
    %v5793 = vld [vmem:[#allocation30 + $0x34] sm:$0xf]
    %v5794 = vld [vmem:[#allocation30 + $0x38] sm:$0xf]
    %v5795 = vld [vmem:[#allocation30 + $0x3c] sm:$0xf]
    %v5796 = vld [vmem:[#allocation30 + $0x40] sm:$0xf]
    %v5797 = vld [vmem:[#allocation30 + $0x44] sm:$0xf]
    %v5798 = vld [vmem:[#allocation30 + $0x48] sm:$0xf]
    %v5799 = vld [vmem:[#allocation30 + $0x4c] sm:$0xf]
    %v5800 = vld [vmem:[#allocation30 + $0x50] sm:$0xf]
    %v5801 = vld [vmem:[#allocation30 + $0x54] sm:$0xf]
    %v5802 = vld [vmem:[#allocation30 + $0x58] sm:$0xf]
    %v5803 = vld [vmem:[#allocation30 + $0x5c] sm:$0xf]
    %v5804 = vld [vmem:[#allocation30 + $0x60] sm:$0xf]
    %v5805 = vld [vmem:[#allocation30 + $0x64] sm:$0xf]
    %v5806 = vld [vmem:[#allocation30 + $0x68] sm:$0xf]
    %v5807 = vld [vmem:[#allocation30 + $0x6c] sm:$0xf]
    %v5808 = vld [vmem:[#allocation30 + $0x70] sm:$0xf]
    %v5809 = vld [vmem:[#allocation30 + $0x74] sm:$0xf]
    %v5810 = vld [vmem:[#allocation30 + $0x78] sm:$0xf]
    %v5811 = vld [vmem:[#allocation30 + $0x7c] sm:$0xf]
    %v5812 = vld [vmem:[#allocation31] sm:$0x1]
    %v5814 = vlaneseq
    %v5815 = vshrl.u32 %v5814, 7
    %v5816 = vsub.s32 0, %v5815
    %v5817 = vrot.slane %v5812, %v5816
    %v5851 = vunpack.c.l.b16 %v5780
    %v5852 = vunpack.c.l.b16 %v5781
    %v5853 = vunpack.c.l.b16 %v5782
    %v5854 = vunpack.c.l.b16 %v5783
    %v5855 = vunpack.c.l.b16 %v5784
    %v5856 = vunpack.c.l.b16 %v5785
    %v5857 = vunpack.c.l.b16 %v5786
    %v5858 = vunpack.c.l.b16 %v5787
    %v5859 = vunpack.c.l.b16 %v5788
    %v5860 = vunpack.c.l.b16 %v5789
    %v5861 = vunpack.c.l.b16 %v5790
    %v5862 = vunpack.c.l.b16 %v5791
    %v5863 = vunpack.c.l.b16 %v5792
    %v5864 = vunpack.c.l.b16 %v5793
    %v5865 = vunpack.c.l.b16 %v5794
    %v5866 = vunpack.c.l.b16 %v5795
    %v5867 = vunpack.c.l.b16 %v5796
    %v5868 = vunpack.c.l.b16 %v5797
    %v5869 = vunpack.c.l.b16 %v5798
    %v5870 = vunpack.c.l.b16 %v5799
    %v5871 = vunpack.c.l.b16 %v5800
    %v5872 = vunpack.c.l.b16 %v5801
    %v5873 = vunpack.c.l.b16 %v5802
    %v5874 = vunpack.c.l.b16 %v5803
    %v5875 = vunpack.c.l.b16 %v5804
    %v5876 = vunpack.c.l.b16 %v5805
    %v5877 = vunpack.c.l.b16 %v5806
    %v5878 = vunpack.c.l.b16 %v5807
    %v5879 = vunpack.c.l.b16 %v5808
    %v5880 = vunpack.c.l.b16 %v5809
    %v5881 = vunpack.c.l.b16 %v5810
    %v5882 = vunpack.c.l.b16 %v5811
    %v5883 = vpack.c.b16 %v5852, %v5851
    %v5884 = vpack.c.b16 %v5854, %v5853
    %v5885 = vpack.c.b16 %v5856, %v5855
    %v5886 = vpack.c.b16 %v5858, %v5857
    %v5887 = vpack.c.b16 %v5860, %v5859
    %v5888 = vpack.c.b16 %v5862, %v5861
    %v5889 = vpack.c.b16 %v5864, %v5863
    %v5890 = vpack.c.b16 %v5866, %v5865
    %v5891 = vpack.c.b16 %v5868, %v5867
    %v5892 = vpack.c.b16 %v5870, %v5869
    %v5893 = vpack.c.b16 %v5872, %v5871
    %v5894 = vpack.c.b16 %v5874, %v5873
    %v5895 = vpack.c.b16 %v5876, %v5875
    %v5896 = vpack.c.b16 %v5878, %v5877
    %v5897 = vpack.c.b16 %v5880, %v5879
    %v5898 = vpack.c.b16 %v5882, %v5881
    %5915 = vmatprep.subr.bf16.mxu0 0
    %5916 = vmatpush1.bf16.msra.mxu0 %v5890
    %5917 = vmatprep.subr.bf16.mxu0 0
    %5918 = vmatpush1.bf16.msra.mxu0 %v5889
    %5919 = vmatprep.subr.bf16.mxu0 0
    %5920 = vmatpush1.bf16.msra.mxu0 %v5888
    %5921 = vmatprep.subr.bf16.mxu0 0
    %5922 = vmatpush1.bf16.msra.mxu0 %v5887
    %5923 = vmatprep.subr.bf16.mxu0 0
    %5924 = vmatpush1.bf16.msra.mxu0 %v5886
    %5925 = vmatprep.subr.bf16.mxu0 0
    %5926 = vmatpush1.bf16.msra.mxu0 %v5885
    %5927 = vmatprep.subr.bf16.mxu0 0
    %5928 = vmatpush1.bf16.msra.mxu0 %v5884
    %5929 = vmatprep.subr.bf16.mxu0 0
    %5930 = vmatpush1.bf16.msra.mxu0 %v5883
    %5931 = vmatprep.subr.bf16.mxu0 0
    %5932 = vmatpush2.bf16.msra.mxu0 %v5898
    %5933 = vmatprep.subr.bf16.mxu0 0
    %5934 = vmatpush2.bf16.msra.mxu0 %v5897
    %5935 = vmatprep.subr.bf16.mxu0 0
    %5936 = vmatpush2.bf16.msra.mxu0 %v5896
    %5937 = vmatprep.subr.bf16.mxu0 0
    %5938 = vmatpush2.bf16.msra.mxu0 %v5895
    %5939 = vmatprep.subr.bf16.mxu0 0
    %5940 = vmatpush2.bf16.msra.mxu0 %v5894
    %5941 = vmatprep.subr.bf16.mxu0 0
    %5942 = vmatpush2.bf16.msra.mxu0 %v5893
    %5943 = vmatprep.subr.bf16.mxu0 0
    %5944 = vmatpush2.bf16.msra.mxu0 %v5892
    %5945 = vmatprep.subr.bf16.mxu0 0
    %5946 = vmatpush2.bf16.msra.mxu0 %v5891
    %5947 = vmatprep.mubr.bf16.mxu0 %v5779
    %5948 = vmatmul.mubr.bf16.gmra.mxu0 %v5778
    %v5949 = vpop.f32.mrf.mxu0
    %v5950 = vadd.f32 %v5817, %v5949
    %v5951 = vpop.f32.mrf.mxu0
    %v5952 = vpop.f32.mrf.mxu0
    %v5953 = vadd.f32 %v5817, %v5952
    %v5954 = vpop.f32.mrf.mxu0
    %5955 = vdwg.mxu0
    %v5956 = vadd.f32 %v5950, %v5588
    %v5957 = vadd.f32 %v5953, %v5589
    %5958 = vadd.xlane.f32.xlu0 %v5956
    %v5959 = vpop.xlane.xlu0 %5958
    %5960 = vadd.xlane.f32.xlu0 %v5957
    %v5961 = vpop.xlane.xlu0 %5960
    %v5962 = vmul.f32 %v5959, %v5553
    %v5963 = vmul.f32 %v5961, %v5553
    %v5964 = vsub.f32 %v5956, %v5962
    %v5965 = vsub.f32 %v5957, %v5963
    %v5966 = vmul.f32 %v5964, %v5964
    %v5967 = vmul.f32 %v5965, %v5965
    %5968 = vadd.xlane.f32.xlu0 %v5966
    %v5969 = vpop.xlane.xlu0 %5968
    %5970 = vadd.xlane.f32.xlu0 %v5967
    %v5971 = vpop.xlane.xlu0 %5970
    %v5972 = vmul.f32 %v5969, %v5553
    %v5973 = vmul.f32 %v5971, %v5553
    %v5974 = vadd.f32 %v5972, 1e-12
    %v5975 = vadd.f32 %v5973, 1e-12
    %v5976 = vrsqrt.pop %v5974
    %v5977 = vrsqrt.pop %v5975
    %v5978 = vmul.f32 %v5964, %v5976
    %v5979 = vmul.f32 %v5965, %v5977
    %v5980 = vld [vmem:[#allocation33] sm:$0x1]
    %v5982 = vlaneseq
    %v5983 = vshrl.u32 %v5982, 7
    %v5984 = vsub.s32 0, %v5983
    %v5985 = vrot.slane %v5980, %v5984
    %v5987 = vmul.f32 %v5978, %v5985
    %v5988 = vmul.f32 %v5979, %v5985
    %v5989 = vld [vmem:[#allocation34] sm:$0x1]
    %v5991 = vlaneseq
    %v5992 = vshrl.u32 %v5991, 7
    %v5993 = vsub.s32 0, %v5992
    %v5994 = vrot.slane %v5989, %v5993
    %v5996 = vadd.f32 %v5987, %v5994
    %v5997 = vadd.f32 %v5988, %v5994
    %v5998 = vpack.c.bf16 %v5997, %v5996
    %v5999 = vld [vmem:[#allocation36] sm:$0xf]
    %v6000 = vld [vmem:[#allocation36 + $0x4] sm:$0xf]
    %v6001 = vld [vmem:[#allocation36 + $0x8] sm:$0xf]
    %v6002 = vld [vmem:[#allocation36 + $0xc] sm:$0xf]
    %v6003 = vld [vmem:[#allocation36 + $0x10] sm:$0xf]
    %v6004 = vld [vmem:[#allocation36 + $0x14] sm:$0xf]
    %v6005 = vld [vmem:[#allocation36 + $0x18] sm:$0xf]
    %v6006 = vld [vmem:[#allocation36 + $0x1c] sm:$0xf]
    %v6007 = vld [vmem:[#allocation36 + $0x20] sm:$0xf]
    %v6008 = vld [vmem:[#allocation36 + $0x24] sm:$0xf]
    %v6009 = vld [vmem:[#allocation36 + $0x28] sm:$0xf]
    %v6010 = vld [vmem:[#allocation36 + $0x2c] sm:$0xf]
    %v6011 = vld [vmem:[#allocation36 + $0x30] sm:$0xf]
    %v6012 = vld [vmem:[#allocation36 + $0x34] sm:$0xf]
    %v6013 = vld [vmem:[#allocation36 + $0x38] sm:$0xf]
    %v6014 = vld [vmem:[#allocation36 + $0x3c] sm:$0xf]
    %v6015 = vld [vmem:[%s25] sm:$0x1]
    %v6017 = vlaneseq
    %v6018 = vshrl.u32 %v6017, 7
    %v6019 = vsub.s32 0, %v6018
    %v6020 = vrot.slane %v6015, %v6019
    %v6038 = vunpack.c.l.b16 %v5999
    %v6039 = vunpack.c.l.b16 %v6000
    %v6040 = vunpack.c.l.b16 %v6001
    %v6041 = vunpack.c.l.b16 %v6002
    %v6042 = vunpack.c.l.b16 %v6003
    %v6043 = vunpack.c.l.b16 %v6004
    %v6044 = vunpack.c.l.b16 %v6005
    %v6045 = vunpack.c.l.b16 %v6006
    %v6046 = vunpack.c.l.b16 %v6007
    %v6047 = vunpack.c.l.b16 %v6008
    %v6048 = vunpack.c.l.b16 %v6009
    %v6049 = vunpack.c.l.b16 %v6010
    %v6050 = vunpack.c.l.b16 %v6011
    %v6051 = vunpack.c.l.b16 %v6012
    %v6052 = vunpack.c.l.b16 %v6013
    %v6053 = vunpack.c.l.b16 %v6014
    %v6054 = vpack.c.b16 %v6039, %v6038
    %v6055 = vpack.c.b16 %v6041, %v6040
    %v6056 = vpack.c.b16 %v6043, %v6042
    %v6057 = vpack.c.b16 %v6045, %v6044
    %v6058 = vpack.c.b16 %v6047, %v6046
    %v6059 = vpack.c.b16 %v6049, %v6048
    %v6060 = vpack.c.b16 %v6051, %v6050
    %v6061 = vpack.c.b16 %v6053, %v6052
    %6070 = vmatprep.subr.bf16.mxu0 0
    %6071 = vmatpush1.bf16.msra.mxu0 %v6061
    %6072 = vmatprep.subr.bf16.mxu0 0
    %6073 = vmatpush1.bf16.msra.mxu0 %v6060
    %6074 = vmatprep.subr.bf16.mxu0 0
    %6075 = vmatpush1.bf16.msra.mxu0 %v6059
    %6076 = vmatprep.subr.bf16.mxu0 0
    %6077 = vmatpush1.bf16.msra.mxu0 %v6058
    %6078 = vmatprep.subr.bf16.mxu0 0
    %6079 = vmatpush1.bf16.msra.mxu0 %v6057
    %6080 = vmatprep.subr.bf16.mxu0 0
    %6081 = vmatpush1.bf16.msra.mxu0 %v6056
    %6082 = vmatprep.subr.bf16.mxu0 0
    %6083 = vmatpush1.bf16.msra.mxu0 %v6055
    %6084 = vmatprep.subr.bf16.mxu0 0
    %6085 = vmatpush1.bf16.msra.mxu0 %v6054
    %6086 = vmatprep.subr.bf16.mxu0 0
    %6087 = vmatpush2.bf16.msra.mxu0 0
    %6088 = vmatprep.subr.bf16.mxu0 0
    %6089 = vmatpush2.bf16.msra.mxu0 0
    %6090 = vmatprep.subr.bf16.mxu0 0
    %6091 = vmatpush2.bf16.msra.mxu0 0
    %6092 = vmatprep.subr.bf16.mxu0 0
    %6093 = vmatpush2.bf16.msra.mxu0 0
    %6094 = vmatprep.subr.bf16.mxu0 0
    %6095 = vmatpush2.bf16.msra.mxu0 0
    %6096 = vmatprep.subr.bf16.mxu0 0
    %6097 = vmatpush2.bf16.msra.mxu0 0
    %6098 = vmatprep.subr.bf16.mxu0 0
    %6099 = vmatpush2.bf16.msra.mxu0 0
    %6100 = vmatprep.subr.bf16.mxu0 0
    %6101 = vmatpush2.bf16.msra.mxu0 0
    %6102 = vmatprep.mubr.bf16.mxu0 0
    %6103 = vmatmul.mubr.bf16.gmra.mxu0 %v5998
    %v6104 = vpop.f32.mrf.mxu0
    %v6105 = vadd.f32 %v6020, %v6104
    %v6106 = vpop.f32.mrf.mxu0
    %v6107 = vpop.f32.mrf.mxu0
    %v6108 = vadd.f32 %v6020, %v6107
    %v6109 = vpop.f32.mrf.mxu0
    %6110 = vdwg.mxu0
    %6111 = vst [vmem:[%s26] sm:$0xff] %v6105
    %6112 = vst [vmem:[%s26 + $0x8] sm:$0xff] %v6108
    // Predicated region
    $region198: #{step_2_reverse0_forward.1} parent=1 // pred_check
      _
    $region199: #{step_2_reverse0_forward.1} parent=1 // pred_check_branch
      %6114 = sbr.rel (0) target = $region201
    $region200: #{step_2_reverse0_forward.1} parent=1 // pred_region
      _
    $region201: #{step_2_reverse0_forward.1} parent=1 // pred_fallthru
      _
    // Predicated region
    $region202: #{step_2_reverse0_forward.1} parent=1 // pred_check
      _
    $region203: #{step_2_reverse0_forward.1} parent=1 // pred_check_branch
      %6116 = sbr.rel (0) target = $region205
    $region204: #{step_2_reverse0_forward.1} parent=1 // pred_region
      _
    $region205: #{step_2_reverse0_forward.1} parent=1 // pred_fallthru
      _
    %6117 = vsyncpa [#allocation3], 1
    %6118 = vsyncpa [#allocation5], 1
    %6119 = vsyncpa [#allocation8], 1
    %6120 = vsyncpa [#allocation11], 1
    %6121 = vsyncpa [#allocation14], 1
    %6122 = vsyncpa [#allocation17], 1
    %6123 = vsyncpa [#allocation20], 1
    %6124 = vsyncpa [#allocation23], 1
    %6125 = vsyncpa [#allocation26], 1
    %6126 = vsyncpa [#allocation29], 1
    %6127 = vsyncpa [#allocation32], 1
    %6128 = vsyncpa [#allocation35], 1

</llo_original>
